<compile_context>
chip_gen: v7x
topology: tpu7x:2x2x1
jax: 0.10.0
libtpu: 0.0.40
codegen_flags: <defaults>
</compile_context>

<pallas_src>
import functools
import numpy as np
import jax
import jax.numpy as jnp
from jax.experimental import pallas as pl
from jax.experimental.pallas import tpu as pltpu


# ----------------------------------------------------------------------------
# Fused Pallas GEMM kernel: out = epilogue(A @ B (+ bias)), bf16 in, f32 acc.
# ----------------------------------------------------------------------------
def _gemm_kernel(*refs, has_bias, relu, modulus):
    if has_bias:
        a_ref, b_ref, bias_ref, o_ref = refs
    else:
        a_ref, b_ref, o_ref = refs
    acc = jnp.dot(a_ref[...], b_ref[...], preferred_element_type=jnp.float32)
    if has_bias:
        acc = acc + bias_ref[...]
    if modulus:
        # B columns are laid out [ all-real | all-imag ]; take |re + i*im| in f32.
        half = acc.shape[-1] // 2
        re = acc[:, :half]
        im = acc[:, half:]
        acc = jnp.sqrt(re * re + im * im + 1e-12)
    if relu:
        acc = jnp.maximum(acc, 0.0)
    o_ref[...] = acc


_TM = 512            # M tile when tiling kicks in (bf16 operands)
_TILE_ABOVE = 1024   # below this M, use a single full-array block


def pallas_gemm(a, b, bias=None, relu=False, modulus=False):
    """(M,K) @ (K,N) + bias with fused ReLU / complex-modulus epilogue."""
    M, K = a.shape
    K2, N = b.shape
    assert K == K2
    n_out = N // 2 if modulus else N

    a = a.astype(jnp.bfloat16)
    b = b.astype(jnp.bfloat16)

    if M <= _TILE_ABOVE:
        tm, mp = M, M                      # single block == full array: no padding
    else:
        tm = _TM
        mp = ((M + tm - 1) // tm) * tm
        if mp != M:                        # pad M rows only, only when tiling
            a = jnp.pad(a, ((0, mp - M), (0, 0)))
    grid = (mp // tm,)

    in_specs = [pl.BlockSpec((tm, K), lambda i: (i, 0)),
                pl.BlockSpec((K, N), lambda i: (0, 0))]
    operands = [a, b]
    has_bias = bias is not None
    if has_bias:
        in_specs.append(pl.BlockSpec((1, N), lambda i: (0, 0)))
        operands.append(bias.astype(jnp.float32).reshape(1, N))

    out = pl.pallas_call(
        functools.partial(_gemm_kernel, has_bias=has_bias, relu=relu,
                          modulus=modulus),
        out_shape=jax.ShapeDtypeStruct((mp, n_out), jnp.float32),
        grid=grid,
        in_specs=in_specs,
        out_specs=pl.BlockSpec((tm, n_out), lambda i: (i, 0)),
        compiler_params=pltpu.CompilerParams(
            dimension_semantics=("parallel",)),
    )(*operands)
    return out[:M] if mp != M else out


# ----------------------------------------------------------------------------
# Row-GEMM convolution helpers (Cin == 1 convs: first/second layer + wavelets).
#   A[(n,y), dy*Wp + p]        = x_pad[n, stride*y + dy, p]
#   B[dy*Wp + p, x*Cout + c]   = w[dy, p - stride*x, c]   (banded, built once)
# so A @ B is exactly the strided 2-D convolution, with lane-dense output cols.
# ----------------------------------------------------------------------------
def _row_patches(xp, kh, ho, stride):
    n, _, wp = xp.shape
    slabs = [xp[:, dy: dy + stride * (ho - 1) + 1: stride, :] for dy in range(kh)]
    a = jnp.concatenate(slabs, axis=-1)                 # (N, Ho, kh*Wp)
    return a.reshape(n * ho, kh * wp)


def _row_weight(w, stride, wp, wo):
    kh, kw, cout = w.shape
    sel = np.zeros((kw, wp, wo), np.float32)
    for dx in range(kw):
        for x in range(wo):
            sel[dx, stride * x + dx, x] = 1.0
    wm = jnp.einsum('dpx,kdc->kpxc', jnp.asarray(sel), w.astype(jnp.float32))
    return wm.reshape(kh * wp, wo * cout)


def conv1c(x_imgs, w, b, stride, padding, relu):
    """Single-input-channel conv.  x_imgs (N,H,W), w (KH,KW,Cout) -> (N,Ho,Wo,Cout)."""
    nimg, h, wdt = x_imgs.shape
    kh, kw, cout = w.shape
    xp = jnp.pad(x_imgs, ((0, 0), (padding, padding), (padding, padding)))
    hp, wp = h + 2 * padding, wdt + 2 * padding
    ho = (hp - kh) // stride + 1
    wo = (wp - kw) // stride + 1
    a = _row_patches(xp, kh, ho, stride)
    wm = _row_weight(w, stride, wp, wo)
    bias_col = None if b is None else jnp.tile(b, wo)   # column = x*Cout + c
    out = pallas_gemm(a, wm, bias_col, relu=relu)
    return out.reshape(nimg, ho, wo, cout)


def wavelet_modulus(x_imgs, re_bank, im_bank, padding):
    """|x * (re + i*im)| for a packed frozen filter bank; modulus fused in-kernel."""
    nimg, h, wdt = x_imgs.shape
    k, _, f = re_bank.shape
    xp = jnp.pad(x_imgs, ((0, 0), (padding, padding), (padding, padding)))
    hp, wp = h + 2 * padding, wdt + 2 * padding
    ho, wo = h, wdt                                     # 'same' conv (odd kernel)
    a = _row_patches(xp, k, ho, 1)
    wm = jnp.concatenate([_row_weight(jnp.asarray(re_bank), 1, wp, wo),
                          _row_weight(jnp.asarray(im_bank), 1, wp, wo)], axis=1)
    out = pallas_gemm(a, wm, None, relu=False, modulus=True)    # (N*Ho, Wo*F)
    return out.reshape(nimg, ho, wo, f)


def conv2d_nhwc(x, w, b, padding, relu):
    """stride-1 'same' conv, Cin > 1 (the `features` 3x3 convs): im2col + GEMM."""
    # TODO(synk): the three features convs could be fused into one Pallas kernel
    # with all weights VMEM-resident; they are weight-DMA bound at these tiny M
    # so the fusion is left out for robustness.
    n, h, wdt, cin = x.shape
    kh, kw, _, cout = w.shape
    xp = jnp.pad(x, ((0, 0), (padding, padding), (padding, padding), (0, 0)))
    cols = [xp[:, i:i + h, j:j + wdt, :] for i in range(kh) for j in range(kw)]
    a = jnp.concatenate(cols, axis=-1).reshape(n * h * wdt, kh * kw * cin)
    out = pallas_gemm(a, w.reshape(kh * kw * cin, cout), b, relu=relu)
    return out.reshape(n, h, wdt, cout)


def maxpool2x2_imgs(x):      # (N, H, W)
    n, h, w = x.shape
    return x.reshape(n, h // 2, 2, w // 2, 2).max(axis=(2, 4))


def maxpool2x2_nhwc(x):      # (N, H, W, C)
    n, h, w, c = x.shape
    return x.reshape(n, h // 2, 2, w // 2, 2, c).max(axis=(2, 4))


# ----------------------------------------------------------------------------
# Frozen scattering branch (packed Gabor proxy of pyscatwave's Scattering).
# ----------------------------------------------------------------------------
def _gabor_2d(size, sigma, theta, xi):
    half = size // 2
    y, x = np.mgrid[-half:half + 1, -half:half + 1].astype(np.float64)
    rx = x * np.cos(theta) + y * np.sin(theta)
    env = np.exp(-(x ** 2 + y ** 2) / (2.0 * sigma ** 2))
    re = env * np.cos(xi * rx)
    im = env * np.sin(xi * rx)
    re = re - re.mean()
    norm = env.sum()
    return (re / norm).astype(np.float32), (im / norm).astype(np.float32)


def make_packed_bank(J, L):
    """Gabor bank packed for single-GEMM evaluation (re|im column halves).
    TODO(synk): exact Kymatio/pyscatwave Morlet filters + subsampling schedule are
    not reproduced; this is a shape/semantics-faithful frozen proxy."""
    filt, kmax = {}, 0
    for j in range(J):
        sigma = 0.8 * (2 ** j)
        xi = 3.0 * np.pi / 4.0 / (2 ** j)
        size = int(2 * np.ceil(3 * sigma) + 1)
        kmax = max(kmax, size)
        for l in range(L):
            filt[(j, l)] = _gabor_2d(size, sigma, np.pi * l / L, xi)

    def pad_to(f):   # zero-padding a filter to kmax keeps the conv output identical
        p = (kmax - f.shape[0]) // 2
        q = kmax - f.shape[0] - p
        return np.pad(f, ((p, q), (p, q)))

    re1 = np.stack([pad_to(filt[(j, l)][0]) for j in range(J) for l in range(L)], -1)
    im1 = np.stack([pad_to(filt[(j, l)][1]) for j in range(J) for l in range(L)], -1)
    order2 = []
    for j1 in range(J):
        for j2 in range(j1 + 1, J):
            re2 = np.stack([pad_to(filt[(j2, l)][0]) for l in range(L)], -1)
            im2 = np.stack([pad_to(filt[(j2, l)][1]) for l in range(L)], -1)
            order2.append((j1, re2.astype(np.float32), im2.astype(np.float32)))
    return dict(J=J, L=L, kmax=kmax,
                re1=re1.astype(np.float32), im1=im1.astype(np.float32),
                order2=order2)


def scattering_proxy(x_imgs, bank, pool):
    """x_imgs (Nimg,N,N) -> (Nimg, N/pool, N/pool, nf); coefficient order:
    order-0, order-1 (j,l), order-2 (j1,l1,j2>j1,l2)."""
    nimg, n_in, _ = x_imgs.shape
    J, L, pad = bank['J'], bank['L'], bank['kmax'] // 2
    n = n_in // pool

    def avg(z):                                   # (M, N, N, C) -> (M, n, n, C)
        m, _, _, c = z.shape
        return z.reshape(m, n, pool, n, pool, c).mean(axis=(2, 4))

    coeffs = [avg(x_imgs[..., None])]                                    # order 0
    u1 = wavelet_modulus(x_imgs, bank['re1'], bank['im1'], pad)          # (Nimg,N,N,J*L)
    coeffs.append(avg(u1))                                               # order 1
    for j1, re2, im2 in bank['order2']:                                  # order 2
        u = u1[..., j1 * L:(j1 + 1) * L]
        u = u.transpose(0, 3, 1, 2).reshape(nimg * L, n_in, n_in)        # fold l1 into M
        u2 = wavelet_modulus(u, re2, im2, pad)                           # (Nimg*L,N,N,L)
        s2 = avg(u2).reshape(nimg, L, n, n, L).transpose(0, 2, 3, 1, 4)
        coeffs.append(s2.reshape(nimg, n, n, L * L))
    return jnp.concatenate(coeffs, axis=-1)


# ----------------------------------------------------------------------------
# Module constants (mirroring __init__ arithmetic) and synthetic parameters.
# ----------------------------------------------------------------------------
J1, N1, L1 = 2, 32, 2
J2, N2, L2 = 1, 8, 2
NFSCAT1 = 1 + L1 * J1 + L1 * L1 * J1 * (J1 - 1) // 2        # 9
NFSCAT2 = 1 + L2 * J2 + L2 * L2 * J2 * (J2 - 1) // 2        # 3
NSPACE1, NSPACE2 = N1 // 2 ** J1, N2 // 2 ** J2             # 8, 4
N_FLAYER1, N_FLAYER2 = 64, 192
C_FIRST = (N_FLAYER1 - NFSCAT1 * 3) // 3                    # 12
C_SECOND = (N_FLAYER2 - NFSCAT2 * NFSCAT1 * 3) // (N_FLAYER1 - NFSCAT1 * 3)  # 3
C_FEAT_IN = N_FLAYER2 - 3                                   # 189
NUM_CLASSES = 10

BANK1 = make_packed_bank(J1, L1)
BANK2 = make_packed_bank(J2, L2)


def init_params(key):
    ks = jax.random.split(key, 12)

    def wgt(k, shape, fan_in):
        return jax.random.normal(k, shape, jnp.float32) / np.sqrt(fan_in)

    def bias(k, c):
        return jax.random.normal(k, (c,), jnp.float32) * 0.01

    return {
        "w1": wgt(ks[0], (11, 11, C_FIRST), 11 * 11), "b1": bias(ks[1], C_FIRST),
        "w2": wgt(ks[2], (5, 5, C_SECOND), 5 * 5),    "b2": bias(ks[3], C_SECOND),
        "wf1": wgt(ks[4], (3, 3, C_FEAT_IN, 384), 9 * C_FEAT_IN), "bf1": bias(ks[5], 384),
        "wf2": wgt(ks[6], (3, 3, 384, 256), 9 * 384), "bf2": bias(ks[7], 256),
        "wf3": wgt(ks[8], (3, 3, 256, 256), 9 * 256), "bf3": bias(ks[9], 256),
        "wc": wgt(ks[10], (256, NUM_CLASSES), 256),   "bc": bias(ks[11], NUM_CLASSES),
    }


# ----------------------------------------------------------------------------
# Forward pass: NCHW (B,3,32,32) float32 in, (B,10) logits out.
# ----------------------------------------------------------------------------
@jax.jit
def forward(params, x):
    B = x.shape[0]
    x = x.astype(jnp.float32)

    # --- learned branch ------------------------------------------------------
    xf = x.reshape(B * 3, 32, 32)                                  # per colour channel
    y1 = conv1c(xf, params["w1"], params["b1"], stride=4, padding=5, relu=True)
    # (B*3, 8, 8, 12); second_layer is shared across all 36 resulting channels
    x1i = y1.transpose(0, 3, 1, 2).reshape(B * 3 * C_FIRST, 8, 8)
    x1i = maxpool2x2_imgs(x1i)                                     # (B*36, 4, 4)
    y2 = conv1c(x1i, params["w2"], params["b2"], stride=1, padding=2, relu=True)
    # channels-last (B,4,4,108); channel order = (colour, first-out, second-out)
    x1 = y2.reshape(B, 3 * C_FIRST, 4, 4, C_SECOND)
    x1 = x1.transpose(0, 2, 3, 1, 4).reshape(B, 4, 4, 3 * C_FIRST * C_SECOND)

    # --- frozen scattering branch ---------------------------------------------
    s1 = scattering_proxy(xf, BANK1, 2 ** J1)                      # (B*3, 8, 8, 9)
    s1_imgs = s1.transpose(0, 3, 1, 2).reshape(B * 3 * NFSCAT1, 8, 8)
    s2 = scattering_proxy(s1_imgs, BANK2, 2 ** J2)                 # (B*27, 4, 4, 3)
    x2 = s2.reshape(B, 3 * NFSCAT1, 4, 4, NFSCAT2)
    x2 = x2.transpose(0, 2, 3, 1, 4).reshape(B, 4, 4, 3 * NFSCAT1 * NFSCAT2)

    # --- features + classifier -------------------------------------------------
    h = jnp.concatenate([x1, x2], axis=-1)                         # (B, 4, 4, 189)
    h = maxpool2x2_nhwc(h)                                         # (B, 2, 2, 189)
    h = conv2d_nhwc(h, params["wf1"], params["bf1"], padding=1, relu=True)
    h = conv2d_nhwc(h, params["wf2"], params["bf2"], padding=1, relu=True)
    h = conv2d_nhwc(h, params["wf3"], params["bf3"], padding=1, relu=True)
    h = maxpool2x2_nhwc(h)                                         # (B, 1, 1, 256)
    feat = h.reshape(B, 256)
    return pallas_gemm(feat, params["wc"], params["bc"], relu=False)   # (B, 10)


if __name__ == "__main__":
    key = jax.random.PRNGKey(0)
    pkey, xkey = jax.random.split(key)
    params = init_params(pkey)
    x = jax.random.normal(xkey, (2, 3, 32, 32), jnp.float32)       # CIFAR-like NCHW
    logits = forward(params, x)
    jax.block_until_ready(logits)
    assert logits.shape == (2, NUM_CLASSES)
    assert bool(jnp.all(jnp.isfinite(logits)))
    print("KERNEL_OK")
</pallas_src>

<mosaic_0001>
module attributes {stable_mosaic.version = 11 : i64} {
  func.func @_gemm_kernel(%arg0: i32, %arg1: memref<192x462xbf16, #tpu.memory_space<vmem>>, %arg2: memref<462x256xbf16, #tpu.memory_space<vmem>>, %arg3: memref<192x128xf32, #tpu.memory_space<vmem>>) attributes {dimension_semantics = [#tpu.dimension_semantics<parallel>], iteration_bounds = array<i64: 1>, scalar_prefetch = 0 : i64, scratch_operands = 0 : i64, tpu.core_type = #tpu.core_type<tc>, window_params = [{transform_indices = @transform_0, window_bounds = array<i64: 192, 462>}, {pipeline_mode = #tpu.pipeline_mode<synchronous>, transform_indices = @transform_1, window_bounds = array<i64: 462, 256>}, {transform_indices = @transform_2, window_bounds = array<i64: 192, 128>}]} {
    %c0 = arith.constant 0 : index
    %c0_0 = arith.constant 0 : index
    %0 = vector.load %arg1[%c0, %c0_0] : memref<192x462xbf16, #tpu.memory_space<vmem>>, vector<192x462xbf16>
    %c0_1 = arith.constant 0 : index
    %c0_2 = arith.constant 0 : index
    %1 = vector.load %arg2[%c0_1, %c0_2] : memref<462x256xbf16, #tpu.memory_space<vmem>>, vector<462x256xbf16>
    %cst = arith.constant dense<0.000000e+00> : vector<192x256xf32>
    %2 = tpu.matmul %0, %1, %cst {dimension_numbers = #tpu.dot_dimension_numbers<[1], [0], [0], [1], [0, 0, 1, 1], [], []>} : vector<192x462xbf16>, vector<462x256xbf16>, vector<192x256xf32> -> vector<192x256xf32>
    %3 = vector.extract_strided_slice %2 {offsets = [0, 0], sizes = [192, 128], strides = [1, 1]} : vector<192x256xf32> to vector<192x128xf32>
    %4 = vector.extract_strided_slice %2 {offsets = [0, 128], sizes = [192, 128], strides = [1, 1]} : vector<192x256xf32> to vector<192x128xf32>
    %5 = arith.mulf %3, %3 : vector<192x128xf32>
    %6 = arith.mulf %4, %4 : vector<192x128xf32>
    %7 = arith.addf %5, %6 : vector<192x128xf32>
    %cst_3 = arith.constant 9.99999996E-13 : f32
    %8 = vector.broadcast %cst_3 : f32 to vector<192x128xf32>
    %9 = arith.addf %7, %8 : vector<192x128xf32>
    %10 = math.sqrt %9 : vector<192x128xf32>
    %c0_4 = arith.constant 0 : index
    %c0_5 = arith.constant 0 : index
    %11 = vector.load %arg3[%c0_4, %c0_5] : memref<192x128xf32, #tpu.memory_space<vmem>>, vector<192x128xf32>
    tpu.vector_store %arg3[%c0_4, %c0_5], %10 {strides = array<i32>} : memref<192x128xf32, #tpu.memory_space<vmem>>, vector<192x128xf32>,
    return
  }
  func.func @transform_0(%arg0: i32) -> (i32, i32) {
    %c0_i32 = arith.constant 0 : i32
    %c0_i32_0 = arith.constant 0 : i32
    return %arg0, %c0_i32 : i32, i32
  }
  func.func @transform_1(%arg0: i32) -> (i32, i32) {
    %c0_i32 = arith.constant 0 : i32
    %c0_i32_0 = arith.constant 0 : i32
    %c0_i32_1 = arith.constant 0 : i32
    return %c0_i32, %c0_i32_0 : i32, i32
  }
  func.func @transform_2(%arg0: i32) -> (i32, i32) {
    %c0_i32 = arith.constant 0 : i32
    %c0_i32_0 = arith.constant 0 : i32
    return %arg0, %c0_i32 : i32, i32
  }
}

module attributes {stable_mosaic.version = 11 : i64} {
  func.func @_gemm_kernel(%arg0: i32, %arg1: memref<384x462xbf16, #tpu.memory_space<vmem>>, %arg2: memref<462x128xbf16, #tpu.memory_space<vmem>>, %arg3: memref<384x64xf32, #tpu.memory_space<vmem>>) attributes {dimension_semantics = [#tpu.dimension_semantics<parallel>], iteration_bounds = array<i64: 1>, scalar_prefetch = 0 : i64, scratch_operands = 0 : i64, tpu.core_type = #tpu.core_type<tc>, window_params = [{transform_indices = @transform_0, window_bounds = array<i64: 384, 462>}, {pipeline_mode = #tpu.pipeline_mode<synchronous>, transform_indices = @transform_1, window_bounds = array<i64: 462, 128>}, {transform_indices = @transform_2, window_bounds = array<i64: 384, 64>}]} {
    %c0 = arith.constant 0 : index
    %c0_0 = arith.constant 0 : index
    %0 = vector.load %arg1[%c0, %c0_0] : memref<384x462xbf16, #tpu.memory_space<vmem>>, vector<384x462xbf16>
    %c0_1 = arith.constant 0 : index
    %c0_2 = arith.constant 0 : index
    %1 = vector.load %arg2[%c0_1, %c0_2] : memref<462x128xbf16, #tpu.memory_space<vmem>>, vector<462x128xbf16>
    %cst = arith.constant dense<0.000000e+00> : vector<384x128xf32>
    %2 = tpu.matmul %0, %1, %cst {dimension_numbers = #tpu.dot_dimension_numbers<[1], [0], [0], [1], [0, 0, 1, 1], [], []>} : vector<384x462xbf16>, vector<462x128xbf16>, vector<384x128xf32> -> vector<384x128xf32>
    %3 = vector.extract_strided_slice %2 {offsets = [0, 0], sizes = [384, 64], strides = [1, 1]} : vector<384x128xf32> to vector<384x64xf32>
    %4 = vector.extract_strided_slice %2 {offsets = [0, 64], sizes = [384, 64], strides = [1, 1]} : vector<384x128xf32> to vector<384x64xf32>
    %5 = arith.mulf %3, %3 : vector<384x64xf32>
    %6 = arith.mulf %4, %4 : vector<384x64xf32>
    %7 = arith.addf %5, %6 : vector<384x64xf32>
    %cst_3 = arith.constant 9.99999996E-13 : f32
    %8 = vector.broadcast %cst_3 : f32 to vector<384x64xf32>
    %9 = arith.addf %7, %8 : vector<384x64xf32>
    %10 = math.sqrt %9 : vector<384x64xf32>
    %c0_4 = arith.constant 0 : index
    %c0_5 = arith.constant 0 : index
    %11 = vector.load %arg3[%c0_4, %c0_5] : memref<384x64xf32, #tpu.memory_space<vmem>>, vector<384x64xf32>
    tpu.vector_store %arg3[%c0_4, %c0_5], %10 {strides = array<i32>} : memref<384x64xf32, #tpu.memory_space<vmem>>, vector<384x64xf32>,
    return
  }
  func.func @transform_0(%arg0: i32) -> (i32, i32) {
    %c0_i32 = arith.constant 0 : i32
    %c0_i32_0 = arith.constant 0 : i32
    return %arg0, %c0_i32 : i32, i32
  }
  func.func @transform_1(%arg0: i32) -> (i32, i32) {
    %c0_i32 = arith.constant 0 : i32
    %c0_i32_0 = arith.constant 0 : i32
    %c0_i32_1 = arith.constant 0 : i32
    return %c0_i32, %c0_i32_0 : i32, i32
  }
  func.func @transform_2(%arg0: i32) -> (i32, i32) {
    %c0_i32 = arith.constant 0 : i32
    %c0_i32_0 = arith.constant 0 : i32
    return %arg0, %c0_i32 : i32, i32
  }
}

module attributes {stable_mosaic.version = 11 : i64} {
  func.func @_gemm_kernel(%arg0: i32, %arg1: memref<432x98xbf16, #tpu.memory_space<vmem>>, %arg2: memref<98x32xbf16, #tpu.memory_space<vmem>>, %arg3: memref<432x16xf32, #tpu.memory_space<vmem>>) attributes {dimension_semantics = [#tpu.dimension_semantics<parallel>], iteration_bounds = array<i64: 1>, scalar_prefetch = 0 : i64, scratch_operands = 0 : i64, tpu.core_type = #tpu.core_type<tc>, window_params = [{transform_indices = @transform_0, window_bounds = array<i64: 432, 98>}, {pipeline_mode = #tpu.pipeline_mode<synchronous>, transform_indices = @transform_1, window_bounds = array<i64: 98, 32>}, {transform_indices = @transform_2, window_bounds = array<i64: 432, 16>}]} {
    %c0 = arith.constant 0 : index
    %c0_0 = arith.constant 0 : index
    %0 = vector.load %arg1[%c0, %c0_0] : memref<432x98xbf16, #tpu.memory_space<vmem>>, vector<432x98xbf16>
    %c0_1 = arith.constant 0 : index
    %c0_2 = arith.constant 0 : index
    %1 = vector.load %arg2[%c0_1, %c0_2] : memref<98x32xbf16, #tpu.memory_space<vmem>>, vector<98x32xbf16>
    %cst = arith.constant dense<0.000000e+00> : vector<432x32xf32>
    %2 = tpu.matmul %0, %1, %cst {dimension_numbers = #tpu.dot_dimension_numbers<[1], [0], [0], [1], [0, 0, 1, 1], [], []>} : vector<432x98xbf16>, vector<98x32xbf16>, vector<432x32xf32> -> vector<432x32xf32>
    %3 = vector.extract_strided_slice %2 {offsets = [0, 0], sizes = [432, 16], strides = [1, 1]} : vector<432x32xf32> to vector<432x16xf32>
    %4 = vector.extract_strided_slice %2 {offsets = [0, 16], sizes = [432, 16], strides = [1, 1]} : vector<432x32xf32> to vector<432x16xf32>
    %5 = arith.mulf %3, %3 : vector<432x16xf32>
    %6 = arith.mulf %4, %4 : vector<432x16xf32>
    %7 = arith.addf %5, %6 : vector<432x16xf32>
    %cst_3 = arith.constant 9.99999996E-13 : f32
    %8 = vector.broadcast %cst_3 : f32 to vector<432x16xf32>
    %9 = arith.addf %7, %8 : vector<432x16xf32>
    %10 = math.sqrt %9 : vector<432x16xf32>
    %c0_4 = arith.constant 0 : index
    %c0_5 = arith.constant 0 : index
    %11 = vector.load %arg3[%c0_4, %c0_5] : memref<432x16xf32, #tpu.memory_space<vmem>>, vector<432x16xf32>
    tpu.vector_store %arg3[%c0_4, %c0_5], %10 {strides = array<i32>} : memref<432x16xf32, #tpu.memory_space<vmem>>, vector<432x16xf32>,
    return
  }
  func.func @transform_0(%arg0: i32) -> (i32, i32) {
    %c0_i32 = arith.constant 0 : i32
    %c0_i32_0 = arith.constant 0 : i32
    return %arg0, %c0_i32 : i32, i32
  }
  func.func @transform_1(%arg0: i32) -> (i32, i32) {
    %c0_i32 = arith.constant 0 : i32
    %c0_i32_0 = arith.constant 0 : i32
    %c0_i32_1 = arith.constant 0 : i32
    return %c0_i32, %c0_i32_0 : i32, i32
  }
  func.func @transform_2(%arg0: i32) -> (i32, i32) {
    %c0_i32 = arith.constant 0 : i32
    %c0_i32_0 = arith.constant 0 : i32
    return %arg0, %c0_i32 : i32, i32
  }
}

module attributes {stable_mosaic.version = 11 : i64} {
  func.func @_gemm_kernel(%arg0: i32, %arg1: memref<48x462xbf16, #tpu.memory_space<vmem>>, %arg2: memref<462x96xbf16, #tpu.memory_space<vmem>>, %arg3: memref<1x96xf32, #tpu.memory_space<vmem>>, %arg4: memref<48x96xf32, #tpu.memory_space<vmem>>) attributes {dimension_semantics = [#tpu.dimension_semantics<parallel>], iteration_bounds = array<i64: 1>, scalar_prefetch = 0 : i64, scratch_operands = 0 : i64, tpu.core_type = #tpu.core_type<tc>, window_params = [{transform_indices = @transform_0, window_bounds = array<i64: 48, 462>}, {pipeline_mode = #tpu.pipeline_mode<synchronous>, transform_indices = @transform_1, window_bounds = array<i64: 462, 96>}, {pipeline_mode = #tpu.pipeline_mode<synchronous>, transform_indices = @transform_2, window_bounds = array<i64: 1, 96>}, {transform_indices = @transform_3, window_bounds = array<i64: 48, 96>}]} {
    %c0 = arith.constant 0 : index
    %c0_0 = arith.constant 0 : index
    %0 = vector.load %arg1[%c0, %c0_0] : memref<48x462xbf16, #tpu.memory_space<vmem>>, vector<48x462xbf16>
    %c0_1 = arith.constant 0 : index
    %c0_2 = arith.constant 0 : index
    %1 = vector.load %arg2[%c0_1, %c0_2] : memref<462x96xbf16, #tpu.memory_space<vmem>>, vector<462x96xbf16>
    %cst = arith.constant dense<0.000000e+00> : vector<48x96xf32>
    %2 = tpu.matmul %0, %1, %cst {dimension_numbers = #tpu.dot_dimension_numbers<[1], [0], [0], [1], [0, 0, 1, 1], [], []>} : vector<48x462xbf16>, vector<462x96xbf16>, vector<48x96xf32> -> vector<48x96xf32>
    %c0_3 = arith.constant 0 : index
    %c0_4 = arith.constant 0 : index
    %3 = vector.load %arg3[%c0_3, %c0_4] : memref<1x96xf32, #tpu.memory_space<vmem>>, vector<1x96xf32>
    %4 = vector.broadcast %3 : vector<1x96xf32> to vector<48x96xf32>
    %5 = arith.addf %2, %4 : vector<48x96xf32>
    %cst_5 = arith.constant 0.000000e+00 : f32
    %6 = vector.broadcast %cst_5 : f32 to vector<48x96xf32>
    %7 = arith.maximumf %5, %6 : vector<48x96xf32>
    %c0_6 = arith.constant 0 : index
    %c0_7 = arith.constant 0 : index
    %8 = vector.load %arg4[%c0_6, %c0_7] : memref<48x96xf32, #tpu.memory_space<vmem>>, vector<48x96xf32>
    tpu.vector_store %arg4[%c0_6, %c0_7], %7 {strides = array<i32>} : memref<48x96xf32, #tpu.memory_space<vmem>>, vector<48x96xf32>,
    return
  }
  func.func @transform_0(%arg0: i32) -> (i32, i32) {
    %c0_i32 = arith.constant 0 : i32
    %c0_i32_0 = arith.constant 0 : i32
    return %arg0, %c0_i32 : i32, i32
  }
  func.func @transform_1(%arg0: i32) -> (i32, i32) {
    %c0_i32 = arith.constant 0 : i32
    %c0_i32_0 = arith.constant 0 : i32
    %c0_i32_1 = arith.constant 0 : i32
    return %c0_i32, %c0_i32_0 : i32, i32
  }
  func.func @transform_2(%arg0: i32) -> (i32, i32) {
    %c0_i32 = arith.constant 0 : i32
    %c0_i32_0 = arith.constant 0 : i32
    %c0_i32_1 = arith.constant 0 : i32
    return %c0_i32, %c0_i32_0 : i32, i32
  }
  func.func @transform_3(%arg0: i32) -> (i32, i32) {
    %c0_i32 = arith.constant 0 : i32
    %c0_i32_0 = arith.constant 0 : i32
    return %arg0, %c0_i32 : i32, i32
  }
}

module attributes {stable_mosaic.version = 11 : i64} {
  func.func @_gemm_kernel(%arg0: i32, %arg1: memref<288x40xbf16, #tpu.memory_space<vmem>>, %arg2: memref<40x12xbf16, #tpu.memory_space<vmem>>, %arg3: memref<1x12xf32, #tpu.memory_space<vmem>>, %arg4: memref<288x12xf32, #tpu.memory_space<vmem>>) attributes {dimension_semantics = [#tpu.dimension_semantics<parallel>], iteration_bounds = array<i64: 1>, scalar_prefetch = 0 : i64, scratch_operands = 0 : i64, tpu.core_type = #tpu.core_type<tc>, window_params = [{transform_indices = @transform_0, window_bounds = array<i64: 288, 40>}, {pipeline_mode = #tpu.pipeline_mode<synchronous>, transform_indices = @transform_1, window_bounds = array<i64: 40, 12>}, {pipeline_mode = #tpu.pipeline_mode<synchronous>, transform_indices = @transform_2, window_bounds = array<i64: 1, 12>}, {transform_indices = @transform_3, window_bounds = array<i64: 288, 12>}]} {
    %c0 = arith.constant 0 : index
    %c0_0 = arith.constant 0 : index
    %0 = vector.load %arg1[%c0, %c0_0] : memref<288x40xbf16, #tpu.memory_space<vmem>>, vector<288x40xbf16>
    %c0_1 = arith.constant 0 : index
    %c0_2 = arith.constant 0 : index
    %1 = vector.load %arg2[%c0_1, %c0_2] : memref<40x12xbf16, #tpu.memory_space<vmem>>, vector<40x12xbf16>
    %cst = arith.constant dense<0.000000e+00> : vector<288x12xf32>
    %2 = tpu.matmul %0, %1, %cst {dimension_numbers = #tpu.dot_dimension_numbers<[1], [0], [0], [1], [0, 0, 1, 1], [], []>} : vector<288x40xbf16>, vector<40x12xbf16>, vector<288x12xf32> -> vector<288x12xf32>
    %c0_3 = arith.constant 0 : index
    %c0_4 = arith.constant 0 : index
    %3 = vector.load %arg3[%c0_3, %c0_4] : memref<1x12xf32, #tpu.memory_space<vmem>>, vector<1x12xf32>
    %4 = vector.broadcast %3 : vector<1x12xf32> to vector<288x12xf32>
    %5 = arith.addf %2, %4 : vector<288x12xf32>
    %cst_5 = arith.constant 0.000000e+00 : f32
    %6 = vector.broadcast %cst_5 : f32 to vector<288x12xf32>
    %7 = arith.maximumf %5, %6 : vector<288x12xf32>
    %c0_6 = arith.constant 0 : index
    %c0_7 = arith.constant 0 : index
    %8 = vector.load %arg4[%c0_6, %c0_7] : memref<288x12xf32, #tpu.memory_space<vmem>>, vector<288x12xf32>
    tpu.vector_store %arg4[%c0_6, %c0_7], %7 {strides = array<i32>} : memref<288x12xf32, #tpu.memory_space<vmem>>, vector<288x12xf32>,
    return
  }
  func.func @transform_0(%arg0: i32) -> (i32, i32) {
    %c0_i32 = arith.constant 0 : i32
    %c0_i32_0 = arith.constant 0 : i32
    return %arg0, %c0_i32 : i32, i32
  }
  func.func @transform_1(%arg0: i32) -> (i32, i32) {
    %c0_i32 = arith.constant 0 : i32
    %c0_i32_0 = arith.constant 0 : i32
    %c0_i32_1 = arith.constant 0 : i32
    return %c0_i32, %c0_i32_0 : i32, i32
  }
  func.func @transform_2(%arg0: i32) -> (i32, i32) {
    %c0_i32 = arith.constant 0 : i32
    %c0_i32_0 = arith.constant 0 : i32
    %c0_i32_1 = arith.constant 0 : i32
    return %c0_i32, %c0_i32_0 : i32, i32
  }
  func.func @transform_3(%arg0: i32) -> (i32, i32) {
    %c0_i32 = arith.constant 0 : i32
    %c0_i32_0 = arith.constant 0 : i32
    return %arg0, %c0_i32 : i32, i32
  }
}

module attributes {stable_mosaic.version = 11 : i64} {
  func.func @_gemm_kernel(%arg0: i32, %arg1: memref<8x1701xbf16, #tpu.memory_space<vmem>>, %arg2: memref<1701x384xbf16, #tpu.memory_space<vmem>>, %arg3: memref<1x384xf32, #tpu.memory_space<vmem>>, %arg4: memref<8x384xf32, #tpu.memory_space<vmem>>) attributes {dimension_semantics = [#tpu.dimension_semantics<parallel>], iteration_bounds = array<i64: 1>, scalar_prefetch = 0 : i64, scratch_operands = 0 : i64, tpu.core_type = #tpu.core_type<tc>, window_params = [{transform_indices = @transform_0, window_bounds = array<i64: 8, 1701>}, {pipeline_mode = #tpu.pipeline_mode<synchronous>, transform_indices = @transform_1, window_bounds = array<i64: 1701, 384>}, {pipeline_mode = #tpu.pipeline_mode<synchronous>, transform_indices = @transform_2, window_bounds = array<i64: 1, 384>}, {transform_indices = @transform_3, window_bounds = array<i64: 8, 384>}]} {
    %c0 = arith.constant 0 : index
    %c0_0 = arith.constant 0 : index
    %0 = vector.load %arg1[%c0, %c0_0] : memref<8x1701xbf16, #tpu.memory_space<vmem>>, vector<8x1701xbf16>
    %c0_1 = arith.constant 0 : index
    %c0_2 = arith.constant 0 : index
    %1 = vector.load %arg2[%c0_1, %c0_2] : memref<1701x384xbf16, #tpu.memory_space<vmem>>, vector<1701x384xbf16>
    %cst = arith.constant dense<0.000000e+00> : vector<8x384xf32>
    %2 = tpu.matmul %0, %1, %cst {dimension_numbers = #tpu.dot_dimension_numbers<[1], [0], [0], [1], [0, 0, 1, 1], [], []>} : vector<8x1701xbf16>, vector<1701x384xbf16>, vector<8x384xf32> -> vector<8x384xf32>
    %c0_3 = arith.constant 0 : index
    %c0_4 = arith.constant 0 : index
    %3 = vector.load %arg3[%c0_3, %c0_4] : memref<1x384xf32, #tpu.memory_space<vmem>>, vector<1x384xf32>
    %4 = vector.broadcast %3 : vector<1x384xf32> to vector<8x384xf32>
    %5 = arith.addf %2, %4 : vector<8x384xf32>
    %cst_5 = arith.constant 0.000000e+00 : f32
    %6 = vector.broadcast %cst_5 : f32 to vector<8x384xf32>
    %7 = arith.maximumf %5, %6 : vector<8x384xf32>
    %c0_6 = arith.constant 0 : index
    %c0_7 = arith.constant 0 : index
    %8 = vector.load %arg4[%c0_6, %c0_7] : memref<8x384xf32, #tpu.memory_space<vmem>>, vector<8x384xf32>
    tpu.vector_store %arg4[%c0_6, %c0_7], %7 {strides = array<i32>} : memref<8x384xf32, #tpu.memory_space<vmem>>, vector<8x384xf32>,
    return
  }
  func.func @transform_0(%arg0: i32) -> (i32, i32) {
    %c0_i32 = arith.constant 0 : i32
    %c0_i32_0 = arith.constant 0 : i32
    return %arg0, %c0_i32 : i32, i32
  }
  func.func @transform_1(%arg0: i32) -> (i32, i32) {
    %c0_i32 = arith.constant 0 : i32
    %c0_i32_0 = arith.constant 0 : i32
    %c0_i32_1 = arith.constant 0 : i32
    return %c0_i32, %c0_i32_0 : i32, i32
  }
  func.func @transform_2(%arg0: i32) -> (i32, i32) {
    %c0_i32 = arith.constant 0 : i32
    %c0_i32_0 = arith.constant 0 : i32
    %c0_i32_1 = arith.constant 0 : i32
    return %c0_i32, %c0_i32_0 : i32, i32
  }
  func.func @transform_3(%arg0: i32) -> (i32, i32) {
    %c0_i32 = arith.constant 0 : i32
    %c0_i32_0 = arith.constant 0 : i32
    return %arg0, %c0_i32 : i32, i32
  }
}

module attributes {stable_mosaic.version = 11 : i64} {
  func.func @_gemm_kernel(%arg0: i32, %arg1: memref<8x3456xbf16, #tpu.memory_space<vmem>>, %arg2: memref<3456x256xbf16, #tpu.memory_space<vmem>>, %arg3: memref<1x256xf32, #tpu.memory_space<vmem>>, %arg4: memref<8x256xf32, #tpu.memory_space<vmem>>) attributes {dimension_semantics = [#tpu.dimension_semantics<parallel>], iteration_bounds = array<i64: 1>, scalar_prefetch = 0 : i64, scratch_operands = 0 : i64, tpu.core_type = #tpu.core_type<tc>, window_params = [{transform_indices = @transform_0, window_bounds = array<i64: 8, 3456>}, {pipeline_mode = #tpu.pipeline_mode<synchronous>, transform_indices = @transform_1, window_bounds = array<i64: 3456, 256>}, {pipeline_mode = #tpu.pipeline_mode<synchronous>, transform_indices = @transform_2, window_bounds = array<i64: 1, 256>}, {transform_indices = @transform_3, window_bounds = array<i64: 8, 256>}]} {
    %c0 = arith.constant 0 : index
    %c0_0 = arith.constant 0 : index
    %0 = vector.load %arg1[%c0, %c0_0] : memref<8x3456xbf16, #tpu.memory_space<vmem>>, vector<8x3456xbf16>
    %c0_1 = arith.constant 0 : index
    %c0_2 = arith.constant 0 : index
    %1 = vector.load %arg2[%c0_1, %c0_2] : memref<3456x256xbf16, #tpu.memory_space<vmem>>, vector<3456x256xbf16>
    %cst = arith.constant dense<0.000000e+00> : vector<8x256xf32>
    %2 = tpu.matmul %0, %1, %cst {dimension_numbers = #tpu.dot_dimension_numbers<[1], [0], [0], [1], [0, 0, 1, 1], [], []>} : vector<8x3456xbf16>, vector<3456x256xbf16>, vector<8x256xf32> -> vector<8x256xf32>
    %c0_3 = arith.constant 0 : index
    %c0_4 = arith.constant 0 : index
    %3 = vector.load %arg3[%c0_3, %c0_4] : memref<1x256xf32, #tpu.memory_space<vmem>>, vector<1x256xf32>
    %4 = vector.broadcast %3 : vector<1x256xf32> to vector<8x256xf32>
    %5 = arith.addf %2, %4 : vector<8x256xf32>
    %cst_5 = arith.constant 0.000000e+00 : f32
    %6 = vector.broadcast %cst_5 : f32 to vector<8x256xf32>
    %7 = arith.maximumf %5, %6 : vector<8x256xf32>
    %c0_6 = arith.constant 0 : index
    %c0_7 = arith.constant 0 : index
    %8 = vector.load %arg4[%c0_6, %c0_7] : memref<8x256xf32, #tpu.memory_space<vmem>>, vector<8x256xf32>
    tpu.vector_store %arg4[%c0_6, %c0_7], %7 {strides = array<i32>} : memref<8x256xf32, #tpu.memory_space<vmem>>, vector<8x256xf32>,
    return
  }
  func.func @transform_0(%arg0: i32) -> (i32, i32) {
    %c0_i32 = arith.constant 0 : i32
    %c0_i32_0 = arith.constant 0 : i32
    return %arg0, %c0_i32 : i32, i32
  }
  func.func @transform_1(%arg0: i32) -> (i32, i32) {
    %c0_i32 = arith.constant 0 : i32
    %c0_i32_0 = arith.constant 0 : i32
    %c0_i32_1 = arith.constant 0 : i32
    return %c0_i32, %c0_i32_0 : i32, i32
  }
  func.func @transform_2(%arg0: i32) -> (i32, i32) {
    %c0_i32 = arith.constant 0 : i32
    %c0_i32_0 = arith.constant 0 : i32
    %c0_i32_1 = arith.constant 0 : i32
    return %c0_i32, %c0_i32_0 : i32, i32
  }
  func.func @transform_3(%arg0: i32) -> (i32, i32) {
    %c0_i32 = arith.constant 0 : i32
    %c0_i32_0 = arith.constant 0 : i32
    return %arg0, %c0_i32 : i32, i32
  }
}

module attributes {stable_mosaic.version = 11 : i64} {
  func.func @_gemm_kernel(%arg0: i32, %arg1: memref<8x2304xbf16, #tpu.memory_space<vmem>>, %arg2: memref<2304x256xbf16, #tpu.memory_space<vmem>>, %arg3: memref<1x256xf32, #tpu.memory_space<vmem>>, %arg4: memref<8x256xf32, #tpu.memory_space<vmem>>) attributes {dimension_semantics = [#tpu.dimension_semantics<parallel>], iteration_bounds = array<i64: 1>, scalar_prefetch = 0 : i64, scratch_operands = 0 : i64, tpu.core_type = #tpu.core_type<tc>, window_params = [{transform_indices = @transform_0, window_bounds = array<i64: 8, 2304>}, {pipeline_mode = #tpu.pipeline_mode<synchronous>, transform_indices = @transform_1, window_bounds = array<i64: 2304, 256>}, {pipeline_mode = #tpu.pipeline_mode<synchronous>, transform_indices = @transform_2, window_bounds = array<i64: 1, 256>}, {transform_indices = @transform_3, window_bounds = array<i64: 8, 256>}]} {
    %c0 = arith.constant 0 : index
    %c0_0 = arith.constant 0 : index
    %0 = vector.load %arg1[%c0, %c0_0] : memref<8x2304xbf16, #tpu.memory_space<vmem>>, vector<8x2304xbf16>
    %c0_1 = arith.constant 0 : index
    %c0_2 = arith.constant 0 : index
    %1 = vector.load %arg2[%c0_1, %c0_2] : memref<2304x256xbf16, #tpu.memory_space<vmem>>, vector<2304x256xbf16>
    %cst = arith.constant dense<0.000000e+00> : vector<8x256xf32>
    %2 = tpu.matmul %0, %1, %cst {dimension_numbers = #tpu.dot_dimension_numbers<[1], [0], [0], [1], [0, 0, 1, 1], [], []>} : vector<8x2304xbf16>, vector<2304x256xbf16>, vector<8x256xf32> -> vector<8x256xf32>
    %c0_3 = arith.constant 0 : index
    %c0_4 = arith.constant 0 : index
    %3 = vector.load %arg3[%c0_3, %c0_4] : memref<1x256xf32, #tpu.memory_space<vmem>>, vector<1x256xf32>
    %4 = vector.broadcast %3 : vector<1x256xf32> to vector<8x256xf32>
    %5 = arith.addf %2, %4 : vector<8x256xf32>
    %cst_5 = arith.constant 0.000000e+00 : f32
    %6 = vector.broadcast %cst_5 : f32 to vector<8x256xf32>
    %7 = arith.maximumf %5, %6 : vector<8x256xf32>
    %c0_6 = arith.constant 0 : index
    %c0_7 = arith.constant 0 : index
    %8 = vector.load %arg4[%c0_6, %c0_7] : memref<8x256xf32, #tpu.memory_space<vmem>>, vector<8x256xf32>
    tpu.vector_store %arg4[%c0_6, %c0_7], %7 {strides = array<i32>} : memref<8x256xf32, #tpu.memory_space<vmem>>, vector<8x256xf32>,
    return
  }
  func.func @transform_0(%arg0: i32) -> (i32, i32) {
    %c0_i32 = arith.constant 0 : i32
    %c0_i32_0 = arith.constant 0 : i32
    return %arg0, %c0_i32 : i32, i32
  }
  func.func @transform_1(%arg0: i32) -> (i32, i32) {
    %c0_i32 = arith.constant 0 : i32
    %c0_i32_0 = arith.constant 0 : i32
    %c0_i32_1 = arith.constant 0 : i32
    return %c0_i32, %c0_i32_0 : i32, i32
  }
  func.func @transform_2(%arg0: i32) -> (i32, i32) {
    %c0_i32 = arith.constant 0 : i32
    %c0_i32_0 = arith.constant 0 : i32
    %c0_i32_1 = arith.constant 0 : i32
    return %c0_i32, %c0_i32_0 : i32, i32
  }
  func.func @transform_3(%arg0: i32) -> (i32, i32) {
    %c0_i32 = arith.constant 0 : i32
    %c0_i32_0 = arith.constant 0 : i32
    return %arg0, %c0_i32 : i32, i32
  }
}

module attributes {stable_mosaic.version = 11 : i64} {
  func.func @_gemm_kernel(%arg0: i32, %arg1: memref<2x256xbf16, #tpu.memory_space<vmem>>, %arg2: memref<256x10xbf16, #tpu.memory_space<vmem>>, %arg3: memref<1x10xf32, #tpu.memory_space<vmem>>, %arg4: memref<2x10xf32, #tpu.memory_space<vmem>>) attributes {dimension_semantics = [#tpu.dimension_semantics<parallel>], iteration_bounds = array<i64: 1>, scalar_prefetch = 0 : i64, scratch_operands = 0 : i64, tpu.core_type = #tpu.core_type<tc>, window_params = [{transform_indices = @transform_0, window_bounds = array<i64: 2, 256>}, {pipeline_mode = #tpu.pipeline_mode<synchronous>, transform_indices = @transform_1, window_bounds = array<i64: 256, 10>}, {pipeline_mode = #tpu.pipeline_mode<synchronous>, transform_indices = @transform_2, window_bounds = array<i64: 1, 10>}, {transform_indices = @transform_3, window_bounds = array<i64: 2, 10>}]} {
    %c0 = arith.constant 0 : index
    %c0_0 = arith.constant 0 : index
    %0 = vector.load %arg1[%c0, %c0_0] : memref<2x256xbf16, #tpu.memory_space<vmem>>, vector<2x256xbf16>
    %c0_1 = arith.constant 0 : index
    %c0_2 = arith.constant 0 : index
    %1 = vector.load %arg2[%c0_1, %c0_2] : memref<256x10xbf16, #tpu.memory_space<vmem>>, vector<256x10xbf16>
    %cst = arith.constant dense<0.000000e+00> : vector<2x10xf32>
    %2 = tpu.matmul %0, %1, %cst {dimension_numbers = #tpu.dot_dimension_numbers<[1], [0], [0], [1], [0, 0, 1, 1], [], []>} : vector<2x256xbf16>, vector<256x10xbf16>, vector<2x10xf32> -> vector<2x10xf32>
    %c0_3 = arith.constant 0 : index
    %c0_4 = arith.constant 0 : index
    %3 = vector.load %arg3[%c0_3, %c0_4] : memref<1x10xf32, #tpu.memory_space<vmem>>, vector<1x10xf32>
    %4 = vector.broadcast %3 : vector<1x10xf32> to vector<2x10xf32>
    %5 = arith.addf %2, %4 : vector<2x10xf32>
    %c0_5 = arith.constant 0 : index
    %c0_6 = arith.constant 0 : index
    %6 = vector.load %arg4[%c0_5, %c0_6] : memref<2x10xf32, #tpu.memory_space<vmem>>, vector<2x10xf32>
    tpu.vector_store %arg4[%c0_5, %c0_6], %5 {strides = array<i32>} : memref<2x10xf32, #tpu.memory_space<vmem>>, vector<2x10xf32>,
    return
  }
  func.func @transform_0(%arg0: i32) -> (i32, i32) {
    %c0_i32 = arith.constant 0 : i32
    %c0_i32_0 = arith.constant 0 : i32
    return %arg0, %c0_i32 : i32, i32
  }
  func.func @transform_1(%arg0: i32) -> (i32, i32) {
    %c0_i32 = arith.constant 0 : i32
    %c0_i32_0 = arith.constant 0 : i32
    %c0_i32_1 = arith.constant 0 : i32
    return %c0_i32, %c0_i32_0 : i32, i32
  }
  func.func @transform_2(%arg0: i32) -> (i32, i32) {
    %c0_i32 = arith.constant 0 : i32
    %c0_i32_0 = arith.constant 0 : i32
    %c0_i32_1 = arith.constant 0 : i32
    return %c0_i32, %c0_i32_0 : i32, i32
  }
  func.func @transform_3(%arg0: i32) -> (i32, i32) {
    %c0_i32 = arith.constant 0 : i32
    %c0_i32_0 = arith.constant 0 : i32
    return %arg0, %c0_i32 : i32, i32
  }
}

</mosaic_0001>

<llo_original>
// kernel: forward.11
$region0: #{forward.11}
  #allocation0 [shape = 'u32[]', space=smem, size = 0x4, offset = 0x4, fixed_abs, tag = 'smem constant byte address 0x4 - core index']
  #allocation1 [shape = 'u32[144,128]{1,0:T(1,128)}', space=vmem, size = 0x12000, scoped, tag = 'internal scratch']
  %s0 = inlined_call_operand.vmem [shape: bf16[192,462], index: 0, kind: input, shape index: {}]
  %s1 = inlined_call_operand.hbm [shape: bf16[462,256], index: 1, kind: input, shape index: {}]
  %s2 = inlined_call_operand.vmem [shape: f32[192,128], index: 2, kind: output, shape index: {}]
  %s3 = sld [smem:[#allocation0]]
  $region22: #{forward.11} parent=0
    _
  %s5 = ssub.s32 1, %s3
  %s6 = scalar_select 0, %s5, %s3
  $region1: #{forward.11} parent=0
    #allocation2 [shape = 'u8[237568]{0}', space=vmem, size = 0x3a000, scoped, tag = 'input window, operand 1, single buffered']
    #allocation3 [shape = 's32[1]{0}', space=sflag, size = 0x4, scoped, tag = 'scoped memory for forward.11']
    %7 = vsyncpa [#allocation3], 0
    // Predicated region
    $region2: #{forward.11} parent=1 // pred_check
      _
    $region3: #{forward.11} parent=1 // pred_check_branch
      %9 = sbr.rel (0) target = $region5
    $region4: #{forward.11} parent=1 // pred_region
      _
    $region5: #{forward.11} parent=1 // pred_fallthru
      _
    // Predicated region
    $region6: #{forward.11} parent=1 // pred_check
      _
    $region7: #{forward.11} parent=1 // pred_check_branch
      %11 = sbr.rel (0) target = $region9
    $region8: #{forward.11} parent=1 // pred_region
      %s13 = ssub.s32 7424, 7424
      %14 = vsyncadd [#allocation3], %s13
      %s15 = sshll.u32 [#allocation2], 4
      %s16 = int_to_ptr.vmem [resolvable:$true] %s15
      %21 = dma.hbm_to_vmem [thread:$0]  %s1, 7424, %s16, [#allocation3], 128, 128, 8
    $region9: #{forward.11} parent=1 // pred_fallthru
      _
    // Predicated region
    $region10: #{forward.11} parent=1 // pred_check
      _
    $region11: #{forward.11} parent=1 // pred_check_branch
      %23 = sbr.rel (0) target = $region13
    $region12: #{forward.11} parent=1 // pred_region
      %24 = dma.done [#allocation3], 7424
    $region13: #{forward.11} parent=1 // pred_fallthru
      _
    %v26 = vld [vmem:[%s0] sm:$0xff]
    %v27 = vld [vmem:[%s0 + $0x8] sm:$0xff]
    %v28 = vld [vmem:[%s0 + $0x10] sm:$0xff]
    %v29 = vld [vmem:[%s0 + $0x18] sm:$0xff]
    %v30 = vld [vmem:[%s0 + $0x20] sm:$0xff]
    %v31 = vld [vmem:[%s0 + $0x28] sm:$0xff]
    %v32 = vld [vmem:[%s0 + $0x30] sm:$0xff]
    %v33 = vld [vmem:[%s0 + $0x38] sm:$0xff]
    %v34 = vld [vmem:[%s0 + $0x40] sm:$0xff]
    %v35 = vld [vmem:[%s0 + $0x48] sm:$0xff]
    %v36 = vld [vmem:[%s0 + $0x50] sm:$0xff]
    %v37 = vld [vmem:[%s0 + $0x58] sm:$0xff]
    %v38 = vld [vmem:[%s0 + $0x60] sm:$0xff]
    %v39 = vld [vmem:[%s0 + $0x68] sm:$0xff]
    %v40 = vld [vmem:[%s0 + $0x70] sm:$0xff]
    %v41 = vld [vmem:[%s0 + $0x78] sm:$0xff]
    %v42 = vld [vmem:[%s0 + $0x80] sm:$0xff]
    %v43 = vld [vmem:[%s0 + $0x88] sm:$0xff]
    %v44 = vld [vmem:[%s0 + $0x90] sm:$0xff]
    %v45 = vld [vmem:[%s0 + $0x98] sm:$0xff]
    %v46 = vld [vmem:[%s0 + $0xa0] sm:$0xff]
    %v47 = vld [vmem:[%s0 + $0xa8] sm:$0xff]
    %v48 = vld [vmem:[%s0 + $0xb0] sm:$0xff]
    %v49 = vld [vmem:[%s0 + $0xb8] sm:$0xff]
    %v50 = vld [vmem:[%s0 + $0xc0] sm:$0xff]
    %v51 = vld [vmem:[%s0 + $0xc8] sm:$0xff]
    %v52 = vld [vmem:[%s0 + $0xd0] sm:$0xff]
    %v53 = vld [vmem:[%s0 + $0xd8] sm:$0xff]
    %v54 = vld [vmem:[%s0 + $0xe0] sm:$0xff]
    %v55 = vld [vmem:[%s0 + $0xe8] sm:$0xff]
    %v56 = vld [vmem:[%s0 + $0xf0] sm:$0xff]
    %v57 = vld [vmem:[%s0 + $0xf8] sm:$0xff]
    %v58 = vld [vmem:[%s0 + $0x100] sm:$0xff]
    %v59 = vld [vmem:[%s0 + $0x108] sm:$0xff]
    %v60 = vld [vmem:[%s0 + $0x110] sm:$0xff]
    %v61 = vld [vmem:[%s0 + $0x118] sm:$0xff]
    %v62 = vld [vmem:[%s0 + $0x120] sm:$0xff]
    %v63 = vld [vmem:[%s0 + $0x128] sm:$0xff]
    %v64 = vld [vmem:[%s0 + $0x130] sm:$0xff]
    %v65 = vld [vmem:[%s0 + $0x138] sm:$0xff]
    %v66 = vld [vmem:[%s0 + $0x140] sm:$0xff]
    %v67 = vld [vmem:[%s0 + $0x148] sm:$0xff]
    %v68 = vld [vmem:[%s0 + $0x150] sm:$0xff]
    %v69 = vld [vmem:[%s0 + $0x158] sm:$0xff]
    %v70 = vld [vmem:[%s0 + $0x160] sm:$0xff]
    %v71 = vld [vmem:[%s0 + $0x168] sm:$0xff]
    %v72 = vld [vmem:[%s0 + $0x170] sm:$0xff]
    %v73 = vld [vmem:[%s0 + $0x178] sm:$0xff]
    %v74 = vld [vmem:[#allocation2] sm:$0xff]
    %v75 = vld [vmem:[#allocation2 + $0x8] sm:$0xff]
    %v76 = vld [vmem:[#allocation2 + $0x10] sm:$0xff]
    %v77 = vld [vmem:[#allocation2 + $0x18] sm:$0xff]
    %v78 = vld [vmem:[#allocation2 + $0x20] sm:$0xff]
    %v79 = vld [vmem:[#allocation2 + $0x28] sm:$0xff]
    %v80 = vld [vmem:[#allocation2 + $0x30] sm:$0xff]
    %v81 = vld [vmem:[#allocation2 + $0x38] sm:$0xff]
    %v82 = vld [vmem:[#allocation2 + $0x40] sm:$0xff]
    %v83 = vld [vmem:[#allocation2 + $0x48] sm:$0xff]
    %v84 = vld [vmem:[#allocation2 + $0x50] sm:$0xff]
    %v85 = vld [vmem:[#allocation2 + $0x58] sm:$0xff]
    %v86 = vld [vmem:[#allocation2 + $0x60] sm:$0xff]
    %v87 = vld [vmem:[#allocation2 + $0x68] sm:$0xff]
    %v88 = vld [vmem:[#allocation2 + $0x70] sm:$0xff]
    %v89 = vld [vmem:[#allocation2 + $0x78] sm:$0xff]
    %v90 = vld [vmem:[#allocation2 + $0x80] sm:$0xff]
    %v91 = vld [vmem:[#allocation2 + $0x88] sm:$0xff]
    %v92 = vld [vmem:[#allocation2 + $0x90] sm:$0xff]
    %v93 = vld [vmem:[#allocation2 + $0x98] sm:$0xff]
    %v94 = vld [vmem:[#allocation2 + $0xa0] sm:$0xff]
    %v95 = vld [vmem:[#allocation2 + $0xa8] sm:$0xff]
    %v96 = vld [vmem:[#allocation2 + $0xb0] sm:$0xff]
    %v97 = vld [vmem:[#allocation2 + $0xb8] sm:$0xff]
    %v98 = vld [vmem:[#allocation2 + $0xc0] sm:$0xff]
    %v99 = vld [vmem:[#allocation2 + $0xc8] sm:$0xff]
    %v100 = vld [vmem:[#allocation2 + $0xd0] sm:$0xff]
    %v101 = vld [vmem:[#allocation2 + $0xd8] sm:$0xff]
    %v102 = vld [vmem:[#allocation2 + $0xe0] sm:$0xff]
    %v103 = vld [vmem:[#allocation2 + $0xe8] sm:$0xff]
    %v104 = vld [vmem:[#allocation2 + $0xf0] sm:$0xff]
    %v105 = vld [vmem:[#allocation2 + $0xf8] sm:$0xff]
    %v106 = vld [vmem:[#allocation2 + $0x100] sm:$0xff]
    %v107 = vld [vmem:[#allocation2 + $0x108] sm:$0xff]
    %v108 = vld [vmem:[#allocation2 + $0x110] sm:$0xff]
    %v109 = vld [vmem:[#allocation2 + $0x118] sm:$0xff]
    %v110 = vld [vmem:[#allocation2 + $0x120] sm:$0xff]
    %v111 = vld [vmem:[#allocation2 + $0x128] sm:$0xff]
    %v112 = vld [vmem:[#allocation2 + $0x130] sm:$0xff]
    %v113 = vld [vmem:[#allocation2 + $0x138] sm:$0xff]
    %v114 = vld [vmem:[#allocation2 + $0x140] sm:$0xff]
    %v115 = vld [vmem:[#allocation2 + $0x148] sm:$0xff]
    %v116 = vld [vmem:[#allocation2 + $0x150] sm:$0xff]
    %v117 = vld [vmem:[#allocation2 + $0x158] sm:$0xff]
    %v118 = vld [vmem:[#allocation2 + $0x160] sm:$0xff]
    %v119 = vld [vmem:[#allocation2 + $0x168] sm:$0xff]
    %v120 = vld [vmem:[#allocation2 + $0x170] sm:$0xff]
    %v121 = vld [vmem:[#allocation2 + $0x178] sm:$0xff]
    %v122 = vld [vmem:[#allocation2 + $0x180] sm:$0xff]
    %v123 = vld [vmem:[#allocation2 + $0x188] sm:$0xff]
    %v124 = vld [vmem:[#allocation2 + $0x190] sm:$0xff]
    %v125 = vld [vmem:[#allocation2 + $0x198] sm:$0xff]
    %v126 = vld [vmem:[#allocation2 + $0x1a0] sm:$0xff]
    %v127 = vld [vmem:[#allocation2 + $0x1a8] sm:$0xff]
    %v128 = vld [vmem:[#allocation2 + $0x1b0] sm:$0xff]
    %v129 = vld [vmem:[#allocation2 + $0x1b8] sm:$0xff]
    %v130 = vld [vmem:[#allocation2 + $0x1c0] sm:$0xff]
    %v131 = vld [vmem:[#allocation2 + $0x1c8] sm:$0x77]
    %v180 = vunpack.c.l.b16 %v26
    %v181 = vunpack.c.h.b16 %v26
    %v182 = vunpack.c.l.b16 %v27
    %v183 = vunpack.c.h.b16 %v27
    %v184 = vunpack.c.l.b16 %v28
    %v185 = vunpack.c.h.b16 %v28
    %v186 = vunpack.c.l.b16 %v29
    %v187 = vunpack.c.h.b16 %v29
    %v188 = vunpack.c.l.b16 %v30
    %v189 = vunpack.c.h.b16 %v30
    %v190 = vunpack.c.l.b16 %v31
    %v191 = vunpack.c.h.b16 %v31
    %v192 = vunpack.c.l.b16 %v32
    %v193 = vunpack.c.h.b16 %v32
    %v194 = vunpack.c.l.b16 %v33
    %v195 = vunpack.c.h.b16 %v33
    %v196 = vunpack.c.l.b16 %v34
    %v197 = vunpack.c.h.b16 %v34
    %v198 = vunpack.c.l.b16 %v35
    %v199 = vunpack.c.h.b16 %v35
    %v200 = vunpack.c.l.b16 %v36
    %v201 = vunpack.c.h.b16 %v36
    %v202 = vunpack.c.l.b16 %v37
    %v203 = vunpack.c.h.b16 %v37
    %v204 = vunpack.c.l.b16 %v38
    %v205 = vunpack.c.h.b16 %v38
    %v206 = vunpack.c.l.b16 %v39
    %v207 = vunpack.c.h.b16 %v39
    %v208 = vunpack.c.l.b16 %v40
    %v209 = vunpack.c.h.b16 %v40
    %v210 = vunpack.c.l.b16 %v41
    %v211 = vunpack.c.h.b16 %v41
    %v212 = vunpack.c.l.b16 %v42
    %v213 = vunpack.c.h.b16 %v42
    %v214 = vunpack.c.l.b16 %v43
    %v215 = vunpack.c.h.b16 %v43
    %v216 = vunpack.c.l.b16 %v44
    %v217 = vunpack.c.h.b16 %v44
    %v218 = vunpack.c.l.b16 %v45
    %v219 = vunpack.c.h.b16 %v45
    %v220 = vunpack.c.l.b16 %v46
    %v221 = vunpack.c.h.b16 %v46
    %v222 = vunpack.c.l.b16 %v47
    %v223 = vunpack.c.h.b16 %v47
    %v224 = vunpack.c.l.b16 %v48
    %v225 = vunpack.c.h.b16 %v48
    %v226 = vunpack.c.l.b16 %v49
    %v227 = vunpack.c.h.b16 %v49
    %v228 = vunpack.c.l.b16 %v50
    %v229 = vunpack.c.h.b16 %v50
    %v230 = vunpack.c.l.b16 %v51
    %v231 = vunpack.c.h.b16 %v51
    %v232 = vunpack.c.l.b16 %v52
    %v233 = vunpack.c.h.b16 %v52
    %v234 = vunpack.c.l.b16 %v53
    %v235 = vunpack.c.h.b16 %v53
    %v236 = vunpack.c.l.b16 %v54
    %v237 = vunpack.c.h.b16 %v54
    %v238 = vunpack.c.l.b16 %v55
    %v239 = vunpack.c.h.b16 %v55
    %v240 = vunpack.c.l.b16 %v56
    %v241 = vunpack.c.h.b16 %v56
    %v242 = vunpack.c.l.b16 %v57
    %v243 = vunpack.c.h.b16 %v57
    %v244 = vunpack.c.l.b16 %v58
    %v245 = vunpack.c.h.b16 %v58
    %v246 = vunpack.c.l.b16 %v59
    %v247 = vunpack.c.h.b16 %v59
    %v248 = vunpack.c.l.b16 %v60
    %v249 = vunpack.c.h.b16 %v60
    %v250 = vunpack.c.l.b16 %v61
    %v251 = vunpack.c.h.b16 %v61
    %v252 = vunpack.c.l.b16 %v62
    %v253 = vunpack.c.h.b16 %v62
    %v254 = vunpack.c.l.b16 %v63
    %v255 = vunpack.c.h.b16 %v63
    %v256 = vunpack.c.l.b16 %v64
    %v257 = vunpack.c.h.b16 %v64
    %v258 = vunpack.c.l.b16 %v65
    %v259 = vunpack.c.h.b16 %v65
    %v260 = vunpack.c.l.b16 %v66
    %v261 = vunpack.c.h.b16 %v66
    %v262 = vunpack.c.l.b16 %v67
    %v263 = vunpack.c.h.b16 %v67
    %v264 = vunpack.c.l.b16 %v68
    %v265 = vunpack.c.h.b16 %v68
    %v266 = vunpack.c.l.b16 %v69
    %v267 = vunpack.c.h.b16 %v69
    %v268 = vunpack.c.l.b16 %v70
    %v269 = vunpack.c.h.b16 %v70
    %v270 = vunpack.c.l.b16 %v71
    %v271 = vunpack.c.h.b16 %v71
    %v272 = vunpack.c.l.b16 %v72
    %v273 = vunpack.c.h.b16 %v72
    %v274 = vunpack.c.l.b16 %v73
    %v275 = vunpack.c.h.b16 %v73
    %v276 = vpack.c.b16 %v184, %v180
    %v277 = vpack.c.b16 %v185, %v181
    %v278 = vpack.c.b16 %v186, %v182
    %v279 = vpack.c.b16 %v187, %v183
    %v280 = vpack.c.b16 %v192, %v188
    %v281 = vpack.c.b16 %v193, %v189
    %v282 = vpack.c.b16 %v194, %v190
    %v283 = vpack.c.b16 %v195, %v191
    %v284 = vpack.c.b16 %v200, %v196
    %v285 = vpack.c.b16 %v201, %v197
    %v286 = vpack.c.b16 %v202, %v198
    %v287 = vpack.c.b16 %v203, %v199
    %v288 = vpack.c.b16 %v208, %v204
    %v289 = vpack.c.b16 %v209, %v205
    %v290 = vpack.c.b16 %v210, %v206
    %v291 = vpack.c.b16 %v211, %v207
    %v292 = vpack.c.b16 %v216, %v212
    %v293 = vpack.c.b16 %v217, %v213
    %v294 = vpack.c.b16 %v218, %v214
    %v295 = vpack.c.b16 %v219, %v215
    %v296 = vpack.c.b16 %v224, %v220
    %v297 = vpack.c.b16 %v225, %v221
    %v298 = vpack.c.b16 %v226, %v222
    %v299 = vpack.c.b16 %v227, %v223
    %v300 = vpack.c.b16 %v232, %v228
    %v301 = vpack.c.b16 %v233, %v229
    %v302 = vpack.c.b16 %v234, %v230
    %v303 = vpack.c.b16 %v235, %v231
    %v304 = vpack.c.b16 %v240, %v236
    %v305 = vpack.c.b16 %v241, %v237
    %v306 = vpack.c.b16 %v242, %v238
    %v307 = vpack.c.b16 %v243, %v239
    %v308 = vpack.c.b16 %v248, %v244
    %v309 = vpack.c.b16 %v249, %v245
    %v310 = vpack.c.b16 %v250, %v246
    %v311 = vpack.c.b16 %v251, %v247
    %v312 = vpack.c.b16 %v256, %v252
    %v313 = vpack.c.b16 %v257, %v253
    %v314 = vpack.c.b16 %v258, %v254
    %v315 = vpack.c.b16 %v259, %v255
    %v316 = vpack.c.b16 %v264, %v260
    %v317 = vpack.c.b16 %v265, %v261
    %v318 = vpack.c.b16 %v266, %v262
    %v319 = vpack.c.b16 %v267, %v263
    %v320 = vpack.c.b16 %v272, %v268
    %v321 = vpack.c.b16 %v273, %v269
    %v322 = vpack.c.b16 %v274, %v270
    %v323 = vpack.c.b16 %v275, %v271
    %v418 = vunpack.c.l.b16 %v74
    %v419 = vunpack.c.h.b16 %v74
    %v420 = vunpack.c.l.b16 %v75
    %v421 = vunpack.c.h.b16 %v75
    %v422 = vunpack.c.l.b16 %v76
    %v423 = vunpack.c.h.b16 %v76
    %v424 = vunpack.c.l.b16 %v77
    %v425 = vunpack.c.h.b16 %v77
    %v426 = vunpack.c.l.b16 %v78
    %v427 = vunpack.c.h.b16 %v78
    %v428 = vunpack.c.l.b16 %v79
    %v429 = vunpack.c.h.b16 %v79
    %v430 = vunpack.c.l.b16 %v80
    %v431 = vunpack.c.h.b16 %v80
    %v432 = vunpack.c.l.b16 %v81
    %v433 = vunpack.c.h.b16 %v81
    %v434 = vunpack.c.l.b16 %v82
    %v435 = vunpack.c.h.b16 %v82
    %v436 = vunpack.c.l.b16 %v83
    %v437 = vunpack.c.h.b16 %v83
    %v438 = vunpack.c.l.b16 %v84
    %v439 = vunpack.c.h.b16 %v84
    %v440 = vunpack.c.l.b16 %v85
    %v441 = vunpack.c.h.b16 %v85
    %v442 = vunpack.c.l.b16 %v86
    %v443 = vunpack.c.h.b16 %v86
    %v444 = vunpack.c.l.b16 %v87
    %v445 = vunpack.c.h.b16 %v87
    %v446 = vunpack.c.l.b16 %v88
    %v447 = vunpack.c.h.b16 %v88
    %v448 = vunpack.c.l.b16 %v89
    %v449 = vunpack.c.h.b16 %v89
    %v450 = vunpack.c.l.b16 %v90
    %v451 = vunpack.c.h.b16 %v90
    %v452 = vunpack.c.l.b16 %v91
    %v453 = vunpack.c.h.b16 %v91
    %v454 = vunpack.c.l.b16 %v92
    %v455 = vunpack.c.h.b16 %v92
    %v456 = vunpack.c.l.b16 %v93
    %v457 = vunpack.c.h.b16 %v93
    %v458 = vunpack.c.l.b16 %v94
    %v459 = vunpack.c.h.b16 %v94
    %v460 = vunpack.c.l.b16 %v95
    %v461 = vunpack.c.h.b16 %v95
    %v462 = vunpack.c.l.b16 %v96
    %v463 = vunpack.c.h.b16 %v96
    %v464 = vunpack.c.l.b16 %v97
    %v465 = vunpack.c.h.b16 %v97
    %v466 = vunpack.c.l.b16 %v98
    %v467 = vunpack.c.h.b16 %v98
    %v468 = vunpack.c.l.b16 %v99
    %v469 = vunpack.c.h.b16 %v99
    %v470 = vunpack.c.l.b16 %v100
    %v471 = vunpack.c.h.b16 %v100
    %v472 = vunpack.c.l.b16 %v101
    %v473 = vunpack.c.h.b16 %v101
    %v474 = vunpack.c.l.b16 %v102
    %v475 = vunpack.c.h.b16 %v102
    %v476 = vunpack.c.l.b16 %v103
    %v477 = vunpack.c.h.b16 %v103
    %v478 = vunpack.c.l.b16 %v104
    %v479 = vunpack.c.h.b16 %v104
    %v480 = vunpack.c.l.b16 %v105
    %v481 = vunpack.c.h.b16 %v105
    %v482 = vunpack.c.l.b16 %v106
    %v483 = vunpack.c.h.b16 %v106
    %v484 = vunpack.c.l.b16 %v107
    %v485 = vunpack.c.h.b16 %v107
    %v486 = vunpack.c.l.b16 %v108
    %v487 = vunpack.c.h.b16 %v108
    %v488 = vunpack.c.l.b16 %v109
    %v489 = vunpack.c.h.b16 %v109
    %v490 = vunpack.c.l.b16 %v110
    %v491 = vunpack.c.h.b16 %v110
    %v492 = vunpack.c.l.b16 %v111
    %v493 = vunpack.c.h.b16 %v111
    %v494 = vunpack.c.l.b16 %v112
    %v495 = vunpack.c.h.b16 %v112
    %v496 = vunpack.c.l.b16 %v113
    %v497 = vunpack.c.h.b16 %v113
    %v498 = vunpack.c.l.b16 %v114
    %v499 = vunpack.c.h.b16 %v114
    %v500 = vunpack.c.l.b16 %v115
    %v501 = vunpack.c.h.b16 %v115
    %v502 = vunpack.c.l.b16 %v116
    %v503 = vunpack.c.h.b16 %v116
    %v504 = vunpack.c.l.b16 %v117
    %v505 = vunpack.c.h.b16 %v117
    %v506 = vunpack.c.l.b16 %v118
    %v507 = vunpack.c.h.b16 %v118
    %v508 = vunpack.c.l.b16 %v119
    %v509 = vunpack.c.h.b16 %v119
    %v510 = vunpack.c.l.b16 %v120
    %v511 = vunpack.c.h.b16 %v120
    %v512 = vunpack.c.l.b16 %v121
    %v513 = vunpack.c.h.b16 %v121
    %v514 = vunpack.c.l.b16 %v122
    %v515 = vunpack.c.h.b16 %v122
    %v516 = vunpack.c.l.b16 %v123
    %v517 = vunpack.c.h.b16 %v123
    %v518 = vunpack.c.l.b16 %v124
    %v519 = vunpack.c.h.b16 %v124
    %v520 = vunpack.c.l.b16 %v125
    %v521 = vunpack.c.h.b16 %v125
    %v522 = vunpack.c.l.b16 %v126
    %v523 = vunpack.c.h.b16 %v126
    %v524 = vunpack.c.l.b16 %v127
    %v525 = vunpack.c.h.b16 %v127
    %v526 = vunpack.c.l.b16 %v128
    %v527 = vunpack.c.h.b16 %v128
    %v528 = vunpack.c.l.b16 %v129
    %v529 = vunpack.c.h.b16 %v129
    %v530 = vunpack.c.l.b16 %v130
    %v531 = vunpack.c.h.b16 %v130
    %v532 = vunpack.c.l.b16 %v131
    %v533 = vunpack.c.h.b16 %v131
    %v534 = vpack.c.b16 %v420, %v418
    %v535 = vpack.c.b16 %v421, %v419
    %v536 = vpack.c.b16 %v424, %v422
    %v537 = vpack.c.b16 %v425, %v423
    %v538 = vpack.c.b16 %v428, %v426
    %v539 = vpack.c.b16 %v429, %v427
    %v540 = vpack.c.b16 %v432, %v430
    %v541 = vpack.c.b16 %v433, %v431
    %v542 = vpack.c.b16 %v436, %v434
    %v543 = vpack.c.b16 %v437, %v435
    %v544 = vpack.c.b16 %v440, %v438
    %v545 = vpack.c.b16 %v441, %v439
    %v546 = vpack.c.b16 %v444, %v442
    %v547 = vpack.c.b16 %v445, %v443
    %v548 = vpack.c.b16 %v448, %v446
    %v549 = vpack.c.b16 %v449, %v447
    %v550 = vpack.c.b16 %v452, %v450
    %v551 = vpack.c.b16 %v453, %v451
    %v552 = vpack.c.b16 %v456, %v454
    %v553 = vpack.c.b16 %v457, %v455
    %v554 = vpack.c.b16 %v460, %v458
    %v555 = vpack.c.b16 %v461, %v459
    %v556 = vpack.c.b16 %v464, %v462
    %v557 = vpack.c.b16 %v465, %v463
    %v558 = vpack.c.b16 %v468, %v466
    %v559 = vpack.c.b16 %v469, %v467
    %v560 = vpack.c.b16 %v472, %v470
    %v561 = vpack.c.b16 %v473, %v471
    %v562 = vpack.c.b16 %v476, %v474
    %v563 = vpack.c.b16 %v477, %v475
    %v564 = vpack.c.b16 %v480, %v478
    %v565 = vpack.c.b16 %v481, %v479
    %v566 = vpack.c.b16 %v484, %v482
    %v567 = vpack.c.b16 %v485, %v483
    %v568 = vpack.c.b16 %v488, %v486
    %v569 = vpack.c.b16 %v489, %v487
    %v570 = vpack.c.b16 %v492, %v490
    %v571 = vpack.c.b16 %v493, %v491
    %v572 = vpack.c.b16 %v496, %v494
    %v573 = vpack.c.b16 %v497, %v495
    %v574 = vpack.c.b16 %v500, %v498
    %v575 = vpack.c.b16 %v501, %v499
    %v576 = vpack.c.b16 %v504, %v502
    %v577 = vpack.c.b16 %v505, %v503
    %v578 = vpack.c.b16 %v508, %v506
    %v579 = vpack.c.b16 %v509, %v507
    %v580 = vpack.c.b16 %v512, %v510
    %v581 = vpack.c.b16 %v513, %v511
    %v582 = vpack.c.b16 %v516, %v514
    %v583 = vpack.c.b16 %v517, %v515
    %v584 = vpack.c.b16 %v520, %v518
    %v585 = vpack.c.b16 %v521, %v519
    %v586 = vpack.c.b16 %v524, %v522
    %v587 = vpack.c.b16 %v525, %v523
    %v588 = vpack.c.b16 %v528, %v526
    %v589 = vpack.c.b16 %v529, %v527
    %v590 = vpack.c.b16 %v532, %v530
    %v591 = vpack.c.b16 %v533, %v531
    %vm648 = vcmask 637952
    %v650 = vsel %vm648, %v279, 0
    %v653 = vsel %vm648, %v283, 0
    %v656 = vsel %vm648, %v287, 0
    %v659 = vsel %vm648, %v291, 0
    %v662 = vsel %vm648, %v295, 0
    %v665 = vsel %vm648, %v299, 0
    %v668 = vsel %vm648, %v303, 0
    %v671 = vsel %vm648, %v307, 0
    %v674 = vsel %vm648, %v311, 0
    %v677 = vsel %vm648, %v315, 0
    %v680 = vsel %vm648, %v319, 0
    %v683 = vsel %vm648, %v323, 0
    %vm685 = vcmask 1046528
    %v687 = vsel %vm685, %v590, 0
    %v690 = vsel %vm685, %v591, 0
    %692 = vmatprep.subr.bf16.mxu0 %v535
    %693 = vmatpush1.bf16.msra.mxu0 %v534
    %694 = vmatprep.subr.bf16.mxu0 %v537
    %695 = vmatpush1.bf16.msra.mxu0 %v536
    %696 = vmatprep.subr.bf16.mxu0 %v539
    %697 = vmatpush1.bf16.msra.mxu0 %v538
    %698 = vmatprep.subr.bf16.mxu0 %v541
    %699 = vmatpush1.bf16.msra.mxu0 %v540
    %700 = vmatprep.subr.bf16.mxu0 %v543
    %701 = vmatpush1.bf16.msra.mxu0 %v542
    %702 = vmatprep.subr.bf16.mxu0 %v545
    %703 = vmatpush1.bf16.msra.mxu0 %v544
    %704 = vmatprep.subr.bf16.mxu0 %v547
    %705 = vmatpush1.bf16.msra.mxu0 %v546
    %706 = vmatprep.subr.bf16.mxu0 %v549
    %707 = vmatpush1.bf16.msra.mxu0 %v548
    %708 = vmatprep.subr.bf16.mxu0 %v551
    %709 = vmatpush1.bf16.msra.mxu0 %v550
    %710 = vmatprep.subr.bf16.mxu0 %v553
    %711 = vmatpush1.bf16.msra.mxu0 %v552
    %712 = vmatprep.subr.bf16.mxu0 %v555
    %713 = vmatpush1.bf16.msra.mxu0 %v554
    %714 = vmatprep.subr.bf16.mxu0 %v557
    %715 = vmatpush1.bf16.msra.mxu0 %v556
    %716 = vmatprep.subr.bf16.mxu0 %v559
    %717 = vmatpush1.bf16.msra.mxu0 %v558
    %718 = vmatprep.subr.bf16.mxu0 %v561
    %719 = vmatpush1.bf16.msra.mxu0 %v560
    %720 = vmatprep.subr.bf16.mxu0 %v563
    %721 = vmatpush1.bf16.msra.mxu0 %v562
    %722 = vmatprep.subr.bf16.mxu0 %v565
    %723 = vmatpush1.bf16.msra.mxu0 %v564
    %724 = vmatprep.mubr.bf16.mxu0 %v277
    %725 = vmatmul.mubr.bf16.gmra.mrb[0].mxu0 %v276
    %v726 = vpop.f32.mrb[0].mxu0
    %v727 = vadd.f32 0.0, %v726
    %v728 = vpop.f32.mrb[0].mxu0
    %v729 = vadd.f32 0.0, %v728
    %v730 = vpop.f32.mrb[0].mxu0
    %v731 = vadd.f32 0.0, %v730
    %v732 = vpop.f32.mrb[0].mxu0
    %v733 = vadd.f32 0.0, %v732
    %734 = vmatprep.mubr.bf16.mxu0 %v281
    %735 = vmatmul.mubr.bf16.gmra.mrb[0].mxu0 %v280
    %v736 = vpop.f32.mrb[0].mxu0
    %v737 = vadd.f32 0.0, %v736
    %v738 = vpop.f32.mrb[0].mxu0
    %v739 = vadd.f32 0.0, %v738
    %v740 = vpop.f32.mrb[0].mxu0
    %v741 = vadd.f32 0.0, %v740
    %v742 = vpop.f32.mrb[0].mxu0
    %v743 = vadd.f32 0.0, %v742
    %744 = vmatprep.mubr.bf16.mxu0 %v285
    %745 = vmatmul.mubr.bf16.gmra.mrb[0].mxu0 %v284
    %v746 = vpop.f32.mrb[0].mxu0
    %v747 = vadd.f32 0.0, %v746
    %v748 = vpop.f32.mrb[0].mxu0
    %v749 = vadd.f32 0.0, %v748
    %v750 = vpop.f32.mrb[0].mxu0
    %v751 = vadd.f32 0.0, %v750
    %v752 = vpop.f32.mrb[0].mxu0
    %v753 = vadd.f32 0.0, %v752
    %754 = vmatprep.mubr.bf16.mxu0 %v289
    %755 = vmatmul.mubr.bf16.gmra.mrb[0].mxu0 %v288
    %v756 = vpop.f32.mrb[0].mxu0
    %v757 = vadd.f32 0.0, %v756
    %v758 = vpop.f32.mrb[0].mxu0
    %v759 = vadd.f32 0.0, %v758
    %v760 = vpop.f32.mrb[0].mxu0
    %v761 = vadd.f32 0.0, %v760
    %v762 = vpop.f32.mrb[0].mxu0
    %v763 = vadd.f32 0.0, %v762
    %764 = vmatprep.mubr.bf16.mxu0 %v293
    %765 = vmatmul.mubr.bf16.gmra.mrb[0].mxu0 %v292
    %v766 = vpop.f32.mrb[0].mxu0
    %v767 = vadd.f32 0.0, %v766
    %v768 = vpop.f32.mrb[0].mxu0
    %v769 = vadd.f32 0.0, %v768
    %v770 = vpop.f32.mrb[0].mxu0
    %v771 = vadd.f32 0.0, %v770
    %v772 = vpop.f32.mrb[0].mxu0
    %v773 = vadd.f32 0.0, %v772
    %774 = vmatprep.mubr.bf16.mxu0 %v297
    %775 = vmatmul.mubr.bf16.gmra.mrb[0].mxu0 %v296
    %v776 = vpop.f32.mrb[0].mxu0
    %v777 = vadd.f32 0.0, %v776
    %v778 = vpop.f32.mrb[0].mxu0
    %v779 = vadd.f32 0.0, %v778
    %v780 = vpop.f32.mrb[0].mxu0
    %v781 = vadd.f32 0.0, %v780
    %v782 = vpop.f32.mrb[0].mxu0
    %v783 = vadd.f32 0.0, %v782
    %784 = vmatprep.mubr.bf16.mxu0 %v301
    %785 = vmatmul.mubr.bf16.gmra.mrb[0].mxu0 %v300
    %v786 = vpop.f32.mrb[0].mxu0
    %v787 = vadd.f32 0.0, %v786
    %v788 = vpop.f32.mrb[0].mxu0
    %v789 = vadd.f32 0.0, %v788
    %v790 = vpop.f32.mrb[0].mxu0
    %v791 = vadd.f32 0.0, %v790
    %v792 = vpop.f32.mrb[0].mxu0
    %v793 = vadd.f32 0.0, %v792
    %794 = vmatprep.mubr.bf16.mxu0 %v305
    %795 = vmatmul.mubr.bf16.gmra.mrb[0].mxu0 %v304
    %v796 = vpop.f32.mrb[0].mxu0
    %v797 = vadd.f32 0.0, %v796
    %v798 = vpop.f32.mrb[0].mxu0
    %v799 = vadd.f32 0.0, %v798
    %v800 = vpop.f32.mrb[0].mxu0
    %v801 = vadd.f32 0.0, %v800
    %v802 = vpop.f32.mrb[0].mxu0
    %v803 = vadd.f32 0.0, %v802
    %804 = vmatprep.mubr.bf16.mxu0 %v309
    %805 = vmatmul.mubr.bf16.gmra.mrb[0].mxu0 %v308
    %v806 = vpop.f32.mrb[0].mxu0
    %v807 = vadd.f32 0.0, %v806
    %v808 = vpop.f32.mrb[0].mxu0
    %v809 = vadd.f32 0.0, %v808
    %v810 = vpop.f32.mrb[0].mxu0
    %v811 = vadd.f32 0.0, %v810
    %v812 = vpop.f32.mrb[0].mxu0
    %v813 = vadd.f32 0.0, %v812
    %814 = vmatprep.mubr.bf16.mxu0 %v313
    %815 = vmatmul.mubr.bf16.gmra.mrb[0].mxu0 %v312
    %v816 = vpop.f32.mrb[0].mxu0
    %v817 = vadd.f32 0.0, %v816
    %v818 = vpop.f32.mrb[0].mxu0
    %v819 = vadd.f32 0.0, %v818
    %v820 = vpop.f32.mrb[0].mxu0
    %v821 = vadd.f32 0.0, %v820
    %v822 = vpop.f32.mrb[0].mxu0
    %v823 = vadd.f32 0.0, %v822
    %824 = vmatprep.mubr.bf16.mxu0 %v317
    %825 = vmatmul.mubr.bf16.gmra.mrb[0].mxu0 %v316
    %v826 = vpop.f32.mrb[0].mxu0
    %v827 = vadd.f32 0.0, %v826
    %v828 = vpop.f32.mrb[0].mxu0
    %v829 = vadd.f32 0.0, %v828
    %v830 = vpop.f32.mrb[0].mxu0
    %v831 = vadd.f32 0.0, %v830
    %v832 = vpop.f32.mrb[0].mxu0
    %v833 = vadd.f32 0.0, %v832
    %834 = vmatprep.mubr.bf16.mxu0 %v321
    %835 = vmatmul.mubr.bf16.gmra.mrb[0].mxu0 %v320
    %v836 = vpop.f32.mrb[0].mxu0
    %v837 = vadd.f32 0.0, %v836
    %v838 = vpop.f32.mrb[0].mxu0
    %v839 = vadd.f32 0.0, %v838
    %v840 = vpop.f32.mrb[0].mxu0
    %v841 = vadd.f32 0.0, %v840
    %v842 = vpop.f32.mrb[0].mxu0
    %v843 = vadd.f32 0.0, %v842
    %844 = vdwg.mxu0
    %845 = vmatprep.subr.bf16.mxu0 %v567
    %846 = vmatpush1.bf16.msra.mxu0 %v566
    %847 = vmatprep.subr.bf16.mxu0 %v569
    %848 = vmatpush1.bf16.msra.mxu0 %v568
    %849 = vmatprep.subr.bf16.mxu0 %v571
    %850 = vmatpush1.bf16.msra.mxu0 %v570
    %851 = vmatprep.subr.bf16.mxu0 %v573
    %852 = vmatpush1.bf16.msra.mxu0 %v572
    %853 = vmatprep.subr.bf16.mxu0 %v575
    %854 = vmatpush1.bf16.msra.mxu0 %v574
    %855 = vmatprep.subr.bf16.mxu0 %v577
    %856 = vmatpush1.bf16.msra.mxu0 %v576
    %857 = vmatprep.subr.bf16.mxu0 %v579
    %858 = vmatpush1.bf16.msra.mxu0 %v578
    %859 = vmatprep.subr.bf16.mxu0 %v581
    %860 = vmatpush1.bf16.msra.mxu0 %v580
    %861 = vmatprep.subr.bf16.mxu0 %v583
    %862 = vmatpush1.bf16.msra.mxu0 %v582
    %863 = vmatprep.subr.bf16.mxu0 %v585
    %864 = vmatpush1.bf16.msra.mxu0 %v584
    %865 = vmatprep.subr.bf16.mxu0 %v587
    %866 = vmatpush1.bf16.msra.mxu0 %v586
    %867 = vmatprep.subr.bf16.mxu0 %v589
    %868 = vmatpush1.bf16.msra.mxu0 %v588
    %869 = vmatprep.subr.bf16.mxu0 %v690
    %870 = vmatpush1.bf16.msra.mxu0 %v687
    %871 = vmatprep.subr.bf16.mxu0 0
    %872 = vmatpush1.bf16.msra.mxu0 0
    %873 = vmatprep.subr.bf16.mxu0 0
    %874 = vmatpush1.bf16.msra.mxu0 0
    %875 = vmatprep.subr.bf16.mxu0 0
    %876 = vmatpush1.bf16.msra.mxu0 0
    %877 = vmatprep.mubr.bf16.mxu0 %v650
    %878 = vmatmul.mubr.bf16.gmra.mrb[0].mxu0 %v278
    %v879 = vpop.f32.mrb[0].mxu0
    %v880 = vadd.f32 %v727, %v879
    %v881 = vpop.f32.mrb[0].mxu0
    %v882 = vadd.f32 %v729, %v881
    %v883 = vpop.f32.mrb[0].mxu0
    %v884 = vadd.f32 %v731, %v883
    %v885 = vpop.f32.mrb[0].mxu0
    %v886 = vadd.f32 %v733, %v885
    %887 = vmatprep.mubr.bf16.mxu0 %v653
    %888 = vmatmul.mubr.bf16.gmra.mrb[0].mxu0 %v282
    %v889 = vpop.f32.mrb[0].mxu0
    %v890 = vadd.f32 %v737, %v889
    %v891 = vpop.f32.mrb[0].mxu0
    %v892 = vadd.f32 %v739, %v891
    %v893 = vpop.f32.mrb[0].mxu0
    %v894 = vadd.f32 %v741, %v893
    %v895 = vpop.f32.mrb[0].mxu0
    %v896 = vadd.f32 %v743, %v895
    %897 = vmatprep.mubr.bf16.mxu0 %v656
    %898 = vmatmul.mubr.bf16.gmra.mrb[0].mxu0 %v286
    %v899 = vpop.f32.mrb[0].mxu0
    %v900 = vadd.f32 %v747, %v899
    %v901 = vpop.f32.mrb[0].mxu0
    %v902 = vadd.f32 %v749, %v901
    %v903 = vpop.f32.mrb[0].mxu0
    %v904 = vadd.f32 %v751, %v903
    %v905 = vpop.f32.mrb[0].mxu0
    %v906 = vadd.f32 %v753, %v905
    %907 = vmatprep.mubr.bf16.mxu0 %v659
    %908 = vmatmul.mubr.bf16.gmra.mrb[0].mxu0 %v290
    %v909 = vpop.f32.mrb[0].mxu0
    %v910 = vadd.f32 %v757, %v909
    %v911 = vpop.f32.mrb[0].mxu0
    %v912 = vadd.f32 %v759, %v911
    %v913 = vpop.f32.mrb[0].mxu0
    %v914 = vadd.f32 %v761, %v913
    %v915 = vpop.f32.mrb[0].mxu0
    %v916 = vadd.f32 %v763, %v915
    %917 = vmatprep.mubr.bf16.mxu0 %v662
    %918 = vmatmul.mubr.bf16.gmra.mrb[0].mxu0 %v294
    %v919 = vpop.f32.mrb[0].mxu0
    %v920 = vadd.f32 %v767, %v919
    %v921 = vpop.f32.mrb[0].mxu0
    %v922 = vadd.f32 %v769, %v921
    %v923 = vpop.f32.mrb[0].mxu0
    %v924 = vadd.f32 %v771, %v923
    %v925 = vpop.f32.mrb[0].mxu0
    %v926 = vadd.f32 %v773, %v925
    %927 = vmatprep.mubr.bf16.mxu0 %v665
    %928 = vmatmul.mubr.bf16.gmra.mrb[0].mxu0 %v298
    %v929 = vpop.f32.mrb[0].mxu0
    %v930 = vadd.f32 %v777, %v929
    %v931 = vpop.f32.mrb[0].mxu0
    %v932 = vadd.f32 %v779, %v931
    %v933 = vpop.f32.mrb[0].mxu0
    %v934 = vadd.f32 %v781, %v933
    %v935 = vpop.f32.mrb[0].mxu0
    %v936 = vadd.f32 %v783, %v935
    %937 = vmatprep.mubr.bf16.mxu0 %v668
    %938 = vmatmul.mubr.bf16.gmra.mrb[0].mxu0 %v302
    %v939 = vpop.f32.mrb[0].mxu0
    %v940 = vadd.f32 %v787, %v939
    %v941 = vpop.f32.mrb[0].mxu0
    %v942 = vadd.f32 %v789, %v941
    %v943 = vpop.f32.mrb[0].mxu0
    %v944 = vadd.f32 %v791, %v943
    %v945 = vpop.f32.mrb[0].mxu0
    %v946 = vadd.f32 %v793, %v945
    %947 = vmatprep.mubr.bf16.mxu0 %v671
    %948 = vmatmul.mubr.bf16.gmra.mrb[0].mxu0 %v306
    %v949 = vpop.f32.mrb[0].mxu0
    %v950 = vadd.f32 %v797, %v949
    %v951 = vpop.f32.mrb[0].mxu0
    %v952 = vadd.f32 %v799, %v951
    %v953 = vpop.f32.mrb[0].mxu0
    %v954 = vadd.f32 %v801, %v953
    %v955 = vpop.f32.mrb[0].mxu0
    %v956 = vadd.f32 %v803, %v955
    %957 = vmatprep.mubr.bf16.mxu0 %v674
    %958 = vmatmul.mubr.bf16.gmra.mrb[0].mxu0 %v310
    %v959 = vpop.f32.mrb[0].mxu0
    %v960 = vadd.f32 %v807, %v959
    %v961 = vpop.f32.mrb[0].mxu0
    %v962 = vadd.f32 %v809, %v961
    %v963 = vpop.f32.mrb[0].mxu0
    %v964 = vadd.f32 %v811, %v963
    %v965 = vpop.f32.mrb[0].mxu0
    %v966 = vadd.f32 %v813, %v965
    %967 = vmatprep.mubr.bf16.mxu0 %v677
    %968 = vmatmul.mubr.bf16.gmra.mrb[0].mxu0 %v314
    %v969 = vpop.f32.mrb[0].mxu0
    %v970 = vadd.f32 %v817, %v969
    %v971 = vpop.f32.mrb[0].mxu0
    %v972 = vadd.f32 %v819, %v971
    %v973 = vpop.f32.mrb[0].mxu0
    %v974 = vadd.f32 %v821, %v973
    %v975 = vpop.f32.mrb[0].mxu0
    %v976 = vadd.f32 %v823, %v975
    %977 = vmatprep.mubr.bf16.mxu0 %v680
    %978 = vmatmul.mubr.bf16.gmra.mrb[0].mxu0 %v318
    %v979 = vpop.f32.mrb[0].mxu0
    %v980 = vadd.f32 %v827, %v979
    %v981 = vpop.f32.mrb[0].mxu0
    %v982 = vadd.f32 %v829, %v981
    %v983 = vpop.f32.mrb[0].mxu0
    %v984 = vadd.f32 %v831, %v983
    %v985 = vpop.f32.mrb[0].mxu0
    %v986 = vadd.f32 %v833, %v985
    %987 = vmatprep.mubr.bf16.mxu0 %v683
    %988 = vmatmul.mubr.bf16.gmra.mrb[0].mxu0 %v322
    %v989 = vpop.f32.mrb[0].mxu0
    %v990 = vadd.f32 %v837, %v989
    %v991 = vpop.f32.mrb[0].mxu0
    %v992 = vadd.f32 %v839, %v991
    %v993 = vpop.f32.mrb[0].mxu0
    %v994 = vadd.f32 %v841, %v993
    %v995 = vpop.f32.mrb[0].mxu0
    %v996 = vadd.f32 %v843, %v995
    %997 = vdwg.mxu0
    %v998 = vmul.f32 %v880, %v880
    %v999 = vmul.f32 %v884, %v884
    %v1000 = vmul.f32 %v890, %v890
    %v1001 = vmul.f32 %v894, %v894
    %v1002 = vmul.f32 %v900, %v900
    %v1003 = vmul.f32 %v904, %v904
    %v1004 = vmul.f32 %v910, %v910
    %v1005 = vmul.f32 %v914, %v914
    %v1006 = vmul.f32 %v920, %v920
    %v1007 = vmul.f32 %v924, %v924
    %v1008 = vmul.f32 %v930, %v930
    %v1009 = vmul.f32 %v934, %v934
    %v1010 = vmul.f32 %v940, %v940
    %v1011 = vmul.f32 %v944, %v944
    %v1012 = vmul.f32 %v950, %v950
    %v1013 = vmul.f32 %v954, %v954
    %v1014 = vmul.f32 %v960, %v960
    %v1015 = vmul.f32 %v964, %v964
    %v1016 = vmul.f32 %v970, %v970
    %v1017 = vmul.f32 %v974, %v974
    %v1018 = vmul.f32 %v980, %v980
    %v1019 = vmul.f32 %v984, %v984
    %v1020 = vmul.f32 %v990, %v990
    %v1021 = vmul.f32 %v994, %v994
    %v1022 = vmul.f32 %v882, %v882
    %v1023 = vmul.f32 %v886, %v886
    %v1024 = vmul.f32 %v892, %v892
    %v1025 = vmul.f32 %v896, %v896
    %v1026 = vmul.f32 %v902, %v902
    %v1027 = vmul.f32 %v906, %v906
    %v1028 = vmul.f32 %v912, %v912
    %v1029 = vmul.f32 %v916, %v916
    %v1030 = vmul.f32 %v922, %v922
    %v1031 = vmul.f32 %v926, %v926
    %v1032 = vmul.f32 %v932, %v932
    %v1033 = vmul.f32 %v936, %v936
    %v1034 = vmul.f32 %v942, %v942
    %v1035 = vmul.f32 %v946, %v946
    %v1036 = vmul.f32 %v952, %v952
    %v1037 = vmul.f32 %v956, %v956
    %v1038 = vmul.f32 %v962, %v962
    %v1039 = vmul.f32 %v966, %v966
    %v1040 = vmul.f32 %v972, %v972
    %v1041 = vmul.f32 %v976, %v976
    %v1042 = vmul.f32 %v982, %v982
    %v1043 = vmul.f32 %v986, %v986
    %v1044 = vmul.f32 %v992, %v992
    %v1045 = vmul.f32 %v996, %v996
    %v1046 = vadd.f32 %v998, %v1022
    %v1047 = vadd.f32 %v999, %v1023
    %v1048 = vadd.f32 %v1000, %v1024
    %v1049 = vadd.f32 %v1001, %v1025
    %v1050 = vadd.f32 %v1002, %v1026
    %v1051 = vadd.f32 %v1003, %v1027
    %v1052 = vadd.f32 %v1004, %v1028
    %v1053 = vadd.f32 %v1005, %v1029
    %v1054 = vadd.f32 %v1006, %v1030
    %v1055 = vadd.f32 %v1007, %v1031
    %v1056 = vadd.f32 %v1008, %v1032
    %v1057 = vadd.f32 %v1009, %v1033
    %v1058 = vadd.f32 %v1010, %v1034
    %v1059 = vadd.f32 %v1011, %v1035
    %v1060 = vadd.f32 %v1012, %v1036
    %v1061 = vadd.f32 %v1013, %v1037
    %v1062 = vadd.f32 %v1014, %v1038
    %v1063 = vadd.f32 %v1015, %v1039
    %v1064 = vadd.f32 %v1016, %v1040
    %v1065 = vadd.f32 %v1017, %v1041
    %v1066 = vadd.f32 %v1018, %v1042
    %v1067 = vadd.f32 %v1019, %v1043
    %v1068 = vadd.f32 %v1020, %v1044
    %v1069 = vadd.f32 %v1021, %v1045
    %v1070 = vadd.f32 %v1046, 1e-12
    %v1071 = vadd.f32 %v1047, 1e-12
    %v1072 = vadd.f32 %v1048, 1e-12
    %v1073 = vadd.f32 %v1049, 1e-12
    %v1074 = vadd.f32 %v1050, 1e-12
    %v1075 = vadd.f32 %v1051, 1e-12
    %v1076 = vadd.f32 %v1052, 1e-12
    %v1077 = vadd.f32 %v1053, 1e-12
    %v1078 = vadd.f32 %v1054, 1e-12
    %v1079 = vadd.f32 %v1055, 1e-12
    %v1080 = vadd.f32 %v1056, 1e-12
    %v1081 = vadd.f32 %v1057, 1e-12
    %v1082 = vadd.f32 %v1058, 1e-12
    %v1083 = vadd.f32 %v1059, 1e-12
    %v1084 = vadd.f32 %v1060, 1e-12
    %v1085 = vadd.f32 %v1061, 1e-12
    %v1086 = vadd.f32 %v1062, 1e-12
    %v1087 = vadd.f32 %v1063, 1e-12
    %v1088 = vadd.f32 %v1064, 1e-12
    %v1089 = vadd.f32 %v1065, 1e-12
    %v1090 = vadd.f32 %v1066, 1e-12
    %v1091 = vadd.f32 %v1067, 1e-12
    %v1092 = vadd.f32 %v1068, 1e-12
    %v1093 = vadd.f32 %v1069, 1e-12
    %v1094 = vrsqrt.pop %v1070
    %v1095 = vmul.f32 %v1070, %v1094
    %vm1096 = vcmp.eq.f32.partialorder %v1070, inf
    %v1097 = vsel %vm1096, %v1070, %v1095
    %vm1098 = vcmp.eq.f32.partialorder %v1070, 0.0
    %v1099 = vand.u32 %v1070, 2147483648
    %v1100 = vsel %vm1098, %v1099, %v1097
    %v1101 = vrsqrt.pop %v1071
    %v1102 = vmul.f32 %v1071, %v1101
    %vm1103 = vcmp.eq.f32.partialorder %v1071, inf
    %v1104 = vsel %vm1103, %v1071, %v1102
    %vm1105 = vcmp.eq.f32.partialorder %v1071, 0.0
    %v1106 = vand.u32 %v1071, 2147483648
    %v1107 = vsel %vm1105, %v1106, %v1104
    %v1108 = vrsqrt.pop %v1072
    %v1109 = vmul.f32 %v1072, %v1108
    %vm1110 = vcmp.eq.f32.partialorder %v1072, inf
    %v1111 = vsel %vm1110, %v1072, %v1109
    %vm1112 = vcmp.eq.f32.partialorder %v1072, 0.0
    %v1113 = vand.u32 %v1072, 2147483648
    %v1114 = vsel %vm1112, %v1113, %v1111
    %v1115 = vrsqrt.pop %v1073
    %v1116 = vmul.f32 %v1073, %v1115
    %vm1117 = vcmp.eq.f32.partialorder %v1073, inf
    %v1118 = vsel %vm1117, %v1073, %v1116
    %vm1119 = vcmp.eq.f32.partialorder %v1073, 0.0
    %v1120 = vand.u32 %v1073, 2147483648
    %v1121 = vsel %vm1119, %v1120, %v1118
    %v1122 = vrsqrt.pop %v1074
    %v1123 = vmul.f32 %v1074, %v1122
    %vm1124 = vcmp.eq.f32.partialorder %v1074, inf
    %v1125 = vsel %vm1124, %v1074, %v1123
    %vm1126 = vcmp.eq.f32.partialorder %v1074, 0.0
    %v1127 = vand.u32 %v1074, 2147483648
    %v1128 = vsel %vm1126, %v1127, %v1125
    %v1129 = vrsqrt.pop %v1075
    %v1130 = vmul.f32 %v1075, %v1129
    %vm1131 = vcmp.eq.f32.partialorder %v1075, inf
    %v1132 = vsel %vm1131, %v1075, %v1130
    %vm1133 = vcmp.eq.f32.partialorder %v1075, 0.0
    %v1134 = vand.u32 %v1075, 2147483648
    %v1135 = vsel %vm1133, %v1134, %v1132
    %v1136 = vrsqrt.pop %v1076
    %v1137 = vmul.f32 %v1076, %v1136
    %vm1138 = vcmp.eq.f32.partialorder %v1076, inf
    %v1139 = vsel %vm1138, %v1076, %v1137
    %vm1140 = vcmp.eq.f32.partialorder %v1076, 0.0
    %v1141 = vand.u32 %v1076, 2147483648
    %v1142 = vsel %vm1140, %v1141, %v1139
    %v1143 = vrsqrt.pop %v1077
    %v1144 = vmul.f32 %v1077, %v1143
    %vm1145 = vcmp.eq.f32.partialorder %v1077, inf
    %v1146 = vsel %vm1145, %v1077, %v1144
    %vm1147 = vcmp.eq.f32.partialorder %v1077, 0.0
    %v1148 = vand.u32 %v1077, 2147483648
    %v1149 = vsel %vm1147, %v1148, %v1146
    %v1150 = vrsqrt.pop %v1078
    %v1151 = vmul.f32 %v1078, %v1150
    %vm1152 = vcmp.eq.f32.partialorder %v1078, inf
    %v1153 = vsel %vm1152, %v1078, %v1151
    %vm1154 = vcmp.eq.f32.partialorder %v1078, 0.0
    %v1155 = vand.u32 %v1078, 2147483648
    %v1156 = vsel %vm1154, %v1155, %v1153
    %v1157 = vrsqrt.pop %v1079
    %v1158 = vmul.f32 %v1079, %v1157
    %vm1159 = vcmp.eq.f32.partialorder %v1079, inf
    %v1160 = vsel %vm1159, %v1079, %v1158
    %vm1161 = vcmp.eq.f32.partialorder %v1079, 0.0
    %v1162 = vand.u32 %v1079, 2147483648
    %v1163 = vsel %vm1161, %v1162, %v1160
    %v1164 = vrsqrt.pop %v1080
    %v1165 = vmul.f32 %v1080, %v1164
    %vm1166 = vcmp.eq.f32.partialorder %v1080, inf
    %v1167 = vsel %vm1166, %v1080, %v1165
    %vm1168 = vcmp.eq.f32.partialorder %v1080, 0.0
    %v1169 = vand.u32 %v1080, 2147483648
    %v1170 = vsel %vm1168, %v1169, %v1167
    %v1171 = vrsqrt.pop %v1081
    %v1172 = vmul.f32 %v1081, %v1171
    %vm1173 = vcmp.eq.f32.partialorder %v1081, inf
    %v1174 = vsel %vm1173, %v1081, %v1172
    %vm1175 = vcmp.eq.f32.partialorder %v1081, 0.0
    %v1176 = vand.u32 %v1081, 2147483648
    %v1177 = vsel %vm1175, %v1176, %v1174
    %v1178 = vrsqrt.pop %v1082
    %v1179 = vmul.f32 %v1082, %v1178
    %vm1180 = vcmp.eq.f32.partialorder %v1082, inf
    %v1181 = vsel %vm1180, %v1082, %v1179
    %vm1182 = vcmp.eq.f32.partialorder %v1082, 0.0
    %v1183 = vand.u32 %v1082, 2147483648
    %v1184 = vsel %vm1182, %v1183, %v1181
    %v1185 = vrsqrt.pop %v1083
    %v1186 = vmul.f32 %v1083, %v1185
    %vm1187 = vcmp.eq.f32.partialorder %v1083, inf
    %v1188 = vsel %vm1187, %v1083, %v1186
    %vm1189 = vcmp.eq.f32.partialorder %v1083, 0.0
    %v1190 = vand.u32 %v1083, 2147483648
    %v1191 = vsel %vm1189, %v1190, %v1188
    %v1192 = vrsqrt.pop %v1084
    %v1193 = vmul.f32 %v1084, %v1192
    %vm1194 = vcmp.eq.f32.partialorder %v1084, inf
    %v1195 = vsel %vm1194, %v1084, %v1193
    %vm1196 = vcmp.eq.f32.partialorder %v1084, 0.0
    %v1197 = vand.u32 %v1084, 2147483648
    %v1198 = vsel %vm1196, %v1197, %v1195
    %v1199 = vrsqrt.pop %v1085
    %v1200 = vmul.f32 %v1085, %v1199
    %vm1201 = vcmp.eq.f32.partialorder %v1085, inf
    %v1202 = vsel %vm1201, %v1085, %v1200
    %vm1203 = vcmp.eq.f32.partialorder %v1085, 0.0
    %v1204 = vand.u32 %v1085, 2147483648
    %v1205 = vsel %vm1203, %v1204, %v1202
    %v1206 = vrsqrt.pop %v1086
    %v1207 = vmul.f32 %v1086, %v1206
    %vm1208 = vcmp.eq.f32.partialorder %v1086, inf
    %v1209 = vsel %vm1208, %v1086, %v1207
    %vm1210 = vcmp.eq.f32.partialorder %v1086, 0.0
    %v1211 = vand.u32 %v1086, 2147483648
    %v1212 = vsel %vm1210, %v1211, %v1209
    %v1213 = vrsqrt.pop %v1087
    %v1214 = vmul.f32 %v1087, %v1213
    %vm1215 = vcmp.eq.f32.partialorder %v1087, inf
    %v1216 = vsel %vm1215, %v1087, %v1214
    %vm1217 = vcmp.eq.f32.partialorder %v1087, 0.0
    %v1218 = vand.u32 %v1087, 2147483648
    %v1219 = vsel %vm1217, %v1218, %v1216
    %v1220 = vrsqrt.pop %v1088
    %v1221 = vmul.f32 %v1088, %v1220
    %vm1222 = vcmp.eq.f32.partialorder %v1088, inf
    %v1223 = vsel %vm1222, %v1088, %v1221
    %vm1224 = vcmp.eq.f32.partialorder %v1088, 0.0
    %v1225 = vand.u32 %v1088, 2147483648
    %v1226 = vsel %vm1224, %v1225, %v1223
    %v1227 = vrsqrt.pop %v1089
    %v1228 = vmul.f32 %v1089, %v1227
    %vm1229 = vcmp.eq.f32.partialorder %v1089, inf
    %v1230 = vsel %vm1229, %v1089, %v1228
    %vm1231 = vcmp.eq.f32.partialorder %v1089, 0.0
    %v1232 = vand.u32 %v1089, 2147483648
    %v1233 = vsel %vm1231, %v1232, %v1230
    %v1234 = vrsqrt.pop %v1090
    %v1235 = vmul.f32 %v1090, %v1234
    %vm1236 = vcmp.eq.f32.partialorder %v1090, inf
    %v1237 = vsel %vm1236, %v1090, %v1235
    %vm1238 = vcmp.eq.f32.partialorder %v1090, 0.0
    %v1239 = vand.u32 %v1090, 2147483648
    %v1240 = vsel %vm1238, %v1239, %v1237
    %v1241 = vrsqrt.pop %v1091
    %v1242 = vmul.f32 %v1091, %v1241
    %vm1243 = vcmp.eq.f32.partialorder %v1091, inf
    %v1244 = vsel %vm1243, %v1091, %v1242
    %vm1245 = vcmp.eq.f32.partialorder %v1091, 0.0
    %v1246 = vand.u32 %v1091, 2147483648
    %v1247 = vsel %vm1245, %v1246, %v1244
    %v1248 = vrsqrt.pop %v1092
    %v1249 = vmul.f32 %v1092, %v1248
    %vm1250 = vcmp.eq.f32.partialorder %v1092, inf
    %v1251 = vsel %vm1250, %v1092, %v1249
    %vm1252 = vcmp.eq.f32.partialorder %v1092, 0.0
    %v1253 = vand.u32 %v1092, 2147483648
    %v1254 = vsel %vm1252, %v1253, %v1251
    %v1255 = vrsqrt.pop %v1093
    %v1256 = vmul.f32 %v1093, %v1255
    %vm1257 = vcmp.eq.f32.partialorder %v1093, inf
    %v1258 = vsel %vm1257, %v1093, %v1256
    %vm1259 = vcmp.eq.f32.partialorder %v1093, 0.0
    %v1260 = vand.u32 %v1093, 2147483648
    %v1261 = vsel %vm1259, %v1260, %v1258
    %1262 = vst [vmem:[%s2] sm:$0xff] %v1100
    %1263 = vst [vmem:[%s2 + $0x8] sm:$0xff] %v1107
    %1264 = vst [vmem:[%s2 + $0x10] sm:$0xff] %v1114
    %1265 = vst [vmem:[%s2 + $0x18] sm:$0xff] %v1121
    %1266 = vst [vmem:[%s2 + $0x20] sm:$0xff] %v1128
    %1267 = vst [vmem:[%s2 + $0x28] sm:$0xff] %v1135
    %1268 = vst [vmem:[%s2 + $0x30] sm:$0xff] %v1142
    %1269 = vst [vmem:[%s2 + $0x38] sm:$0xff] %v1149
    %1270 = vst [vmem:[%s2 + $0x40] sm:$0xff] %v1156
    %1271 = vst [vmem:[%s2 + $0x48] sm:$0xff] %v1163
    %1272 = vst [vmem:[%s2 + $0x50] sm:$0xff] %v1170
    %1273 = vst [vmem:[%s2 + $0x58] sm:$0xff] %v1177
    %1274 = vst [vmem:[%s2 + $0x60] sm:$0xff] %v1184
    %1275 = vst [vmem:[%s2 + $0x68] sm:$0xff] %v1191
    %1276 = vst [vmem:[%s2 + $0x70] sm:$0xff] %v1198
    %1277 = vst [vmem:[%s2 + $0x78] sm:$0xff] %v1205
    %1278 = vst [vmem:[%s2 + $0x80] sm:$0xff] %v1212
    %1279 = vst [vmem:[%s2 + $0x88] sm:$0xff] %v1219
    %1280 = vst [vmem:[%s2 + $0x90] sm:$0xff] %v1226
    %1281 = vst [vmem:[%s2 + $0x98] sm:$0xff] %v1233
    %1282 = vst [vmem:[%s2 + $0xa0] sm:$0xff] %v1240
    %1283 = vst [vmem:[%s2 + $0xa8] sm:$0xff] %v1247
    %1284 = vst [vmem:[%s2 + $0xb0] sm:$0xff] %v1254
    %1285 = vst [vmem:[%s2 + $0xb8] sm:$0xff] %v1261
    // Predicated region
    $region14: #{forward.11} parent=1 // pred_check
      _
    $region15: #{forward.11} parent=1 // pred_check_branch
      %1287 = sbr.rel (0) target = $region17
    $region16: #{forward.11} parent=1 // pred_region
      _
    $region17: #{forward.11} parent=1 // pred_fallthru
      _
    // Predicated region
    $region18: #{forward.11} parent=1 // pred_check
      _
    $region19: #{forward.11} parent=1 // pred_check_branch
      %1289 = sbr.rel (0) target = $region21
    $region20: #{forward.11} parent=1 // pred_region
      _
    $region21: #{forward.11} parent=1 // pred_fallthru
      _
    %1290 = vsyncpa [#allocation3], 1

// kernel: forward.12
$region0: #{forward.12}
  #allocation0 [shape = 'u32[]', space=smem, size = 0x4, offset = 0x4, fixed_abs, tag = 'smem constant byte address 0x4 - core index']
  #allocation1 [shape = 'u32[144,128]{1,0:T(1,128)}', space=vmem, size = 0x12000, scoped, tag = 'internal scratch']
  %s0 = inlined_call_operand.vmem [shape: bf16[384,462], index: 0, kind: input, shape index: {}]
  %s1 = inlined_call_operand.vmem [shape: bf16[462,128], index: 1, kind: input, shape index: {}]
  %s2 = inlined_call_operand.vmem [shape: f32[384,64], index: 2, kind: output, shape index: {}]
  %s3 = sld [smem:[#allocation0]]
  $region18: #{forward.12} parent=0
    _
  %s5 = ssub.s32 1, %s3
  %s6 = scalar_select 0, %s5, %s3
  // Predicated region
  $region2: #{forward.12} parent=0 // pred_check
    _
  $region3: #{forward.12} parent=0 // pred_check_branch
    %8 = sbr.rel (0) target = $region5
  $region4: #{forward.12} parent=0 // pred_region
    _
  $region5: #{forward.12} parent=0 // pred_fallthru
    _
  // Predicated region
  $region6: #{forward.12} parent=0 // pred_check
    _
  $region7: #{forward.12} parent=0 // pred_check_branch
    %10 = sbr.rel (0) target = $region9
  $region8: #{forward.12} parent=0 // pred_region
    _
  $region9: #{forward.12} parent=0 // pred_fallthru
    _
  %v12 = vld [vmem:[%s0] sm:$0xff]
  %v13 = vld [vmem:[%s0 + $0x8] sm:$0xff]
  %v14 = vld [vmem:[%s0 + $0x10] sm:$0xff]
  %v15 = vld [vmem:[%s0 + $0x18] sm:$0xff]
  %v16 = vld [vmem:[%s0 + $0x20] sm:$0xff]
  %v17 = vld [vmem:[%s0 + $0x28] sm:$0xff]
  %v18 = vld [vmem:[%s0 + $0x30] sm:$0xff]
  %v19 = vld [vmem:[%s0 + $0x38] sm:$0xff]
  %v20 = vld [vmem:[%s0 + $0x40] sm:$0xff]
  %v21 = vld [vmem:[%s0 + $0x48] sm:$0xff]
  %v22 = vld [vmem:[%s0 + $0x50] sm:$0xff]
  %v23 = vld [vmem:[%s0 + $0x58] sm:$0xff]
  %v24 = vld [vmem:[%s0 + $0x60] sm:$0xff]
  %v25 = vld [vmem:[%s0 + $0x68] sm:$0xff]
  %v26 = vld [vmem:[%s0 + $0x70] sm:$0xff]
  %v27 = vld [vmem:[%s0 + $0x78] sm:$0xff]
  %v28 = vld [vmem:[%s0 + $0x80] sm:$0xff]
  %v29 = vld [vmem:[%s0 + $0x88] sm:$0xff]
  %v30 = vld [vmem:[%s0 + $0x90] sm:$0xff]
  %v31 = vld [vmem:[%s0 + $0x98] sm:$0xff]
  %v32 = vld [vmem:[%s0 + $0xa0] sm:$0xff]
  %v33 = vld [vmem:[%s0 + $0xa8] sm:$0xff]
  %v34 = vld [vmem:[%s0 + $0xb0] sm:$0xff]
  %v35 = vld [vmem:[%s0 + $0xb8] sm:$0xff]
  %v36 = vld [vmem:[%s0 + $0xc0] sm:$0xff]
  %v37 = vld [vmem:[%s0 + $0xc8] sm:$0xff]
  %v38 = vld [vmem:[%s0 + $0xd0] sm:$0xff]
  %v39 = vld [vmem:[%s0 + $0xd8] sm:$0xff]
  %v40 = vld [vmem:[%s0 + $0xe0] sm:$0xff]
  %v41 = vld [vmem:[%s0 + $0xe8] sm:$0xff]
  %v42 = vld [vmem:[%s0 + $0xf0] sm:$0xff]
  %v43 = vld [vmem:[%s0 + $0xf8] sm:$0xff]
  %v44 = vld [vmem:[%s0 + $0x100] sm:$0xff]
  %v45 = vld [vmem:[%s0 + $0x108] sm:$0xff]
  %v46 = vld [vmem:[%s0 + $0x110] sm:$0xff]
  %v47 = vld [vmem:[%s0 + $0x118] sm:$0xff]
  %v48 = vld [vmem:[%s0 + $0x120] sm:$0xff]
  %v49 = vld [vmem:[%s0 + $0x128] sm:$0xff]
  %v50 = vld [vmem:[%s0 + $0x130] sm:$0xff]
  %v51 = vld [vmem:[%s0 + $0x138] sm:$0xff]
  %v52 = vld [vmem:[%s0 + $0x140] sm:$0xff]
  %v53 = vld [vmem:[%s0 + $0x148] sm:$0xff]
  %v54 = vld [vmem:[%s0 + $0x150] sm:$0xff]
  %v55 = vld [vmem:[%s0 + $0x158] sm:$0xff]
  %v56 = vld [vmem:[%s0 + $0x160] sm:$0xff]
  %v57 = vld [vmem:[%s0 + $0x168] sm:$0xff]
  %v58 = vld [vmem:[%s0 + $0x170] sm:$0xff]
  %v59 = vld [vmem:[%s0 + $0x178] sm:$0xff]
  %v60 = vld [vmem:[%s0 + $0x180] sm:$0xff]
  %v61 = vld [vmem:[%s0 + $0x188] sm:$0xff]
  %v62 = vld [vmem:[%s0 + $0x190] sm:$0xff]
  %v63 = vld [vmem:[%s0 + $0x198] sm:$0xff]
  %v64 = vld [vmem:[%s0 + $0x1a0] sm:$0xff]
  %v65 = vld [vmem:[%s0 + $0x1a8] sm:$0xff]
  %v66 = vld [vmem:[%s0 + $0x1b0] sm:$0xff]
  %v67 = vld [vmem:[%s0 + $0x1b8] sm:$0xff]
  %v68 = vld [vmem:[%s0 + $0x1c0] sm:$0xff]
  %v69 = vld [vmem:[%s0 + $0x1c8] sm:$0xff]
  %v70 = vld [vmem:[%s0 + $0x1d0] sm:$0xff]
  %v71 = vld [vmem:[%s0 + $0x1d8] sm:$0xff]
  %v72 = vld [vmem:[%s0 + $0x1e0] sm:$0xff]
  %v73 = vld [vmem:[%s0 + $0x1e8] sm:$0xff]
  %v74 = vld [vmem:[%s0 + $0x1f0] sm:$0xff]
  %v75 = vld [vmem:[%s0 + $0x1f8] sm:$0xff]
  %v76 = vld [vmem:[%s0 + $0x200] sm:$0xff]
  %v77 = vld [vmem:[%s0 + $0x208] sm:$0xff]
  %v78 = vld [vmem:[%s0 + $0x210] sm:$0xff]
  %v79 = vld [vmem:[%s0 + $0x218] sm:$0xff]
  %v80 = vld [vmem:[%s0 + $0x220] sm:$0xff]
  %v81 = vld [vmem:[%s0 + $0x228] sm:$0xff]
  %v82 = vld [vmem:[%s0 + $0x230] sm:$0xff]
  %v83 = vld [vmem:[%s0 + $0x238] sm:$0xff]
  %v84 = vld [vmem:[%s0 + $0x240] sm:$0xff]
  %v85 = vld [vmem:[%s0 + $0x248] sm:$0xff]
  %v86 = vld [vmem:[%s0 + $0x250] sm:$0xff]
  %v87 = vld [vmem:[%s0 + $0x258] sm:$0xff]
  %v88 = vld [vmem:[%s0 + $0x260] sm:$0xff]
  %v89 = vld [vmem:[%s0 + $0x268] sm:$0xff]
  %v90 = vld [vmem:[%s0 + $0x270] sm:$0xff]
  %v91 = vld [vmem:[%s0 + $0x278] sm:$0xff]
  %v92 = vld [vmem:[%s0 + $0x280] sm:$0xff]
  %v93 = vld [vmem:[%s0 + $0x288] sm:$0xff]
  %v94 = vld [vmem:[%s0 + $0x290] sm:$0xff]
  %v95 = vld [vmem:[%s0 + $0x298] sm:$0xff]
  %v96 = vld [vmem:[%s0 + $0x2a0] sm:$0xff]
  %v97 = vld [vmem:[%s0 + $0x2a8] sm:$0xff]
  %v98 = vld [vmem:[%s0 + $0x2b0] sm:$0xff]
  %v99 = vld [vmem:[%s0 + $0x2b8] sm:$0xff]
  %v100 = vld [vmem:[%s0 + $0x2c0] sm:$0xff]
  %v101 = vld [vmem:[%s0 + $0x2c8] sm:$0xff]
  %v102 = vld [vmem:[%s0 + $0x2d0] sm:$0xff]
  %v103 = vld [vmem:[%s0 + $0x2d8] sm:$0xff]
  %v104 = vld [vmem:[%s0 + $0x2e0] sm:$0xff]
  %v105 = vld [vmem:[%s0 + $0x2e8] sm:$0xff]
  %v106 = vld [vmem:[%s0 + $0x2f0] sm:$0xff]
  %v107 = vld [vmem:[%s0 + $0x2f8] sm:$0xff]
  %v108 = vld [vmem:[%s1] sm:$0xf]
  %v109 = vld [vmem:[%s1 + $0x4] sm:$0xf]
  %v110 = vld [vmem:[%s1 + $0x8] sm:$0xf]
  %v111 = vld [vmem:[%s1 + $0xc] sm:$0xf]
  %v112 = vld [vmem:[%s1 + $0x10] sm:$0xf]
  %v113 = vld [vmem:[%s1 + $0x14] sm:$0xf]
  %v114 = vld [vmem:[%s1 + $0x18] sm:$0xf]
  %v115 = vld [vmem:[%s1 + $0x1c] sm:$0xf]
  %v116 = vld [vmem:[%s1 + $0x20] sm:$0xf]
  %v117 = vld [vmem:[%s1 + $0x24] sm:$0xf]
  %v118 = vld [vmem:[%s1 + $0x28] sm:$0xf]
  %v119 = vld [vmem:[%s1 + $0x2c] sm:$0xf]
  %v120 = vld [vmem:[%s1 + $0x30] sm:$0xf]
  %v121 = vld [vmem:[%s1 + $0x34] sm:$0xf]
  %v122 = vld [vmem:[%s1 + $0x38] sm:$0xf]
  %v123 = vld [vmem:[%s1 + $0x3c] sm:$0xf]
  %v124 = vld [vmem:[%s1 + $0x40] sm:$0xf]
  %v125 = vld [vmem:[%s1 + $0x44] sm:$0xf]
  %v126 = vld [vmem:[%s1 + $0x48] sm:$0xf]
  %v127 = vld [vmem:[%s1 + $0x4c] sm:$0xf]
  %v128 = vld [vmem:[%s1 + $0x50] sm:$0xf]
  %v129 = vld [vmem:[%s1 + $0x54] sm:$0xf]
  %v130 = vld [vmem:[%s1 + $0x58] sm:$0xf]
  %v131 = vld [vmem:[%s1 + $0x5c] sm:$0xf]
  %v132 = vld [vmem:[%s1 + $0x60] sm:$0xf]
  %v133 = vld [vmem:[%s1 + $0x64] sm:$0xf]
  %v134 = vld [vmem:[%s1 + $0x68] sm:$0xf]
  %v135 = vld [vmem:[%s1 + $0x6c] sm:$0xf]
  %v136 = vld [vmem:[%s1 + $0x70] sm:$0xf]
  %v137 = vld [vmem:[%s1 + $0x74] sm:$0xf]
  %v138 = vld [vmem:[%s1 + $0x78] sm:$0xf]
  %v139 = vld [vmem:[%s1 + $0x7c] sm:$0xf]
  %v140 = vld [vmem:[%s1 + $0x80] sm:$0xf]
  %v141 = vld [vmem:[%s1 + $0x84] sm:$0xf]
  %v142 = vld [vmem:[%s1 + $0x88] sm:$0xf]
  %v143 = vld [vmem:[%s1 + $0x8c] sm:$0xf]
  %v144 = vld [vmem:[%s1 + $0x90] sm:$0xf]
  %v145 = vld [vmem:[%s1 + $0x94] sm:$0xf]
  %v146 = vld [vmem:[%s1 + $0x98] sm:$0xf]
  %v147 = vld [vmem:[%s1 + $0x9c] sm:$0xf]
  %v148 = vld [vmem:[%s1 + $0xa0] sm:$0xf]
  %v149 = vld [vmem:[%s1 + $0xa4] sm:$0xf]
  %v150 = vld [vmem:[%s1 + $0xa8] sm:$0xf]
  %v151 = vld [vmem:[%s1 + $0xac] sm:$0xf]
  %v152 = vld [vmem:[%s1 + $0xb0] sm:$0xf]
  %v153 = vld [vmem:[%s1 + $0xb4] sm:$0xf]
  %v154 = vld [vmem:[%s1 + $0xb8] sm:$0xf]
  %v155 = vld [vmem:[%s1 + $0xbc] sm:$0xf]
  %v156 = vld [vmem:[%s1 + $0xc0] sm:$0xf]
  %v157 = vld [vmem:[%s1 + $0xc4] sm:$0xf]
  %v158 = vld [vmem:[%s1 + $0xc8] sm:$0xf]
  %v159 = vld [vmem:[%s1 + $0xcc] sm:$0xf]
  %v160 = vld [vmem:[%s1 + $0xd0] sm:$0xf]
  %v161 = vld [vmem:[%s1 + $0xd4] sm:$0xf]
  %v162 = vld [vmem:[%s1 + $0xd8] sm:$0xf]
  %v163 = vld [vmem:[%s1 + $0xdc] sm:$0xf]
  %v164 = vld [vmem:[%s1 + $0xe0] sm:$0xf]
  %v165 = vld [vmem:[%s1 + $0xe4] sm:$0x7]
  %v262 = vunpack.c.l.b16 %v12
  %v263 = vunpack.c.h.b16 %v12
  %v264 = vunpack.c.l.b16 %v13
  %v265 = vunpack.c.h.b16 %v13
  %v266 = vunpack.c.l.b16 %v14
  %v267 = vunpack.c.h.b16 %v14
  %v268 = vunpack.c.l.b16 %v15
  %v269 = vunpack.c.h.b16 %v15
  %v270 = vunpack.c.l.b16 %v16
  %v271 = vunpack.c.h.b16 %v16
  %v272 = vunpack.c.l.b16 %v17
  %v273 = vunpack.c.h.b16 %v17
  %v274 = vunpack.c.l.b16 %v18
  %v275 = vunpack.c.h.b16 %v18
  %v276 = vunpack.c.l.b16 %v19
  %v277 = vunpack.c.h.b16 %v19
  %v278 = vunpack.c.l.b16 %v20
  %v279 = vunpack.c.h.b16 %v20
  %v280 = vunpack.c.l.b16 %v21
  %v281 = vunpack.c.h.b16 %v21
  %v282 = vunpack.c.l.b16 %v22
  %v283 = vunpack.c.h.b16 %v22
  %v284 = vunpack.c.l.b16 %v23
  %v285 = vunpack.c.h.b16 %v23
  %v286 = vunpack.c.l.b16 %v24
  %v287 = vunpack.c.h.b16 %v24
  %v288 = vunpack.c.l.b16 %v25
  %v289 = vunpack.c.h.b16 %v25
  %v290 = vunpack.c.l.b16 %v26
  %v291 = vunpack.c.h.b16 %v26
  %v292 = vunpack.c.l.b16 %v27
  %v293 = vunpack.c.h.b16 %v27
  %v294 = vunpack.c.l.b16 %v28
  %v295 = vunpack.c.h.b16 %v28
  %v296 = vunpack.c.l.b16 %v29
  %v297 = vunpack.c.h.b16 %v29
  %v298 = vunpack.c.l.b16 %v30
  %v299 = vunpack.c.h.b16 %v30
  %v300 = vunpack.c.l.b16 %v31
  %v301 = vunpack.c.h.b16 %v31
  %v302 = vunpack.c.l.b16 %v32
  %v303 = vunpack.c.h.b16 %v32
  %v304 = vunpack.c.l.b16 %v33
  %v305 = vunpack.c.h.b16 %v33
  %v306 = vunpack.c.l.b16 %v34
  %v307 = vunpack.c.h.b16 %v34
  %v308 = vunpack.c.l.b16 %v35
  %v309 = vunpack.c.h.b16 %v35
  %v310 = vunpack.c.l.b16 %v36
  %v311 = vunpack.c.h.b16 %v36
  %v312 = vunpack.c.l.b16 %v37
  %v313 = vunpack.c.h.b16 %v37
  %v314 = vunpack.c.l.b16 %v38
  %v315 = vunpack.c.h.b16 %v38
  %v316 = vunpack.c.l.b16 %v39
  %v317 = vunpack.c.h.b16 %v39
  %v318 = vunpack.c.l.b16 %v40
  %v319 = vunpack.c.h.b16 %v40
  %v320 = vunpack.c.l.b16 %v41
  %v321 = vunpack.c.h.b16 %v41
  %v322 = vunpack.c.l.b16 %v42
  %v323 = vunpack.c.h.b16 %v42
  %v324 = vunpack.c.l.b16 %v43
  %v325 = vunpack.c.h.b16 %v43
  %v326 = vunpack.c.l.b16 %v44
  %v327 = vunpack.c.h.b16 %v44
  %v328 = vunpack.c.l.b16 %v45
  %v329 = vunpack.c.h.b16 %v45
  %v330 = vunpack.c.l.b16 %v46
  %v331 = vunpack.c.h.b16 %v46
  %v332 = vunpack.c.l.b16 %v47
  %v333 = vunpack.c.h.b16 %v47
  %v334 = vunpack.c.l.b16 %v48
  %v335 = vunpack.c.h.b16 %v48
  %v336 = vunpack.c.l.b16 %v49
  %v337 = vunpack.c.h.b16 %v49
  %v338 = vunpack.c.l.b16 %v50
  %v339 = vunpack.c.h.b16 %v50
  %v340 = vunpack.c.l.b16 %v51
  %v341 = vunpack.c.h.b16 %v51
  %v342 = vunpack.c.l.b16 %v52
  %v343 = vunpack.c.h.b16 %v52
  %v344 = vunpack.c.l.b16 %v53
  %v345 = vunpack.c.h.b16 %v53
  %v346 = vunpack.c.l.b16 %v54
  %v347 = vunpack.c.h.b16 %v54
  %v348 = vunpack.c.l.b16 %v55
  %v349 = vunpack.c.h.b16 %v55
  %v350 = vunpack.c.l.b16 %v56
  %v351 = vunpack.c.h.b16 %v56
  %v352 = vunpack.c.l.b16 %v57
  %v353 = vunpack.c.h.b16 %v57
  %v354 = vunpack.c.l.b16 %v58
  %v355 = vunpack.c.h.b16 %v58
  %v356 = vunpack.c.l.b16 %v59
  %v357 = vunpack.c.h.b16 %v59
  %v358 = vunpack.c.l.b16 %v60
  %v359 = vunpack.c.h.b16 %v60
  %v360 = vunpack.c.l.b16 %v61
  %v361 = vunpack.c.h.b16 %v61
  %v362 = vunpack.c.l.b16 %v62
  %v363 = vunpack.c.h.b16 %v62
  %v364 = vunpack.c.l.b16 %v63
  %v365 = vunpack.c.h.b16 %v63
  %v366 = vunpack.c.l.b16 %v64
  %v367 = vunpack.c.h.b16 %v64
  %v368 = vunpack.c.l.b16 %v65
  %v369 = vunpack.c.h.b16 %v65
  %v370 = vunpack.c.l.b16 %v66
  %v371 = vunpack.c.h.b16 %v66
  %v372 = vunpack.c.l.b16 %v67
  %v373 = vunpack.c.h.b16 %v67
  %v374 = vunpack.c.l.b16 %v68
  %v375 = vunpack.c.h.b16 %v68
  %v376 = vunpack.c.l.b16 %v69
  %v377 = vunpack.c.h.b16 %v69
  %v378 = vunpack.c.l.b16 %v70
  %v379 = vunpack.c.h.b16 %v70
  %v380 = vunpack.c.l.b16 %v71
  %v381 = vunpack.c.h.b16 %v71
  %v382 = vunpack.c.l.b16 %v72
  %v383 = vunpack.c.h.b16 %v72
  %v384 = vunpack.c.l.b16 %v73
  %v385 = vunpack.c.h.b16 %v73
  %v386 = vunpack.c.l.b16 %v74
  %v387 = vunpack.c.h.b16 %v74
  %v388 = vunpack.c.l.b16 %v75
  %v389 = vunpack.c.h.b16 %v75
  %v390 = vunpack.c.l.b16 %v76
  %v391 = vunpack.c.h.b16 %v76
  %v392 = vunpack.c.l.b16 %v77
  %v393 = vunpack.c.h.b16 %v77
  %v394 = vunpack.c.l.b16 %v78
  %v395 = vunpack.c.h.b16 %v78
  %v396 = vunpack.c.l.b16 %v79
  %v397 = vunpack.c.h.b16 %v79
  %v398 = vunpack.c.l.b16 %v80
  %v399 = vunpack.c.h.b16 %v80
  %v400 = vunpack.c.l.b16 %v81
  %v401 = vunpack.c.h.b16 %v81
  %v402 = vunpack.c.l.b16 %v82
  %v403 = vunpack.c.h.b16 %v82
  %v404 = vunpack.c.l.b16 %v83
  %v405 = vunpack.c.h.b16 %v83
  %v406 = vunpack.c.l.b16 %v84
  %v407 = vunpack.c.h.b16 %v84
  %v408 = vunpack.c.l.b16 %v85
  %v409 = vunpack.c.h.b16 %v85
  %v410 = vunpack.c.l.b16 %v86
  %v411 = vunpack.c.h.b16 %v86
  %v412 = vunpack.c.l.b16 %v87
  %v413 = vunpack.c.h.b16 %v87
  %v414 = vunpack.c.l.b16 %v88
  %v415 = vunpack.c.h.b16 %v88
  %v416 = vunpack.c.l.b16 %v89
  %v417 = vunpack.c.h.b16 %v89
  %v418 = vunpack.c.l.b16 %v90
  %v419 = vunpack.c.h.b16 %v90
  %v420 = vunpack.c.l.b16 %v91
  %v421 = vunpack.c.h.b16 %v91
  %v422 = vunpack.c.l.b16 %v92
  %v423 = vunpack.c.h.b16 %v92
  %v424 = vunpack.c.l.b16 %v93
  %v425 = vunpack.c.h.b16 %v93
  %v426 = vunpack.c.l.b16 %v94
  %v427 = vunpack.c.h.b16 %v94
  %v428 = vunpack.c.l.b16 %v95
  %v429 = vunpack.c.h.b16 %v95
  %v430 = vunpack.c.l.b16 %v96
  %v431 = vunpack.c.h.b16 %v96
  %v432 = vunpack.c.l.b16 %v97
  %v433 = vunpack.c.h.b16 %v97
  %v434 = vunpack.c.l.b16 %v98
  %v435 = vunpack.c.h.b16 %v98
  %v436 = vunpack.c.l.b16 %v99
  %v437 = vunpack.c.h.b16 %v99
  %v438 = vunpack.c.l.b16 %v100
  %v439 = vunpack.c.h.b16 %v100
  %v440 = vunpack.c.l.b16 %v101
  %v441 = vunpack.c.h.b16 %v101
  %v442 = vunpack.c.l.b16 %v102
  %v443 = vunpack.c.h.b16 %v102
  %v444 = vunpack.c.l.b16 %v103
  %v445 = vunpack.c.h.b16 %v103
  %v446 = vunpack.c.l.b16 %v104
  %v447 = vunpack.c.h.b16 %v104
  %v448 = vunpack.c.l.b16 %v105
  %v449 = vunpack.c.h.b16 %v105
  %v450 = vunpack.c.l.b16 %v106
  %v451 = vunpack.c.h.b16 %v106
  %v452 = vunpack.c.l.b16 %v107
  %v453 = vunpack.c.h.b16 %v107
  %v454 = vpack.c.b16 %v266, %v262
  %v455 = vpack.c.b16 %v267, %v263
  %v456 = vpack.c.b16 %v268, %v264
  %v457 = vpack.c.b16 %v269, %v265
  %v458 = vpack.c.b16 %v274, %v270
  %v459 = vpack.c.b16 %v275, %v271
  %v460 = vpack.c.b16 %v276, %v272
  %v461 = vpack.c.b16 %v277, %v273
  %v462 = vpack.c.b16 %v282, %v278
  %v463 = vpack.c.b16 %v283, %v279
  %v464 = vpack.c.b16 %v284, %v280
  %v465 = vpack.c.b16 %v285, %v281
  %v466 = vpack.c.b16 %v290, %v286
  %v467 = vpack.c.b16 %v291, %v287
  %v468 = vpack.c.b16 %v292, %v288
  %v469 = vpack.c.b16 %v293, %v289
  %v470 = vpack.c.b16 %v298, %v294
  %v471 = vpack.c.b16 %v299, %v295
  %v472 = vpack.c.b16 %v300, %v296
  %v473 = vpack.c.b16 %v301, %v297
  %v474 = vpack.c.b16 %v306, %v302
  %v475 = vpack.c.b16 %v307, %v303
  %v476 = vpack.c.b16 %v308, %v304
  %v477 = vpack.c.b16 %v309, %v305
  %v478 = vpack.c.b16 %v314, %v310
  %v479 = vpack.c.b16 %v315, %v311
  %v480 = vpack.c.b16 %v316, %v312
  %v481 = vpack.c.b16 %v317, %v313
  %v482 = vpack.c.b16 %v322, %v318
  %v483 = vpack.c.b16 %v323, %v319
  %v484 = vpack.c.b16 %v324, %v320
  %v485 = vpack.c.b16 %v325, %v321
  %v486 = vpack.c.b16 %v330, %v326
  %v487 = vpack.c.b16 %v331, %v327
  %v488 = vpack.c.b16 %v332, %v328
  %v489 = vpack.c.b16 %v333, %v329
  %v490 = vpack.c.b16 %v338, %v334
  %v491 = vpack.c.b16 %v339, %v335
  %v492 = vpack.c.b16 %v340, %v336
  %v493 = vpack.c.b16 %v341, %v337
  %v494 = vpack.c.b16 %v346, %v342
  %v495 = vpack.c.b16 %v347, %v343
  %v496 = vpack.c.b16 %v348, %v344
  %v497 = vpack.c.b16 %v349, %v345
  %v498 = vpack.c.b16 %v354, %v350
  %v499 = vpack.c.b16 %v355, %v351
  %v500 = vpack.c.b16 %v356, %v352
  %v501 = vpack.c.b16 %v357, %v353
  %v502 = vpack.c.b16 %v362, %v358
  %v503 = vpack.c.b16 %v363, %v359
  %v504 = vpack.c.b16 %v364, %v360
  %v505 = vpack.c.b16 %v365, %v361
  %v506 = vpack.c.b16 %v370, %v366
  %v507 = vpack.c.b16 %v371, %v367
  %v508 = vpack.c.b16 %v372, %v368
  %v509 = vpack.c.b16 %v373, %v369
  %v510 = vpack.c.b16 %v378, %v374
  %v511 = vpack.c.b16 %v379, %v375
  %v512 = vpack.c.b16 %v380, %v376
  %v513 = vpack.c.b16 %v381, %v377
  %v514 = vpack.c.b16 %v386, %v382
  %v515 = vpack.c.b16 %v387, %v383
  %v516 = vpack.c.b16 %v388, %v384
  %v517 = vpack.c.b16 %v389, %v385
  %v518 = vpack.c.b16 %v394, %v390
  %v519 = vpack.c.b16 %v395, %v391
  %v520 = vpack.c.b16 %v396, %v392
  %v521 = vpack.c.b16 %v397, %v393
  %v522 = vpack.c.b16 %v402, %v398
  %v523 = vpack.c.b16 %v403, %v399
  %v524 = vpack.c.b16 %v404, %v400
  %v525 = vpack.c.b16 %v405, %v401
  %v526 = vpack.c.b16 %v410, %v406
  %v527 = vpack.c.b16 %v411, %v407
  %v528 = vpack.c.b16 %v412, %v408
  %v529 = vpack.c.b16 %v413, %v409
  %v530 = vpack.c.b16 %v418, %v414
  %v531 = vpack.c.b16 %v419, %v415
  %v532 = vpack.c.b16 %v420, %v416
  %v533 = vpack.c.b16 %v421, %v417
  %v534 = vpack.c.b16 %v426, %v422
  %v535 = vpack.c.b16 %v427, %v423
  %v536 = vpack.c.b16 %v428, %v424
  %v537 = vpack.c.b16 %v429, %v425
  %v538 = vpack.c.b16 %v434, %v430
  %v539 = vpack.c.b16 %v435, %v431
  %v540 = vpack.c.b16 %v436, %v432
  %v541 = vpack.c.b16 %v437, %v433
  %v542 = vpack.c.b16 %v442, %v438
  %v543 = vpack.c.b16 %v443, %v439
  %v544 = vpack.c.b16 %v444, %v440
  %v545 = vpack.c.b16 %v445, %v441
  %v546 = vpack.c.b16 %v450, %v446
  %v547 = vpack.c.b16 %v451, %v447
  %v548 = vpack.c.b16 %v452, %v448
  %v549 = vpack.c.b16 %v453, %v449
  %v680 = vunpack.c.l.b16 %v108
  %v681 = vunpack.c.l.b16 %v109
  %v682 = vunpack.c.l.b16 %v110
  %v683 = vunpack.c.l.b16 %v111
  %v684 = vunpack.c.l.b16 %v112
  %v685 = vunpack.c.l.b16 %v113
  %v686 = vunpack.c.l.b16 %v114
  %v687 = vunpack.c.l.b16 %v115
  %v688 = vunpack.c.l.b16 %v116
  %v689 = vunpack.c.l.b16 %v117
  %v690 = vunpack.c.l.b16 %v118
  %v691 = vunpack.c.l.b16 %v119
  %v692 = vunpack.c.l.b16 %v120
  %v693 = vunpack.c.l.b16 %v121
  %v694 = vunpack.c.l.b16 %v122
  %v695 = vunpack.c.l.b16 %v123
  %v696 = vunpack.c.l.b16 %v124
  %v697 = vunpack.c.l.b16 %v125
  %v698 = vunpack.c.l.b16 %v126
  %v699 = vunpack.c.l.b16 %v127
  %v700 = vunpack.c.l.b16 %v128
  %v701 = vunpack.c.l.b16 %v129
  %v702 = vunpack.c.l.b16 %v130
  %v703 = vunpack.c.l.b16 %v131
  %v704 = vunpack.c.l.b16 %v132
  %v705 = vunpack.c.l.b16 %v133
  %v706 = vunpack.c.l.b16 %v134
  %v707 = vunpack.c.l.b16 %v135
  %v708 = vunpack.c.l.b16 %v136
  %v709 = vunpack.c.l.b16 %v137
  %v710 = vunpack.c.l.b16 %v138
  %v711 = vunpack.c.l.b16 %v139
  %v712 = vunpack.c.l.b16 %v140
  %v713 = vunpack.c.l.b16 %v141
  %v714 = vunpack.c.l.b16 %v142
  %v715 = vunpack.c.l.b16 %v143
  %v716 = vunpack.c.l.b16 %v144
  %v717 = vunpack.c.l.b16 %v145
  %v718 = vunpack.c.l.b16 %v146
  %v719 = vunpack.c.l.b16 %v147
  %v720 = vunpack.c.l.b16 %v148
  %v721 = vunpack.c.l.b16 %v149
  %v722 = vunpack.c.l.b16 %v150
  %v723 = vunpack.c.l.b16 %v151
  %v724 = vunpack.c.l.b16 %v152
  %v725 = vunpack.c.l.b16 %v153
  %v726 = vunpack.c.l.b16 %v154
  %v727 = vunpack.c.l.b16 %v155
  %v728 = vunpack.c.l.b16 %v156
  %v729 = vunpack.c.l.b16 %v157
  %v730 = vunpack.c.l.b16 %v158
  %v731 = vunpack.c.l.b16 %v159
  %v732 = vunpack.c.l.b16 %v160
  %v733 = vunpack.c.l.b16 %v161
  %v734 = vunpack.c.l.b16 %v162
  %v735 = vunpack.c.l.b16 %v163
  %v736 = vunpack.c.l.b16 %v164
  %v737 = vunpack.c.l.b16 %v165
  %v738 = vpack.c.b16 %v681, %v680
  %v739 = vpack.c.b16 %v683, %v682
  %v740 = vpack.c.b16 %v685, %v684
  %v741 = vpack.c.b16 %v687, %v686
  %v742 = vpack.c.b16 %v689, %v688
  %v743 = vpack.c.b16 %v691, %v690
  %v744 = vpack.c.b16 %v693, %v692
  %v745 = vpack.c.b16 %v695, %v694
  %v746 = vpack.c.b16 %v697, %v696
  %v747 = vpack.c.b16 %v699, %v698
  %v748 = vpack.c.b16 %v701, %v700
  %v749 = vpack.c.b16 %v703, %v702
  %v750 = vpack.c.b16 %v705, %v704
  %v751 = vpack.c.b16 %v707, %v706
  %v752 = vpack.c.b16 %v709, %v708
  %v753 = vpack.c.b16 %v711, %v710
  %v754 = vpack.c.b16 %v713, %v712
  %v755 = vpack.c.b16 %v715, %v714
  %v756 = vpack.c.b16 %v717, %v716
  %v757 = vpack.c.b16 %v719, %v718
  %v758 = vpack.c.b16 %v721, %v720
  %v759 = vpack.c.b16 %v723, %v722
  %v760 = vpack.c.b16 %v725, %v724
  %v761 = vpack.c.b16 %v727, %v726
  %v762 = vpack.c.b16 %v729, %v728
  %v763 = vpack.c.b16 %v731, %v730
  %v764 = vpack.c.b16 %v733, %v732
  %v765 = vpack.c.b16 %v735, %v734
  %v766 = vpack.c.b16 %v737, %v736
  %vm795 = vcmask 637952
  %v797 = vsel %vm795, %v457, 0
  %v800 = vsel %vm795, %v461, 0
  %v803 = vsel %vm795, %v465, 0
  %v806 = vsel %vm795, %v469, 0
  %v809 = vsel %vm795, %v473, 0
  %v812 = vsel %vm795, %v477, 0
  %v815 = vsel %vm795, %v481, 0
  %v818 = vsel %vm795, %v485, 0
  %v821 = vsel %vm795, %v489, 0
  %v824 = vsel %vm795, %v493, 0
  %v827 = vsel %vm795, %v497, 0
  %v830 = vsel %vm795, %v501, 0
  %v833 = vsel %vm795, %v505, 0
  %v836 = vsel %vm795, %v509, 0
  %v839 = vsel %vm795, %v513, 0
  %v842 = vsel %vm795, %v517, 0
  %v845 = vsel %vm795, %v521, 0
  %v848 = vsel %vm795, %v525, 0
  %v851 = vsel %vm795, %v529, 0
  %v854 = vsel %vm795, %v533, 0
  %v857 = vsel %vm795, %v537, 0
  %v860 = vsel %vm795, %v541, 0
  %v863 = vsel %vm795, %v545, 0
  %v866 = vsel %vm795, %v549, 0
  %vm868 = vcmask 1046528
  %v870 = vsel %vm868, %v766, 0
  %872 = vmatprep.subr.bf16.mxu0 0
  %873 = vmatpush1.bf16.msra.mxu0 %v738
  %874 = vmatprep.subr.bf16.mxu0 0
  %875 = vmatpush1.bf16.msra.mxu0 %v739
  %876 = vmatprep.subr.bf16.mxu0 0
  %877 = vmatpush1.bf16.msra.mxu0 %v740
  %878 = vmatprep.subr.bf16.mxu0 0
  %879 = vmatpush1.bf16.msra.mxu0 %v741
  %880 = vmatprep.subr.bf16.mxu0 0
  %881 = vmatpush1.bf16.msra.mxu0 %v742
  %882 = vmatprep.subr.bf16.mxu0 0
  %883 = vmatpush1.bf16.msra.mxu0 %v743
  %884 = vmatprep.subr.bf16.mxu0 0
  %885 = vmatpush1.bf16.msra.mxu0 %v744
  %886 = vmatprep.subr.bf16.mxu0 0
  %887 = vmatpush1.bf16.msra.mxu0 %v745
  %888 = vmatprep.subr.bf16.mxu0 0
  %889 = vmatpush1.bf16.msra.mxu0 %v746
  %890 = vmatprep.subr.bf16.mxu0 0
  %891 = vmatpush1.bf16.msra.mxu0 %v747
  %892 = vmatprep.subr.bf16.mxu0 0
  %893 = vmatpush1.bf16.msra.mxu0 %v748
  %894 = vmatprep.subr.bf16.mxu0 0
  %895 = vmatpush1.bf16.msra.mxu0 %v749
  %896 = vmatprep.subr.bf16.mxu0 0
  %897 = vmatpush1.bf16.msra.mxu0 %v750
  %898 = vmatprep.subr.bf16.mxu0 0
  %899 = vmatpush1.bf16.msra.mxu0 %v751
  %900 = vmatprep.subr.bf16.mxu0 0
  %901 = vmatpush1.bf16.msra.mxu0 %v752
  %902 = vmatprep.subr.bf16.mxu0 0
  %903 = vmatpush1.bf16.msra.mxu0 %v753
  %904 = vmatprep.mubr.bf16.mxu0 %v455
  %905 = vmatmul.mubr.bf16.gmra.mrb[0].mxu0 %v454
  %v906 = vpop.f32.mrb[0].mxu0
  %v907 = vadd.f32 0.0, %v906
  %v908 = vpop.f32.mrb[0].mxu0
  %v909 = vpop.f32.mrb[0].mxu0
  %v910 = vadd.f32 0.0, %v909
  %v911 = vpop.f32.mrb[0].mxu0
  %912 = vmatprep.mubr.bf16.mxu0 %v459
  %913 = vmatmul.mubr.bf16.gmra.mrb[0].mxu0 %v458
  %v914 = vpop.f32.mrb[0].mxu0
  %v915 = vadd.f32 0.0, %v914
  %v916 = vpop.f32.mrb[0].mxu0
  %v917 = vpop.f32.mrb[0].mxu0
  %v918 = vadd.f32 0.0, %v917
  %v919 = vpop.f32.mrb[0].mxu0
  %920 = vmatprep.mubr.bf16.mxu0 %v463
  %921 = vmatmul.mubr.bf16.gmra.mrb[0].mxu0 %v462
  %v922 = vpop.f32.mrb[0].mxu0
  %v923 = vadd.f32 0.0, %v922
  %v924 = vpop.f32.mrb[0].mxu0
  %v925 = vpop.f32.mrb[0].mxu0
  %v926 = vadd.f32 0.0, %v925
  %v927 = vpop.f32.mrb[0].mxu0
  %928 = vmatprep.mubr.bf16.mxu0 %v467
  %929 = vmatmul.mubr.bf16.gmra.mrb[0].mxu0 %v466
  %v930 = vpop.f32.mrb[0].mxu0
  %v931 = vadd.f32 0.0, %v930
  %v932 = vpop.f32.mrb[0].mxu0
  %v933 = vpop.f32.mrb[0].mxu0
  %v934 = vadd.f32 0.0, %v933
  %v935 = vpop.f32.mrb[0].mxu0
  %936 = vmatprep.mubr.bf16.mxu0 %v471
  %937 = vmatmul.mubr.bf16.gmra.mrb[0].mxu0 %v470
  %v938 = vpop.f32.mrb[0].mxu0
  %v939 = vadd.f32 0.0, %v938
  %v940 = vpop.f32.mrb[0].mxu0
  %v941 = vpop.f32.mrb[0].mxu0
  %v942 = vadd.f32 0.0, %v941
  %v943 = vpop.f32.mrb[0].mxu0
  %944 = vmatprep.mubr.bf16.mxu0 %v475
  %945 = vmatmul.mubr.bf16.gmra.mrb[0].mxu0 %v474
  %v946 = vpop.f32.mrb[0].mxu0
  %v947 = vadd.f32 0.0, %v946
  %v948 = vpop.f32.mrb[0].mxu0
  %v949 = vpop.f32.mrb[0].mxu0
  %v950 = vadd.f32 0.0, %v949
  %v951 = vpop.f32.mrb[0].mxu0
  %952 = vmatprep.mubr.bf16.mxu0 %v479
  %953 = vmatmul.mubr.bf16.gmra.mrb[0].mxu0 %v478
  %v954 = vpop.f32.mrb[0].mxu0
  %v955 = vadd.f32 0.0, %v954
  %v956 = vpop.f32.mrb[0].mxu0
  %v957 = vpop.f32.mrb[0].mxu0
  %v958 = vadd.f32 0.0, %v957
  %v959 = vpop.f32.mrb[0].mxu0
  %960 = vmatprep.mubr.bf16.mxu0 %v483
  %961 = vmatmul.mubr.bf16.gmra.mrb[0].mxu0 %v482
  %v962 = vpop.f32.mrb[0].mxu0
  %v963 = vadd.f32 0.0, %v962
  %v964 = vpop.f32.mrb[0].mxu0
  %v965 = vpop.f32.mrb[0].mxu0
  %v966 = vadd.f32 0.0, %v965
  %v967 = vpop.f32.mrb[0].mxu0
  %968 = vmatprep.mubr.bf16.mxu0 %v487
  %969 = vmatmul.mubr.bf16.gmra.mrb[0].mxu0 %v486
  %v970 = vpop.f32.mrb[0].mxu0
  %v971 = vadd.f32 0.0, %v970
  %v972 = vpop.f32.mrb[0].mxu0
  %v973 = vpop.f32.mrb[0].mxu0
  %v974 = vadd.f32 0.0, %v973
  %v975 = vpop.f32.mrb[0].mxu0
  %976 = vmatprep.mubr.bf16.mxu0 %v491
  %977 = vmatmul.mubr.bf16.gmra.mrb[0].mxu0 %v490
  %v978 = vpop.f32.mrb[0].mxu0
  %v979 = vadd.f32 0.0, %v978
  %v980 = vpop.f32.mrb[0].mxu0
  %v981 = vpop.f32.mrb[0].mxu0
  %v982 = vadd.f32 0.0, %v981
  %v983 = vpop.f32.mrb[0].mxu0
  %984 = vmatprep.mubr.bf16.mxu0 %v495
  %985 = vmatmul.mubr.bf16.gmra.mrb[0].mxu0 %v494
  %v986 = vpop.f32.mrb[0].mxu0
  %v987 = vadd.f32 0.0, %v986
  %v988 = vpop.f32.mrb[0].mxu0
  %v989 = vpop.f32.mrb[0].mxu0
  %v990 = vadd.f32 0.0, %v989
  %v991 = vpop.f32.mrb[0].mxu0
  %992 = vmatprep.mubr.bf16.mxu0 %v499
  %993 = vmatmul.mubr.bf16.gmra.mrb[0].mxu0 %v498
  %v994 = vpop.f32.mrb[0].mxu0
  %v995 = vadd.f32 0.0, %v994
  %v996 = vpop.f32.mrb[0].mxu0
  %v997 = vpop.f32.mrb[0].mxu0
  %v998 = vadd.f32 0.0, %v997
  %v999 = vpop.f32.mrb[0].mxu0
  %1000 = vmatprep.mubr.bf16.mxu0 %v503
  %1001 = vmatmul.mubr.bf16.gmra.mrb[0].mxu0 %v502
  %v1002 = vpop.f32.mrb[0].mxu0
  %v1003 = vadd.f32 0.0, %v1002
  %v1004 = vpop.f32.mrb[0].mxu0
  %v1005 = vpop.f32.mrb[0].mxu0
  %v1006 = vadd.f32 0.0, %v1005
  %v1007 = vpop.f32.mrb[0].mxu0
  %1008 = vmatprep.mubr.bf16.mxu0 %v507
  %1009 = vmatmul.mubr.bf16.gmra.mrb[0].mxu0 %v506
  %v1010 = vpop.f32.mrb[0].mxu0
  %v1011 = vadd.f32 0.0, %v1010
  %v1012 = vpop.f32.mrb[0].mxu0
  %v1013 = vpop.f32.mrb[0].mxu0
  %v1014 = vadd.f32 0.0, %v1013
  %v1015 = vpop.f32.mrb[0].mxu0
  %1016 = vmatprep.mubr.bf16.mxu0 %v511
  %1017 = vmatmul.mubr.bf16.gmra.mrb[0].mxu0 %v510
  %v1018 = vpop.f32.mrb[0].mxu0
  %v1019 = vadd.f32 0.0, %v1018
  %v1020 = vpop.f32.mrb[0].mxu0
  %v1021 = vpop.f32.mrb[0].mxu0
  %v1022 = vadd.f32 0.0, %v1021
  %v1023 = vpop.f32.mrb[0].mxu0
  %1024 = vmatprep.mubr.bf16.mxu0 %v515
  %1025 = vmatmul.mubr.bf16.gmra.mrb[0].mxu0 %v514
  %v1026 = vpop.f32.mrb[0].mxu0
  %v1027 = vadd.f32 0.0, %v1026
  %v1028 = vpop.f32.mrb[0].mxu0
  %v1029 = vpop.f32.mrb[0].mxu0
  %v1030 = vadd.f32 0.0, %v1029
  %v1031 = vpop.f32.mrb[0].mxu0
  %1032 = vmatprep.mubr.bf16.mxu0 %v519
  %1033 = vmatmul.mubr.bf16.gmra.mrb[0].mxu0 %v518
  %v1034 = vpop.f32.mrb[0].mxu0
  %v1035 = vadd.f32 0.0, %v1034
  %v1036 = vpop.f32.mrb[0].mxu0
  %v1037 = vpop.f32.mrb[0].mxu0
  %v1038 = vadd.f32 0.0, %v1037
  %v1039 = vpop.f32.mrb[0].mxu0
  %1040 = vmatprep.mubr.bf16.mxu0 %v523
  %1041 = vmatmul.mubr.bf16.gmra.mrb[0].mxu0 %v522
  %v1042 = vpop.f32.mrb[0].mxu0
  %v1043 = vadd.f32 0.0, %v1042
  %v1044 = vpop.f32.mrb[0].mxu0
  %v1045 = vpop.f32.mrb[0].mxu0
  %v1046 = vadd.f32 0.0, %v1045
  %v1047 = vpop.f32.mrb[0].mxu0
  %1048 = vmatprep.mubr.bf16.mxu0 %v527
  %1049 = vmatmul.mubr.bf16.gmra.mrb[0].mxu0 %v526
  %v1050 = vpop.f32.mrb[0].mxu0
  %v1051 = vadd.f32 0.0, %v1050
  %v1052 = vpop.f32.mrb[0].mxu0
  %v1053 = vpop.f32.mrb[0].mxu0
  %v1054 = vadd.f32 0.0, %v1053
  %v1055 = vpop.f32.mrb[0].mxu0
  %1056 = vmatprep.mubr.bf16.mxu0 %v531
  %1057 = vmatmul.mubr.bf16.gmra.mrb[0].mxu0 %v530
  %v1058 = vpop.f32.mrb[0].mxu0
  %v1059 = vadd.f32 0.0, %v1058
  %v1060 = vpop.f32.mrb[0].mxu0
  %v1061 = vpop.f32.mrb[0].mxu0
  %v1062 = vadd.f32 0.0, %v1061
  %v1063 = vpop.f32.mrb[0].mxu0
  %1064 = vmatprep.mubr.bf16.mxu0 %v535
  %1065 = vmatmul.mubr.bf16.gmra.mrb[0].mxu0 %v534
  %v1066 = vpop.f32.mrb[0].mxu0
  %v1067 = vadd.f32 0.0, %v1066
  %v1068 = vpop.f32.mrb[0].mxu0
  %v1069 = vpop.f32.mrb[0].mxu0
  %v1070 = vadd.f32 0.0, %v1069
  %v1071 = vpop.f32.mrb[0].mxu0
  %1072 = vmatprep.mubr.bf16.mxu0 %v539
  %1073 = vmatmul.mubr.bf16.gmra.mrb[0].mxu0 %v538
  %v1074 = vpop.f32.mrb[0].mxu0
  %v1075 = vadd.f32 0.0, %v1074
  %v1076 = vpop.f32.mrb[0].mxu0
  %v1077 = vpop.f32.mrb[0].mxu0
  %v1078 = vadd.f32 0.0, %v1077
  %v1079 = vpop.f32.mrb[0].mxu0
  %1080 = vmatprep.mubr.bf16.mxu0 %v543
  %1081 = vmatmul.mubr.bf16.gmra.mrb[0].mxu0 %v542
  %v1082 = vpop.f32.mrb[0].mxu0
  %v1083 = vadd.f32 0.0, %v1082
  %v1084 = vpop.f32.mrb[0].mxu0
  %v1085 = vpop.f32.mrb[0].mxu0
  %v1086 = vadd.f32 0.0, %v1085
  %v1087 = vpop.f32.mrb[0].mxu0
  %1088 = vmatprep.mubr.bf16.mxu0 %v547
  %1089 = vmatmul.mubr.bf16.gmra.mrb[0].mxu0 %v546
  %v1090 = vpop.f32.mrb[0].mxu0
  %v1091 = vadd.f32 0.0, %v1090
  %v1092 = vpop.f32.mrb[0].mxu0
  %v1093 = vpop.f32.mrb[0].mxu0
  %v1094 = vadd.f32 0.0, %v1093
  %v1095 = vpop.f32.mrb[0].mxu0
  %1096 = vdwg.mxu0
  %1097 = vmatprep.subr.bf16.mxu0 0
  %1098 = vmatpush1.bf16.msra.mxu0 %v754
  %1099 = vmatprep.subr.bf16.mxu0 0
  %1100 = vmatpush1.bf16.msra.mxu0 %v755
  %1101 = vmatprep.subr.bf16.mxu0 0
  %1102 = vmatpush1.bf16.msra.mxu0 %v756
  %1103 = vmatprep.subr.bf16.mxu0 0
  %1104 = vmatpush1.bf16.msra.mxu0 %v757
  %1105 = vmatprep.subr.bf16.mxu0 0
  %1106 = vmatpush1.bf16.msra.mxu0 %v758
  %1107 = vmatprep.subr.bf16.mxu0 0
  %1108 = vmatpush1.bf16.msra.mxu0 %v759
  %1109 = vmatprep.subr.bf16.mxu0 0
  %1110 = vmatpush1.bf16.msra.mxu0 %v760
  %1111 = vmatprep.subr.bf16.mxu0 0
  %1112 = vmatpush1.bf16.msra.mxu0 %v761
  %1113 = vmatprep.subr.bf16.mxu0 0
  %1114 = vmatpush1.bf16.msra.mxu0 %v762
  %1115 = vmatprep.subr.bf16.mxu0 0
  %1116 = vmatpush1.bf16.msra.mxu0 %v763
  %1117 = vmatprep.subr.bf16.mxu0 0
  %1118 = vmatpush1.bf16.msra.mxu0 %v764
  %1119 = vmatprep.subr.bf16.mxu0 0
  %1120 = vmatpush1.bf16.msra.mxu0 %v765
  %1121 = vmatprep.subr.bf16.mxu0 0
  %1122 = vmatpush1.bf16.msra.mxu0 %v870
  %1123 = vmatprep.subr.bf16.mxu0 0
  %1124 = vmatpush1.bf16.msra.mxu0 0
  %1125 = vmatprep.subr.bf16.mxu0 0
  %1126 = vmatpush1.bf16.msra.mxu0 0
  %1127 = vmatprep.subr.bf16.mxu0 0
  %1128 = vmatpush1.bf16.msra.mxu0 0
  %1129 = vmatprep.mubr.bf16.mxu0 %v797
  %1130 = vmatmul.mubr.bf16.gmra.mrb[0].mxu0 %v456
  %v1131 = vpop.f32.mrb[0].mxu0
  %v1132 = vadd.f32 %v907, %v1131
  %v1133 = vpop.f32.mrb[0].mxu0
  %v1134 = vpop.f32.mrb[0].mxu0
  %v1135 = vadd.f32 %v910, %v1134
  %v1136 = vpop.f32.mrb[0].mxu0
  %1137 = vmatprep.mubr.bf16.mxu0 %v800
  %1138 = vmatmul.mubr.bf16.gmra.mrb[0].mxu0 %v460
  %v1139 = vpop.f32.mrb[0].mxu0
  %v1140 = vadd.f32 %v915, %v1139
  %v1141 = vpop.f32.mrb[0].mxu0
  %v1142 = vpop.f32.mrb[0].mxu0
  %v1143 = vadd.f32 %v918, %v1142
  %v1144 = vpop.f32.mrb[0].mxu0
  %1145 = vmatprep.mubr.bf16.mxu0 %v803
  %1146 = vmatmul.mubr.bf16.gmra.mrb[0].mxu0 %v464
  %v1147 = vpop.f32.mrb[0].mxu0
  %v1148 = vadd.f32 %v923, %v1147
  %v1149 = vpop.f32.mrb[0].mxu0
  %v1150 = vpop.f32.mrb[0].mxu0
  %v1151 = vadd.f32 %v926, %v1150
  %v1152 = vpop.f32.mrb[0].mxu0
  %1153 = vmatprep.mubr.bf16.mxu0 %v806
  %1154 = vmatmul.mubr.bf16.gmra.mrb[0].mxu0 %v468
  %v1155 = vpop.f32.mrb[0].mxu0
  %v1156 = vadd.f32 %v931, %v1155
  %v1157 = vpop.f32.mrb[0].mxu0
  %v1158 = vpop.f32.mrb[0].mxu0
  %v1159 = vadd.f32 %v934, %v1158
  %v1160 = vpop.f32.mrb[0].mxu0
  %1161 = vmatprep.mubr.bf16.mxu0 %v809
  %1162 = vmatmul.mubr.bf16.gmra.mrb[0].mxu0 %v472
  %v1163 = vpop.f32.mrb[0].mxu0
  %v1164 = vadd.f32 %v939, %v1163
  %v1165 = vpop.f32.mrb[0].mxu0
  %v1166 = vpop.f32.mrb[0].mxu0
  %v1167 = vadd.f32 %v942, %v1166
  %v1168 = vpop.f32.mrb[0].mxu0
  %1169 = vmatprep.mubr.bf16.mxu0 %v812
  %1170 = vmatmul.mubr.bf16.gmra.mrb[0].mxu0 %v476
  %v1171 = vpop.f32.mrb[0].mxu0
  %v1172 = vadd.f32 %v947, %v1171
  %v1173 = vpop.f32.mrb[0].mxu0
  %v1174 = vpop.f32.mrb[0].mxu0
  %v1175 = vadd.f32 %v950, %v1174
  %v1176 = vpop.f32.mrb[0].mxu0
  %1177 = vmatprep.mubr.bf16.mxu0 %v815
  %1178 = vmatmul.mubr.bf16.gmra.mrb[0].mxu0 %v480
  %v1179 = vpop.f32.mrb[0].mxu0
  %v1180 = vadd.f32 %v955, %v1179
  %v1181 = vpop.f32.mrb[0].mxu0
  %v1182 = vpop.f32.mrb[0].mxu0
  %v1183 = vadd.f32 %v958, %v1182
  %v1184 = vpop.f32.mrb[0].mxu0
  %1185 = vmatprep.mubr.bf16.mxu0 %v818
  %1186 = vmatmul.mubr.bf16.gmra.mrb[0].mxu0 %v484
  %v1187 = vpop.f32.mrb[0].mxu0
  %v1188 = vadd.f32 %v963, %v1187
  %v1189 = vpop.f32.mrb[0].mxu0
  %v1190 = vpop.f32.mrb[0].mxu0
  %v1191 = vadd.f32 %v966, %v1190
  %v1192 = vpop.f32.mrb[0].mxu0
  %1193 = vmatprep.mubr.bf16.mxu0 %v821
  %1194 = vmatmul.mubr.bf16.gmra.mrb[0].mxu0 %v488
  %v1195 = vpop.f32.mrb[0].mxu0
  %v1196 = vadd.f32 %v971, %v1195
  %v1197 = vpop.f32.mrb[0].mxu0
  %v1198 = vpop.f32.mrb[0].mxu0
  %v1199 = vadd.f32 %v974, %v1198
  %v1200 = vpop.f32.mrb[0].mxu0
  %1201 = vmatprep.mubr.bf16.mxu0 %v824
  %1202 = vmatmul.mubr.bf16.gmra.mrb[0].mxu0 %v492
  %v1203 = vpop.f32.mrb[0].mxu0
  %v1204 = vadd.f32 %v979, %v1203
  %v1205 = vpop.f32.mrb[0].mxu0
  %v1206 = vpop.f32.mrb[0].mxu0
  %v1207 = vadd.f32 %v982, %v1206
  %v1208 = vpop.f32.mrb[0].mxu0
  %1209 = vmatprep.mubr.bf16.mxu0 %v827
  %1210 = vmatmul.mubr.bf16.gmra.mrb[0].mxu0 %v496
  %v1211 = vpop.f32.mrb[0].mxu0
  %v1212 = vadd.f32 %v987, %v1211
  %v1213 = vpop.f32.mrb[0].mxu0
  %v1214 = vpop.f32.mrb[0].mxu0
  %v1215 = vadd.f32 %v990, %v1214
  %v1216 = vpop.f32.mrb[0].mxu0
  %1217 = vmatprep.mubr.bf16.mxu0 %v830
  %1218 = vmatmul.mubr.bf16.gmra.mrb[0].mxu0 %v500
  %v1219 = vpop.f32.mrb[0].mxu0
  %v1220 = vadd.f32 %v995, %v1219
  %v1221 = vpop.f32.mrb[0].mxu0
  %v1222 = vpop.f32.mrb[0].mxu0
  %v1223 = vadd.f32 %v998, %v1222
  %v1224 = vpop.f32.mrb[0].mxu0
  %1225 = vmatprep.mubr.bf16.mxu0 %v833
  %1226 = vmatmul.mubr.bf16.gmra.mrb[0].mxu0 %v504
  %v1227 = vpop.f32.mrb[0].mxu0
  %v1228 = vadd.f32 %v1003, %v1227
  %v1229 = vpop.f32.mrb[0].mxu0
  %v1230 = vpop.f32.mrb[0].mxu0
  %v1231 = vadd.f32 %v1006, %v1230
  %v1232 = vpop.f32.mrb[0].mxu0
  %1233 = vmatprep.mubr.bf16.mxu0 %v836
  %1234 = vmatmul.mubr.bf16.gmra.mrb[0].mxu0 %v508
  %v1235 = vpop.f32.mrb[0].mxu0
  %v1236 = vadd.f32 %v1011, %v1235
  %v1237 = vpop.f32.mrb[0].mxu0
  %v1238 = vpop.f32.mrb[0].mxu0
  %v1239 = vadd.f32 %v1014, %v1238
  %v1240 = vpop.f32.mrb[0].mxu0
  %1241 = vmatprep.mubr.bf16.mxu0 %v839
  %1242 = vmatmul.mubr.bf16.gmra.mrb[0].mxu0 %v512
  %v1243 = vpop.f32.mrb[0].mxu0
  %v1244 = vadd.f32 %v1019, %v1243
  %v1245 = vpop.f32.mrb[0].mxu0
  %v1246 = vpop.f32.mrb[0].mxu0
  %v1247 = vadd.f32 %v1022, %v1246
  %v1248 = vpop.f32.mrb[0].mxu0
  %1249 = vmatprep.mubr.bf16.mxu0 %v842
  %1250 = vmatmul.mubr.bf16.gmra.mrb[0].mxu0 %v516
  %v1251 = vpop.f32.mrb[0].mxu0
  %v1252 = vadd.f32 %v1027, %v1251
  %v1253 = vpop.f32.mrb[0].mxu0
  %v1254 = vpop.f32.mrb[0].mxu0
  %v1255 = vadd.f32 %v1030, %v1254
  %v1256 = vpop.f32.mrb[0].mxu0
  %1257 = vmatprep.mubr.bf16.mxu0 %v845
  %1258 = vmatmul.mubr.bf16.gmra.mrb[0].mxu0 %v520
  %v1259 = vpop.f32.mrb[0].mxu0
  %v1260 = vadd.f32 %v1035, %v1259
  %v1261 = vpop.f32.mrb[0].mxu0
  %v1262 = vpop.f32.mrb[0].mxu0
  %v1263 = vadd.f32 %v1038, %v1262
  %v1264 = vpop.f32.mrb[0].mxu0
  %1265 = vmatprep.mubr.bf16.mxu0 %v848
  %1266 = vmatmul.mubr.bf16.gmra.mrb[0].mxu0 %v524
  %v1267 = vpop.f32.mrb[0].mxu0
  %v1268 = vadd.f32 %v1043, %v1267
  %v1269 = vpop.f32.mrb[0].mxu0
  %v1270 = vpop.f32.mrb[0].mxu0
  %v1271 = vadd.f32 %v1046, %v1270
  %v1272 = vpop.f32.mrb[0].mxu0
  %1273 = vmatprep.mubr.bf16.mxu0 %v851
  %1274 = vmatmul.mubr.bf16.gmra.mrb[0].mxu0 %v528
  %v1275 = vpop.f32.mrb[0].mxu0
  %v1276 = vadd.f32 %v1051, %v1275
  %v1277 = vpop.f32.mrb[0].mxu0
  %v1278 = vpop.f32.mrb[0].mxu0
  %v1279 = vadd.f32 %v1054, %v1278
  %v1280 = vpop.f32.mrb[0].mxu0
  %1281 = vmatprep.mubr.bf16.mxu0 %v854
  %1282 = vmatmul.mubr.bf16.gmra.mrb[0].mxu0 %v532
  %v1283 = vpop.f32.mrb[0].mxu0
  %v1284 = vadd.f32 %v1059, %v1283
  %v1285 = vpop.f32.mrb[0].mxu0
  %v1286 = vpop.f32.mrb[0].mxu0
  %v1287 = vadd.f32 %v1062, %v1286
  %v1288 = vpop.f32.mrb[0].mxu0
  %1289 = vmatprep.mubr.bf16.mxu0 %v857
  %1290 = vmatmul.mubr.bf16.gmra.mrb[0].mxu0 %v536
  %v1291 = vpop.f32.mrb[0].mxu0
  %v1292 = vadd.f32 %v1067, %v1291
  %v1293 = vpop.f32.mrb[0].mxu0
  %v1294 = vpop.f32.mrb[0].mxu0
  %v1295 = vadd.f32 %v1070, %v1294
  %v1296 = vpop.f32.mrb[0].mxu0
  %1297 = vmatprep.mubr.bf16.mxu0 %v860
  %1298 = vmatmul.mubr.bf16.gmra.mrb[0].mxu0 %v540
  %v1299 = vpop.f32.mrb[0].mxu0
  %v1300 = vadd.f32 %v1075, %v1299
  %v1301 = vpop.f32.mrb[0].mxu0
  %v1302 = vpop.f32.mrb[0].mxu0
  %v1303 = vadd.f32 %v1078, %v1302
  %v1304 = vpop.f32.mrb[0].mxu0
  %1305 = vmatprep.mubr.bf16.mxu0 %v863
  %1306 = vmatmul.mubr.bf16.gmra.mrb[0].mxu0 %v544
  %v1307 = vpop.f32.mrb[0].mxu0
  %v1308 = vadd.f32 %v1083, %v1307
  %v1309 = vpop.f32.mrb[0].mxu0
  %v1310 = vpop.f32.mrb[0].mxu0
  %v1311 = vadd.f32 %v1086, %v1310
  %v1312 = vpop.f32.mrb[0].mxu0
  %1313 = vmatprep.mubr.bf16.mxu0 %v866
  %1314 = vmatmul.mubr.bf16.gmra.mrb[0].mxu0 %v548
  %v1315 = vpop.f32.mrb[0].mxu0
  %v1316 = vadd.f32 %v1091, %v1315
  %v1317 = vpop.f32.mrb[0].mxu0
  %v1318 = vpop.f32.mrb[0].mxu0
  %v1319 = vadd.f32 %v1094, %v1318
  %v1320 = vpop.f32.mrb[0].mxu0
  %1321 = vdwg.mxu0
  %v1322 = vmul.f32 %v1132, %v1132
  %v1323 = vmul.f32 %v1135, %v1135
  %v1324 = vmul.f32 %v1140, %v1140
  %v1325 = vmul.f32 %v1143, %v1143
  %v1326 = vmul.f32 %v1148, %v1148
  %v1327 = vmul.f32 %v1151, %v1151
  %v1328 = vmul.f32 %v1156, %v1156
  %v1329 = vmul.f32 %v1159, %v1159
  %v1330 = vmul.f32 %v1164, %v1164
  %v1331 = vmul.f32 %v1167, %v1167
  %v1332 = vmul.f32 %v1172, %v1172
  %v1333 = vmul.f32 %v1175, %v1175
  %v1334 = vmul.f32 %v1180, %v1180
  %v1335 = vmul.f32 %v1183, %v1183
  %v1336 = vmul.f32 %v1188, %v1188
  %v1337 = vmul.f32 %v1191, %v1191
  %v1338 = vmul.f32 %v1196, %v1196
  %v1339 = vmul.f32 %v1199, %v1199
  %v1340 = vmul.f32 %v1204, %v1204
  %v1341 = vmul.f32 %v1207, %v1207
  %v1342 = vmul.f32 %v1212, %v1212
  %v1343 = vmul.f32 %v1215, %v1215
  %v1344 = vmul.f32 %v1220, %v1220
  %v1345 = vmul.f32 %v1223, %v1223
  %v1346 = vmul.f32 %v1228, %v1228
  %v1347 = vmul.f32 %v1231, %v1231
  %v1348 = vmul.f32 %v1236, %v1236
  %v1349 = vmul.f32 %v1239, %v1239
  %v1350 = vmul.f32 %v1244, %v1244
  %v1351 = vmul.f32 %v1247, %v1247
  %v1352 = vmul.f32 %v1252, %v1252
  %v1353 = vmul.f32 %v1255, %v1255
  %v1354 = vmul.f32 %v1260, %v1260
  %v1355 = vmul.f32 %v1263, %v1263
  %v1356 = vmul.f32 %v1268, %v1268
  %v1357 = vmul.f32 %v1271, %v1271
  %v1358 = vmul.f32 %v1276, %v1276
  %v1359 = vmul.f32 %v1279, %v1279
  %v1360 = vmul.f32 %v1284, %v1284
  %v1361 = vmul.f32 %v1287, %v1287
  %v1362 = vmul.f32 %v1292, %v1292
  %v1363 = vmul.f32 %v1295, %v1295
  %v1364 = vmul.f32 %v1300, %v1300
  %v1365 = vmul.f32 %v1303, %v1303
  %v1366 = vmul.f32 %v1308, %v1308
  %v1367 = vmul.f32 %v1311, %v1311
  %v1368 = vmul.f32 %v1316, %v1316
  %v1369 = vmul.f32 %v1319, %v1319
  %1418 = vrot.lane.b32.xlu0 %v1322, 64
  %v1419 = vpop.permute.xlu0 %1418
  %1420 = vrot.lane.b32.xlu0 %v1323, 64
  %v1421 = vpop.permute.xlu0 %1420
  %1422 = vrot.lane.b32.xlu0 %v1324, 64
  %v1423 = vpop.permute.xlu0 %1422
  %1424 = vrot.lane.b32.xlu0 %v1325, 64
  %v1425 = vpop.permute.xlu0 %1424
  %1426 = vrot.lane.b32.xlu0 %v1326, 64
  %v1427 = vpop.permute.xlu0 %1426
  %1428 = vrot.lane.b32.xlu0 %v1327, 64
  %v1429 = vpop.permute.xlu0 %1428
  %1430 = vrot.lane.b32.xlu0 %v1328, 64
  %v1431 = vpop.permute.xlu0 %1430
  %1432 = vrot.lane.b32.xlu0 %v1329, 64
  %v1433 = vpop.permute.xlu0 %1432
  %1434 = vrot.lane.b32.xlu0 %v1330, 64
  %v1435 = vpop.permute.xlu0 %1434
  %1436 = vrot.lane.b32.xlu0 %v1331, 64
  %v1437 = vpop.permute.xlu0 %1436
  %1438 = vrot.lane.b32.xlu0 %v1332, 64
  %v1439 = vpop.permute.xlu0 %1438
  %1440 = vrot.lane.b32.xlu0 %v1333, 64
  %v1441 = vpop.permute.xlu0 %1440
  %1442 = vrot.lane.b32.xlu0 %v1334, 64
  %v1443 = vpop.permute.xlu0 %1442
  %1444 = vrot.lane.b32.xlu0 %v1335, 64
  %v1445 = vpop.permute.xlu0 %1444
  %1446 = vrot.lane.b32.xlu0 %v1336, 64
  %v1447 = vpop.permute.xlu0 %1446
  %1448 = vrot.lane.b32.xlu0 %v1337, 64
  %v1449 = vpop.permute.xlu0 %1448
  %1450 = vrot.lane.b32.xlu0 %v1338, 64
  %v1451 = vpop.permute.xlu0 %1450
  %1452 = vrot.lane.b32.xlu0 %v1339, 64
  %v1453 = vpop.permute.xlu0 %1452
  %1454 = vrot.lane.b32.xlu0 %v1340, 64
  %v1455 = vpop.permute.xlu0 %1454
  %1456 = vrot.lane.b32.xlu0 %v1341, 64
  %v1457 = vpop.permute.xlu0 %1456
  %1458 = vrot.lane.b32.xlu0 %v1342, 64
  %v1459 = vpop.permute.xlu0 %1458
  %1460 = vrot.lane.b32.xlu0 %v1343, 64
  %v1461 = vpop.permute.xlu0 %1460
  %1462 = vrot.lane.b32.xlu0 %v1344, 64
  %v1463 = vpop.permute.xlu0 %1462
  %1464 = vrot.lane.b32.xlu0 %v1345, 64
  %v1465 = vpop.permute.xlu0 %1464
  %1466 = vrot.lane.b32.xlu0 %v1346, 64
  %v1467 = vpop.permute.xlu0 %1466
  %1468 = vrot.lane.b32.xlu0 %v1347, 64
  %v1469 = vpop.permute.xlu0 %1468
  %1470 = vrot.lane.b32.xlu0 %v1348, 64
  %v1471 = vpop.permute.xlu0 %1470
  %1472 = vrot.lane.b32.xlu0 %v1349, 64
  %v1473 = vpop.permute.xlu0 %1472
  %1474 = vrot.lane.b32.xlu0 %v1350, 64
  %v1475 = vpop.permute.xlu0 %1474
  %1476 = vrot.lane.b32.xlu0 %v1351, 64
  %v1477 = vpop.permute.xlu0 %1476
  %1478 = vrot.lane.b32.xlu0 %v1352, 64
  %v1479 = vpop.permute.xlu0 %1478
  %1480 = vrot.lane.b32.xlu0 %v1353, 64
  %v1481 = vpop.permute.xlu0 %1480
  %1482 = vrot.lane.b32.xlu0 %v1354, 64
  %v1483 = vpop.permute.xlu0 %1482
  %1484 = vrot.lane.b32.xlu0 %v1355, 64
  %v1485 = vpop.permute.xlu0 %1484
  %1486 = vrot.lane.b32.xlu0 %v1356, 64
  %v1487 = vpop.permute.xlu0 %1486
  %1488 = vrot.lane.b32.xlu0 %v1357, 64
  %v1489 = vpop.permute.xlu0 %1488
  %1490 = vrot.lane.b32.xlu0 %v1358, 64
  %v1491 = vpop.permute.xlu0 %1490
  %1492 = vrot.lane.b32.xlu0 %v1359, 64
  %v1493 = vpop.permute.xlu0 %1492
  %1494 = vrot.lane.b32.xlu0 %v1360, 64
  %v1495 = vpop.permute.xlu0 %1494
  %1496 = vrot.lane.b32.xlu0 %v1361, 64
  %v1497 = vpop.permute.xlu0 %1496
  %1498 = vrot.lane.b32.xlu0 %v1362, 64
  %v1499 = vpop.permute.xlu0 %1498
  %1500 = vrot.lane.b32.xlu0 %v1363, 64
  %v1501 = vpop.permute.xlu0 %1500
  %1502 = vrot.lane.b32.xlu0 %v1364, 64
  %v1503 = vpop.permute.xlu0 %1502
  %1504 = vrot.lane.b32.xlu0 %v1365, 64
  %v1505 = vpop.permute.xlu0 %1504
  %1506 = vrot.lane.b32.xlu0 %v1366, 64
  %v1507 = vpop.permute.xlu0 %1506
  %1508 = vrot.lane.b32.xlu0 %v1367, 64
  %v1509 = vpop.permute.xlu0 %1508
  %1510 = vrot.lane.b32.xlu0 %v1368, 64
  %v1511 = vpop.permute.xlu0 %1510
  %1512 = vrot.lane.b32.xlu0 %v1369, 64
  %v1513 = vpop.permute.xlu0 %1512
  %v1562 = vadd.f32 %v1322, %v1419
  %v1563 = vadd.f32 %v1323, %v1421
  %v1564 = vadd.f32 %v1324, %v1423
  %v1565 = vadd.f32 %v1325, %v1425
  %v1566 = vadd.f32 %v1326, %v1427
  %v1567 = vadd.f32 %v1327, %v1429
  %v1568 = vadd.f32 %v1328, %v1431
  %v1569 = vadd.f32 %v1329, %v1433
  %v1570 = vadd.f32 %v1330, %v1435
  %v1571 = vadd.f32 %v1331, %v1437
  %v1572 = vadd.f32 %v1332, %v1439
  %v1573 = vadd.f32 %v1333, %v1441
  %v1574 = vadd.f32 %v1334, %v1443
  %v1575 = vadd.f32 %v1335, %v1445
  %v1576 = vadd.f32 %v1336, %v1447
  %v1577 = vadd.f32 %v1337, %v1449
  %v1578 = vadd.f32 %v1338, %v1451
  %v1579 = vadd.f32 %v1339, %v1453
  %v1580 = vadd.f32 %v1340, %v1455
  %v1581 = vadd.f32 %v1341, %v1457
  %v1582 = vadd.f32 %v1342, %v1459
  %v1583 = vadd.f32 %v1343, %v1461
  %v1584 = vadd.f32 %v1344, %v1463
  %v1585 = vadd.f32 %v1345, %v1465
  %v1586 = vadd.f32 %v1346, %v1467
  %v1587 = vadd.f32 %v1347, %v1469
  %v1588 = vadd.f32 %v1348, %v1471
  %v1589 = vadd.f32 %v1349, %v1473
  %v1590 = vadd.f32 %v1350, %v1475
  %v1591 = vadd.f32 %v1351, %v1477
  %v1592 = vadd.f32 %v1352, %v1479
  %v1593 = vadd.f32 %v1353, %v1481
  %v1594 = vadd.f32 %v1354, %v1483
  %v1595 = vadd.f32 %v1355, %v1485
  %v1596 = vadd.f32 %v1356, %v1487
  %v1597 = vadd.f32 %v1357, %v1489
  %v1598 = vadd.f32 %v1358, %v1491
  %v1599 = vadd.f32 %v1359, %v1493
  %v1600 = vadd.f32 %v1360, %v1495
  %v1601 = vadd.f32 %v1361, %v1497
  %v1602 = vadd.f32 %v1362, %v1499
  %v1603 = vadd.f32 %v1363, %v1501
  %v1604 = vadd.f32 %v1364, %v1503
  %v1605 = vadd.f32 %v1365, %v1505
  %v1606 = vadd.f32 %v1366, %v1507
  %v1607 = vadd.f32 %v1367, %v1509
  %v1608 = vadd.f32 %v1368, %v1511
  %v1609 = vadd.f32 %v1369, %v1513
  %v1610 = vadd.f32 %v1562, 1e-12
  %v1611 = vadd.f32 %v1563, 1e-12
  %v1612 = vadd.f32 %v1564, 1e-12
  %v1613 = vadd.f32 %v1565, 1e-12
  %v1614 = vadd.f32 %v1566, 1e-12
  %v1615 = vadd.f32 %v1567, 1e-12
  %v1616 = vadd.f32 %v1568, 1e-12
  %v1617 = vadd.f32 %v1569, 1e-12
  %v1618 = vadd.f32 %v1570, 1e-12
  %v1619 = vadd.f32 %v1571, 1e-12
  %v1620 = vadd.f32 %v1572, 1e-12
  %v1621 = vadd.f32 %v1573, 1e-12
  %v1622 = vadd.f32 %v1574, 1e-12
  %v1623 = vadd.f32 %v1575, 1e-12
  %v1624 = vadd.f32 %v1576, 1e-12
  %v1625 = vadd.f32 %v1577, 1e-12
  %v1626 = vadd.f32 %v1578, 1e-12
  %v1627 = vadd.f32 %v1579, 1e-12
  %v1628 = vadd.f32 %v1580, 1e-12
  %v1629 = vadd.f32 %v1581, 1e-12
  %v1630 = vadd.f32 %v1582, 1e-12
  %v1631 = vadd.f32 %v1583, 1e-12
  %v1632 = vadd.f32 %v1584, 1e-12
  %v1633 = vadd.f32 %v1585, 1e-12
  %v1634 = vadd.f32 %v1586, 1e-12
  %v1635 = vadd.f32 %v1587, 1e-12
  %v1636 = vadd.f32 %v1588, 1e-12
  %v1637 = vadd.f32 %v1589, 1e-12
  %v1638 = vadd.f32 %v1590, 1e-12
  %v1639 = vadd.f32 %v1591, 1e-12
  %v1640 = vadd.f32 %v1592, 1e-12
  %v1641 = vadd.f32 %v1593, 1e-12
  %v1642 = vadd.f32 %v1594, 1e-12
  %v1643 = vadd.f32 %v1595, 1e-12
  %v1644 = vadd.f32 %v1596, 1e-12
  %v1645 = vadd.f32 %v1597, 1e-12
  %v1646 = vadd.f32 %v1598, 1e-12
  %v1647 = vadd.f32 %v1599, 1e-12
  %v1648 = vadd.f32 %v1600, 1e-12
  %v1649 = vadd.f32 %v1601, 1e-12
  %v1650 = vadd.f32 %v1602, 1e-12
  %v1651 = vadd.f32 %v1603, 1e-12
  %v1652 = vadd.f32 %v1604, 1e-12
  %v1653 = vadd.f32 %v1605, 1e-12
  %v1654 = vadd.f32 %v1606, 1e-12
  %v1655 = vadd.f32 %v1607, 1e-12
  %v1656 = vadd.f32 %v1608, 1e-12
  %v1657 = vadd.f32 %v1609, 1e-12
  %v1658 = vrsqrt.pop %v1610
  %v1659 = vmul.f32 %v1610, %v1658
  %vm1660 = vcmp.eq.f32.partialorder %v1610, inf
  %v1661 = vsel %vm1660, %v1610, %v1659
  %vm1662 = vcmp.eq.f32.partialorder %v1610, 0.0
  %v1663 = vand.u32 %v1610, 2147483648
  %v1664 = vsel %vm1662, %v1663, %v1661
  %v1665 = vrsqrt.pop %v1611
  %v1666 = vmul.f32 %v1611, %v1665
  %vm1667 = vcmp.eq.f32.partialorder %v1611, inf
  %v1668 = vsel %vm1667, %v1611, %v1666
  %vm1669 = vcmp.eq.f32.partialorder %v1611, 0.0
  %v1670 = vand.u32 %v1611, 2147483648
  %v1671 = vsel %vm1669, %v1670, %v1668
  %v1672 = vrsqrt.pop %v1612
  %v1673 = vmul.f32 %v1612, %v1672
  %vm1674 = vcmp.eq.f32.partialorder %v1612, inf
  %v1675 = vsel %vm1674, %v1612, %v1673
  %vm1676 = vcmp.eq.f32.partialorder %v1612, 0.0
  %v1677 = vand.u32 %v1612, 2147483648
  %v1678 = vsel %vm1676, %v1677, %v1675
  %v1679 = vrsqrt.pop %v1613
  %v1680 = vmul.f32 %v1613, %v1679
  %vm1681 = vcmp.eq.f32.partialorder %v1613, inf
  %v1682 = vsel %vm1681, %v1613, %v1680
  %vm1683 = vcmp.eq.f32.partialorder %v1613, 0.0
  %v1684 = vand.u32 %v1613, 2147483648
  %v1685 = vsel %vm1683, %v1684, %v1682
  %v1686 = vrsqrt.pop %v1614
  %v1687 = vmul.f32 %v1614, %v1686
  %vm1688 = vcmp.eq.f32.partialorder %v1614, inf
  %v1689 = vsel %vm1688, %v1614, %v1687
  %vm1690 = vcmp.eq.f32.partialorder %v1614, 0.0
  %v1691 = vand.u32 %v1614, 2147483648
  %v1692 = vsel %vm1690, %v1691, %v1689
  %v1693 = vrsqrt.pop %v1615
  %v1694 = vmul.f32 %v1615, %v1693
  %vm1695 = vcmp.eq.f32.partialorder %v1615, inf
  %v1696 = vsel %vm1695, %v1615, %v1694
  %vm1697 = vcmp.eq.f32.partialorder %v1615, 0.0
  %v1698 = vand.u32 %v1615, 2147483648
  %v1699 = vsel %vm1697, %v1698, %v1696
  %v1700 = vrsqrt.pop %v1616
  %v1701 = vmul.f32 %v1616, %v1700
  %vm1702 = vcmp.eq.f32.partialorder %v1616, inf
  %v1703 = vsel %vm1702, %v1616, %v1701
  %vm1704 = vcmp.eq.f32.partialorder %v1616, 0.0
  %v1705 = vand.u32 %v1616, 2147483648
  %v1706 = vsel %vm1704, %v1705, %v1703
  %v1707 = vrsqrt.pop %v1617
  %v1708 = vmul.f32 %v1617, %v1707
  %vm1709 = vcmp.eq.f32.partialorder %v1617, inf
  %v1710 = vsel %vm1709, %v1617, %v1708
  %vm1711 = vcmp.eq.f32.partialorder %v1617, 0.0
  %v1712 = vand.u32 %v1617, 2147483648
  %v1713 = vsel %vm1711, %v1712, %v1710
  %v1714 = vrsqrt.pop %v1618
  %v1715 = vmul.f32 %v1618, %v1714
  %vm1716 = vcmp.eq.f32.partialorder %v1618, inf
  %v1717 = vsel %vm1716, %v1618, %v1715
  %vm1718 = vcmp.eq.f32.partialorder %v1618, 0.0
  %v1719 = vand.u32 %v1618, 2147483648
  %v1720 = vsel %vm1718, %v1719, %v1717
  %v1721 = vrsqrt.pop %v1619
  %v1722 = vmul.f32 %v1619, %v1721
  %vm1723 = vcmp.eq.f32.partialorder %v1619, inf
  %v1724 = vsel %vm1723, %v1619, %v1722
  %vm1725 = vcmp.eq.f32.partialorder %v1619, 0.0
  %v1726 = vand.u32 %v1619, 2147483648
  %v1727 = vsel %vm1725, %v1726, %v1724
  %v1728 = vrsqrt.pop %v1620
  %v1729 = vmul.f32 %v1620, %v1728
  %vm1730 = vcmp.eq.f32.partialorder %v1620, inf
  %v1731 = vsel %vm1730, %v1620, %v1729
  %vm1732 = vcmp.eq.f32.partialorder %v1620, 0.0
  %v1733 = vand.u32 %v1620, 2147483648
  %v1734 = vsel %vm1732, %v1733, %v1731
  %v1735 = vrsqrt.pop %v1621
  %v1736 = vmul.f32 %v1621, %v1735
  %vm1737 = vcmp.eq.f32.partialorder %v1621, inf
  %v1738 = vsel %vm1737, %v1621, %v1736
  %vm1739 = vcmp.eq.f32.partialorder %v1621, 0.0
  %v1740 = vand.u32 %v1621, 2147483648
  %v1741 = vsel %vm1739, %v1740, %v1738
  %v1742 = vrsqrt.pop %v1622
  %v1743 = vmul.f32 %v1622, %v1742
  %vm1744 = vcmp.eq.f32.partialorder %v1622, inf
  %v1745 = vsel %vm1744, %v1622, %v1743
  %vm1746 = vcmp.eq.f32.partialorder %v1622, 0.0
  %v1747 = vand.u32 %v1622, 2147483648
  %v1748 = vsel %vm1746, %v1747, %v1745
  %v1749 = vrsqrt.pop %v1623
  %v1750 = vmul.f32 %v1623, %v1749
  %vm1751 = vcmp.eq.f32.partialorder %v1623, inf
  %v1752 = vsel %vm1751, %v1623, %v1750
  %vm1753 = vcmp.eq.f32.partialorder %v1623, 0.0
  %v1754 = vand.u32 %v1623, 2147483648
  %v1755 = vsel %vm1753, %v1754, %v1752
  %v1756 = vrsqrt.pop %v1624
  %v1757 = vmul.f32 %v1624, %v1756
  %vm1758 = vcmp.eq.f32.partialorder %v1624, inf
  %v1759 = vsel %vm1758, %v1624, %v1757
  %vm1760 = vcmp.eq.f32.partialorder %v1624, 0.0
  %v1761 = vand.u32 %v1624, 2147483648
  %v1762 = vsel %vm1760, %v1761, %v1759
  %v1763 = vrsqrt.pop %v1625
  %v1764 = vmul.f32 %v1625, %v1763
  %vm1765 = vcmp.eq.f32.partialorder %v1625, inf
  %v1766 = vsel %vm1765, %v1625, %v1764
  %vm1767 = vcmp.eq.f32.partialorder %v1625, 0.0
  %v1768 = vand.u32 %v1625, 2147483648
  %v1769 = vsel %vm1767, %v1768, %v1766
  %v1770 = vrsqrt.pop %v1626
  %v1771 = vmul.f32 %v1626, %v1770
  %vm1772 = vcmp.eq.f32.partialorder %v1626, inf
  %v1773 = vsel %vm1772, %v1626, %v1771
  %vm1774 = vcmp.eq.f32.partialorder %v1626, 0.0
  %v1775 = vand.u32 %v1626, 2147483648
  %v1776 = vsel %vm1774, %v1775, %v1773
  %v1777 = vrsqrt.pop %v1627
  %v1778 = vmul.f32 %v1627, %v1777
  %vm1779 = vcmp.eq.f32.partialorder %v1627, inf
  %v1780 = vsel %vm1779, %v1627, %v1778
  %vm1781 = vcmp.eq.f32.partialorder %v1627, 0.0
  %v1782 = vand.u32 %v1627, 2147483648
  %v1783 = vsel %vm1781, %v1782, %v1780
  %v1784 = vrsqrt.pop %v1628
  %v1785 = vmul.f32 %v1628, %v1784
  %vm1786 = vcmp.eq.f32.partialorder %v1628, inf
  %v1787 = vsel %vm1786, %v1628, %v1785
  %vm1788 = vcmp.eq.f32.partialorder %v1628, 0.0
  %v1789 = vand.u32 %v1628, 2147483648
  %v1790 = vsel %vm1788, %v1789, %v1787
  %v1791 = vrsqrt.pop %v1629
  %v1792 = vmul.f32 %v1629, %v1791
  %vm1793 = vcmp.eq.f32.partialorder %v1629, inf
  %v1794 = vsel %vm1793, %v1629, %v1792
  %vm1795 = vcmp.eq.f32.partialorder %v1629, 0.0
  %v1796 = vand.u32 %v1629, 2147483648
  %v1797 = vsel %vm1795, %v1796, %v1794
  %v1798 = vrsqrt.pop %v1630
  %v1799 = vmul.f32 %v1630, %v1798
  %vm1800 = vcmp.eq.f32.partialorder %v1630, inf
  %v1801 = vsel %vm1800, %v1630, %v1799
  %vm1802 = vcmp.eq.f32.partialorder %v1630, 0.0
  %v1803 = vand.u32 %v1630, 2147483648
  %v1804 = vsel %vm1802, %v1803, %v1801
  %v1805 = vrsqrt.pop %v1631
  %v1806 = vmul.f32 %v1631, %v1805
  %vm1807 = vcmp.eq.f32.partialorder %v1631, inf
  %v1808 = vsel %vm1807, %v1631, %v1806
  %vm1809 = vcmp.eq.f32.partialorder %v1631, 0.0
  %v1810 = vand.u32 %v1631, 2147483648
  %v1811 = vsel %vm1809, %v1810, %v1808
  %v1812 = vrsqrt.pop %v1632
  %v1813 = vmul.f32 %v1632, %v1812
  %vm1814 = vcmp.eq.f32.partialorder %v1632, inf
  %v1815 = vsel %vm1814, %v1632, %v1813
  %vm1816 = vcmp.eq.f32.partialorder %v1632, 0.0
  %v1817 = vand.u32 %v1632, 2147483648
  %v1818 = vsel %vm1816, %v1817, %v1815
  %v1819 = vrsqrt.pop %v1633
  %v1820 = vmul.f32 %v1633, %v1819
  %vm1821 = vcmp.eq.f32.partialorder %v1633, inf
  %v1822 = vsel %vm1821, %v1633, %v1820
  %vm1823 = vcmp.eq.f32.partialorder %v1633, 0.0
  %v1824 = vand.u32 %v1633, 2147483648
  %v1825 = vsel %vm1823, %v1824, %v1822
  %v1826 = vrsqrt.pop %v1634
  %v1827 = vmul.f32 %v1634, %v1826
  %vm1828 = vcmp.eq.f32.partialorder %v1634, inf
  %v1829 = vsel %vm1828, %v1634, %v1827
  %vm1830 = vcmp.eq.f32.partialorder %v1634, 0.0
  %v1831 = vand.u32 %v1634, 2147483648
  %v1832 = vsel %vm1830, %v1831, %v1829
  %v1833 = vrsqrt.pop %v1635
  %v1834 = vmul.f32 %v1635, %v1833
  %vm1835 = vcmp.eq.f32.partialorder %v1635, inf
  %v1836 = vsel %vm1835, %v1635, %v1834
  %vm1837 = vcmp.eq.f32.partialorder %v1635, 0.0
  %v1838 = vand.u32 %v1635, 2147483648
  %v1839 = vsel %vm1837, %v1838, %v1836
  %v1840 = vrsqrt.pop %v1636
  %v1841 = vmul.f32 %v1636, %v1840
  %vm1842 = vcmp.eq.f32.partialorder %v1636, inf
  %v1843 = vsel %vm1842, %v1636, %v1841
  %vm1844 = vcmp.eq.f32.partialorder %v1636, 0.0
  %v1845 = vand.u32 %v1636, 2147483648
  %v1846 = vsel %vm1844, %v1845, %v1843
  %v1847 = vrsqrt.pop %v1637
  %v1848 = vmul.f32 %v1637, %v1847
  %vm1849 = vcmp.eq.f32.partialorder %v1637, inf
  %v1850 = vsel %vm1849, %v1637, %v1848
  %vm1851 = vcmp.eq.f32.partialorder %v1637, 0.0
  %v1852 = vand.u32 %v1637, 2147483648
  %v1853 = vsel %vm1851, %v1852, %v1850
  %v1854 = vrsqrt.pop %v1638
  %v1855 = vmul.f32 %v1638, %v1854
  %vm1856 = vcmp.eq.f32.partialorder %v1638, inf
  %v1857 = vsel %vm1856, %v1638, %v1855
  %vm1858 = vcmp.eq.f32.partialorder %v1638, 0.0
  %v1859 = vand.u32 %v1638, 2147483648
  %v1860 = vsel %vm1858, %v1859, %v1857
  %v1861 = vrsqrt.pop %v1639
  %v1862 = vmul.f32 %v1639, %v1861
  %vm1863 = vcmp.eq.f32.partialorder %v1639, inf
  %v1864 = vsel %vm1863, %v1639, %v1862
  %vm1865 = vcmp.eq.f32.partialorder %v1639, 0.0
  %v1866 = vand.u32 %v1639, 2147483648
  %v1867 = vsel %vm1865, %v1866, %v1864
  %v1868 = vrsqrt.pop %v1640
  %v1869 = vmul.f32 %v1640, %v1868
  %vm1870 = vcmp.eq.f32.partialorder %v1640, inf
  %v1871 = vsel %vm1870, %v1640, %v1869
  %vm1872 = vcmp.eq.f32.partialorder %v1640, 0.0
  %v1873 = vand.u32 %v1640, 2147483648
  %v1874 = vsel %vm1872, %v1873, %v1871
  %v1875 = vrsqrt.pop %v1641
  %v1876 = vmul.f32 %v1641, %v1875
  %vm1877 = vcmp.eq.f32.partialorder %v1641, inf
  %v1878 = vsel %vm1877, %v1641, %v1876
  %vm1879 = vcmp.eq.f32.partialorder %v1641, 0.0
  %v1880 = vand.u32 %v1641, 2147483648
  %v1881 = vsel %vm1879, %v1880, %v1878
  %v1882 = vrsqrt.pop %v1642
  %v1883 = vmul.f32 %v1642, %v1882
  %vm1884 = vcmp.eq.f32.partialorder %v1642, inf
  %v1885 = vsel %vm1884, %v1642, %v1883
  %vm1886 = vcmp.eq.f32.partialorder %v1642, 0.0
  %v1887 = vand.u32 %v1642, 2147483648
  %v1888 = vsel %vm1886, %v1887, %v1885
  %v1889 = vrsqrt.pop %v1643
  %v1890 = vmul.f32 %v1643, %v1889
  %vm1891 = vcmp.eq.f32.partialorder %v1643, inf
  %v1892 = vsel %vm1891, %v1643, %v1890
  %vm1893 = vcmp.eq.f32.partialorder %v1643, 0.0
  %v1894 = vand.u32 %v1643, 2147483648
  %v1895 = vsel %vm1893, %v1894, %v1892
  %v1896 = vrsqrt.pop %v1644
  %v1897 = vmul.f32 %v1644, %v1896
  %vm1898 = vcmp.eq.f32.partialorder %v1644, inf
  %v1899 = vsel %vm1898, %v1644, %v1897
  %vm1900 = vcmp.eq.f32.partialorder %v1644, 0.0
  %v1901 = vand.u32 %v1644, 2147483648
  %v1902 = vsel %vm1900, %v1901, %v1899
  %v1903 = vrsqrt.pop %v1645
  %v1904 = vmul.f32 %v1645, %v1903
  %vm1905 = vcmp.eq.f32.partialorder %v1645, inf
  %v1906 = vsel %vm1905, %v1645, %v1904
  %vm1907 = vcmp.eq.f32.partialorder %v1645, 0.0
  %v1908 = vand.u32 %v1645, 2147483648
  %v1909 = vsel %vm1907, %v1908, %v1906
  %v1910 = vrsqrt.pop %v1646
  %v1911 = vmul.f32 %v1646, %v1910
  %vm1912 = vcmp.eq.f32.partialorder %v1646, inf
  %v1913 = vsel %vm1912, %v1646, %v1911
  %vm1914 = vcmp.eq.f32.partialorder %v1646, 0.0
  %v1915 = vand.u32 %v1646, 2147483648
  %v1916 = vsel %vm1914, %v1915, %v1913
  %v1917 = vrsqrt.pop %v1647
  %v1918 = vmul.f32 %v1647, %v1917
  %vm1919 = vcmp.eq.f32.partialorder %v1647, inf
  %v1920 = vsel %vm1919, %v1647, %v1918
  %vm1921 = vcmp.eq.f32.partialorder %v1647, 0.0
  %v1922 = vand.u32 %v1647, 2147483648
  %v1923 = vsel %vm1921, %v1922, %v1920
  %v1924 = vrsqrt.pop %v1648
  %v1925 = vmul.f32 %v1648, %v1924
  %vm1926 = vcmp.eq.f32.partialorder %v1648, inf
  %v1927 = vsel %vm1926, %v1648, %v1925
  %vm1928 = vcmp.eq.f32.partialorder %v1648, 0.0
  %v1929 = vand.u32 %v1648, 2147483648
  %v1930 = vsel %vm1928, %v1929, %v1927
  %v1931 = vrsqrt.pop %v1649
  %v1932 = vmul.f32 %v1649, %v1931
  %vm1933 = vcmp.eq.f32.partialorder %v1649, inf
  %v1934 = vsel %vm1933, %v1649, %v1932
  %vm1935 = vcmp.eq.f32.partialorder %v1649, 0.0
  %v1936 = vand.u32 %v1649, 2147483648
  %v1937 = vsel %vm1935, %v1936, %v1934
  %v1938 = vrsqrt.pop %v1650
  %v1939 = vmul.f32 %v1650, %v1938
  %vm1940 = vcmp.eq.f32.partialorder %v1650, inf
  %v1941 = vsel %vm1940, %v1650, %v1939
  %vm1942 = vcmp.eq.f32.partialorder %v1650, 0.0
  %v1943 = vand.u32 %v1650, 2147483648
  %v1944 = vsel %vm1942, %v1943, %v1941
  %v1945 = vrsqrt.pop %v1651
  %v1946 = vmul.f32 %v1651, %v1945
  %vm1947 = vcmp.eq.f32.partialorder %v1651, inf
  %v1948 = vsel %vm1947, %v1651, %v1946
  %vm1949 = vcmp.eq.f32.partialorder %v1651, 0.0
  %v1950 = vand.u32 %v1651, 2147483648
  %v1951 = vsel %vm1949, %v1950, %v1948
  %v1952 = vrsqrt.pop %v1652
  %v1953 = vmul.f32 %v1652, %v1952
  %vm1954 = vcmp.eq.f32.partialorder %v1652, inf
  %v1955 = vsel %vm1954, %v1652, %v1953
  %vm1956 = vcmp.eq.f32.partialorder %v1652, 0.0
  %v1957 = vand.u32 %v1652, 2147483648
  %v1958 = vsel %vm1956, %v1957, %v1955
  %v1959 = vrsqrt.pop %v1653
  %v1960 = vmul.f32 %v1653, %v1959
  %vm1961 = vcmp.eq.f32.partialorder %v1653, inf
  %v1962 = vsel %vm1961, %v1653, %v1960
  %vm1963 = vcmp.eq.f32.partialorder %v1653, 0.0
  %v1964 = vand.u32 %v1653, 2147483648
  %v1965 = vsel %vm1963, %v1964, %v1962
  %v1966 = vrsqrt.pop %v1654
  %v1967 = vmul.f32 %v1654, %v1966
  %vm1968 = vcmp.eq.f32.partialorder %v1654, inf
  %v1969 = vsel %vm1968, %v1654, %v1967
  %vm1970 = vcmp.eq.f32.partialorder %v1654, 0.0
  %v1971 = vand.u32 %v1654, 2147483648
  %v1972 = vsel %vm1970, %v1971, %v1969
  %v1973 = vrsqrt.pop %v1655
  %v1974 = vmul.f32 %v1655, %v1973
  %vm1975 = vcmp.eq.f32.partialorder %v1655, inf
  %v1976 = vsel %vm1975, %v1655, %v1974
  %vm1977 = vcmp.eq.f32.partialorder %v1655, 0.0
  %v1978 = vand.u32 %v1655, 2147483648
  %v1979 = vsel %vm1977, %v1978, %v1976
  %v1980 = vrsqrt.pop %v1656
  %v1981 = vmul.f32 %v1656, %v1980
  %vm1982 = vcmp.eq.f32.partialorder %v1656, inf
  %v1983 = vsel %vm1982, %v1656, %v1981
  %vm1984 = vcmp.eq.f32.partialorder %v1656, 0.0
  %v1985 = vand.u32 %v1656, 2147483648
  %v1986 = vsel %vm1984, %v1985, %v1983
  %v1987 = vrsqrt.pop %v1657
  %v1988 = vmul.f32 %v1657, %v1987
  %vm1989 = vcmp.eq.f32.partialorder %v1657, inf
  %v1990 = vsel %vm1989, %v1657, %v1988
  %vm1991 = vcmp.eq.f32.partialorder %v1657, 0.0
  %v1992 = vand.u32 %v1657, 2147483648
  %v1993 = vsel %vm1991, %v1992, %v1990
  %vm1994 = vcmask 523264
  %1995 = vst.msk [vmem:[%s2] sm:$0xff] %vm1994, %v1664
  %1996 = vst.msk [vmem:[%s2 + $0x8] sm:$0xff] %vm1994, %v1671
  %1997 = vst.msk [vmem:[%s2 + $0x10] sm:$0xff] %vm1994, %v1678
  %1998 = vst.msk [vmem:[%s2 + $0x18] sm:$0xff] %vm1994, %v1685
  %1999 = vst.msk [vmem:[%s2 + $0x20] sm:$0xff] %vm1994, %v1692
  %2000 = vst.msk [vmem:[%s2 + $0x28] sm:$0xff] %vm1994, %v1699
  %2001 = vst.msk [vmem:[%s2 + $0x30] sm:$0xff] %vm1994, %v1706
  %2002 = vst.msk [vmem:[%s2 + $0x38] sm:$0xff] %vm1994, %v1713
  %2003 = vst.msk [vmem:[%s2 + $0x40] sm:$0xff] %vm1994, %v1720
  %2004 = vst.msk [vmem:[%s2 + $0x48] sm:$0xff] %vm1994, %v1727
  %2005 = vst.msk [vmem:[%s2 + $0x50] sm:$0xff] %vm1994, %v1734
  %2006 = vst.msk [vmem:[%s2 + $0x58] sm:$0xff] %vm1994, %v1741
  %2007 = vst.msk [vmem:[%s2 + $0x60] sm:$0xff] %vm1994, %v1748
  %2008 = vst.msk [vmem:[%s2 + $0x68] sm:$0xff] %vm1994, %v1755
  %2009 = vst.msk [vmem:[%s2 + $0x70] sm:$0xff] %vm1994, %v1762
  %2010 = vst.msk [vmem:[%s2 + $0x78] sm:$0xff] %vm1994, %v1769
  %2011 = vst.msk [vmem:[%s2 + $0x80] sm:$0xff] %vm1994, %v1776
  %2012 = vst.msk [vmem:[%s2 + $0x88] sm:$0xff] %vm1994, %v1783
  %2013 = vst.msk [vmem:[%s2 + $0x90] sm:$0xff] %vm1994, %v1790
  %2014 = vst.msk [vmem:[%s2 + $0x98] sm:$0xff] %vm1994, %v1797
  %2015 = vst.msk [vmem:[%s2 + $0xa0] sm:$0xff] %vm1994, %v1804
  %2016 = vst.msk [vmem:[%s2 + $0xa8] sm:$0xff] %vm1994, %v1811
  %2017 = vst.msk [vmem:[%s2 + $0xb0] sm:$0xff] %vm1994, %v1818
  %2018 = vst.msk [vmem:[%s2 + $0xb8] sm:$0xff] %vm1994, %v1825
  %2019 = vst.msk [vmem:[%s2 + $0xc0] sm:$0xff] %vm1994, %v1832
  %2020 = vst.msk [vmem:[%s2 + $0xc8] sm:$0xff] %vm1994, %v1839
  %2021 = vst.msk [vmem:[%s2 + $0xd0] sm:$0xff] %vm1994, %v1846
  %2022 = vst.msk [vmem:[%s2 + $0xd8] sm:$0xff] %vm1994, %v1853
  %2023 = vst.msk [vmem:[%s2 + $0xe0] sm:$0xff] %vm1994, %v1860
  %2024 = vst.msk [vmem:[%s2 + $0xe8] sm:$0xff] %vm1994, %v1867
  %2025 = vst.msk [vmem:[%s2 + $0xf0] sm:$0xff] %vm1994, %v1874
  %2026 = vst.msk [vmem:[%s2 + $0xf8] sm:$0xff] %vm1994, %v1881
  %2027 = vst.msk [vmem:[%s2 + $0x100] sm:$0xff] %vm1994, %v1888
  %2028 = vst.msk [vmem:[%s2 + $0x108] sm:$0xff] %vm1994, %v1895
  %2029 = vst.msk [vmem:[%s2 + $0x110] sm:$0xff] %vm1994, %v1902
  %2030 = vst.msk [vmem:[%s2 + $0x118] sm:$0xff] %vm1994, %v1909
  %2031 = vst.msk [vmem:[%s2 + $0x120] sm:$0xff] %vm1994, %v1916
  %2032 = vst.msk [vmem:[%s2 + $0x128] sm:$0xff] %vm1994, %v1923
  %2033 = vst.msk [vmem:[%s2 + $0x130] sm:$0xff] %vm1994, %v1930
  %2034 = vst.msk [vmem:[%s2 + $0x138] sm:$0xff] %vm1994, %v1937
  %2035 = vst.msk [vmem:[%s2 + $0x140] sm:$0xff] %vm1994, %v1944
  %2036 = vst.msk [vmem:[%s2 + $0x148] sm:$0xff] %vm1994, %v1951
  %2037 = vst.msk [vmem:[%s2 + $0x150] sm:$0xff] %vm1994, %v1958
  %2038 = vst.msk [vmem:[%s2 + $0x158] sm:$0xff] %vm1994, %v1965
  %2039 = vst.msk [vmem:[%s2 + $0x160] sm:$0xff] %vm1994, %v1972
  %2040 = vst.msk [vmem:[%s2 + $0x168] sm:$0xff] %vm1994, %v1979
  %2041 = vst.msk [vmem:[%s2 + $0x170] sm:$0xff] %vm1994, %v1986
  %2042 = vst.msk [vmem:[%s2 + $0x178] sm:$0xff] %vm1994, %v1993
  // Predicated region
  $region10: #{forward.12} parent=0 // pred_check
    _
  $region11: #{forward.12} parent=0 // pred_check_branch
    %2044 = sbr.rel (0) target = $region13
  $region12: #{forward.12} parent=0 // pred_region
    _
  $region13: #{forward.12} parent=0 // pred_fallthru
    _
  // Predicated region
  $region14: #{forward.12} parent=0 // pred_check
    _
  $region15: #{forward.12} parent=0 // pred_check_branch
    %2046 = sbr.rel (0) target = $region17
  $region16: #{forward.12} parent=0 // pred_region
    _
  $region17: #{forward.12} parent=0 // pred_fallthru
    _

// kernel: forward.13
$region0: #{forward.13}
  #allocation0 [shape = 'u32[]', space=smem, size = 0x4, offset = 0x4, fixed_abs, tag = 'smem constant byte address 0x4 - core index']
  #allocation1 [shape = 'u32[144,128]{1,0:T(1,128)}', space=vmem, size = 0x12000, scoped, tag = 'internal scratch']
  %s0 = inlined_call_operand.vmem [shape: bf16[432,98], index: 0, kind: input, shape index: {}]
  %s1 = inlined_call_operand.vmem [shape: bf16[98,32], index: 1, kind: input, shape index: {}]
  %s2 = inlined_call_operand.vmem [shape: f32[432,16], index: 2, kind: output, shape index: {}]
  %s3 = sld [smem:[#allocation0]]
  $region18: #{forward.13} parent=0
    _
  %s5 = ssub.s32 1, %s3
  %s6 = scalar_select 0, %s5, %s3
  // Predicated region
  $region2: #{forward.13} parent=0 // pred_check
    _
  $region3: #{forward.13} parent=0 // pred_check_branch
    %8 = sbr.rel (0) target = $region5
  $region4: #{forward.13} parent=0 // pred_region
    _
  $region5: #{forward.13} parent=0 // pred_fallthru
    _
  // Predicated region
  $region6: #{forward.13} parent=0 // pred_check
    _
  $region7: #{forward.13} parent=0 // pred_check_branch
    %10 = sbr.rel (0) target = $region9
  $region8: #{forward.13} parent=0 // pred_region
    _
  $region9: #{forward.13} parent=0 // pred_fallthru
    _
  %v12 = vld [vmem:[%s0] sm:$0xf]
  %v13 = vld [vmem:[%s0 + $0x4] sm:$0xf]
  %v14 = vld [vmem:[%s0 + $0x8] sm:$0xf]
  %v15 = vld [vmem:[%s0 + $0xc] sm:$0xf]
  %v16 = vld [vmem:[%s0 + $0x10] sm:$0xf]
  %v17 = vld [vmem:[%s0 + $0x14] sm:$0xf]
  %v18 = vld [vmem:[%s0 + $0x18] sm:$0xf]
  %v19 = vld [vmem:[%s0 + $0x1c] sm:$0xf]
  %v20 = vld [vmem:[%s0 + $0x20] sm:$0xf]
  %v21 = vld [vmem:[%s0 + $0x24] sm:$0xf]
  %v22 = vld [vmem:[%s0 + $0x28] sm:$0xf]
  %v23 = vld [vmem:[%s0 + $0x2c] sm:$0xf]
  %v24 = vld [vmem:[%s0 + $0x30] sm:$0xf]
  %v25 = vld [vmem:[%s0 + $0x34] sm:$0xf]
  %v26 = vld [vmem:[%s0 + $0x38] sm:$0xf]
  %v27 = vld [vmem:[%s0 + $0x3c] sm:$0xf]
  %v28 = vld [vmem:[%s0 + $0x40] sm:$0xf]
  %v29 = vld [vmem:[%s0 + $0x44] sm:$0xf]
  %v30 = vld [vmem:[%s0 + $0x48] sm:$0xf]
  %v31 = vld [vmem:[%s0 + $0x4c] sm:$0xf]
  %v32 = vld [vmem:[%s0 + $0x50] sm:$0xf]
  %v33 = vld [vmem:[%s0 + $0x54] sm:$0xf]
  %v34 = vld [vmem:[%s0 + $0x58] sm:$0xf]
  %v35 = vld [vmem:[%s0 + $0x5c] sm:$0xf]
  %v36 = vld [vmem:[%s0 + $0x60] sm:$0xf]
  %v37 = vld [vmem:[%s0 + $0x64] sm:$0xf]
  %v38 = vld [vmem:[%s0 + $0x68] sm:$0xf]
  %v39 = vld [vmem:[%s0 + $0x6c] sm:$0xf]
  %v40 = vld [vmem:[%s0 + $0x70] sm:$0xf]
  %v41 = vld [vmem:[%s0 + $0x74] sm:$0xf]
  %v42 = vld [vmem:[%s0 + $0x78] sm:$0xf]
  %v43 = vld [vmem:[%s0 + $0x7c] sm:$0xf]
  %v44 = vld [vmem:[%s0 + $0x80] sm:$0xf]
  %v45 = vld [vmem:[%s0 + $0x84] sm:$0xf]
  %v46 = vld [vmem:[%s0 + $0x88] sm:$0xf]
  %v47 = vld [vmem:[%s0 + $0x8c] sm:$0xf]
  %v48 = vld [vmem:[%s0 + $0x90] sm:$0xf]
  %v49 = vld [vmem:[%s0 + $0x94] sm:$0xf]
  %v50 = vld [vmem:[%s0 + $0x98] sm:$0xf]
  %v51 = vld [vmem:[%s0 + $0x9c] sm:$0xf]
  %v52 = vld [vmem:[%s0 + $0xa0] sm:$0xf]
  %v53 = vld [vmem:[%s0 + $0xa4] sm:$0xf]
  %v54 = vld [vmem:[%s0 + $0xa8] sm:$0xf]
  %v55 = vld [vmem:[%s0 + $0xac] sm:$0xf]
  %v56 = vld [vmem:[%s0 + $0xb0] sm:$0xf]
  %v57 = vld [vmem:[%s0 + $0xb4] sm:$0xf]
  %v58 = vld [vmem:[%s0 + $0xb8] sm:$0xf]
  %v59 = vld [vmem:[%s0 + $0xbc] sm:$0xf]
  %v60 = vld [vmem:[%s0 + $0xc0] sm:$0xf]
  %v61 = vld [vmem:[%s0 + $0xc4] sm:$0xf]
  %v62 = vld [vmem:[%s0 + $0xc8] sm:$0xf]
  %v63 = vld [vmem:[%s0 + $0xcc] sm:$0xf]
  %v64 = vld [vmem:[%s0 + $0xd0] sm:$0xf]
  %v65 = vld [vmem:[%s0 + $0xd4] sm:$0xf]
  %v66 = vld [vmem:[%s1] sm:$0xf]
  %v67 = vld [vmem:[%s1 + $0x4] sm:$0xf]
  %v68 = vld [vmem:[%s1 + $0x8] sm:$0xf]
  %v69 = vld [vmem:[%s1 + $0xc] sm:$0xf]
  %v70 = vld [vmem:[%s1 + $0x10] sm:$0xf]
  %v71 = vld [vmem:[%s1 + $0x14] sm:$0xf]
  %v72 = vld [vmem:[%s1 + $0x18] sm:$0xf]
  %v73 = vld [vmem:[%s1 + $0x1c] sm:$0xf]
  %v74 = vld [vmem:[%s1 + $0x20] sm:$0xf]
  %v75 = vld [vmem:[%s1 + $0x24] sm:$0xf]
  %v76 = vld [vmem:[%s1 + $0x28] sm:$0xf]
  %v77 = vld [vmem:[%s1 + $0x2c] sm:$0xf]
  %v78 = vld [vmem:[%s1 + $0x30] sm:$0x1]
  %v133 = vunpack.c.l.b16 %v12
  %v134 = vunpack.c.l.b16 %v13
  %v135 = vunpack.c.l.b16 %v14
  %v136 = vunpack.c.l.b16 %v15
  %v137 = vunpack.c.l.b16 %v16
  %v138 = vunpack.c.l.b16 %v17
  %v139 = vunpack.c.l.b16 %v18
  %v140 = vunpack.c.l.b16 %v19
  %v141 = vunpack.c.l.b16 %v20
  %v142 = vunpack.c.l.b16 %v21
  %v143 = vunpack.c.l.b16 %v22
  %v144 = vunpack.c.l.b16 %v23
  %v145 = vunpack.c.l.b16 %v24
  %v146 = vunpack.c.l.b16 %v25
  %v147 = vunpack.c.l.b16 %v26
  %v148 = vunpack.c.l.b16 %v27
  %v149 = vunpack.c.l.b16 %v28
  %v150 = vunpack.c.l.b16 %v29
  %v151 = vunpack.c.l.b16 %v30
  %v152 = vunpack.c.l.b16 %v31
  %v153 = vunpack.c.l.b16 %v32
  %v154 = vunpack.c.l.b16 %v33
  %v155 = vunpack.c.l.b16 %v34
  %v156 = vunpack.c.l.b16 %v35
  %v157 = vunpack.c.l.b16 %v36
  %v158 = vunpack.c.l.b16 %v37
  %v159 = vunpack.c.l.b16 %v38
  %v160 = vunpack.c.l.b16 %v39
  %v161 = vunpack.c.l.b16 %v40
  %v162 = vunpack.c.l.b16 %v41
  %v163 = vunpack.c.l.b16 %v42
  %v164 = vunpack.c.l.b16 %v43
  %v165 = vunpack.c.l.b16 %v44
  %v166 = vunpack.c.l.b16 %v45
  %v167 = vunpack.c.l.b16 %v46
  %v168 = vunpack.c.l.b16 %v47
  %v169 = vunpack.c.l.b16 %v48
  %v170 = vunpack.c.l.b16 %v49
  %v171 = vunpack.c.l.b16 %v50
  %v172 = vunpack.c.l.b16 %v51
  %v173 = vunpack.c.l.b16 %v52
  %v174 = vunpack.c.l.b16 %v53
  %v175 = vunpack.c.l.b16 %v54
  %v176 = vunpack.c.l.b16 %v55
  %v177 = vunpack.c.l.b16 %v56
  %v178 = vunpack.c.l.b16 %v57
  %v179 = vunpack.c.l.b16 %v58
  %v180 = vunpack.c.l.b16 %v59
  %v181 = vunpack.c.l.b16 %v60
  %v182 = vunpack.c.l.b16 %v61
  %v183 = vunpack.c.l.b16 %v62
  %v184 = vunpack.c.l.b16 %v63
  %v185 = vunpack.c.l.b16 %v64
  %v186 = vunpack.c.l.b16 %v65
  %v187 = vpack.c.b16 %v134, %v133
  %v188 = vpack.c.b16 %v136, %v135
  %v189 = vpack.c.b16 %v138, %v137
  %v190 = vpack.c.b16 %v140, %v139
  %v191 = vpack.c.b16 %v142, %v141
  %v192 = vpack.c.b16 %v144, %v143
  %v193 = vpack.c.b16 %v146, %v145
  %v194 = vpack.c.b16 %v148, %v147
  %v195 = vpack.c.b16 %v150, %v149
  %v196 = vpack.c.b16 %v152, %v151
  %v197 = vpack.c.b16 %v154, %v153
  %v198 = vpack.c.b16 %v156, %v155
  %v199 = vpack.c.b16 %v158, %v157
  %v200 = vpack.c.b16 %v160, %v159
  %v201 = vpack.c.b16 %v162, %v161
  %v202 = vpack.c.b16 %v164, %v163
  %v203 = vpack.c.b16 %v166, %v165
  %v204 = vpack.c.b16 %v168, %v167
  %v205 = vpack.c.b16 %v170, %v169
  %v206 = vpack.c.b16 %v172, %v171
  %v207 = vpack.c.b16 %v174, %v173
  %v208 = vpack.c.b16 %v176, %v175
  %v209 = vpack.c.b16 %v178, %v177
  %v210 = vpack.c.b16 %v180, %v179
  %v211 = vpack.c.b16 %v182, %v181
  %v212 = vpack.c.b16 %v184, %v183
  %v213 = vpack.c.b16 %v186, %v185
  %v227 = vunpack.c.l.b16 %v66
  %v228 = vunpack.c.l.b16 %v67
  %v229 = vunpack.c.l.b16 %v68
  %v230 = vunpack.c.l.b16 %v69
  %v231 = vunpack.c.l.b16 %v70
  %v232 = vunpack.c.l.b16 %v71
  %v233 = vunpack.c.l.b16 %v72
  %v234 = vunpack.c.l.b16 %v73
  %v235 = vunpack.c.l.b16 %v74
  %v236 = vunpack.c.l.b16 %v75
  %v237 = vunpack.c.l.b16 %v76
  %v238 = vunpack.c.l.b16 %v77
  %v239 = vunpack.c.l.b16 %v78
  %v240 = vpack.c.b16 %v228, %v227
  %v241 = vpack.c.b16 %v230, %v229
  %v242 = vpack.c.b16 %v232, %v231
  %v243 = vpack.c.b16 %v234, %v233
  %v244 = vpack.c.b16 %v236, %v235
  %v245 = vpack.c.b16 %v238, %v237
  %v246 = vpack.c.b16 %v239, %v239
  %vm253 = vcmask 801792
  %v255 = vsel %vm253, %v187, 0
  %v258 = vsel %vm253, %v188, 0
  %v261 = vsel %vm253, %v189, 0
  %v264 = vsel %vm253, %v190, 0
  %v267 = vsel %vm253, %v191, 0
  %v270 = vsel %vm253, %v192, 0
  %v273 = vsel %vm253, %v193, 0
  %v276 = vsel %vm253, %v194, 0
  %v279 = vsel %vm253, %v195, 0
  %v282 = vsel %vm253, %v196, 0
  %v285 = vsel %vm253, %v197, 0
  %v288 = vsel %vm253, %v198, 0
  %v291 = vsel %vm253, %v199, 0
  %v294 = vsel %vm253, %v200, 0
  %v297 = vsel %vm253, %v201, 0
  %v300 = vsel %vm253, %v202, 0
  %v303 = vsel %vm253, %v203, 0
  %v306 = vsel %vm253, %v204, 0
  %v309 = vsel %vm253, %v205, 0
  %v312 = vsel %vm253, %v206, 0
  %v315 = vsel %vm253, %v207, 0
  %v318 = vsel %vm253, %v208, 0
  %v321 = vsel %vm253, %v209, 0
  %v324 = vsel %vm253, %v210, 0
  %v327 = vsel %vm253, %v211, 0
  %v330 = vsel %vm253, %v212, 0
  %v333 = vsel %vm253, %v213, 0
  %vm335 = vcmask 1040384
  %v337 = vsel %vm335, %v246, 0
  %339 = vmatprep.subr.bf16.mxu0 0
  %340 = vmatpush1.bf16.msra.mxu0 %v240
  %341 = vmatprep.subr.bf16.mxu0 0
  %342 = vmatpush1.bf16.msra.mxu0 %v241
  %343 = vmatprep.subr.bf16.mxu0 0
  %344 = vmatpush1.bf16.msra.mxu0 %v242
  %345 = vmatprep.subr.bf16.mxu0 0
  %346 = vmatpush1.bf16.msra.mxu0 %v243
  %347 = vmatprep.subr.bf16.mxu0 0
  %348 = vmatpush1.bf16.msra.mxu0 %v244
  %349 = vmatprep.subr.bf16.mxu0 0
  %350 = vmatpush1.bf16.msra.mxu0 %v245
  %351 = vmatprep.subr.bf16.mxu0 0
  %352 = vmatpush1.bf16.msra.mxu0 %v337
  %353 = vmatprep.subr.bf16.mxu0 0
  %354 = vmatpush1.bf16.msra.mxu0 0
  %355 = vmatprep.subr.bf16.mxu0 0
  %356 = vmatpush1.bf16.msra.mxu0 0
  %357 = vmatprep.subr.bf16.mxu0 0
  %358 = vmatpush1.bf16.msra.mxu0 0
  %359 = vmatprep.subr.bf16.mxu0 0
  %360 = vmatpush1.bf16.msra.mxu0 0
  %361 = vmatprep.subr.bf16.mxu0 0
  %362 = vmatpush1.bf16.msra.mxu0 0
  %363 = vmatprep.subr.bf16.mxu0 0
  %364 = vmatpush1.bf16.msra.mxu0 0
  %365 = vmatprep.subr.bf16.mxu0 0
  %366 = vmatpush1.bf16.msra.mxu0 0
  %367 = vmatprep.subr.bf16.mxu0 0
  %368 = vmatpush1.bf16.msra.mxu0 0
  %369 = vmatprep.subr.bf16.mxu0 0
  %370 = vmatpush1.bf16.msra.mxu0 0
  %371 = vmatprep.mubr.bf16.mxu0 0
  %372 = vmatmul.mubr.bf16.gmra.mrb[0].mxu0 %v255
  %v373 = vpop.f32.mrb[0].mxu0
  %v374 = vadd.f32 0.0, %v373
  %v375 = vpop.f32.mrb[0].mxu0
  %v376 = vpop.f32.mrb[0].mxu0
  %v377 = vadd.f32 0.0, %v376
  %v378 = vpop.f32.mrb[0].mxu0
  %379 = vmatprep.mubr.bf16.mxu0 0
  %380 = vmatmul.mubr.bf16.gmra.mrb[0].mxu0 %v258
  %v381 = vpop.f32.mrb[0].mxu0
  %v382 = vadd.f32 0.0, %v381
  %v383 = vpop.f32.mrb[0].mxu0
  %v384 = vpop.f32.mrb[0].mxu0
  %v385 = vadd.f32 0.0, %v384
  %v386 = vpop.f32.mrb[0].mxu0
  %387 = vmatprep.mubr.bf16.mxu0 0
  %388 = vmatmul.mubr.bf16.gmra.mrb[0].mxu0 %v261
  %v389 = vpop.f32.mrb[0].mxu0
  %v390 = vadd.f32 0.0, %v389
  %v391 = vpop.f32.mrb[0].mxu0
  %v392 = vpop.f32.mrb[0].mxu0
  %v393 = vadd.f32 0.0, %v392
  %v394 = vpop.f32.mrb[0].mxu0
  %395 = vmatprep.mubr.bf16.mxu0 0
  %396 = vmatmul.mubr.bf16.gmra.mrb[0].mxu0 %v264
  %v397 = vpop.f32.mrb[0].mxu0
  %v398 = vadd.f32 0.0, %v397
  %v399 = vpop.f32.mrb[0].mxu0
  %v400 = vpop.f32.mrb[0].mxu0
  %v401 = vadd.f32 0.0, %v400
  %v402 = vpop.f32.mrb[0].mxu0
  %403 = vmatprep.mubr.bf16.mxu0 0
  %404 = vmatmul.mubr.bf16.gmra.mrb[0].mxu0 %v267
  %v405 = vpop.f32.mrb[0].mxu0
  %v406 = vadd.f32 0.0, %v405
  %v407 = vpop.f32.mrb[0].mxu0
  %v408 = vpop.f32.mrb[0].mxu0
  %v409 = vadd.f32 0.0, %v408
  %v410 = vpop.f32.mrb[0].mxu0
  %411 = vmatprep.mubr.bf16.mxu0 0
  %412 = vmatmul.mubr.bf16.gmra.mrb[0].mxu0 %v270
  %v413 = vpop.f32.mrb[0].mxu0
  %v414 = vadd.f32 0.0, %v413
  %v415 = vpop.f32.mrb[0].mxu0
  %v416 = vpop.f32.mrb[0].mxu0
  %v417 = vadd.f32 0.0, %v416
  %v418 = vpop.f32.mrb[0].mxu0
  %419 = vmatprep.mubr.bf16.mxu0 0
  %420 = vmatmul.mubr.bf16.gmra.mrb[0].mxu0 %v273
  %v421 = vpop.f32.mrb[0].mxu0
  %v422 = vadd.f32 0.0, %v421
  %v423 = vpop.f32.mrb[0].mxu0
  %v424 = vpop.f32.mrb[0].mxu0
  %v425 = vadd.f32 0.0, %v424
  %v426 = vpop.f32.mrb[0].mxu0
  %427 = vmatprep.mubr.bf16.mxu0 0
  %428 = vmatmul.mubr.bf16.gmra.mrb[0].mxu0 %v276
  %v429 = vpop.f32.mrb[0].mxu0
  %v430 = vadd.f32 0.0, %v429
  %v431 = vpop.f32.mrb[0].mxu0
  %v432 = vpop.f32.mrb[0].mxu0
  %v433 = vadd.f32 0.0, %v432
  %v434 = vpop.f32.mrb[0].mxu0
  %435 = vmatprep.mubr.bf16.mxu0 0
  %436 = vmatmul.mubr.bf16.gmra.mrb[0].mxu0 %v279
  %v437 = vpop.f32.mrb[0].mxu0
  %v438 = vadd.f32 0.0, %v437
  %v439 = vpop.f32.mrb[0].mxu0
  %v440 = vpop.f32.mrb[0].mxu0
  %v441 = vadd.f32 0.0, %v440
  %v442 = vpop.f32.mrb[0].mxu0
  %443 = vmatprep.mubr.bf16.mxu0 0
  %444 = vmatmul.mubr.bf16.gmra.mrb[0].mxu0 %v282
  %v445 = vpop.f32.mrb[0].mxu0
  %v446 = vadd.f32 0.0, %v445
  %v447 = vpop.f32.mrb[0].mxu0
  %v448 = vpop.f32.mrb[0].mxu0
  %v449 = vadd.f32 0.0, %v448
  %v450 = vpop.f32.mrb[0].mxu0
  %451 = vmatprep.mubr.bf16.mxu0 0
  %452 = vmatmul.mubr.bf16.gmra.mrb[0].mxu0 %v285
  %v453 = vpop.f32.mrb[0].mxu0
  %v454 = vadd.f32 0.0, %v453
  %v455 = vpop.f32.mrb[0].mxu0
  %v456 = vpop.f32.mrb[0].mxu0
  %v457 = vadd.f32 0.0, %v456
  %v458 = vpop.f32.mrb[0].mxu0
  %459 = vmatprep.mubr.bf16.mxu0 0
  %460 = vmatmul.mubr.bf16.gmra.mrb[0].mxu0 %v288
  %v461 = vpop.f32.mrb[0].mxu0
  %v462 = vadd.f32 0.0, %v461
  %v463 = vpop.f32.mrb[0].mxu0
  %v464 = vpop.f32.mrb[0].mxu0
  %v465 = vadd.f32 0.0, %v464
  %v466 = vpop.f32.mrb[0].mxu0
  %467 = vmatprep.mubr.bf16.mxu0 0
  %468 = vmatmul.mubr.bf16.gmra.mrb[0].mxu0 %v291
  %v469 = vpop.f32.mrb[0].mxu0
  %v470 = vadd.f32 0.0, %v469
  %v471 = vpop.f32.mrb[0].mxu0
  %v472 = vpop.f32.mrb[0].mxu0
  %v473 = vadd.f32 0.0, %v472
  %v474 = vpop.f32.mrb[0].mxu0
  %475 = vmatprep.mubr.bf16.mxu0 0
  %476 = vmatmul.mubr.bf16.gmra.mrb[0].mxu0 %v294
  %v477 = vpop.f32.mrb[0].mxu0
  %v478 = vadd.f32 0.0, %v477
  %v479 = vpop.f32.mrb[0].mxu0
  %v480 = vpop.f32.mrb[0].mxu0
  %v481 = vadd.f32 0.0, %v480
  %v482 = vpop.f32.mrb[0].mxu0
  %483 = vmatprep.mubr.bf16.mxu0 0
  %484 = vmatmul.mubr.bf16.gmra.mrb[0].mxu0 %v297
  %v485 = vpop.f32.mrb[0].mxu0
  %v486 = vadd.f32 0.0, %v485
  %v487 = vpop.f32.mrb[0].mxu0
  %v488 = vpop.f32.mrb[0].mxu0
  %v489 = vadd.f32 0.0, %v488
  %v490 = vpop.f32.mrb[0].mxu0
  %491 = vmatprep.mubr.bf16.mxu0 0
  %492 = vmatmul.mubr.bf16.gmra.mrb[0].mxu0 %v300
  %v493 = vpop.f32.mrb[0].mxu0
  %v494 = vadd.f32 0.0, %v493
  %v495 = vpop.f32.mrb[0].mxu0
  %v496 = vpop.f32.mrb[0].mxu0
  %v497 = vadd.f32 0.0, %v496
  %v498 = vpop.f32.mrb[0].mxu0
  %499 = vmatprep.mubr.bf16.mxu0 0
  %500 = vmatmul.mubr.bf16.gmra.mrb[0].mxu0 %v303
  %v501 = vpop.f32.mrb[0].mxu0
  %v502 = vadd.f32 0.0, %v501
  %v503 = vpop.f32.mrb[0].mxu0
  %v504 = vpop.f32.mrb[0].mxu0
  %v505 = vadd.f32 0.0, %v504
  %v506 = vpop.f32.mrb[0].mxu0
  %507 = vmatprep.mubr.bf16.mxu0 0
  %508 = vmatmul.mubr.bf16.gmra.mrb[0].mxu0 %v306
  %v509 = vpop.f32.mrb[0].mxu0
  %v510 = vadd.f32 0.0, %v509
  %v511 = vpop.f32.mrb[0].mxu0
  %v512 = vpop.f32.mrb[0].mxu0
  %v513 = vadd.f32 0.0, %v512
  %v514 = vpop.f32.mrb[0].mxu0
  %515 = vmatprep.mubr.bf16.mxu0 0
  %516 = vmatmul.mubr.bf16.gmra.mrb[0].mxu0 %v309
  %v517 = vpop.f32.mrb[0].mxu0
  %v518 = vadd.f32 0.0, %v517
  %v519 = vpop.f32.mrb[0].mxu0
  %v520 = vpop.f32.mrb[0].mxu0
  %v521 = vadd.f32 0.0, %v520
  %v522 = vpop.f32.mrb[0].mxu0
  %523 = vmatprep.mubr.bf16.mxu0 0
  %524 = vmatmul.mubr.bf16.gmra.mrb[0].mxu0 %v312
  %v525 = vpop.f32.mrb[0].mxu0
  %v526 = vadd.f32 0.0, %v525
  %v527 = vpop.f32.mrb[0].mxu0
  %v528 = vpop.f32.mrb[0].mxu0
  %v529 = vadd.f32 0.0, %v528
  %v530 = vpop.f32.mrb[0].mxu0
  %531 = vmatprep.mubr.bf16.mxu0 0
  %532 = vmatmul.mubr.bf16.gmra.mrb[0].mxu0 %v315
  %v533 = vpop.f32.mrb[0].mxu0
  %v534 = vadd.f32 0.0, %v533
  %v535 = vpop.f32.mrb[0].mxu0
  %v536 = vpop.f32.mrb[0].mxu0
  %v537 = vadd.f32 0.0, %v536
  %v538 = vpop.f32.mrb[0].mxu0
  %539 = vmatprep.mubr.bf16.mxu0 0
  %540 = vmatmul.mubr.bf16.gmra.mrb[0].mxu0 %v318
  %v541 = vpop.f32.mrb[0].mxu0
  %v542 = vadd.f32 0.0, %v541
  %v543 = vpop.f32.mrb[0].mxu0
  %v544 = vpop.f32.mrb[0].mxu0
  %v545 = vadd.f32 0.0, %v544
  %v546 = vpop.f32.mrb[0].mxu0
  %547 = vmatprep.mubr.bf16.mxu0 0
  %548 = vmatmul.mubr.bf16.gmra.mrb[0].mxu0 %v321
  %v549 = vpop.f32.mrb[0].mxu0
  %v550 = vadd.f32 0.0, %v549
  %v551 = vpop.f32.mrb[0].mxu0
  %v552 = vpop.f32.mrb[0].mxu0
  %v553 = vadd.f32 0.0, %v552
  %v554 = vpop.f32.mrb[0].mxu0
  %555 = vmatprep.mubr.bf16.mxu0 0
  %556 = vmatmul.mubr.bf16.gmra.mrb[0].mxu0 %v324
  %v557 = vpop.f32.mrb[0].mxu0
  %v558 = vadd.f32 0.0, %v557
  %v559 = vpop.f32.mrb[0].mxu0
  %v560 = vpop.f32.mrb[0].mxu0
  %v561 = vadd.f32 0.0, %v560
  %v562 = vpop.f32.mrb[0].mxu0
  %563 = vmatprep.mubr.bf16.mxu0 0
  %564 = vmatmul.mubr.bf16.gmra.mrb[0].mxu0 %v327
  %v565 = vpop.f32.mrb[0].mxu0
  %v566 = vadd.f32 0.0, %v565
  %v567 = vpop.f32.mrb[0].mxu0
  %v568 = vpop.f32.mrb[0].mxu0
  %v569 = vadd.f32 0.0, %v568
  %v570 = vpop.f32.mrb[0].mxu0
  %571 = vmatprep.mubr.bf16.mxu0 0
  %572 = vmatmul.mubr.bf16.gmra.mrb[0].mxu0 %v330
  %v573 = vpop.f32.mrb[0].mxu0
  %v574 = vadd.f32 0.0, %v573
  %v575 = vpop.f32.mrb[0].mxu0
  %v576 = vpop.f32.mrb[0].mxu0
  %v577 = vadd.f32 0.0, %v576
  %v578 = vpop.f32.mrb[0].mxu0
  %579 = vmatprep.mubr.bf16.mxu0 0
  %580 = vmatmul.mubr.bf16.gmra.mrb[0].mxu0 %v333
  %v581 = vpop.f32.mrb[0].mxu0
  %v582 = vadd.f32 0.0, %v581
  %v583 = vpop.f32.mrb[0].mxu0
  %v584 = vpop.f32.mrb[0].mxu0
  %v585 = vadd.f32 0.0, %v584
  %v586 = vpop.f32.mrb[0].mxu0
  %587 = vdwg.mxu0
  %v588 = vmul.f32 %v374, %v374
  %v589 = vmul.f32 %v377, %v377
  %v590 = vmul.f32 %v382, %v382
  %v591 = vmul.f32 %v385, %v385
  %v592 = vmul.f32 %v390, %v390
  %v593 = vmul.f32 %v393, %v393
  %v594 = vmul.f32 %v398, %v398
  %v595 = vmul.f32 %v401, %v401
  %v596 = vmul.f32 %v406, %v406
  %v597 = vmul.f32 %v409, %v409
  %v598 = vmul.f32 %v414, %v414
  %v599 = vmul.f32 %v417, %v417
  %v600 = vmul.f32 %v422, %v422
  %v601 = vmul.f32 %v425, %v425
  %v602 = vmul.f32 %v430, %v430
  %v603 = vmul.f32 %v433, %v433
  %v604 = vmul.f32 %v438, %v438
  %v605 = vmul.f32 %v441, %v441
  %v606 = vmul.f32 %v446, %v446
  %v607 = vmul.f32 %v449, %v449
  %v608 = vmul.f32 %v454, %v454
  %v609 = vmul.f32 %v457, %v457
  %v610 = vmul.f32 %v462, %v462
  %v611 = vmul.f32 %v465, %v465
  %v612 = vmul.f32 %v470, %v470
  %v613 = vmul.f32 %v473, %v473
  %v614 = vmul.f32 %v478, %v478
  %v615 = vmul.f32 %v481, %v481
  %v616 = vmul.f32 %v486, %v486
  %v617 = vmul.f32 %v489, %v489
  %v618 = vmul.f32 %v494, %v494
  %v619 = vmul.f32 %v497, %v497
  %v620 = vmul.f32 %v502, %v502
  %v621 = vmul.f32 %v505, %v505
  %v622 = vmul.f32 %v510, %v510
  %v623 = vmul.f32 %v513, %v513
  %v624 = vmul.f32 %v518, %v518
  %v625 = vmul.f32 %v521, %v521
  %v626 = vmul.f32 %v526, %v526
  %v627 = vmul.f32 %v529, %v529
  %v628 = vmul.f32 %v534, %v534
  %v629 = vmul.f32 %v537, %v537
  %v630 = vmul.f32 %v542, %v542
  %v631 = vmul.f32 %v545, %v545
  %v632 = vmul.f32 %v550, %v550
  %v633 = vmul.f32 %v553, %v553
  %v634 = vmul.f32 %v558, %v558
  %v635 = vmul.f32 %v561, %v561
  %v636 = vmul.f32 %v566, %v566
  %v637 = vmul.f32 %v569, %v569
  %v638 = vmul.f32 %v574, %v574
  %v639 = vmul.f32 %v577, %v577
  %v640 = vmul.f32 %v582, %v582
  %v641 = vmul.f32 %v585, %v585
  %696 = vrot.lane.b32.xlu0 %v588, 112
  %v697 = vpop.permute.xlu0 %696
  %698 = vrot.lane.b32.xlu0 %v589, 112
  %v699 = vpop.permute.xlu0 %698
  %700 = vrot.lane.b32.xlu0 %v590, 112
  %v701 = vpop.permute.xlu0 %700
  %702 = vrot.lane.b32.xlu0 %v591, 112
  %v703 = vpop.permute.xlu0 %702
  %704 = vrot.lane.b32.xlu0 %v592, 112
  %v705 = vpop.permute.xlu0 %704
  %706 = vrot.lane.b32.xlu0 %v593, 112
  %v707 = vpop.permute.xlu0 %706
  %708 = vrot.lane.b32.xlu0 %v594, 112
  %v709 = vpop.permute.xlu0 %708
  %710 = vrot.lane.b32.xlu0 %v595, 112
  %v711 = vpop.permute.xlu0 %710
  %712 = vrot.lane.b32.xlu0 %v596, 112
  %v713 = vpop.permute.xlu0 %712
  %714 = vrot.lane.b32.xlu0 %v597, 112
  %v715 = vpop.permute.xlu0 %714
  %716 = vrot.lane.b32.xlu0 %v598, 112
  %v717 = vpop.permute.xlu0 %716
  %718 = vrot.lane.b32.xlu0 %v599, 112
  %v719 = vpop.permute.xlu0 %718
  %720 = vrot.lane.b32.xlu0 %v600, 112
  %v721 = vpop.permute.xlu0 %720
  %722 = vrot.lane.b32.xlu0 %v601, 112
  %v723 = vpop.permute.xlu0 %722
  %724 = vrot.lane.b32.xlu0 %v602, 112
  %v725 = vpop.permute.xlu0 %724
  %726 = vrot.lane.b32.xlu0 %v603, 112
  %v727 = vpop.permute.xlu0 %726
  %728 = vrot.lane.b32.xlu0 %v604, 112
  %v729 = vpop.permute.xlu0 %728
  %730 = vrot.lane.b32.xlu0 %v605, 112
  %v731 = vpop.permute.xlu0 %730
  %732 = vrot.lane.b32.xlu0 %v606, 112
  %v733 = vpop.permute.xlu0 %732
  %734 = vrot.lane.b32.xlu0 %v607, 112
  %v735 = vpop.permute.xlu0 %734
  %736 = vrot.lane.b32.xlu0 %v608, 112
  %v737 = vpop.permute.xlu0 %736
  %738 = vrot.lane.b32.xlu0 %v609, 112
  %v739 = vpop.permute.xlu0 %738
  %740 = vrot.lane.b32.xlu0 %v610, 112
  %v741 = vpop.permute.xlu0 %740
  %742 = vrot.lane.b32.xlu0 %v611, 112
  %v743 = vpop.permute.xlu0 %742
  %744 = vrot.lane.b32.xlu0 %v612, 112
  %v745 = vpop.permute.xlu0 %744
  %746 = vrot.lane.b32.xlu0 %v613, 112
  %v747 = vpop.permute.xlu0 %746
  %748 = vrot.lane.b32.xlu0 %v614, 112
  %v749 = vpop.permute.xlu0 %748
  %750 = vrot.lane.b32.xlu0 %v615, 112
  %v751 = vpop.permute.xlu0 %750
  %752 = vrot.lane.b32.xlu0 %v616, 112
  %v753 = vpop.permute.xlu0 %752
  %754 = vrot.lane.b32.xlu0 %v617, 112
  %v755 = vpop.permute.xlu0 %754
  %756 = vrot.lane.b32.xlu0 %v618, 112
  %v757 = vpop.permute.xlu0 %756
  %758 = vrot.lane.b32.xlu0 %v619, 112
  %v759 = vpop.permute.xlu0 %758
  %760 = vrot.lane.b32.xlu0 %v620, 112
  %v761 = vpop.permute.xlu0 %760
  %762 = vrot.lane.b32.xlu0 %v621, 112
  %v763 = vpop.permute.xlu0 %762
  %764 = vrot.lane.b32.xlu0 %v622, 112
  %v765 = vpop.permute.xlu0 %764
  %766 = vrot.lane.b32.xlu0 %v623, 112
  %v767 = vpop.permute.xlu0 %766
  %768 = vrot.lane.b32.xlu0 %v624, 112
  %v769 = vpop.permute.xlu0 %768
  %770 = vrot.lane.b32.xlu0 %v625, 112
  %v771 = vpop.permute.xlu0 %770
  %772 = vrot.lane.b32.xlu0 %v626, 112
  %v773 = vpop.permute.xlu0 %772
  %774 = vrot.lane.b32.xlu0 %v627, 112
  %v775 = vpop.permute.xlu0 %774
  %776 = vrot.lane.b32.xlu0 %v628, 112
  %v777 = vpop.permute.xlu0 %776
  %778 = vrot.lane.b32.xlu0 %v629, 112
  %v779 = vpop.permute.xlu0 %778
  %780 = vrot.lane.b32.xlu0 %v630, 112
  %v781 = vpop.permute.xlu0 %780
  %782 = vrot.lane.b32.xlu0 %v631, 112
  %v783 = vpop.permute.xlu0 %782
  %784 = vrot.lane.b32.xlu0 %v632, 112
  %v785 = vpop.permute.xlu0 %784
  %786 = vrot.lane.b32.xlu0 %v633, 112
  %v787 = vpop.permute.xlu0 %786
  %788 = vrot.lane.b32.xlu0 %v634, 112
  %v789 = vpop.permute.xlu0 %788
  %790 = vrot.lane.b32.xlu0 %v635, 112
  %v791 = vpop.permute.xlu0 %790
  %792 = vrot.lane.b32.xlu0 %v636, 112
  %v793 = vpop.permute.xlu0 %792
  %794 = vrot.lane.b32.xlu0 %v637, 112
  %v795 = vpop.permute.xlu0 %794
  %796 = vrot.lane.b32.xlu0 %v638, 112
  %v797 = vpop.permute.xlu0 %796
  %798 = vrot.lane.b32.xlu0 %v639, 112
  %v799 = vpop.permute.xlu0 %798
  %800 = vrot.lane.b32.xlu0 %v640, 112
  %v801 = vpop.permute.xlu0 %800
  %802 = vrot.lane.b32.xlu0 %v641, 112
  %v803 = vpop.permute.xlu0 %802
  %v858 = vadd.f32 %v588, %v697
  %v859 = vadd.f32 %v589, %v699
  %v860 = vadd.f32 %v590, %v701
  %v861 = vadd.f32 %v591, %v703
  %v862 = vadd.f32 %v592, %v705
  %v863 = vadd.f32 %v593, %v707
  %v864 = vadd.f32 %v594, %v709
  %v865 = vadd.f32 %v595, %v711
  %v866 = vadd.f32 %v596, %v713
  %v867 = vadd.f32 %v597, %v715
  %v868 = vadd.f32 %v598, %v717
  %v869 = vadd.f32 %v599, %v719
  %v870 = vadd.f32 %v600, %v721
  %v871 = vadd.f32 %v601, %v723
  %v872 = vadd.f32 %v602, %v725
  %v873 = vadd.f32 %v603, %v727
  %v874 = vadd.f32 %v604, %v729
  %v875 = vadd.f32 %v605, %v731
  %v876 = vadd.f32 %v606, %v733
  %v877 = vadd.f32 %v607, %v735
  %v878 = vadd.f32 %v608, %v737
  %v879 = vadd.f32 %v609, %v739
  %v880 = vadd.f32 %v610, %v741
  %v881 = vadd.f32 %v611, %v743
  %v882 = vadd.f32 %v612, %v745
  %v883 = vadd.f32 %v613, %v747
  %v884 = vadd.f32 %v614, %v749
  %v885 = vadd.f32 %v615, %v751
  %v886 = vadd.f32 %v616, %v753
  %v887 = vadd.f32 %v617, %v755
  %v888 = vadd.f32 %v618, %v757
  %v889 = vadd.f32 %v619, %v759
  %v890 = vadd.f32 %v620, %v761
  %v891 = vadd.f32 %v621, %v763
  %v892 = vadd.f32 %v622, %v765
  %v893 = vadd.f32 %v623, %v767
  %v894 = vadd.f32 %v624, %v769
  %v895 = vadd.f32 %v625, %v771
  %v896 = vadd.f32 %v626, %v773
  %v897 = vadd.f32 %v627, %v775
  %v898 = vadd.f32 %v628, %v777
  %v899 = vadd.f32 %v629, %v779
  %v900 = vadd.f32 %v630, %v781
  %v901 = vadd.f32 %v631, %v783
  %v902 = vadd.f32 %v632, %v785
  %v903 = vadd.f32 %v633, %v787
  %v904 = vadd.f32 %v634, %v789
  %v905 = vadd.f32 %v635, %v791
  %v906 = vadd.f32 %v636, %v793
  %v907 = vadd.f32 %v637, %v795
  %v908 = vadd.f32 %v638, %v797
  %v909 = vadd.f32 %v639, %v799
  %v910 = vadd.f32 %v640, %v801
  %v911 = vadd.f32 %v641, %v803
  %v912 = vadd.f32 %v858, 1e-12
  %v913 = vadd.f32 %v859, 1e-12
  %v914 = vadd.f32 %v860, 1e-12
  %v915 = vadd.f32 %v861, 1e-12
  %v916 = vadd.f32 %v862, 1e-12
  %v917 = vadd.f32 %v863, 1e-12
  %v918 = vadd.f32 %v864, 1e-12
  %v919 = vadd.f32 %v865, 1e-12
  %v920 = vadd.f32 %v866, 1e-12
  %v921 = vadd.f32 %v867, 1e-12
  %v922 = vadd.f32 %v868, 1e-12
  %v923 = vadd.f32 %v869, 1e-12
  %v924 = vadd.f32 %v870, 1e-12
  %v925 = vadd.f32 %v871, 1e-12
  %v926 = vadd.f32 %v872, 1e-12
  %v927 = vadd.f32 %v873, 1e-12
  %v928 = vadd.f32 %v874, 1e-12
  %v929 = vadd.f32 %v875, 1e-12
  %v930 = vadd.f32 %v876, 1e-12
  %v931 = vadd.f32 %v877, 1e-12
  %v932 = vadd.f32 %v878, 1e-12
  %v933 = vadd.f32 %v879, 1e-12
  %v934 = vadd.f32 %v880, 1e-12
  %v935 = vadd.f32 %v881, 1e-12
  %v936 = vadd.f32 %v882, 1e-12
  %v937 = vadd.f32 %v883, 1e-12
  %v938 = vadd.f32 %v884, 1e-12
  %v939 = vadd.f32 %v885, 1e-12
  %v940 = vadd.f32 %v886, 1e-12
  %v941 = vadd.f32 %v887, 1e-12
  %v942 = vadd.f32 %v888, 1e-12
  %v943 = vadd.f32 %v889, 1e-12
  %v944 = vadd.f32 %v890, 1e-12
  %v945 = vadd.f32 %v891, 1e-12
  %v946 = vadd.f32 %v892, 1e-12
  %v947 = vadd.f32 %v893, 1e-12
  %v948 = vadd.f32 %v894, 1e-12
  %v949 = vadd.f32 %v895, 1e-12
  %v950 = vadd.f32 %v896, 1e-12
  %v951 = vadd.f32 %v897, 1e-12
  %v952 = vadd.f32 %v898, 1e-12
  %v953 = vadd.f32 %v899, 1e-12
  %v954 = vadd.f32 %v900, 1e-12
  %v955 = vadd.f32 %v901, 1e-12
  %v956 = vadd.f32 %v902, 1e-12
  %v957 = vadd.f32 %v903, 1e-12
  %v958 = vadd.f32 %v904, 1e-12
  %v959 = vadd.f32 %v905, 1e-12
  %v960 = vadd.f32 %v906, 1e-12
  %v961 = vadd.f32 %v907, 1e-12
  %v962 = vadd.f32 %v908, 1e-12
  %v963 = vadd.f32 %v909, 1e-12
  %v964 = vadd.f32 %v910, 1e-12
  %v965 = vadd.f32 %v911, 1e-12
  %v966 = vrsqrt.pop %v912
  %v967 = vmul.f32 %v912, %v966
  %vm968 = vcmp.eq.f32.partialorder %v912, inf
  %v969 = vsel %vm968, %v912, %v967
  %vm970 = vcmp.eq.f32.partialorder %v912, 0.0
  %v971 = vand.u32 %v912, 2147483648
  %v972 = vsel %vm970, %v971, %v969
  %v973 = vrsqrt.pop %v913
  %v974 = vmul.f32 %v913, %v973
  %vm975 = vcmp.eq.f32.partialorder %v913, inf
  %v976 = vsel %vm975, %v913, %v974
  %vm977 = vcmp.eq.f32.partialorder %v913, 0.0
  %v978 = vand.u32 %v913, 2147483648
  %v979 = vsel %vm977, %v978, %v976
  %v980 = vrsqrt.pop %v914
  %v981 = vmul.f32 %v914, %v980
  %vm982 = vcmp.eq.f32.partialorder %v914, inf
  %v983 = vsel %vm982, %v914, %v981
  %vm984 = vcmp.eq.f32.partialorder %v914, 0.0
  %v985 = vand.u32 %v914, 2147483648
  %v986 = vsel %vm984, %v985, %v983
  %v987 = vrsqrt.pop %v915
  %v988 = vmul.f32 %v915, %v987
  %vm989 = vcmp.eq.f32.partialorder %v915, inf
  %v990 = vsel %vm989, %v915, %v988
  %vm991 = vcmp.eq.f32.partialorder %v915, 0.0
  %v992 = vand.u32 %v915, 2147483648
  %v993 = vsel %vm991, %v992, %v990
  %v994 = vrsqrt.pop %v916
  %v995 = vmul.f32 %v916, %v994
  %vm996 = vcmp.eq.f32.partialorder %v916, inf
  %v997 = vsel %vm996, %v916, %v995
  %vm998 = vcmp.eq.f32.partialorder %v916, 0.0
  %v999 = vand.u32 %v916, 2147483648
  %v1000 = vsel %vm998, %v999, %v997
  %v1001 = vrsqrt.pop %v917
  %v1002 = vmul.f32 %v917, %v1001
  %vm1003 = vcmp.eq.f32.partialorder %v917, inf
  %v1004 = vsel %vm1003, %v917, %v1002
  %vm1005 = vcmp.eq.f32.partialorder %v917, 0.0
  %v1006 = vand.u32 %v917, 2147483648
  %v1007 = vsel %vm1005, %v1006, %v1004
  %v1008 = vrsqrt.pop %v918
  %v1009 = vmul.f32 %v918, %v1008
  %vm1010 = vcmp.eq.f32.partialorder %v918, inf
  %v1011 = vsel %vm1010, %v918, %v1009
  %vm1012 = vcmp.eq.f32.partialorder %v918, 0.0
  %v1013 = vand.u32 %v918, 2147483648
  %v1014 = vsel %vm1012, %v1013, %v1011
  %v1015 = vrsqrt.pop %v919
  %v1016 = vmul.f32 %v919, %v1015
  %vm1017 = vcmp.eq.f32.partialorder %v919, inf
  %v1018 = vsel %vm1017, %v919, %v1016
  %vm1019 = vcmp.eq.f32.partialorder %v919, 0.0
  %v1020 = vand.u32 %v919, 2147483648
  %v1021 = vsel %vm1019, %v1020, %v1018
  %v1022 = vrsqrt.pop %v920
  %v1023 = vmul.f32 %v920, %v1022
  %vm1024 = vcmp.eq.f32.partialorder %v920, inf
  %v1025 = vsel %vm1024, %v920, %v1023
  %vm1026 = vcmp.eq.f32.partialorder %v920, 0.0
  %v1027 = vand.u32 %v920, 2147483648
  %v1028 = vsel %vm1026, %v1027, %v1025
  %v1029 = vrsqrt.pop %v921
  %v1030 = vmul.f32 %v921, %v1029
  %vm1031 = vcmp.eq.f32.partialorder %v921, inf
  %v1032 = vsel %vm1031, %v921, %v1030
  %vm1033 = vcmp.eq.f32.partialorder %v921, 0.0
  %v1034 = vand.u32 %v921, 2147483648
  %v1035 = vsel %vm1033, %v1034, %v1032
  %v1036 = vrsqrt.pop %v922
  %v1037 = vmul.f32 %v922, %v1036
  %vm1038 = vcmp.eq.f32.partialorder %v922, inf
  %v1039 = vsel %vm1038, %v922, %v1037
  %vm1040 = vcmp.eq.f32.partialorder %v922, 0.0
  %v1041 = vand.u32 %v922, 2147483648
  %v1042 = vsel %vm1040, %v1041, %v1039
  %v1043 = vrsqrt.pop %v923
  %v1044 = vmul.f32 %v923, %v1043
  %vm1045 = vcmp.eq.f32.partialorder %v923, inf
  %v1046 = vsel %vm1045, %v923, %v1044
  %vm1047 = vcmp.eq.f32.partialorder %v923, 0.0
  %v1048 = vand.u32 %v923, 2147483648
  %v1049 = vsel %vm1047, %v1048, %v1046
  %v1050 = vrsqrt.pop %v924
  %v1051 = vmul.f32 %v924, %v1050
  %vm1052 = vcmp.eq.f32.partialorder %v924, inf
  %v1053 = vsel %vm1052, %v924, %v1051
  %vm1054 = vcmp.eq.f32.partialorder %v924, 0.0
  %v1055 = vand.u32 %v924, 2147483648
  %v1056 = vsel %vm1054, %v1055, %v1053
  %v1057 = vrsqrt.pop %v925
  %v1058 = vmul.f32 %v925, %v1057
  %vm1059 = vcmp.eq.f32.partialorder %v925, inf
  %v1060 = vsel %vm1059, %v925, %v1058
  %vm1061 = vcmp.eq.f32.partialorder %v925, 0.0
  %v1062 = vand.u32 %v925, 2147483648
  %v1063 = vsel %vm1061, %v1062, %v1060
  %v1064 = vrsqrt.pop %v926
  %v1065 = vmul.f32 %v926, %v1064
  %vm1066 = vcmp.eq.f32.partialorder %v926, inf
  %v1067 = vsel %vm1066, %v926, %v1065
  %vm1068 = vcmp.eq.f32.partialorder %v926, 0.0
  %v1069 = vand.u32 %v926, 2147483648
  %v1070 = vsel %vm1068, %v1069, %v1067
  %v1071 = vrsqrt.pop %v927
  %v1072 = vmul.f32 %v927, %v1071
  %vm1073 = vcmp.eq.f32.partialorder %v927, inf
  %v1074 = vsel %vm1073, %v927, %v1072
  %vm1075 = vcmp.eq.f32.partialorder %v927, 0.0
  %v1076 = vand.u32 %v927, 2147483648
  %v1077 = vsel %vm1075, %v1076, %v1074
  %v1078 = vrsqrt.pop %v928
  %v1079 = vmul.f32 %v928, %v1078
  %vm1080 = vcmp.eq.f32.partialorder %v928, inf
  %v1081 = vsel %vm1080, %v928, %v1079
  %vm1082 = vcmp.eq.f32.partialorder %v928, 0.0
  %v1083 = vand.u32 %v928, 2147483648
  %v1084 = vsel %vm1082, %v1083, %v1081
  %v1085 = vrsqrt.pop %v929
  %v1086 = vmul.f32 %v929, %v1085
  %vm1087 = vcmp.eq.f32.partialorder %v929, inf
  %v1088 = vsel %vm1087, %v929, %v1086
  %vm1089 = vcmp.eq.f32.partialorder %v929, 0.0
  %v1090 = vand.u32 %v929, 2147483648
  %v1091 = vsel %vm1089, %v1090, %v1088
  %v1092 = vrsqrt.pop %v930
  %v1093 = vmul.f32 %v930, %v1092
  %vm1094 = vcmp.eq.f32.partialorder %v930, inf
  %v1095 = vsel %vm1094, %v930, %v1093
  %vm1096 = vcmp.eq.f32.partialorder %v930, 0.0
  %v1097 = vand.u32 %v930, 2147483648
  %v1098 = vsel %vm1096, %v1097, %v1095
  %v1099 = vrsqrt.pop %v931
  %v1100 = vmul.f32 %v931, %v1099
  %vm1101 = vcmp.eq.f32.partialorder %v931, inf
  %v1102 = vsel %vm1101, %v931, %v1100
  %vm1103 = vcmp.eq.f32.partialorder %v931, 0.0
  %v1104 = vand.u32 %v931, 2147483648
  %v1105 = vsel %vm1103, %v1104, %v1102
  %v1106 = vrsqrt.pop %v932
  %v1107 = vmul.f32 %v932, %v1106
  %vm1108 = vcmp.eq.f32.partialorder %v932, inf
  %v1109 = vsel %vm1108, %v932, %v1107
  %vm1110 = vcmp.eq.f32.partialorder %v932, 0.0
  %v1111 = vand.u32 %v932, 2147483648
  %v1112 = vsel %vm1110, %v1111, %v1109
  %v1113 = vrsqrt.pop %v933
  %v1114 = vmul.f32 %v933, %v1113
  %vm1115 = vcmp.eq.f32.partialorder %v933, inf
  %v1116 = vsel %vm1115, %v933, %v1114
  %vm1117 = vcmp.eq.f32.partialorder %v933, 0.0
  %v1118 = vand.u32 %v933, 2147483648
  %v1119 = vsel %vm1117, %v1118, %v1116
  %v1120 = vrsqrt.pop %v934
  %v1121 = vmul.f32 %v934, %v1120
  %vm1122 = vcmp.eq.f32.partialorder %v934, inf
  %v1123 = vsel %vm1122, %v934, %v1121
  %vm1124 = vcmp.eq.f32.partialorder %v934, 0.0
  %v1125 = vand.u32 %v934, 2147483648
  %v1126 = vsel %vm1124, %v1125, %v1123
  %v1127 = vrsqrt.pop %v935
  %v1128 = vmul.f32 %v935, %v1127
  %vm1129 = vcmp.eq.f32.partialorder %v935, inf
  %v1130 = vsel %vm1129, %v935, %v1128
  %vm1131 = vcmp.eq.f32.partialorder %v935, 0.0
  %v1132 = vand.u32 %v935, 2147483648
  %v1133 = vsel %vm1131, %v1132, %v1130
  %v1134 = vrsqrt.pop %v936
  %v1135 = vmul.f32 %v936, %v1134
  %vm1136 = vcmp.eq.f32.partialorder %v936, inf
  %v1137 = vsel %vm1136, %v936, %v1135
  %vm1138 = vcmp.eq.f32.partialorder %v936, 0.0
  %v1139 = vand.u32 %v936, 2147483648
  %v1140 = vsel %vm1138, %v1139, %v1137
  %v1141 = vrsqrt.pop %v937
  %v1142 = vmul.f32 %v937, %v1141
  %vm1143 = vcmp.eq.f32.partialorder %v937, inf
  %v1144 = vsel %vm1143, %v937, %v1142
  %vm1145 = vcmp.eq.f32.partialorder %v937, 0.0
  %v1146 = vand.u32 %v937, 2147483648
  %v1147 = vsel %vm1145, %v1146, %v1144
  %v1148 = vrsqrt.pop %v938
  %v1149 = vmul.f32 %v938, %v1148
  %vm1150 = vcmp.eq.f32.partialorder %v938, inf
  %v1151 = vsel %vm1150, %v938, %v1149
  %vm1152 = vcmp.eq.f32.partialorder %v938, 0.0
  %v1153 = vand.u32 %v938, 2147483648
  %v1154 = vsel %vm1152, %v1153, %v1151
  %v1155 = vrsqrt.pop %v939
  %v1156 = vmul.f32 %v939, %v1155
  %vm1157 = vcmp.eq.f32.partialorder %v939, inf
  %v1158 = vsel %vm1157, %v939, %v1156
  %vm1159 = vcmp.eq.f32.partialorder %v939, 0.0
  %v1160 = vand.u32 %v939, 2147483648
  %v1161 = vsel %vm1159, %v1160, %v1158
  %v1162 = vrsqrt.pop %v940
  %v1163 = vmul.f32 %v940, %v1162
  %vm1164 = vcmp.eq.f32.partialorder %v940, inf
  %v1165 = vsel %vm1164, %v940, %v1163
  %vm1166 = vcmp.eq.f32.partialorder %v940, 0.0
  %v1167 = vand.u32 %v940, 2147483648
  %v1168 = vsel %vm1166, %v1167, %v1165
  %v1169 = vrsqrt.pop %v941
  %v1170 = vmul.f32 %v941, %v1169
  %vm1171 = vcmp.eq.f32.partialorder %v941, inf
  %v1172 = vsel %vm1171, %v941, %v1170
  %vm1173 = vcmp.eq.f32.partialorder %v941, 0.0
  %v1174 = vand.u32 %v941, 2147483648
  %v1175 = vsel %vm1173, %v1174, %v1172
  %v1176 = vrsqrt.pop %v942
  %v1177 = vmul.f32 %v942, %v1176
  %vm1178 = vcmp.eq.f32.partialorder %v942, inf
  %v1179 = vsel %vm1178, %v942, %v1177
  %vm1180 = vcmp.eq.f32.partialorder %v942, 0.0
  %v1181 = vand.u32 %v942, 2147483648
  %v1182 = vsel %vm1180, %v1181, %v1179
  %v1183 = vrsqrt.pop %v943
  %v1184 = vmul.f32 %v943, %v1183
  %vm1185 = vcmp.eq.f32.partialorder %v943, inf
  %v1186 = vsel %vm1185, %v943, %v1184
  %vm1187 = vcmp.eq.f32.partialorder %v943, 0.0
  %v1188 = vand.u32 %v943, 2147483648
  %v1189 = vsel %vm1187, %v1188, %v1186
  %v1190 = vrsqrt.pop %v944
  %v1191 = vmul.f32 %v944, %v1190
  %vm1192 = vcmp.eq.f32.partialorder %v944, inf
  %v1193 = vsel %vm1192, %v944, %v1191
  %vm1194 = vcmp.eq.f32.partialorder %v944, 0.0
  %v1195 = vand.u32 %v944, 2147483648
  %v1196 = vsel %vm1194, %v1195, %v1193
  %v1197 = vrsqrt.pop %v945
  %v1198 = vmul.f32 %v945, %v1197
  %vm1199 = vcmp.eq.f32.partialorder %v945, inf
  %v1200 = vsel %vm1199, %v945, %v1198
  %vm1201 = vcmp.eq.f32.partialorder %v945, 0.0
  %v1202 = vand.u32 %v945, 2147483648
  %v1203 = vsel %vm1201, %v1202, %v1200
  %v1204 = vrsqrt.pop %v946
  %v1205 = vmul.f32 %v946, %v1204
  %vm1206 = vcmp.eq.f32.partialorder %v946, inf
  %v1207 = vsel %vm1206, %v946, %v1205
  %vm1208 = vcmp.eq.f32.partialorder %v946, 0.0
  %v1209 = vand.u32 %v946, 2147483648
  %v1210 = vsel %vm1208, %v1209, %v1207
  %v1211 = vrsqrt.pop %v947
  %v1212 = vmul.f32 %v947, %v1211
  %vm1213 = vcmp.eq.f32.partialorder %v947, inf
  %v1214 = vsel %vm1213, %v947, %v1212
  %vm1215 = vcmp.eq.f32.partialorder %v947, 0.0
  %v1216 = vand.u32 %v947, 2147483648
  %v1217 = vsel %vm1215, %v1216, %v1214
  %v1218 = vrsqrt.pop %v948
  %v1219 = vmul.f32 %v948, %v1218
  %vm1220 = vcmp.eq.f32.partialorder %v948, inf
  %v1221 = vsel %vm1220, %v948, %v1219
  %vm1222 = vcmp.eq.f32.partialorder %v948, 0.0
  %v1223 = vand.u32 %v948, 2147483648
  %v1224 = vsel %vm1222, %v1223, %v1221
  %v1225 = vrsqrt.pop %v949
  %v1226 = vmul.f32 %v949, %v1225
  %vm1227 = vcmp.eq.f32.partialorder %v949, inf
  %v1228 = vsel %vm1227, %v949, %v1226
  %vm1229 = vcmp.eq.f32.partialorder %v949, 0.0
  %v1230 = vand.u32 %v949, 2147483648
  %v1231 = vsel %vm1229, %v1230, %v1228
  %v1232 = vrsqrt.pop %v950
  %v1233 = vmul.f32 %v950, %v1232
  %vm1234 = vcmp.eq.f32.partialorder %v950, inf
  %v1235 = vsel %vm1234, %v950, %v1233
  %vm1236 = vcmp.eq.f32.partialorder %v950, 0.0
  %v1237 = vand.u32 %v950, 2147483648
  %v1238 = vsel %vm1236, %v1237, %v1235
  %v1239 = vrsqrt.pop %v951
  %v1240 = vmul.f32 %v951, %v1239
  %vm1241 = vcmp.eq.f32.partialorder %v951, inf
  %v1242 = vsel %vm1241, %v951, %v1240
  %vm1243 = vcmp.eq.f32.partialorder %v951, 0.0
  %v1244 = vand.u32 %v951, 2147483648
  %v1245 = vsel %vm1243, %v1244, %v1242
  %v1246 = vrsqrt.pop %v952
  %v1247 = vmul.f32 %v952, %v1246
  %vm1248 = vcmp.eq.f32.partialorder %v952, inf
  %v1249 = vsel %vm1248, %v952, %v1247
  %vm1250 = vcmp.eq.f32.partialorder %v952, 0.0
  %v1251 = vand.u32 %v952, 2147483648
  %v1252 = vsel %vm1250, %v1251, %v1249
  %v1253 = vrsqrt.pop %v953
  %v1254 = vmul.f32 %v953, %v1253
  %vm1255 = vcmp.eq.f32.partialorder %v953, inf
  %v1256 = vsel %vm1255, %v953, %v1254
  %vm1257 = vcmp.eq.f32.partialorder %v953, 0.0
  %v1258 = vand.u32 %v953, 2147483648
  %v1259 = vsel %vm1257, %v1258, %v1256
  %v1260 = vrsqrt.pop %v954
  %v1261 = vmul.f32 %v954, %v1260
  %vm1262 = vcmp.eq.f32.partialorder %v954, inf
  %v1263 = vsel %vm1262, %v954, %v1261
  %vm1264 = vcmp.eq.f32.partialorder %v954, 0.0
  %v1265 = vand.u32 %v954, 2147483648
  %v1266 = vsel %vm1264, %v1265, %v1263
  %v1267 = vrsqrt.pop %v955
  %v1268 = vmul.f32 %v955, %v1267
  %vm1269 = vcmp.eq.f32.partialorder %v955, inf
  %v1270 = vsel %vm1269, %v955, %v1268
  %vm1271 = vcmp.eq.f32.partialorder %v955, 0.0
  %v1272 = vand.u32 %v955, 2147483648
  %v1273 = vsel %vm1271, %v1272, %v1270
  %v1274 = vrsqrt.pop %v956
  %v1275 = vmul.f32 %v956, %v1274
  %vm1276 = vcmp.eq.f32.partialorder %v956, inf
  %v1277 = vsel %vm1276, %v956, %v1275
  %vm1278 = vcmp.eq.f32.partialorder %v956, 0.0
  %v1279 = vand.u32 %v956, 2147483648
  %v1280 = vsel %vm1278, %v1279, %v1277
  %v1281 = vrsqrt.pop %v957
  %v1282 = vmul.f32 %v957, %v1281
  %vm1283 = vcmp.eq.f32.partialorder %v957, inf
  %v1284 = vsel %vm1283, %v957, %v1282
  %vm1285 = vcmp.eq.f32.partialorder %v957, 0.0
  %v1286 = vand.u32 %v957, 2147483648
  %v1287 = vsel %vm1285, %v1286, %v1284
  %v1288 = vrsqrt.pop %v958
  %v1289 = vmul.f32 %v958, %v1288
  %vm1290 = vcmp.eq.f32.partialorder %v958, inf
  %v1291 = vsel %vm1290, %v958, %v1289
  %vm1292 = vcmp.eq.f32.partialorder %v958, 0.0
  %v1293 = vand.u32 %v958, 2147483648
  %v1294 = vsel %vm1292, %v1293, %v1291
  %v1295 = vrsqrt.pop %v959
  %v1296 = vmul.f32 %v959, %v1295
  %vm1297 = vcmp.eq.f32.partialorder %v959, inf
  %v1298 = vsel %vm1297, %v959, %v1296
  %vm1299 = vcmp.eq.f32.partialorder %v959, 0.0
  %v1300 = vand.u32 %v959, 2147483648
  %v1301 = vsel %vm1299, %v1300, %v1298
  %v1302 = vrsqrt.pop %v960
  %v1303 = vmul.f32 %v960, %v1302
  %vm1304 = vcmp.eq.f32.partialorder %v960, inf
  %v1305 = vsel %vm1304, %v960, %v1303
  %vm1306 = vcmp.eq.f32.partialorder %v960, 0.0
  %v1307 = vand.u32 %v960, 2147483648
  %v1308 = vsel %vm1306, %v1307, %v1305
  %v1309 = vrsqrt.pop %v961
  %v1310 = vmul.f32 %v961, %v1309
  %vm1311 = vcmp.eq.f32.partialorder %v961, inf
  %v1312 = vsel %vm1311, %v961, %v1310
  %vm1313 = vcmp.eq.f32.partialorder %v961, 0.0
  %v1314 = vand.u32 %v961, 2147483648
  %v1315 = vsel %vm1313, %v1314, %v1312
  %v1316 = vrsqrt.pop %v962
  %v1317 = vmul.f32 %v962, %v1316
  %vm1318 = vcmp.eq.f32.partialorder %v962, inf
  %v1319 = vsel %vm1318, %v962, %v1317
  %vm1320 = vcmp.eq.f32.partialorder %v962, 0.0
  %v1321 = vand.u32 %v962, 2147483648
  %v1322 = vsel %vm1320, %v1321, %v1319
  %v1323 = vrsqrt.pop %v963
  %v1324 = vmul.f32 %v963, %v1323
  %vm1325 = vcmp.eq.f32.partialorder %v963, inf
  %v1326 = vsel %vm1325, %v963, %v1324
  %vm1327 = vcmp.eq.f32.partialorder %v963, 0.0
  %v1328 = vand.u32 %v963, 2147483648
  %v1329 = vsel %vm1327, %v1328, %v1326
  %v1330 = vrsqrt.pop %v964
  %v1331 = vmul.f32 %v964, %v1330
  %vm1332 = vcmp.eq.f32.partialorder %v964, inf
  %v1333 = vsel %vm1332, %v964, %v1331
  %vm1334 = vcmp.eq.f32.partialorder %v964, 0.0
  %v1335 = vand.u32 %v964, 2147483648
  %v1336 = vsel %vm1334, %v1335, %v1333
  %v1337 = vrsqrt.pop %v965
  %v1338 = vmul.f32 %v965, %v1337
  %vm1339 = vcmp.eq.f32.partialorder %v965, inf
  %v1340 = vsel %vm1339, %v965, %v1338
  %vm1341 = vcmp.eq.f32.partialorder %v965, 0.0
  %v1342 = vand.u32 %v965, 2147483648
  %v1343 = vsel %vm1341, %v1342, %v1340
  %vm1344 = vcmask 130048
  %1345 = vst.msk [vmem:[%s2] sm:$0xff] %vm1344, %v972
  %1346 = vst.msk [vmem:[%s2 + $0x8] sm:$0xff] %vm1344, %v979
  %1347 = vst.msk [vmem:[%s2 + $0x10] sm:$0xff] %vm1344, %v986
  %1348 = vst.msk [vmem:[%s2 + $0x18] sm:$0xff] %vm1344, %v993
  %1349 = vst.msk [vmem:[%s2 + $0x20] sm:$0xff] %vm1344, %v1000
  %1350 = vst.msk [vmem:[%s2 + $0x28] sm:$0xff] %vm1344, %v1007
  %1351 = vst.msk [vmem:[%s2 + $0x30] sm:$0xff] %vm1344, %v1014
  %1352 = vst.msk [vmem:[%s2 + $0x38] sm:$0xff] %vm1344, %v1021
  %1353 = vst.msk [vmem:[%s2 + $0x40] sm:$0xff] %vm1344, %v1028
  %1354 = vst.msk [vmem:[%s2 + $0x48] sm:$0xff] %vm1344, %v1035
  %1355 = vst.msk [vmem:[%s2 + $0x50] sm:$0xff] %vm1344, %v1042
  %1356 = vst.msk [vmem:[%s2 + $0x58] sm:$0xff] %vm1344, %v1049
  %1357 = vst.msk [vmem:[%s2 + $0x60] sm:$0xff] %vm1344, %v1056
  %1358 = vst.msk [vmem:[%s2 + $0x68] sm:$0xff] %vm1344, %v1063
  %1359 = vst.msk [vmem:[%s2 + $0x70] sm:$0xff] %vm1344, %v1070
  %1360 = vst.msk [vmem:[%s2 + $0x78] sm:$0xff] %vm1344, %v1077
  %1361 = vst.msk [vmem:[%s2 + $0x80] sm:$0xff] %vm1344, %v1084
  %1362 = vst.msk [vmem:[%s2 + $0x88] sm:$0xff] %vm1344, %v1091
  %1363 = vst.msk [vmem:[%s2 + $0x90] sm:$0xff] %vm1344, %v1098
  %1364 = vst.msk [vmem:[%s2 + $0x98] sm:$0xff] %vm1344, %v1105
  %1365 = vst.msk [vmem:[%s2 + $0xa0] sm:$0xff] %vm1344, %v1112
  %1366 = vst.msk [vmem:[%s2 + $0xa8] sm:$0xff] %vm1344, %v1119
  %1367 = vst.msk [vmem:[%s2 + $0xb0] sm:$0xff] %vm1344, %v1126
  %1368 = vst.msk [vmem:[%s2 + $0xb8] sm:$0xff] %vm1344, %v1133
  %1369 = vst.msk [vmem:[%s2 + $0xc0] sm:$0xff] %vm1344, %v1140
  %1370 = vst.msk [vmem:[%s2 + $0xc8] sm:$0xff] %vm1344, %v1147
  %1371 = vst.msk [vmem:[%s2 + $0xd0] sm:$0xff] %vm1344, %v1154
  %1372 = vst.msk [vmem:[%s2 + $0xd8] sm:$0xff] %vm1344, %v1161
  %1373 = vst.msk [vmem:[%s2 + $0xe0] sm:$0xff] %vm1344, %v1168
  %1374 = vst.msk [vmem:[%s2 + $0xe8] sm:$0xff] %vm1344, %v1175
  %1375 = vst.msk [vmem:[%s2 + $0xf0] sm:$0xff] %vm1344, %v1182
  %1376 = vst.msk [vmem:[%s2 + $0xf8] sm:$0xff] %vm1344, %v1189
  %1377 = vst.msk [vmem:[%s2 + $0x100] sm:$0xff] %vm1344, %v1196
  %1378 = vst.msk [vmem:[%s2 + $0x108] sm:$0xff] %vm1344, %v1203
  %1379 = vst.msk [vmem:[%s2 + $0x110] sm:$0xff] %vm1344, %v1210
  %1380 = vst.msk [vmem:[%s2 + $0x118] sm:$0xff] %vm1344, %v1217
  %1381 = vst.msk [vmem:[%s2 + $0x120] sm:$0xff] %vm1344, %v1224
  %1382 = vst.msk [vmem:[%s2 + $0x128] sm:$0xff] %vm1344, %v1231
  %1383 = vst.msk [vmem:[%s2 + $0x130] sm:$0xff] %vm1344, %v1238
  %1384 = vst.msk [vmem:[%s2 + $0x138] sm:$0xff] %vm1344, %v1245
  %1385 = vst.msk [vmem:[%s2 + $0x140] sm:$0xff] %vm1344, %v1252
  %1386 = vst.msk [vmem:[%s2 + $0x148] sm:$0xff] %vm1344, %v1259
  %1387 = vst.msk [vmem:[%s2 + $0x150] sm:$0xff] %vm1344, %v1266
  %1388 = vst.msk [vmem:[%s2 + $0x158] sm:$0xff] %vm1344, %v1273
  %1389 = vst.msk [vmem:[%s2 + $0x160] sm:$0xff] %vm1344, %v1280
  %1390 = vst.msk [vmem:[%s2 + $0x168] sm:$0xff] %vm1344, %v1287
  %1391 = vst.msk [vmem:[%s2 + $0x170] sm:$0xff] %vm1344, %v1294
  %1392 = vst.msk [vmem:[%s2 + $0x178] sm:$0xff] %vm1344, %v1301
  %1393 = vst.msk [vmem:[%s2 + $0x180] sm:$0xff] %vm1344, %v1308
  %1394 = vst.msk [vmem:[%s2 + $0x188] sm:$0xff] %vm1344, %v1315
  %1395 = vst.msk [vmem:[%s2 + $0x190] sm:$0xff] %vm1344, %v1322
  %1396 = vst.msk [vmem:[%s2 + $0x198] sm:$0xff] %vm1344, %v1329
  %1397 = vst.msk [vmem:[%s2 + $0x1a0] sm:$0xff] %vm1344, %v1336
  %1398 = vst.msk [vmem:[%s2 + $0x1a8] sm:$0xff] %vm1344, %v1343
  // Predicated region
  $region10: #{forward.13} parent=0 // pred_check
    _
  $region11: #{forward.13} parent=0 // pred_check_branch
    %1400 = sbr.rel (0) target = $region13
  $region12: #{forward.13} parent=0 // pred_region
    _
  $region13: #{forward.13} parent=0 // pred_fallthru
    _
  // Predicated region
  $region14: #{forward.13} parent=0 // pred_check
    _
  $region15: #{forward.13} parent=0 // pred_check_branch
    %1402 = sbr.rel (0) target = $region17
  $region16: #{forward.13} parent=0 // pred_region
    _
  $region17: #{forward.13} parent=0 // pred_fallthru
    _

// kernel: tile.13
$region0: #{tile.13}
  #allocation0 [shape = 's32[1]{0}', space=sflag, size = 0x4, scoped, tag = 'scoped memory for tile.13']
  %s0 = inlined_call_operand.vmem [shape: f32[12], index: 0, kind: input, shape index: {}]
  %s1 = inlined_call_operand.vmem [shape: f32[8,12], index: 1, kind: output, shape index: {}]
  // Predicated region
  $region2: #{tile.13} parent=0 // pred_check
    _
  $region3: #{tile.13} parent=0 // pred_check_branch
    %3 = sbr.rel (0) target = $region5
  $region4: #{tile.13} parent=0 // pred_region
    _
  $region5: #{tile.13} parent=0 // pred_fallthru
    _
  %v4 = vld [vmem:[%s0] ss:$0 sm:$0xff]
  %5 = vst [vmem:[%s1] sm:$0xff] %v4

// kernel: tile.14
$region0: #{tile.14}
  %s0 = inlined_call_operand.vmem [shape: f32[8,12], index: 0, kind: input, shape index: {}]
  %s1 = inlined_call_operand.vmem [shape: f32[1,96], index: 1, kind: output, shape index: {}]
  $region1: #{tile.14} parent=0
    #allocation0 [shape = 'u8[4096]{0}', space=vmem, size = 0x1000, scoped, tag = 'scoped mem for output reshape']
    %v2 = vld [vmem:[%s0] sm:$0x1]
    %vm3 = vcmask 97280
    %4 = vst.msk [vmem:[#allocation0] sm:$0x1] %vm3, %v2
    %s5 = scalar_lea.vmem %s0, 7
    %v6 = vld [vmem:[%s5] sm:$0x1]
    %7 = vrot.lane.b32.xlu0 %v6, 84
    %v8 = vpop.permute.xlu0 %7
    %vm9 = vcmask 786080
    %10 = vst.msk [vmem:[#allocation0] sm:$0x1] %vm9, %v8
    %s11 = scalar_lea.vmem %s0, 6
    %v12 = vld [vmem:[%s11] sm:$0x1]
    %13 = vrot.lane.b32.xlu0 %v12, 72
    %v14 = vpop.permute.xlu0 %13
    %vm15 = vcmask 687680
    %16 = vst.msk [vmem:[#allocation0] sm:$0x1] %vm15, %v14
    %s17 = scalar_lea.vmem %s0, 5
    %v18 = vld [vmem:[%s17] sm:$0x1]
    %19 = vrot.lane.b32.xlu0 %v18, 60
    %v20 = vpop.permute.xlu0 %19
    %vm21 = vcmask 589280
    %22 = vst.msk [vmem:[#allocation0] sm:$0x1] %vm21, %v20
    %s23 = scalar_lea.vmem %s0, 4
    %v24 = vld [vmem:[%s23] sm:$0x1]
    %25 = vrot.lane.b32.xlu0 %v24, 48
    %v26 = vpop.permute.xlu0 %25
    %vm27 = vcmask 490880
    %28 = vst.msk [vmem:[#allocation0] sm:$0x1] %vm27, %v26
    %s29 = scalar_lea.vmem %s0, 3
    %v30 = vld [vmem:[%s29] sm:$0x1]
    %31 = vrot.lane.b32.xlu0 %v30, 36
    %v32 = vpop.permute.xlu0 %31
    %vm33 = vcmask 392480
    %34 = vst.msk [vmem:[#allocation0] sm:$0x1] %vm33, %v32
    %s35 = scalar_lea.vmem %s0, 2
    %v36 = vld [vmem:[%s35] sm:$0x1]
    %37 = vrot.lane.b32.xlu0 %v36, 24
    %v38 = vpop.permute.xlu0 %37
    %vm39 = vcmask 294080
    %40 = vst.msk [vmem:[#allocation0] sm:$0x1] %vm39, %v38
    %s41 = scalar_lea.vmem %s0, 1
    %v42 = vld [vmem:[%s41] sm:$0x1]
    %43 = vrot.lane.b32.xlu0 %v42, 12
    %v44 = vpop.permute.xlu0 %43
    %vm45 = vcmask 195680
    %46 = vst.msk [vmem:[#allocation0] sm:$0x1] %vm45, %v44
    %s48 = sshllo.u32 0, 1
    %v50 = vld [vmem:[#allocation0] sm:%s48]
    %s51 = sshllo.u32 0, 1
    %52 = vst [vmem:[%s1] sm:%s51] %v50

// kernel: forward.9
$region0: #{forward.9}
  #allocation0 [shape = 'u32[]', space=smem, size = 0x4, offset = 0x4, fixed_abs, tag = 'smem constant byte address 0x4 - core index']
  #allocation1 [shape = 'u32[144,128]{1,0:T(1,128)}', space=vmem, size = 0x12000, scoped, tag = 'internal scratch']
  %s0 = inlined_call_operand.vmem [shape: bf16[48,462], index: 0, kind: input, shape index: {}]
  %s1 = inlined_call_operand.vmem [shape: bf16[462,96], index: 1, kind: input, shape index: {}]
  %s2 = inlined_call_operand.vmem [shape: f32[1,96], index: 2, kind: input, shape index: {}]
  %s3 = inlined_call_operand.vmem [shape: f32[48,96], index: 3, kind: output, shape index: {}]
  %s4 = sld [smem:[#allocation0]]
  $region22: #{forward.9} parent=0
    _
  %s6 = ssub.s32 1, %s4
  %s7 = scalar_select 0, %s6, %s4
  // Predicated region
  $region2: #{forward.9} parent=0 // pred_check
    _
  $region3: #{forward.9} parent=0 // pred_check_branch
    %9 = sbr.rel (0) target = $region5
  $region4: #{forward.9} parent=0 // pred_region
    _
  $region5: #{forward.9} parent=0 // pred_fallthru
    _
  // Predicated region
  $region6: #{forward.9} parent=0 // pred_check
    _
  $region7: #{forward.9} parent=0 // pred_check_branch
    %11 = sbr.rel (0) target = $region9
  $region8: #{forward.9} parent=0 // pred_region
    _
  $region9: #{forward.9} parent=0 // pred_fallthru
    _
  // Predicated region
  $region10: #{forward.9} parent=0 // pred_check
    _
  $region11: #{forward.9} parent=0 // pred_check_branch
    %13 = sbr.rel (0) target = $region13
  $region12: #{forward.9} parent=0 // pred_region
    _
  $region13: #{forward.9} parent=0 // pred_fallthru
    _
  %v15 = vld [vmem:[%s0] sm:$0xff]
  %v16 = vld [vmem:[%s0 + $0x8] sm:$0xff]
  %v17 = vld [vmem:[%s0 + $0x10] sm:$0xff]
  %v18 = vld [vmem:[%s0 + $0x18] sm:$0xff]
  %v19 = vld [vmem:[%s0 + $0x20] sm:$0xff]
  %v20 = vld [vmem:[%s0 + $0x28] sm:$0xff]
  %v21 = vld [vmem:[%s0 + $0x30] sm:$0xff]
  %v22 = vld [vmem:[%s0 + $0x38] sm:$0xff]
  %v23 = vld [vmem:[%s0 + $0x40] sm:$0xff]
  %v24 = vld [vmem:[%s0 + $0x48] sm:$0xff]
  %v25 = vld [vmem:[%s0 + $0x50] sm:$0xff]
  %v26 = vld [vmem:[%s0 + $0x58] sm:$0xff]
  %v27 = vld [vmem:[%s1] sm:$0xf]
  %v28 = vld [vmem:[%s1 + $0x4] sm:$0xf]
  %v29 = vld [vmem:[%s1 + $0x8] sm:$0xf]
  %v30 = vld [vmem:[%s1 + $0xc] sm:$0xf]
  %v31 = vld [vmem:[%s1 + $0x10] sm:$0xf]
  %v32 = vld [vmem:[%s1 + $0x14] sm:$0xf]
  %v33 = vld [vmem:[%s1 + $0x18] sm:$0xf]
  %v34 = vld [vmem:[%s1 + $0x1c] sm:$0xf]
  %v35 = vld [vmem:[%s1 + $0x20] sm:$0xf]
  %v36 = vld [vmem:[%s1 + $0x24] sm:$0xf]
  %v37 = vld [vmem:[%s1 + $0x28] sm:$0xf]
  %v38 = vld [vmem:[%s1 + $0x2c] sm:$0xf]
  %v39 = vld [vmem:[%s1 + $0x30] sm:$0xf]
  %v40 = vld [vmem:[%s1 + $0x34] sm:$0xf]
  %v41 = vld [vmem:[%s1 + $0x38] sm:$0xf]
  %v42 = vld [vmem:[%s1 + $0x3c] sm:$0xf]
  %v43 = vld [vmem:[%s1 + $0x40] sm:$0xf]
  %v44 = vld [vmem:[%s1 + $0x44] sm:$0xf]
  %v45 = vld [vmem:[%s1 + $0x48] sm:$0xf]
  %v46 = vld [vmem:[%s1 + $0x4c] sm:$0xf]
  %v47 = vld [vmem:[%s1 + $0x50] sm:$0xf]
  %v48 = vld [vmem:[%s1 + $0x54] sm:$0xf]
  %v49 = vld [vmem:[%s1 + $0x58] sm:$0xf]
  %v50 = vld [vmem:[%s1 + $0x5c] sm:$0xf]
  %v51 = vld [vmem:[%s1 + $0x60] sm:$0xf]
  %v52 = vld [vmem:[%s1 + $0x64] sm:$0xf]
  %v53 = vld [vmem:[%s1 + $0x68] sm:$0xf]
  %v54 = vld [vmem:[%s1 + $0x6c] sm:$0xf]
  %v55 = vld [vmem:[%s1 + $0x70] sm:$0xf]
  %v56 = vld [vmem:[%s1 + $0x74] sm:$0xf]
  %v57 = vld [vmem:[%s1 + $0x78] sm:$0xf]
  %v58 = vld [vmem:[%s1 + $0x7c] sm:$0xf]
  %v59 = vld [vmem:[%s1 + $0x80] sm:$0xf]
  %v60 = vld [vmem:[%s1 + $0x84] sm:$0xf]
  %v61 = vld [vmem:[%s1 + $0x88] sm:$0xf]
  %v62 = vld [vmem:[%s1 + $0x8c] sm:$0xf]
  %v63 = vld [vmem:[%s1 + $0x90] sm:$0xf]
  %v64 = vld [vmem:[%s1 + $0x94] sm:$0xf]
  %v65 = vld [vmem:[%s1 + $0x98] sm:$0xf]
  %v66 = vld [vmem:[%s1 + $0x9c] sm:$0xf]
  %v67 = vld [vmem:[%s1 + $0xa0] sm:$0xf]
  %v68 = vld [vmem:[%s1 + $0xa4] sm:$0xf]
  %v69 = vld [vmem:[%s1 + $0xa8] sm:$0xf]
  %v70 = vld [vmem:[%s1 + $0xac] sm:$0xf]
  %v71 = vld [vmem:[%s1 + $0xb0] sm:$0xf]
  %v72 = vld [vmem:[%s1 + $0xb4] sm:$0xf]
  %v73 = vld [vmem:[%s1 + $0xb8] sm:$0xf]
  %v74 = vld [vmem:[%s1 + $0xbc] sm:$0xf]
  %v75 = vld [vmem:[%s1 + $0xc0] sm:$0xf]
  %v76 = vld [vmem:[%s1 + $0xc4] sm:$0xf]
  %v77 = vld [vmem:[%s1 + $0xc8] sm:$0xf]
  %v78 = vld [vmem:[%s1 + $0xcc] sm:$0xf]
  %v79 = vld [vmem:[%s1 + $0xd0] sm:$0xf]
  %v80 = vld [vmem:[%s1 + $0xd4] sm:$0xf]
  %v81 = vld [vmem:[%s1 + $0xd8] sm:$0xf]
  %v82 = vld [vmem:[%s1 + $0xdc] sm:$0xf]
  %v83 = vld [vmem:[%s1 + $0xe0] sm:$0xf]
  %v84 = vld [vmem:[%s1 + $0xe4] sm:$0x7]
  %v85 = vld [vmem:[%s2] sm:$0x1]
  %v87 = vlaneseq
  %v88 = vshrl.u32 %v87, 7
  %v89 = vsub.s32 0, %v88
  %v90 = vrot.slane %v85, %v89
  %v104 = vunpack.c.l.b16 %v15
  %v105 = vunpack.c.h.b16 %v15
  %v106 = vunpack.c.l.b16 %v16
  %v107 = vunpack.c.h.b16 %v16
  %v108 = vunpack.c.l.b16 %v17
  %v109 = vunpack.c.h.b16 %v17
  %v110 = vunpack.c.l.b16 %v18
  %v111 = vunpack.c.h.b16 %v18
  %v112 = vunpack.c.l.b16 %v19
  %v113 = vunpack.c.h.b16 %v19
  %v114 = vunpack.c.l.b16 %v20
  %v115 = vunpack.c.h.b16 %v20
  %v116 = vunpack.c.l.b16 %v21
  %v117 = vunpack.c.h.b16 %v21
  %v118 = vunpack.c.l.b16 %v22
  %v119 = vunpack.c.h.b16 %v22
  %v120 = vunpack.c.l.b16 %v23
  %v121 = vunpack.c.h.b16 %v23
  %v122 = vunpack.c.l.b16 %v24
  %v123 = vunpack.c.h.b16 %v24
  %v124 = vunpack.c.l.b16 %v25
  %v125 = vunpack.c.h.b16 %v25
  %v126 = vunpack.c.l.b16 %v26
  %v127 = vunpack.c.h.b16 %v26
  %v128 = vpack.c.b16 %v108, %v104
  %v129 = vpack.c.b16 %v109, %v105
  %v130 = vpack.c.b16 %v110, %v106
  %v131 = vpack.c.b16 %v111, %v107
  %v132 = vpack.c.b16 %v116, %v112
  %v133 = vpack.c.b16 %v117, %v113
  %v134 = vpack.c.b16 %v118, %v114
  %v135 = vpack.c.b16 %v119, %v115
  %v136 = vpack.c.b16 %v124, %v120
  %v137 = vpack.c.b16 %v125, %v121
  %v138 = vpack.c.b16 %v126, %v122
  %v139 = vpack.c.b16 %v127, %v123
  %v207 = vunpack.c.l.b16 %v27
  %v208 = vunpack.c.l.b16 %v28
  %v209 = vunpack.c.l.b16 %v29
  %v210 = vunpack.c.l.b16 %v30
  %v211 = vunpack.c.l.b16 %v31
  %v212 = vunpack.c.l.b16 %v32
  %v213 = vunpack.c.l.b16 %v33
  %v214 = vunpack.c.l.b16 %v34
  %v215 = vunpack.c.l.b16 %v35
  %v216 = vunpack.c.l.b16 %v36
  %v217 = vunpack.c.l.b16 %v37
  %v218 = vunpack.c.l.b16 %v38
  %v219 = vunpack.c.l.b16 %v39
  %v220 = vunpack.c.l.b16 %v40
  %v221 = vunpack.c.l.b16 %v41
  %v222 = vunpack.c.l.b16 %v42
  %v223 = vunpack.c.l.b16 %v43
  %v224 = vunpack.c.l.b16 %v44
  %v225 = vunpack.c.l.b16 %v45
  %v226 = vunpack.c.l.b16 %v46
  %v227 = vunpack.c.l.b16 %v47
  %v228 = vunpack.c.l.b16 %v48
  %v229 = vunpack.c.l.b16 %v49
  %v230 = vunpack.c.l.b16 %v50
  %v231 = vunpack.c.l.b16 %v51
  %v232 = vunpack.c.l.b16 %v52
  %v233 = vunpack.c.l.b16 %v53
  %v234 = vunpack.c.l.b16 %v54
  %v235 = vunpack.c.l.b16 %v55
  %v236 = vunpack.c.l.b16 %v56
  %v237 = vunpack.c.l.b16 %v57
  %v238 = vunpack.c.l.b16 %v58
  %v239 = vunpack.c.l.b16 %v59
  %v240 = vunpack.c.l.b16 %v60
  %v241 = vunpack.c.l.b16 %v61
  %v242 = vunpack.c.l.b16 %v62
  %v243 = vunpack.c.l.b16 %v63
  %v244 = vunpack.c.l.b16 %v64
  %v245 = vunpack.c.l.b16 %v65
  %v246 = vunpack.c.l.b16 %v66
  %v247 = vunpack.c.l.b16 %v67
  %v248 = vunpack.c.l.b16 %v68
  %v249 = vunpack.c.l.b16 %v69
  %v250 = vunpack.c.l.b16 %v70
  %v251 = vunpack.c.l.b16 %v71
  %v252 = vunpack.c.l.b16 %v72
  %v253 = vunpack.c.l.b16 %v73
  %v254 = vunpack.c.l.b16 %v74
  %v255 = vunpack.c.l.b16 %v75
  %v256 = vunpack.c.l.b16 %v76
  %v257 = vunpack.c.l.b16 %v77
  %v258 = vunpack.c.l.b16 %v78
  %v259 = vunpack.c.l.b16 %v79
  %v260 = vunpack.c.l.b16 %v80
  %v261 = vunpack.c.l.b16 %v81
  %v262 = vunpack.c.l.b16 %v82
  %v263 = vunpack.c.l.b16 %v83
  %v264 = vunpack.c.l.b16 %v84
  %v265 = vpack.c.b16 %v208, %v207
  %v266 = vpack.c.b16 %v210, %v209
  %v267 = vpack.c.b16 %v212, %v211
  %v268 = vpack.c.b16 %v214, %v213
  %v269 = vpack.c.b16 %v216, %v215
  %v270 = vpack.c.b16 %v218, %v217
  %v271 = vpack.c.b16 %v220, %v219
  %v272 = vpack.c.b16 %v222, %v221
  %v273 = vpack.c.b16 %v224, %v223
  %v274 = vpack.c.b16 %v226, %v225
  %v275 = vpack.c.b16 %v228, %v227
  %v276 = vpack.c.b16 %v230, %v229
  %v277 = vpack.c.b16 %v232, %v231
  %v278 = vpack.c.b16 %v234, %v233
  %v279 = vpack.c.b16 %v236, %v235
  %v280 = vpack.c.b16 %v238, %v237
  %v281 = vpack.c.b16 %v240, %v239
  %v282 = vpack.c.b16 %v242, %v241
  %v283 = vpack.c.b16 %v244, %v243
  %v284 = vpack.c.b16 %v246, %v245
  %v285 = vpack.c.b16 %v248, %v247
  %v286 = vpack.c.b16 %v250, %v249
  %v287 = vpack.c.b16 %v252, %v251
  %v288 = vpack.c.b16 %v254, %v253
  %v289 = vpack.c.b16 %v256, %v255
  %v290 = vpack.c.b16 %v258, %v257
  %v291 = vpack.c.b16 %v260, %v259
  %v292 = vpack.c.b16 %v262, %v261
  %v293 = vpack.c.b16 %v264, %v263
  %vm322 = vcmask 637952
  %v324 = vsel %vm322, %v131, 0
  %v327 = vsel %vm322, %v135, 0
  %v330 = vsel %vm322, %v139, 0
  %vm332 = vcmask 1046528
  %v334 = vsel %vm332, %v293, 0
  %336 = vmatprep.subr.bf16.mxu0 0
  %337 = vmatpush1.bf16.msra.mxu0 %v265
  %338 = vmatprep.subr.bf16.mxu0 0
  %339 = vmatpush1.bf16.msra.mxu0 %v266
  %340 = vmatprep.subr.bf16.mxu0 0
  %341 = vmatpush1.bf16.msra.mxu0 %v267
  %342 = vmatprep.subr.bf16.mxu0 0
  %343 = vmatpush1.bf16.msra.mxu0 %v268
  %344 = vmatprep.subr.bf16.mxu0 0
  %345 = vmatpush1.bf16.msra.mxu0 %v269
  %346 = vmatprep.subr.bf16.mxu0 0
  %347 = vmatpush1.bf16.msra.mxu0 %v270
  %348 = vmatprep.subr.bf16.mxu0 0
  %349 = vmatpush1.bf16.msra.mxu0 %v271
  %350 = vmatprep.subr.bf16.mxu0 0
  %351 = vmatpush1.bf16.msra.mxu0 %v272
  %352 = vmatprep.subr.bf16.mxu0 0
  %353 = vmatpush1.bf16.msra.mxu0 %v273
  %354 = vmatprep.subr.bf16.mxu0 0
  %355 = vmatpush1.bf16.msra.mxu0 %v274
  %356 = vmatprep.subr.bf16.mxu0 0
  %357 = vmatpush1.bf16.msra.mxu0 %v275
  %358 = vmatprep.subr.bf16.mxu0 0
  %359 = vmatpush1.bf16.msra.mxu0 %v276
  %360 = vmatprep.subr.bf16.mxu0 0
  %361 = vmatpush1.bf16.msra.mxu0 %v277
  %362 = vmatprep.subr.bf16.mxu0 0
  %363 = vmatpush1.bf16.msra.mxu0 %v278
  %364 = vmatprep.subr.bf16.mxu0 0
  %365 = vmatpush1.bf16.msra.mxu0 %v279
  %366 = vmatprep.subr.bf16.mxu0 0
  %367 = vmatpush1.bf16.msra.mxu0 %v280
  %368 = vmatprep.mubr.bf16.mxu0 %v129
  %369 = vmatmul.mubr.bf16.gmra.mrb[0].mxu0 %v128
  %v370 = vpop.f32.mrb[0].mxu0
  %v371 = vadd.f32 %v90, %v370
  %v372 = vpop.f32.mrb[0].mxu0
  %v373 = vpop.f32.mrb[0].mxu0
  %v374 = vadd.f32 %v90, %v373
  %v375 = vpop.f32.mrb[0].mxu0
  %376 = vmatprep.mubr.bf16.mxu0 %v133
  %377 = vmatmul.mubr.bf16.gmra.mrb[0].mxu0 %v132
  %v378 = vpop.f32.mrb[0].mxu0
  %v379 = vadd.f32 %v90, %v378
  %v380 = vpop.f32.mrb[0].mxu0
  %v381 = vpop.f32.mrb[0].mxu0
  %v382 = vadd.f32 %v90, %v381
  %v383 = vpop.f32.mrb[0].mxu0
  %384 = vmatprep.mubr.bf16.mxu0 %v137
  %385 = vmatmul.mubr.bf16.gmra.mrb[0].mxu0 %v136
  %v386 = vpop.f32.mrb[0].mxu0
  %v387 = vadd.f32 %v90, %v386
  %v388 = vpop.f32.mrb[0].mxu0
  %v389 = vpop.f32.mrb[0].mxu0
  %v390 = vadd.f32 %v90, %v389
  %v391 = vpop.f32.mrb[0].mxu0
  %392 = vdwg.mxu0
  %393 = vmatprep.subr.bf16.mxu0 0
  %394 = vmatpush1.bf16.msra.mxu0 %v281
  %395 = vmatprep.subr.bf16.mxu0 0
  %396 = vmatpush1.bf16.msra.mxu0 %v282
  %397 = vmatprep.subr.bf16.mxu0 0
  %398 = vmatpush1.bf16.msra.mxu0 %v283
  %399 = vmatprep.subr.bf16.mxu0 0
  %400 = vmatpush1.bf16.msra.mxu0 %v284
  %401 = vmatprep.subr.bf16.mxu0 0
  %402 = vmatpush1.bf16.msra.mxu0 %v285
  %403 = vmatprep.subr.bf16.mxu0 0
  %404 = vmatpush1.bf16.msra.mxu0 %v286
  %405 = vmatprep.subr.bf16.mxu0 0
  %406 = vmatpush1.bf16.msra.mxu0 %v287
  %407 = vmatprep.subr.bf16.mxu0 0
  %408 = vmatpush1.bf16.msra.mxu0 %v288
  %409 = vmatprep.subr.bf16.mxu0 0
  %410 = vmatpush1.bf16.msra.mxu0 %v289
  %411 = vmatprep.subr.bf16.mxu0 0
  %412 = vmatpush1.bf16.msra.mxu0 %v290
  %413 = vmatprep.subr.bf16.mxu0 0
  %414 = vmatpush1.bf16.msra.mxu0 %v291
  %415 = vmatprep.subr.bf16.mxu0 0
  %416 = vmatpush1.bf16.msra.mxu0 %v292
  %417 = vmatprep.subr.bf16.mxu0 0
  %418 = vmatpush1.bf16.msra.mxu0 %v334
  %419 = vmatprep.subr.bf16.mxu0 0
  %420 = vmatpush1.bf16.msra.mxu0 0
  %421 = vmatprep.subr.bf16.mxu0 0
  %422 = vmatpush1.bf16.msra.mxu0 0
  %423 = vmatprep.subr.bf16.mxu0 0
  %424 = vmatpush1.bf16.msra.mxu0 0
  %425 = vmatprep.mubr.bf16.mxu0 %v324
  %426 = vmatmul.mubr.bf16.gmra.mrb[0].mxu0 %v130
  %v427 = vpop.f32.mrb[0].mxu0
  %v428 = vadd.f32 %v371, %v427
  %v429 = vpop.f32.mrb[0].mxu0
  %v430 = vpop.f32.mrb[0].mxu0
  %v431 = vadd.f32 %v374, %v430
  %v432 = vpop.f32.mrb[0].mxu0
  %433 = vmatprep.mubr.bf16.mxu0 %v327
  %434 = vmatmul.mubr.bf16.gmra.mrb[0].mxu0 %v134
  %v435 = vpop.f32.mrb[0].mxu0
  %v436 = vadd.f32 %v379, %v435
  %v437 = vpop.f32.mrb[0].mxu0
  %v438 = vpop.f32.mrb[0].mxu0
  %v439 = vadd.f32 %v382, %v438
  %v440 = vpop.f32.mrb[0].mxu0
  %441 = vmatprep.mubr.bf16.mxu0 %v330
  %442 = vmatmul.mubr.bf16.gmra.mrb[0].mxu0 %v138
  %v443 = vpop.f32.mrb[0].mxu0
  %v444 = vadd.f32 %v387, %v443
  %v445 = vpop.f32.mrb[0].mxu0
  %v446 = vpop.f32.mrb[0].mxu0
  %v447 = vadd.f32 %v390, %v446
  %v448 = vpop.f32.mrb[0].mxu0
  %449 = vdwg.mxu0
  %v450 = vmax.f32 %v428, 0.0
  %v451 = vmax.f32 %v431, 0.0
  %v452 = vmax.f32 %v436, 0.0
  %v453 = vmax.f32 %v439, 0.0
  %v454 = vmax.f32 %v444, 0.0
  %v455 = vmax.f32 %v447, 0.0
  %vm456 = vcmask 785408
  %457 = vst.msk [vmem:[%s3] sm:$0xff] %vm456, %v450
  %458 = vst.msk [vmem:[%s3 + $0x8] sm:$0xff] %vm456, %v451
  %459 = vst.msk [vmem:[%s3 + $0x10] sm:$0xff] %vm456, %v452
  %460 = vst.msk [vmem:[%s3 + $0x18] sm:$0xff] %vm456, %v453
  %461 = vst.msk [vmem:[%s3 + $0x20] sm:$0xff] %vm456, %v454
  %462 = vst.msk [vmem:[%s3 + $0x28] sm:$0xff] %vm456, %v455
  // Predicated region
  $region14: #{forward.9} parent=0 // pred_check
    _
  $region15: #{forward.9} parent=0 // pred_check_branch
    %464 = sbr.rel (0) target = $region17
  $region16: #{forward.9} parent=0 // pred_region
    _
  $region17: #{forward.9} parent=0 // pred_fallthru
    _
  // Predicated region
  $region18: #{forward.9} parent=0 // pred_check
    _
  $region19: #{forward.9} parent=0 // pred_check_branch
    %466 = sbr.rel (0) target = $region21
  $region20: #{forward.9} parent=0 // pred_region
    _
  $region21: #{forward.9} parent=0 // pred_fallthru
    _

// kernel: tile.18
$region0: #{tile.18}
  #allocation0 [shape = 's32[1]{0}', space=sflag, size = 0x4, scoped, tag = 'scoped memory for tile.18']
  %s0 = inlined_call_operand.vmem [shape: f32[3], index: 0, kind: input, shape index: {}]
  %s1 = inlined_call_operand.vmem [shape: f32[4,3], index: 1, kind: output, shape index: {}]
  // Predicated region
  $region2: #{tile.18} parent=0 // pred_check
    _
  $region3: #{tile.18} parent=0 // pred_check_branch
    %3 = sbr.rel (0) target = $region5
  $region4: #{tile.18} parent=0 // pred_region
    _
  $region5: #{tile.18} parent=0 // pred_fallthru
    _
  %v4 = vld [vmem:[%s0] ss:$0 sm:$0xff]
  %5 = vst [vmem:[%s1] sm:$0xf] %v4

// kernel: tile.19
$region0: #{tile.19}
  %s0 = inlined_call_operand.vmem [shape: f32[4,3], index: 0, kind: input, shape index: {}]
  %s1 = inlined_call_operand.vmem [shape: f32[1,12], index: 1, kind: output, shape index: {}]
  $region1: #{tile.19} parent=0
    #allocation0 [shape = 'u8[4096]{0}', space=vmem, size = 0x1000, scoped, tag = 'scoped mem for output reshape']
    #allocation1 [shape = 'u8[4096]{0}', space=vmem, size = 0x1000, scoped, tag = 'scoped mem for input reshape']
    %s3 = sshllo.u32 0, 4
    %v4 = vld [vmem:[%s0] sm:%s3]
    %5 = vst [vmem:[#allocation1] sm:%s3] %v4
    %v6 = vld [vmem:[#allocation1] sm:$0x1]
    %vm7 = vcmask 23552
    %8 = vst.msk [vmem:[#allocation0] sm:$0x1] %vm7, %v6
    %s9 = scalar_lea.vmem [#allocation1], 3
    %v10 = vld [vmem:[%s9] sm:$0x1]
    %11 = vrot.lane.b32.xlu0 %v10, 9
    %v12 = vpop.permute.xlu0 %11
    %vm13 = vcmask 97352
    %14 = vst.msk [vmem:[#allocation0] sm:$0x1] %vm13, %v12
    %s15 = scalar_lea.vmem [#allocation1], 2
    %v16 = vld [vmem:[%s15] sm:$0x1]
    %17 = vrot.lane.b32.xlu0 %v16, 6
    %v18 = vpop.permute.xlu0 %17
    %vm19 = vcmask 72752
    %20 = vst.msk [vmem:[#allocation0] sm:$0x1] %vm19, %v18
    %s21 = scalar_lea.vmem [#allocation1], 1
    %v22 = vld [vmem:[%s21] sm:$0x1]
    %23 = vrot.lane.b32.xlu0 %v22, 3
    %v24 = vpop.permute.xlu0 %23
    %vm25 = vcmask 48152
    %26 = vst.msk [vmem:[#allocation0] sm:$0x1] %vm25, %v24
    %s28 = sshllo.u32 0, 1
    %v30 = vld [vmem:[#allocation0] sm:%s28]
    %s31 = sshllo.u32 0, 1
    %32 = vst [vmem:[%s1] sm:%s31] %v30

// kernel: forward.10
$region0: #{forward.10}
  #allocation0 [shape = 'u32[]', space=smem, size = 0x4, offset = 0x4, fixed_abs, tag = 'smem constant byte address 0x4 - core index']
  #allocation1 [shape = 'u32[144,128]{1,0:T(1,128)}', space=vmem, size = 0x12000, scoped, tag = 'internal scratch']
  %s0 = inlined_call_operand.vmem [shape: bf16[288,40], index: 0, kind: input, shape index: {}]
  %s1 = inlined_call_operand.vmem [shape: bf16[40,12], index: 1, kind: input, shape index: {}]
  %s2 = inlined_call_operand.vmem [shape: f32[1,12], index: 2, kind: input, shape index: {}]
  %s3 = inlined_call_operand.vmem [shape: f32[288,12], index: 3, kind: output, shape index: {}]
  %s4 = sld [smem:[#allocation0]]
  $region22: #{forward.10} parent=0
    _
  %s6 = ssub.s32 1, %s4
  %s7 = scalar_select 0, %s6, %s4
  // Predicated region
  $region2: #{forward.10} parent=0 // pred_check
    _
  $region3: #{forward.10} parent=0 // pred_check_branch
    %9 = sbr.rel (0) target = $region5
  $region4: #{forward.10} parent=0 // pred_region
    _
  $region5: #{forward.10} parent=0 // pred_fallthru
    _
  // Predicated region
  $region6: #{forward.10} parent=0 // pred_check
    _
  $region7: #{forward.10} parent=0 // pred_check_branch
    %11 = sbr.rel (0) target = $region9
  $region8: #{forward.10} parent=0 // pred_region
    _
  $region9: #{forward.10} parent=0 // pred_fallthru
    _
  // Predicated region
  $region10: #{forward.10} parent=0 // pred_check
    _
  $region11: #{forward.10} parent=0 // pred_check_branch
    %13 = sbr.rel (0) target = $region13
  $region12: #{forward.10} parent=0 // pred_region
    _
  $region13: #{forward.10} parent=0 // pred_fallthru
    _
  %v15 = vld [vmem:[%s0] sm:$0xf]
  %v16 = vld [vmem:[%s0 + $0x4] sm:$0xf]
  %v17 = vld [vmem:[%s0 + $0x8] sm:$0xf]
  %v18 = vld [vmem:[%s0 + $0xc] sm:$0xf]
  %v19 = vld [vmem:[%s0 + $0x10] sm:$0xf]
  %v20 = vld [vmem:[%s0 + $0x14] sm:$0xf]
  %v21 = vld [vmem:[%s0 + $0x18] sm:$0xf]
  %v22 = vld [vmem:[%s0 + $0x1c] sm:$0xf]
  %v23 = vld [vmem:[%s0 + $0x20] sm:$0xf]
  %v24 = vld [vmem:[%s0 + $0x24] sm:$0xf]
  %v25 = vld [vmem:[%s0 + $0x28] sm:$0xf]
  %v26 = vld [vmem:[%s0 + $0x2c] sm:$0xf]
  %v27 = vld [vmem:[%s0 + $0x30] sm:$0xf]
  %v28 = vld [vmem:[%s0 + $0x34] sm:$0xf]
  %v29 = vld [vmem:[%s0 + $0x38] sm:$0xf]
  %v30 = vld [vmem:[%s0 + $0x3c] sm:$0xf]
  %v31 = vld [vmem:[%s0 + $0x40] sm:$0xf]
  %v32 = vld [vmem:[%s0 + $0x44] sm:$0xf]
  %v33 = vld [vmem:[%s0 + $0x48] sm:$0xf]
  %v34 = vld [vmem:[%s0 + $0x4c] sm:$0xf]
  %v35 = vld [vmem:[%s0 + $0x50] sm:$0xf]
  %v36 = vld [vmem:[%s0 + $0x54] sm:$0xf]
  %v37 = vld [vmem:[%s0 + $0x58] sm:$0xf]
  %v38 = vld [vmem:[%s0 + $0x5c] sm:$0xf]
  %v39 = vld [vmem:[%s0 + $0x60] sm:$0xf]
  %v40 = vld [vmem:[%s0 + $0x64] sm:$0xf]
  %v41 = vld [vmem:[%s0 + $0x68] sm:$0xf]
  %v42 = vld [vmem:[%s0 + $0x6c] sm:$0xf]
  %v43 = vld [vmem:[%s0 + $0x70] sm:$0xf]
  %v44 = vld [vmem:[%s0 + $0x74] sm:$0xf]
  %v45 = vld [vmem:[%s0 + $0x78] sm:$0xf]
  %v46 = vld [vmem:[%s0 + $0x7c] sm:$0xf]
  %v47 = vld [vmem:[%s0 + $0x80] sm:$0xf]
  %v48 = vld [vmem:[%s0 + $0x84] sm:$0xf]
  %v49 = vld [vmem:[%s0 + $0x88] sm:$0xf]
  %v50 = vld [vmem:[%s0 + $0x8c] sm:$0xf]
  %v51 = vld [vmem:[%s1] sm:$0xf]
  %v52 = vld [vmem:[%s1 + $0x4] sm:$0xf]
  %v53 = vld [vmem:[%s1 + $0x8] sm:$0xf]
  %v54 = vld [vmem:[%s1 + $0xc] sm:$0xf]
  %v55 = vld [vmem:[%s1 + $0x10] sm:$0xf]
  %v56 = vld [vmem:[%s2] sm:$0x1]
  %v58 = vlaneseq
  %v59 = vshrl.u32 %v58, 7
  %v60 = vsub.s32 0, %v59
  %v61 = vrot.slane %v56, %v60
  %v99 = vunpack.c.l.b16 %v15
  %v100 = vunpack.c.l.b16 %v16
  %v101 = vunpack.c.l.b16 %v17
  %v102 = vunpack.c.l.b16 %v18
  %v103 = vunpack.c.l.b16 %v19
  %v104 = vunpack.c.l.b16 %v20
  %v105 = vunpack.c.l.b16 %v21
  %v106 = vunpack.c.l.b16 %v22
  %v107 = vunpack.c.l.b16 %v23
  %v108 = vunpack.c.l.b16 %v24
  %v109 = vunpack.c.l.b16 %v25
  %v110 = vunpack.c.l.b16 %v26
  %v111 = vunpack.c.l.b16 %v27
  %v112 = vunpack.c.l.b16 %v28
  %v113 = vunpack.c.l.b16 %v29
  %v114 = vunpack.c.l.b16 %v30
  %v115 = vunpack.c.l.b16 %v31
  %v116 = vunpack.c.l.b16 %v32
  %v117 = vunpack.c.l.b16 %v33
  %v118 = vunpack.c.l.b16 %v34
  %v119 = vunpack.c.l.b16 %v35
  %v120 = vunpack.c.l.b16 %v36
  %v121 = vunpack.c.l.b16 %v37
  %v122 = vunpack.c.l.b16 %v38
  %v123 = vunpack.c.l.b16 %v39
  %v124 = vunpack.c.l.b16 %v40
  %v125 = vunpack.c.l.b16 %v41
  %v126 = vunpack.c.l.b16 %v42
  %v127 = vunpack.c.l.b16 %v43
  %v128 = vunpack.c.l.b16 %v44
  %v129 = vunpack.c.l.b16 %v45
  %v130 = vunpack.c.l.b16 %v46
  %v131 = vunpack.c.l.b16 %v47
  %v132 = vunpack.c.l.b16 %v48
  %v133 = vunpack.c.l.b16 %v49
  %v134 = vunpack.c.l.b16 %v50
  %v135 = vpack.c.b16 %v100, %v99
  %v136 = vpack.c.b16 %v102, %v101
  %v137 = vpack.c.b16 %v104, %v103
  %v138 = vpack.c.b16 %v106, %v105
  %v139 = vpack.c.b16 %v108, %v107
  %v140 = vpack.c.b16 %v110, %v109
  %v141 = vpack.c.b16 %v112, %v111
  %v142 = vpack.c.b16 %v114, %v113
  %v143 = vpack.c.b16 %v116, %v115
  %v144 = vpack.c.b16 %v118, %v117
  %v145 = vpack.c.b16 %v120, %v119
  %v146 = vpack.c.b16 %v122, %v121
  %v147 = vpack.c.b16 %v124, %v123
  %v148 = vpack.c.b16 %v126, %v125
  %v149 = vpack.c.b16 %v128, %v127
  %v150 = vpack.c.b16 %v130, %v129
  %v151 = vpack.c.b16 %v132, %v131
  %v152 = vpack.c.b16 %v134, %v133
  %v158 = vunpack.c.l.b16 %v51
  %v159 = vunpack.c.l.b16 %v52
  %v160 = vunpack.c.l.b16 %v53
  %v161 = vunpack.c.l.b16 %v54
  %v162 = vunpack.c.l.b16 %v55
  %v163 = vpack.c.b16 %v159, %v158
  %v164 = vpack.c.b16 %v161, %v160
  %v165 = vpack.c.b16 %v162, %v162
  %vm168 = vcmask 326656
  %v170 = vsel %vm168, %v135, 0
  %v173 = vsel %vm168, %v136, 0
  %v176 = vsel %vm168, %v137, 0
  %v179 = vsel %vm168, %v138, 0
  %v182 = vsel %vm168, %v139, 0
  %v185 = vsel %vm168, %v140, 0
  %v188 = vsel %vm168, %v141, 0
  %v191 = vsel %vm168, %v142, 0
  %v194 = vsel %vm168, %v143, 0
  %v197 = vsel %vm168, %v144, 0
  %v200 = vsel %vm168, %v145, 0
  %v203 = vsel %vm168, %v146, 0
  %v206 = vsel %vm168, %v147, 0
  %v209 = vsel %vm168, %v148, 0
  %v212 = vsel %vm168, %v149, 0
  %v215 = vsel %vm168, %v150, 0
  %v218 = vsel %vm168, %v151, 0
  %v221 = vsel %vm168, %v152, 0
  %vm223 = vcmask 1043456
  %v225 = vsel %vm223, %v165, 0
  %227 = vmatprep.subr.bf16.mxu0 0
  %228 = vmatpush1.bf16.msra.mxu0 %v163
  %229 = vmatprep.subr.bf16.mxu0 0
  %230 = vmatpush1.bf16.msra.mxu0 %v164
  %231 = vmatprep.subr.bf16.mxu0 0
  %232 = vmatpush1.bf16.msra.mxu0 %v225
  %233 = vmatprep.subr.bf16.mxu0 0
  %234 = vmatpush1.bf16.msra.mxu0 0
  %235 = vmatprep.subr.bf16.mxu0 0
  %236 = vmatpush1.bf16.msra.mxu0 0
  %237 = vmatprep.subr.bf16.mxu0 0
  %238 = vmatpush1.bf16.msra.mxu0 0
  %239 = vmatprep.subr.bf16.mxu0 0
  %240 = vmatpush1.bf16.msra.mxu0 0
  %241 = vmatprep.subr.bf16.mxu0 0
  %242 = vmatpush1.bf16.msra.mxu0 0
  %243 = vmatprep.subr.bf16.mxu0 0
  %244 = vmatpush1.bf16.msra.mxu0 0
  %245 = vmatprep.subr.bf16.mxu0 0
  %246 = vmatpush1.bf16.msra.mxu0 0
  %247 = vmatprep.subr.bf16.mxu0 0
  %248 = vmatpush1.bf16.msra.mxu0 0
  %249 = vmatprep.subr.bf16.mxu0 0
  %250 = vmatpush1.bf16.msra.mxu0 0
  %251 = vmatprep.subr.bf16.mxu0 0
  %252 = vmatpush1.bf16.msra.mxu0 0
  %253 = vmatprep.subr.bf16.mxu0 0
  %254 = vmatpush1.bf16.msra.mxu0 0
  %255 = vmatprep.subr.bf16.mxu0 0
  %256 = vmatpush1.bf16.msra.mxu0 0
  %257 = vmatprep.subr.bf16.mxu0 0
  %258 = vmatpush1.bf16.msra.mxu0 0
  %259 = vmatprep.mubr.bf16.mxu0 0
  %260 = vmatmul.mubr.bf16.gmra.mrb[0].mxu0 %v170
  %v261 = vpop.f32.mrb[0].mxu0
  %v262 = vadd.f32 %v61, %v261
  %v263 = vpop.f32.mrb[0].mxu0
  %v264 = vpop.f32.mrb[0].mxu0
  %v265 = vadd.f32 %v61, %v264
  %v266 = vpop.f32.mrb[0].mxu0
  %267 = vmatprep.mubr.bf16.mxu0 0
  %268 = vmatmul.mubr.bf16.gmra.mrb[0].mxu0 %v173
  %v269 = vpop.f32.mrb[0].mxu0
  %v270 = vadd.f32 %v61, %v269
  %v271 = vpop.f32.mrb[0].mxu0
  %v272 = vpop.f32.mrb[0].mxu0
  %v273 = vadd.f32 %v61, %v272
  %v274 = vpop.f32.mrb[0].mxu0
  %275 = vmatprep.mubr.bf16.mxu0 0
  %276 = vmatmul.mubr.bf16.gmra.mrb[0].mxu0 %v176
  %v277 = vpop.f32.mrb[0].mxu0
  %v278 = vadd.f32 %v61, %v277
  %v279 = vpop.f32.mrb[0].mxu0
  %v280 = vpop.f32.mrb[0].mxu0
  %v281 = vadd.f32 %v61, %v280
  %v282 = vpop.f32.mrb[0].mxu0
  %283 = vmatprep.mubr.bf16.mxu0 0
  %284 = vmatmul.mubr.bf16.gmra.mrb[0].mxu0 %v179
  %v285 = vpop.f32.mrb[0].mxu0
  %v286 = vadd.f32 %v61, %v285
  %v287 = vpop.f32.mrb[0].mxu0
  %v288 = vpop.f32.mrb[0].mxu0
  %v289 = vadd.f32 %v61, %v288
  %v290 = vpop.f32.mrb[0].mxu0
  %291 = vmatprep.mubr.bf16.mxu0 0
  %292 = vmatmul.mubr.bf16.gmra.mrb[0].mxu0 %v182
  %v293 = vpop.f32.mrb[0].mxu0
  %v294 = vadd.f32 %v61, %v293
  %v295 = vpop.f32.mrb[0].mxu0
  %v296 = vpop.f32.mrb[0].mxu0
  %v297 = vadd.f32 %v61, %v296
  %v298 = vpop.f32.mrb[0].mxu0
  %299 = vmatprep.mubr.bf16.mxu0 0
  %300 = vmatmul.mubr.bf16.gmra.mrb[0].mxu0 %v185
  %v301 = vpop.f32.mrb[0].mxu0
  %v302 = vadd.f32 %v61, %v301
  %v303 = vpop.f32.mrb[0].mxu0
  %v304 = vpop.f32.mrb[0].mxu0
  %v305 = vadd.f32 %v61, %v304
  %v306 = vpop.f32.mrb[0].mxu0
  %307 = vmatprep.mubr.bf16.mxu0 0
  %308 = vmatmul.mubr.bf16.gmra.mrb[0].mxu0 %v188
  %v309 = vpop.f32.mrb[0].mxu0
  %v310 = vadd.f32 %v61, %v309
  %v311 = vpop.f32.mrb[0].mxu0
  %v312 = vpop.f32.mrb[0].mxu0
  %v313 = vadd.f32 %v61, %v312
  %v314 = vpop.f32.mrb[0].mxu0
  %315 = vmatprep.mubr.bf16.mxu0 0
  %316 = vmatmul.mubr.bf16.gmra.mrb[0].mxu0 %v191
  %v317 = vpop.f32.mrb[0].mxu0
  %v318 = vadd.f32 %v61, %v317
  %v319 = vpop.f32.mrb[0].mxu0
  %v320 = vpop.f32.mrb[0].mxu0
  %v321 = vadd.f32 %v61, %v320
  %v322 = vpop.f32.mrb[0].mxu0
  %323 = vmatprep.mubr.bf16.mxu0 0
  %324 = vmatmul.mubr.bf16.gmra.mrb[0].mxu0 %v194
  %v325 = vpop.f32.mrb[0].mxu0
  %v326 = vadd.f32 %v61, %v325
  %v327 = vpop.f32.mrb[0].mxu0
  %v328 = vpop.f32.mrb[0].mxu0
  %v329 = vadd.f32 %v61, %v328
  %v330 = vpop.f32.mrb[0].mxu0
  %331 = vmatprep.mubr.bf16.mxu0 0
  %332 = vmatmul.mubr.bf16.gmra.mrb[0].mxu0 %v197
  %v333 = vpop.f32.mrb[0].mxu0
  %v334 = vadd.f32 %v61, %v333
  %v335 = vpop.f32.mrb[0].mxu0
  %v336 = vpop.f32.mrb[0].mxu0
  %v337 = vadd.f32 %v61, %v336
  %v338 = vpop.f32.mrb[0].mxu0
  %339 = vmatprep.mubr.bf16.mxu0 0
  %340 = vmatmul.mubr.bf16.gmra.mrb[0].mxu0 %v200
  %v341 = vpop.f32.mrb[0].mxu0
  %v342 = vadd.f32 %v61, %v341
  %v343 = vpop.f32.mrb[0].mxu0
  %v344 = vpop.f32.mrb[0].mxu0
  %v345 = vadd.f32 %v61, %v344
  %v346 = vpop.f32.mrb[0].mxu0
  %347 = vmatprep.mubr.bf16.mxu0 0
  %348 = vmatmul.mubr.bf16.gmra.mrb[0].mxu0 %v203
  %v349 = vpop.f32.mrb[0].mxu0
  %v350 = vadd.f32 %v61, %v349
  %v351 = vpop.f32.mrb[0].mxu0
  %v352 = vpop.f32.mrb[0].mxu0
  %v353 = vadd.f32 %v61, %v352
  %v354 = vpop.f32.mrb[0].mxu0
  %355 = vmatprep.mubr.bf16.mxu0 0
  %356 = vmatmul.mubr.bf16.gmra.mrb[0].mxu0 %v206
  %v357 = vpop.f32.mrb[0].mxu0
  %v358 = vadd.f32 %v61, %v357
  %v359 = vpop.f32.mrb[0].mxu0
  %v360 = vpop.f32.mrb[0].mxu0
  %v361 = vadd.f32 %v61, %v360
  %v362 = vpop.f32.mrb[0].mxu0
  %363 = vmatprep.mubr.bf16.mxu0 0
  %364 = vmatmul.mubr.bf16.gmra.mrb[0].mxu0 %v209
  %v365 = vpop.f32.mrb[0].mxu0
  %v366 = vadd.f32 %v61, %v365
  %v367 = vpop.f32.mrb[0].mxu0
  %v368 = vpop.f32.mrb[0].mxu0
  %v369 = vadd.f32 %v61, %v368
  %v370 = vpop.f32.mrb[0].mxu0
  %371 = vmatprep.mubr.bf16.mxu0 0
  %372 = vmatmul.mubr.bf16.gmra.mrb[0].mxu0 %v212
  %v373 = vpop.f32.mrb[0].mxu0
  %v374 = vadd.f32 %v61, %v373
  %v375 = vpop.f32.mrb[0].mxu0
  %v376 = vpop.f32.mrb[0].mxu0
  %v377 = vadd.f32 %v61, %v376
  %v378 = vpop.f32.mrb[0].mxu0
  %379 = vmatprep.mubr.bf16.mxu0 0
  %380 = vmatmul.mubr.bf16.gmra.mrb[0].mxu0 %v215
  %v381 = vpop.f32.mrb[0].mxu0
  %v382 = vadd.f32 %v61, %v381
  %v383 = vpop.f32.mrb[0].mxu0
  %v384 = vpop.f32.mrb[0].mxu0
  %v385 = vadd.f32 %v61, %v384
  %v386 = vpop.f32.mrb[0].mxu0
  %387 = vmatprep.mubr.bf16.mxu0 0
  %388 = vmatmul.mubr.bf16.gmra.mrb[0].mxu0 %v218
  %v389 = vpop.f32.mrb[0].mxu0
  %v390 = vadd.f32 %v61, %v389
  %v391 = vpop.f32.mrb[0].mxu0
  %v392 = vpop.f32.mrb[0].mxu0
  %v393 = vadd.f32 %v61, %v392
  %v394 = vpop.f32.mrb[0].mxu0
  %395 = vmatprep.mubr.bf16.mxu0 0
  %396 = vmatmul.mubr.bf16.gmra.mrb[0].mxu0 %v221
  %v397 = vpop.f32.mrb[0].mxu0
  %v398 = vadd.f32 %v61, %v397
  %v399 = vpop.f32.mrb[0].mxu0
  %v400 = vpop.f32.mrb[0].mxu0
  %v401 = vadd.f32 %v61, %v400
  %v402 = vpop.f32.mrb[0].mxu0
  %403 = vdwg.mxu0
  %v404 = vmax.f32 %v262, 0.0
  %v405 = vmax.f32 %v265, 0.0
  %v406 = vmax.f32 %v270, 0.0
  %v407 = vmax.f32 %v273, 0.0
  %v408 = vmax.f32 %v278, 0.0
  %v409 = vmax.f32 %v281, 0.0
  %v410 = vmax.f32 %v286, 0.0
  %v411 = vmax.f32 %v289, 0.0
  %v412 = vmax.f32 %v294, 0.0
  %v413 = vmax.f32 %v297, 0.0
  %v414 = vmax.f32 %v302, 0.0
  %v415 = vmax.f32 %v305, 0.0
  %v416 = vmax.f32 %v310, 0.0
  %v417 = vmax.f32 %v313, 0.0
  %v418 = vmax.f32 %v318, 0.0
  %v419 = vmax.f32 %v321, 0.0
  %v420 = vmax.f32 %v326, 0.0
  %v421 = vmax.f32 %v329, 0.0
  %v422 = vmax.f32 %v334, 0.0
  %v423 = vmax.f32 %v337, 0.0
  %v424 = vmax.f32 %v342, 0.0
  %v425 = vmax.f32 %v345, 0.0
  %v426 = vmax.f32 %v350, 0.0
  %v427 = vmax.f32 %v353, 0.0
  %v428 = vmax.f32 %v358, 0.0
  %v429 = vmax.f32 %v361, 0.0
  %v430 = vmax.f32 %v366, 0.0
  %v431 = vmax.f32 %v369, 0.0
  %v432 = vmax.f32 %v374, 0.0
  %v433 = vmax.f32 %v377, 0.0
  %v434 = vmax.f32 %v382, 0.0
  %v435 = vmax.f32 %v385, 0.0
  %v436 = vmax.f32 %v390, 0.0
  %v437 = vmax.f32 %v393, 0.0
  %v438 = vmax.f32 %v398, 0.0
  %v439 = vmax.f32 %v401, 0.0
  %vm440 = vcmask 97280
  %441 = vst.msk [vmem:[%s3] sm:$0xff] %vm440, %v404
  %442 = vst.msk [vmem:[%s3 + $0x8] sm:$0xff] %vm440, %v405
  %443 = vst.msk [vmem:[%s3 + $0x10] sm:$0xff] %vm440, %v406
  %444 = vst.msk [vmem:[%s3 + $0x18] sm:$0xff] %vm440, %v407
  %445 = vst.msk [vmem:[%s3 + $0x20] sm:$0xff] %vm440, %v408
  %446 = vst.msk [vmem:[%s3 + $0x28] sm:$0xff] %vm440, %v409
  %447 = vst.msk [vmem:[%s3 + $0x30] sm:$0xff] %vm440, %v410
  %448 = vst.msk [vmem:[%s3 + $0x38] sm:$0xff] %vm440, %v411
  %449 = vst.msk [vmem:[%s3 + $0x40] sm:$0xff] %vm440, %v412
  %450 = vst.msk [vmem:[%s3 + $0x48] sm:$0xff] %vm440, %v413
  %451 = vst.msk [vmem:[%s3 + $0x50] sm:$0xff] %vm440, %v414
  %452 = vst.msk [vmem:[%s3 + $0x58] sm:$0xff] %vm440, %v415
  %453 = vst.msk [vmem:[%s3 + $0x60] sm:$0xff] %vm440, %v416
  %454 = vst.msk [vmem:[%s3 + $0x68] sm:$0xff] %vm440, %v417
  %455 = vst.msk [vmem:[%s3 + $0x70] sm:$0xff] %vm440, %v418
  %456 = vst.msk [vmem:[%s3 + $0x78] sm:$0xff] %vm440, %v419
  %457 = vst.msk [vmem:[%s3 + $0x80] sm:$0xff] %vm440, %v420
  %458 = vst.msk [vmem:[%s3 + $0x88] sm:$0xff] %vm440, %v421
  %459 = vst.msk [vmem:[%s3 + $0x90] sm:$0xff] %vm440, %v422
  %460 = vst.msk [vmem:[%s3 + $0x98] sm:$0xff] %vm440, %v423
  %461 = vst.msk [vmem:[%s3 + $0xa0] sm:$0xff] %vm440, %v424
  %462 = vst.msk [vmem:[%s3 + $0xa8] sm:$0xff] %vm440, %v425
  %463 = vst.msk [vmem:[%s3 + $0xb0] sm:$0xff] %vm440, %v426
  %464 = vst.msk [vmem:[%s3 + $0xb8] sm:$0xff] %vm440, %v427
  %465 = vst.msk [vmem:[%s3 + $0xc0] sm:$0xff] %vm440, %v428
  %466 = vst.msk [vmem:[%s3 + $0xc8] sm:$0xff] %vm440, %v429
  %467 = vst.msk [vmem:[%s3 + $0xd0] sm:$0xff] %vm440, %v430
  %468 = vst.msk [vmem:[%s3 + $0xd8] sm:$0xff] %vm440, %v431
  %469 = vst.msk [vmem:[%s3 + $0xe0] sm:$0xff] %vm440, %v432
  %470 = vst.msk [vmem:[%s3 + $0xe8] sm:$0xff] %vm440, %v433
  %471 = vst.msk [vmem:[%s3 + $0xf0] sm:$0xff] %vm440, %v434
  %472 = vst.msk [vmem:[%s3 + $0xf8] sm:$0xff] %vm440, %v435
  %473 = vst.msk [vmem:[%s3 + $0x100] sm:$0xff] %vm440, %v436
  %474 = vst.msk [vmem:[%s3 + $0x108] sm:$0xff] %vm440, %v437
  %475 = vst.msk [vmem:[%s3 + $0x110] sm:$0xff] %vm440, %v438
  %476 = vst.msk [vmem:[%s3 + $0x118] sm:$0xff] %vm440, %v439
  // Predicated region
  $region14: #{forward.10} parent=0 // pred_check
    _
  $region15: #{forward.10} parent=0 // pred_check_branch
    %478 = sbr.rel (0) target = $region17
  $region16: #{forward.10} parent=0 // pred_region
    _
  $region17: #{forward.10} parent=0 // pred_fallthru
    _
  // Predicated region
  $region18: #{forward.10} parent=0 // pred_check
    _
  $region19: #{forward.10} parent=0 // pred_check_branch
    %480 = sbr.rel (0) target = $region21
  $region20: #{forward.10} parent=0 // pred_region
    _
  $region21: #{forward.10} parent=0 // pred_fallthru
    _

// kernel: forward.14
$region0: #{forward.14}
  #allocation0 [shape = 'u32[]', space=smem, size = 0x4, offset = 0x4, fixed_abs, tag = 'smem constant byte address 0x4 - core index']
  #allocation1 [shape = 'u32[144,128]{1,0:T(1,128)}', space=vmem, size = 0x12000, scoped, tag = 'internal scratch']
  %s0 = inlined_call_operand.vmem [shape: bf16[8,1701], index: 0, kind: input, shape index: {}]
  %s1 = inlined_call_operand.vmem [shape: bf16[1701,384], index: 1, kind: input, shape index: {}]
  %s2 = inlined_call_operand.vmem [shape: f32[1,384], index: 2, kind: input, shape index: {}]
  %s3 = inlined_call_operand.vmem [shape: f32[8,384], index: 3, kind: output, shape index: {}]
  %s4 = sld [smem:[#allocation0]]
  $region22: #{forward.14} parent=0
    _
  %s6 = ssub.s32 1, %s4
  %s7 = scalar_select 0, %s6, %s4
  // Predicated region
  $region2: #{forward.14} parent=0 // pred_check
    _
  $region3: #{forward.14} parent=0 // pred_check_branch
    %9 = sbr.rel (0) target = $region5
  $region4: #{forward.14} parent=0 // pred_region
    _
  $region5: #{forward.14} parent=0 // pred_fallthru
    _
  // Predicated region
  $region6: #{forward.14} parent=0 // pred_check
    _
  $region7: #{forward.14} parent=0 // pred_check_branch
    %11 = sbr.rel (0) target = $region9
  $region8: #{forward.14} parent=0 // pred_region
    _
  $region9: #{forward.14} parent=0 // pred_fallthru
    _
  // Predicated region
  $region10: #{forward.14} parent=0 // pred_check
    _
  $region11: #{forward.14} parent=0 // pred_check_branch
    %13 = sbr.rel (0) target = $region13
  $region12: #{forward.14} parent=0 // pred_region
    _
  $region13: #{forward.14} parent=0 // pred_fallthru
    _
  %v15 = vld [vmem:[%s0] sm:$0xff]
  %v16 = vld [vmem:[%s0 + $0x8] sm:$0xff]
  %v17 = vld [vmem:[%s0 + $0x10] sm:$0xff]
  %v18 = vld [vmem:[%s0 + $0x18] sm:$0xff]
  %v19 = vld [vmem:[%s0 + $0x20] sm:$0xff]
  %v20 = vld [vmem:[%s0 + $0x28] sm:$0xff]
  %v21 = vld [vmem:[%s0 + $0x30] sm:$0xff]
  %v22 = vld [vmem:[%s1] sm:$0xff]
  %v23 = vld [vmem:[%s1 + $0x8] sm:$0xf]
  %v24 = vld [vmem:[%s1 + $0xc] sm:$0xff]
  %v25 = vld [vmem:[%s1 + $0x14] sm:$0xf]
  %v26 = vld [vmem:[%s1 + $0x18] sm:$0xff]
  %v27 = vld [vmem:[%s1 + $0x20] sm:$0xf]
  %v28 = vld [vmem:[%s1 + $0x24] sm:$0xff]
  %v29 = vld [vmem:[%s1 + $0x2c] sm:$0xf]
  %v30 = vld [vmem:[%s1 + $0x30] sm:$0xff]
  %v31 = vld [vmem:[%s1 + $0x38] sm:$0xf]
  %v32 = vld [vmem:[%s1 + $0x3c] sm:$0xff]
  %v33 = vld [vmem:[%s1 + $0x44] sm:$0xf]
  %v34 = vld [vmem:[%s1 + $0x48] sm:$0xff]
  %v35 = vld [vmem:[%s1 + $0x50] sm:$0xf]
  %v36 = vld [vmem:[%s1 + $0x54] sm:$0xff]
  %v37 = vld [vmem:[%s1 + $0x5c] sm:$0xf]
  %v38 = vld [vmem:[%s1 + $0x60] sm:$0xff]
  %v39 = vld [vmem:[%s1 + $0x68] sm:$0xf]
  %v40 = vld [vmem:[%s1 + $0x6c] sm:$0xff]
  %v41 = vld [vmem:[%s1 + $0x74] sm:$0xf]
  %v42 = vld [vmem:[%s1 + $0x78] sm:$0xff]
  %v43 = vld [vmem:[%s1 + $0x80] sm:$0xf]
  %v44 = vld [vmem:[%s1 + $0x84] sm:$0xff]
  %v45 = vld [vmem:[%s1 + $0x8c] sm:$0xf]
  %v46 = vld [vmem:[%s1 + $0x90] sm:$0xff]
  %v47 = vld [vmem:[%s1 + $0x98] sm:$0xf]
  %v48 = vld [vmem:[%s1 + $0x9c] sm:$0xff]
  %v49 = vld [vmem:[%s1 + $0xa4] sm:$0xf]
  %v50 = vld [vmem:[%s1 + $0xa8] sm:$0xff]
  %v51 = vld [vmem:[%s1 + $0xb0] sm:$0xf]
  %v52 = vld [vmem:[%s1 + $0xb4] sm:$0xff]
  %v53 = vld [vmem:[%s1 + $0xbc] sm:$0xf]
  %v54 = vld [vmem:[%s1 + $0xc0] sm:$0xff]
  %v55 = vld [vmem:[%s1 + $0xc8] sm:$0xf]
  %v56 = vld [vmem:[%s1 + $0xcc] sm:$0xff]
  %v57 = vld [vmem:[%s1 + $0xd4] sm:$0xf]
  %v58 = vld [vmem:[%s1 + $0xd8] sm:$0xff]
  %v59 = vld [vmem:[%s1 + $0xe0] sm:$0xf]
  %v60 = vld [vmem:[%s1 + $0xe4] sm:$0xff]
  %v61 = vld [vmem:[%s1 + $0xec] sm:$0xf]
  %v62 = vld [vmem:[%s1 + $0xf0] sm:$0xff]
  %v63 = vld [vmem:[%s1 + $0xf8] sm:$0xf]
  %v64 = vld [vmem:[%s1 + $0xfc] sm:$0xff]
  %v65 = vld [vmem:[%s1 + $0x104] sm:$0xf]
  %v66 = vld [vmem:[%s1 + $0x108] sm:$0xff]
  %v67 = vld [vmem:[%s1 + $0x110] sm:$0xf]
  %v68 = vld [vmem:[%s1 + $0x114] sm:$0xff]
  %v69 = vld [vmem:[%s1 + $0x11c] sm:$0xf]
  %v70 = vld [vmem:[%s1 + $0x120] sm:$0xff]
  %v71 = vld [vmem:[%s1 + $0x128] sm:$0xf]
  %v72 = vld [vmem:[%s1 + $0x12c] sm:$0xff]
  %v73 = vld [vmem:[%s1 + $0x134] sm:$0xf]
  %v74 = vld [vmem:[%s1 + $0x138] sm:$0xff]
  %v75 = vld [vmem:[%s1 + $0x140] sm:$0xf]
  %v76 = vld [vmem:[%s1 + $0x144] sm:$0xff]
  %v77 = vld [vmem:[%s1 + $0x14c] sm:$0xf]
  %v78 = vld [vmem:[%s1 + $0x150] sm:$0xff]
  %v79 = vld [vmem:[%s1 + $0x158] sm:$0xf]
  %v80 = vld [vmem:[%s1 + $0x15c] sm:$0xff]
  %v81 = vld [vmem:[%s1 + $0x164] sm:$0xf]
  %v82 = vld [vmem:[%s1 + $0x168] sm:$0xff]
  %v83 = vld [vmem:[%s1 + $0x170] sm:$0xf]
  %v84 = vld [vmem:[%s1 + $0x174] sm:$0xff]
  %v85 = vld [vmem:[%s1 + $0x17c] sm:$0xf]
  %v86 = vld [vmem:[%s1 + $0x180] sm:$0xff]
  %v87 = vld [vmem:[%s1 + $0x188] sm:$0xf]
  %v88 = vld [vmem:[%s1 + $0x18c] sm:$0xff]
  %v89 = vld [vmem:[%s1 + $0x194] sm:$0xf]
  %v90 = vld [vmem:[%s1 + $0x198] sm:$0xff]
  %v91 = vld [vmem:[%s1 + $0x1a0] sm:$0xf]
  %v92 = vld [vmem:[%s1 + $0x1a4] sm:$0xff]
  %v93 = vld [vmem:[%s1 + $0x1ac] sm:$0xf]
  %v94 = vld [vmem:[%s1 + $0x1b0] sm:$0xff]
  %v95 = vld [vmem:[%s1 + $0x1b8] sm:$0xf]
  %v96 = vld [vmem:[%s1 + $0x1bc] sm:$0xff]
  %v97 = vld [vmem:[%s1 + $0x1c4] sm:$0xf]
  %v98 = vld [vmem:[%s1 + $0x1c8] sm:$0xff]
  %v99 = vld [vmem:[%s1 + $0x1d0] sm:$0xf]
  %v100 = vld [vmem:[%s1 + $0x1d4] sm:$0xff]
  %v101 = vld [vmem:[%s1 + $0x1dc] sm:$0xf]
  %v102 = vld [vmem:[%s1 + $0x1e0] sm:$0xff]
  %v103 = vld [vmem:[%s1 + $0x1e8] sm:$0xf]
  %v104 = vld [vmem:[%s1 + $0x1ec] sm:$0xff]
  %v105 = vld [vmem:[%s1 + $0x1f4] sm:$0xf]
  %v106 = vld [vmem:[%s1 + $0x1f8] sm:$0xff]
  %v107 = vld [vmem:[%s1 + $0x200] sm:$0xf]
  %v108 = vld [vmem:[%s1 + $0x204] sm:$0xff]
  %v109 = vld [vmem:[%s1 + $0x20c] sm:$0xf]
  %v110 = vld [vmem:[%s1 + $0x210] sm:$0xff]
  %v111 = vld [vmem:[%s1 + $0x218] sm:$0xf]
  %v112 = vld [vmem:[%s1 + $0x21c] sm:$0xff]
  %v113 = vld [vmem:[%s1 + $0x224] sm:$0xf]
  %v114 = vld [vmem:[%s1 + $0x228] sm:$0xff]
  %v115 = vld [vmem:[%s1 + $0x230] sm:$0xf]
  %v116 = vld [vmem:[%s1 + $0x234] sm:$0xff]
  %v117 = vld [vmem:[%s1 + $0x23c] sm:$0xf]
  %v118 = vld [vmem:[%s1 + $0x240] sm:$0xff]
  %v119 = vld [vmem:[%s1 + $0x248] sm:$0xf]
  %v120 = vld [vmem:[%s1 + $0x24c] sm:$0xff]
  %v121 = vld [vmem:[%s1 + $0x254] sm:$0xf]
  %v122 = vld [vmem:[%s1 + $0x258] sm:$0xff]
  %v123 = vld [vmem:[%s1 + $0x260] sm:$0xf]
  %v124 = vld [vmem:[%s1 + $0x264] sm:$0xff]
  %v125 = vld [vmem:[%s1 + $0x26c] sm:$0xf]
  %v126 = vld [vmem:[%s1 + $0x270] sm:$0xff]
  %v127 = vld [vmem:[%s1 + $0x278] sm:$0xf]
  %v128 = vld [vmem:[%s1 + $0x27c] sm:$0xff]
  %v129 = vld [vmem:[%s1 + $0x284] sm:$0xf]
  %v130 = vld [vmem:[%s1 + $0x288] sm:$0xff]
  %v131 = vld [vmem:[%s1 + $0x290] sm:$0xf]
  %v132 = vld [vmem:[%s1 + $0x294] sm:$0xff]
  %v133 = vld [vmem:[%s1 + $0x29c] sm:$0xf]
  %v134 = vld [vmem:[%s1 + $0x2a0] sm:$0xff]
  %v135 = vld [vmem:[%s1 + $0x2a8] sm:$0xf]
  %v136 = vld [vmem:[%s1 + $0x2ac] sm:$0xff]
  %v137 = vld [vmem:[%s1 + $0x2b4] sm:$0xf]
  %v138 = vld [vmem:[%s1 + $0x2b8] sm:$0xff]
  %v139 = vld [vmem:[%s1 + $0x2c0] sm:$0xf]
  %v140 = vld [vmem:[%s1 + $0x2c4] sm:$0xff]
  %v141 = vld [vmem:[%s1 + $0x2cc] sm:$0xf]
  %v142 = vld [vmem:[%s1 + $0x2d0] sm:$0xff]
  %v143 = vld [vmem:[%s1 + $0x2d8] sm:$0xf]
  %v144 = vld [vmem:[%s1 + $0x2dc] sm:$0xff]
  %v145 = vld [vmem:[%s1 + $0x2e4] sm:$0xf]
  %v146 = vld [vmem:[%s1 + $0x2e8] sm:$0xff]
  %v147 = vld [vmem:[%s1 + $0x2f0] sm:$0xf]
  %v148 = vld [vmem:[%s1 + $0x2f4] sm:$0xff]
  %v149 = vld [vmem:[%s1 + $0x2fc] sm:$0xf]
  %v150 = vld [vmem:[%s1 + $0x300] sm:$0xff]
  %v151 = vld [vmem:[%s1 + $0x308] sm:$0xf]
  %v152 = vld [vmem:[%s1 + $0x30c] sm:$0xff]
  %v153 = vld [vmem:[%s1 + $0x314] sm:$0xf]
  %v154 = vld [vmem:[%s1 + $0x318] sm:$0xff]
  %v155 = vld [vmem:[%s1 + $0x320] sm:$0xf]
  %v156 = vld [vmem:[%s1 + $0x324] sm:$0xff]
  %v157 = vld [vmem:[%s1 + $0x32c] sm:$0xf]
  %v158 = vld [vmem:[%s1 + $0x330] sm:$0xff]
  %v159 = vld [vmem:[%s1 + $0x338] sm:$0xf]
  %v160 = vld [vmem:[%s1 + $0x33c] sm:$0xff]
  %v161 = vld [vmem:[%s1 + $0x344] sm:$0xf]
  %v162 = vld [vmem:[%s1 + $0x348] sm:$0xff]
  %v163 = vld [vmem:[%s1 + $0x350] sm:$0xf]
  %v164 = vld [vmem:[%s1 + $0x354] sm:$0xff]
  %v165 = vld [vmem:[%s1 + $0x35c] sm:$0xf]
  %v166 = vld [vmem:[%s1 + $0x360] sm:$0xff]
  %v167 = vld [vmem:[%s1 + $0x368] sm:$0xf]
  %v168 = vld [vmem:[%s1 + $0x36c] sm:$0xff]
  %v169 = vld [vmem:[%s1 + $0x374] sm:$0xf]
  %v170 = vld [vmem:[%s1 + $0x378] sm:$0xff]
  %v171 = vld [vmem:[%s1 + $0x380] sm:$0xf]
  %v172 = vld [vmem:[%s1 + $0x384] sm:$0xff]
  %v173 = vld [vmem:[%s1 + $0x38c] sm:$0xf]
  %v174 = vld [vmem:[%s1 + $0x390] sm:$0xff]
  %v175 = vld [vmem:[%s1 + $0x398] sm:$0xf]
  %v176 = vld [vmem:[%s1 + $0x39c] sm:$0xff]
  %v177 = vld [vmem:[%s1 + $0x3a4] sm:$0xf]
  %v178 = vld [vmem:[%s1 + $0x3a8] sm:$0xff]
  %v179 = vld [vmem:[%s1 + $0x3b0] sm:$0xf]
  %v180 = vld [vmem:[%s1 + $0x3b4] sm:$0xff]
  %v181 = vld [vmem:[%s1 + $0x3bc] sm:$0xf]
  %v182 = vld [vmem:[%s1 + $0x3c0] sm:$0xff]
  %v183 = vld [vmem:[%s1 + $0x3c8] sm:$0xf]
  %v184 = vld [vmem:[%s1 + $0x3cc] sm:$0xff]
  %v185 = vld [vmem:[%s1 + $0x3d4] sm:$0xf]
  %v186 = vld [vmem:[%s1 + $0x3d8] sm:$0xff]
  %v187 = vld [vmem:[%s1 + $0x3e0] sm:$0xf]
  %v188 = vld [vmem:[%s1 + $0x3e4] sm:$0xff]
  %v189 = vld [vmem:[%s1 + $0x3ec] sm:$0xf]
  %v190 = vld [vmem:[%s1 + $0x3f0] sm:$0xff]
  %v191 = vld [vmem:[%s1 + $0x3f8] sm:$0xf]
  %v192 = vld [vmem:[%s1 + $0x3fc] sm:$0xff]
  %v193 = vld [vmem:[%s1 + $0x404] sm:$0xf]
  %v194 = vld [vmem:[%s1 + $0x408] sm:$0xff]
  %v195 = vld [vmem:[%s1 + $0x410] sm:$0xf]
  %v196 = vld [vmem:[%s1 + $0x414] sm:$0xff]
  %v197 = vld [vmem:[%s1 + $0x41c] sm:$0xf]
  %v198 = vld [vmem:[%s1 + $0x420] sm:$0xff]
  %v199 = vld [vmem:[%s1 + $0x428] sm:$0xf]
  %v200 = vld [vmem:[%s1 + $0x42c] sm:$0xff]
  %v201 = vld [vmem:[%s1 + $0x434] sm:$0xf]
  %v202 = vld [vmem:[%s1 + $0x438] sm:$0xff]
  %v203 = vld [vmem:[%s1 + $0x440] sm:$0xf]
  %v204 = vld [vmem:[%s1 + $0x444] sm:$0xff]
  %v205 = vld [vmem:[%s1 + $0x44c] sm:$0xf]
  %v206 = vld [vmem:[%s1 + $0x450] sm:$0xff]
  %v207 = vld [vmem:[%s1 + $0x458] sm:$0xf]
  %v208 = vld [vmem:[%s1 + $0x45c] sm:$0xff]
  %v209 = vld [vmem:[%s1 + $0x464] sm:$0xf]
  %v210 = vld [vmem:[%s1 + $0x468] sm:$0xff]
  %v211 = vld [vmem:[%s1 + $0x470] sm:$0xf]
  %v212 = vld [vmem:[%s1 + $0x474] sm:$0xff]
  %v213 = vld [vmem:[%s1 + $0x47c] sm:$0xf]
  %v214 = vld [vmem:[%s1 + $0x480] sm:$0xff]
  %v215 = vld [vmem:[%s1 + $0x488] sm:$0xf]
  %v216 = vld [vmem:[%s1 + $0x48c] sm:$0xff]
  %v217 = vld [vmem:[%s1 + $0x494] sm:$0xf]
  %v218 = vld [vmem:[%s1 + $0x498] sm:$0xff]
  %v219 = vld [vmem:[%s1 + $0x4a0] sm:$0xf]
  %v220 = vld [vmem:[%s1 + $0x4a4] sm:$0xff]
  %v221 = vld [vmem:[%s1 + $0x4ac] sm:$0xf]
  %v222 = vld [vmem:[%s1 + $0x4b0] sm:$0xff]
  %v223 = vld [vmem:[%s1 + $0x4b8] sm:$0xf]
  %v224 = vld [vmem:[%s1 + $0x4bc] sm:$0xff]
  %v225 = vld [vmem:[%s1 + $0x4c4] sm:$0xf]
  %v226 = vld [vmem:[%s1 + $0x4c8] sm:$0xff]
  %v227 = vld [vmem:[%s1 + $0x4d0] sm:$0xf]
  %v228 = vld [vmem:[%s1 + $0x4d4] sm:$0xff]
  %v229 = vld [vmem:[%s1 + $0x4dc] sm:$0xf]
  %v230 = vld [vmem:[%s1 + $0x4e0] sm:$0xff]
  %v231 = vld [vmem:[%s1 + $0x4e8] sm:$0xf]
  %v232 = vld [vmem:[%s1 + $0x4ec] sm:$0xff]
  %v233 = vld [vmem:[%s1 + $0x4f4] sm:$0xf]
  %v234 = vld [vmem:[%s1 + $0x4f8] sm:$0xff]
  %v235 = vld [vmem:[%s1 + $0x500] sm:$0xf]
  %v236 = vld [vmem:[%s1 + $0x504] sm:$0xff]
  %v237 = vld [vmem:[%s1 + $0x50c] sm:$0xf]
  %v238 = vld [vmem:[%s1 + $0x510] sm:$0xff]
  %v239 = vld [vmem:[%s1 + $0x518] sm:$0xf]
  %v240 = vld [vmem:[%s1 + $0x51c] sm:$0xff]
  %v241 = vld [vmem:[%s1 + $0x524] sm:$0xf]
  %v242 = vld [vmem:[%s1 + $0x528] sm:$0xff]
  %v243 = vld [vmem:[%s1 + $0x530] sm:$0xf]
  %v244 = vld [vmem:[%s1 + $0x534] sm:$0xff]
  %v245 = vld [vmem:[%s1 + $0x53c] sm:$0xf]
  %v246 = vld [vmem:[%s1 + $0x540] sm:$0xff]
  %v247 = vld [vmem:[%s1 + $0x548] sm:$0xf]
  %v248 = vld [vmem:[%s1 + $0x54c] sm:$0xff]
  %v249 = vld [vmem:[%s1 + $0x554] sm:$0xf]
  %v250 = vld [vmem:[%s1 + $0x558] sm:$0xff]
  %v251 = vld [vmem:[%s1 + $0x560] sm:$0xf]
  %v252 = vld [vmem:[%s1 + $0x564] sm:$0xff]
  %v253 = vld [vmem:[%s1 + $0x56c] sm:$0xf]
  %v254 = vld [vmem:[%s1 + $0x570] sm:$0xff]
  %v255 = vld [vmem:[%s1 + $0x578] sm:$0xf]
  %v256 = vld [vmem:[%s1 + $0x57c] sm:$0xff]
  %v257 = vld [vmem:[%s1 + $0x584] sm:$0xf]
  %v258 = vld [vmem:[%s1 + $0x588] sm:$0xff]
  %v259 = vld [vmem:[%s1 + $0x590] sm:$0xf]
  %v260 = vld [vmem:[%s1 + $0x594] sm:$0xff]
  %v261 = vld [vmem:[%s1 + $0x59c] sm:$0xf]
  %v262 = vld [vmem:[%s1 + $0x5a0] sm:$0xff]
  %v263 = vld [vmem:[%s1 + $0x5a8] sm:$0xf]
  %v264 = vld [vmem:[%s1 + $0x5ac] sm:$0xff]
  %v265 = vld [vmem:[%s1 + $0x5b4] sm:$0xf]
  %v266 = vld [vmem:[%s1 + $0x5b8] sm:$0xff]
  %v267 = vld [vmem:[%s1 + $0x5c0] sm:$0xf]
  %v268 = vld [vmem:[%s1 + $0x5c4] sm:$0xff]
  %v269 = vld [vmem:[%s1 + $0x5cc] sm:$0xf]
  %v270 = vld [vmem:[%s1 + $0x5d0] sm:$0xff]
  %v271 = vld [vmem:[%s1 + $0x5d8] sm:$0xf]
  %v272 = vld [vmem:[%s1 + $0x5dc] sm:$0xff]
  %v273 = vld [vmem:[%s1 + $0x5e4] sm:$0xf]
  %v274 = vld [vmem:[%s1 + $0x5e8] sm:$0xff]
  %v275 = vld [vmem:[%s1 + $0x5f0] sm:$0xf]
  %v276 = vld [vmem:[%s1 + $0x5f4] sm:$0xff]
  %v277 = vld [vmem:[%s1 + $0x5fc] sm:$0xf]
  %v278 = vld [vmem:[%s1 + $0x600] sm:$0xff]
  %v279 = vld [vmem:[%s1 + $0x608] sm:$0xf]
  %v280 = vld [vmem:[%s1 + $0x60c] sm:$0xff]
  %v281 = vld [vmem:[%s1 + $0x614] sm:$0xf]
  %v282 = vld [vmem:[%s1 + $0x618] sm:$0xff]
  %v283 = vld [vmem:[%s1 + $0x620] sm:$0xf]
  %v284 = vld [vmem:[%s1 + $0x624] sm:$0xff]
  %v285 = vld [vmem:[%s1 + $0x62c] sm:$0xf]
  %v286 = vld [vmem:[%s1 + $0x630] sm:$0xff]
  %v287 = vld [vmem:[%s1 + $0x638] sm:$0xf]
  %v288 = vld [vmem:[%s1 + $0x63c] sm:$0xff]
  %v289 = vld [vmem:[%s1 + $0x644] sm:$0xf]
  %v290 = vld [vmem:[%s1 + $0x648] sm:$0xff]
  %v291 = vld [vmem:[%s1 + $0x650] sm:$0xf]
  %v292 = vld [vmem:[%s1 + $0x654] sm:$0xff]
  %v293 = vld [vmem:[%s1 + $0x65c] sm:$0xf]
  %v294 = vld [vmem:[%s1 + $0x660] sm:$0xff]
  %v295 = vld [vmem:[%s1 + $0x668] sm:$0xf]
  %v296 = vld [vmem:[%s1 + $0x66c] sm:$0xff]
  %v297 = vld [vmem:[%s1 + $0x674] sm:$0xf]
  %v298 = vld [vmem:[%s1 + $0x678] sm:$0xff]
  %v299 = vld [vmem:[%s1 + $0x680] sm:$0xf]
  %v300 = vld [vmem:[%s1 + $0x684] sm:$0xff]
  %v301 = vld [vmem:[%s1 + $0x68c] sm:$0xf]
  %v302 = vld [vmem:[%s1 + $0x690] sm:$0xff]
  %v303 = vld [vmem:[%s1 + $0x698] sm:$0xf]
  %v304 = vld [vmem:[%s1 + $0x69c] sm:$0xff]
  %v305 = vld [vmem:[%s1 + $0x6a4] sm:$0xf]
  %v306 = vld [vmem:[%s1 + $0x6a8] sm:$0xff]
  %v307 = vld [vmem:[%s1 + $0x6b0] sm:$0xf]
  %v308 = vld [vmem:[%s1 + $0x6b4] sm:$0xff]
  %v309 = vld [vmem:[%s1 + $0x6bc] sm:$0xf]
  %v310 = vld [vmem:[%s1 + $0x6c0] sm:$0xff]
  %v311 = vld [vmem:[%s1 + $0x6c8] sm:$0xf]
  %v312 = vld [vmem:[%s1 + $0x6cc] sm:$0xff]
  %v313 = vld [vmem:[%s1 + $0x6d4] sm:$0xf]
  %v314 = vld [vmem:[%s1 + $0x6d8] sm:$0xff]
  %v315 = vld [vmem:[%s1 + $0x6e0] sm:$0xf]
  %v316 = vld [vmem:[%s1 + $0x6e4] sm:$0xff]
  %v317 = vld [vmem:[%s1 + $0x6ec] sm:$0xf]
  %v318 = vld [vmem:[%s1 + $0x6f0] sm:$0xff]
  %v319 = vld [vmem:[%s1 + $0x6f8] sm:$0xf]
  %v320 = vld [vmem:[%s1 + $0x6fc] sm:$0xff]
  %v321 = vld [vmem:[%s1 + $0x704] sm:$0xf]
  %v322 = vld [vmem:[%s1 + $0x708] sm:$0xff]
  %v323 = vld [vmem:[%s1 + $0x710] sm:$0xf]
  %v324 = vld [vmem:[%s1 + $0x714] sm:$0xff]
  %v325 = vld [vmem:[%s1 + $0x71c] sm:$0xf]
  %v326 = vld [vmem:[%s1 + $0x720] sm:$0xff]
  %v327 = vld [vmem:[%s1 + $0x728] sm:$0xf]
  %v328 = vld [vmem:[%s1 + $0x72c] sm:$0xff]
  %v329 = vld [vmem:[%s1 + $0x734] sm:$0xf]
  %v330 = vld [vmem:[%s1 + $0x738] sm:$0xff]
  %v331 = vld [vmem:[%s1 + $0x740] sm:$0xf]
  %v332 = vld [vmem:[%s1 + $0x744] sm:$0xff]
  %v333 = vld [vmem:[%s1 + $0x74c] sm:$0xf]
  %v334 = vld [vmem:[%s1 + $0x750] sm:$0xff]
  %v335 = vld [vmem:[%s1 + $0x758] sm:$0xf]
  %v336 = vld [vmem:[%s1 + $0x75c] sm:$0xff]
  %v337 = vld [vmem:[%s1 + $0x764] sm:$0xf]
  %v338 = vld [vmem:[%s1 + $0x768] sm:$0xff]
  %v339 = vld [vmem:[%s1 + $0x770] sm:$0xf]
  %v340 = vld [vmem:[%s1 + $0x774] sm:$0xff]
  %v341 = vld [vmem:[%s1 + $0x77c] sm:$0xf]
  %v342 = vld [vmem:[%s1 + $0x780] sm:$0xff]
  %v343 = vld [vmem:[%s1 + $0x788] sm:$0xf]
  %v344 = vld [vmem:[%s1 + $0x78c] sm:$0xff]
  %v345 = vld [vmem:[%s1 + $0x794] sm:$0xf]
  %v346 = vld [vmem:[%s1 + $0x798] sm:$0xff]
  %v347 = vld [vmem:[%s1 + $0x7a0] sm:$0xf]
  %v348 = vld [vmem:[%s1 + $0x7a4] sm:$0xff]
  %v349 = vld [vmem:[%s1 + $0x7ac] sm:$0xf]
  %v350 = vld [vmem:[%s1 + $0x7b0] sm:$0xff]
  %v351 = vld [vmem:[%s1 + $0x7b8] sm:$0xf]
  %v352 = vld [vmem:[%s1 + $0x7bc] sm:$0xff]
  %v353 = vld [vmem:[%s1 + $0x7c4] sm:$0xf]
  %v354 = vld [vmem:[%s1 + $0x7c8] sm:$0xff]
  %v355 = vld [vmem:[%s1 + $0x7d0] sm:$0xf]
  %v356 = vld [vmem:[%s1 + $0x7d4] sm:$0xff]
  %v357 = vld [vmem:[%s1 + $0x7dc] sm:$0xf]
  %v358 = vld [vmem:[%s1 + $0x7e0] sm:$0xff]
  %v359 = vld [vmem:[%s1 + $0x7e8] sm:$0xf]
  %v360 = vld [vmem:[%s1 + $0x7ec] sm:$0xff]
  %v361 = vld [vmem:[%s1 + $0x7f4] sm:$0xf]
  %v362 = vld [vmem:[%s1 + $0x7f8] sm:$0xff]
  %v363 = vld [vmem:[%s1 + $0x800] sm:$0xf]
  %v364 = vld [vmem:[%s1 + $0x804] sm:$0xff]
  %v365 = vld [vmem:[%s1 + $0x80c] sm:$0xf]
  %v366 = vld [vmem:[%s1 + $0x810] sm:$0xff]
  %v367 = vld [vmem:[%s1 + $0x818] sm:$0xf]
  %v368 = vld [vmem:[%s1 + $0x81c] sm:$0xff]
  %v369 = vld [vmem:[%s1 + $0x824] sm:$0xf]
  %v370 = vld [vmem:[%s1 + $0x828] sm:$0xff]
  %v371 = vld [vmem:[%s1 + $0x830] sm:$0xf]
  %v372 = vld [vmem:[%s1 + $0x834] sm:$0xff]
  %v373 = vld [vmem:[%s1 + $0x83c] sm:$0xf]
  %v374 = vld [vmem:[%s1 + $0x840] sm:$0xff]
  %v375 = vld [vmem:[%s1 + $0x848] sm:$0xf]
  %v376 = vld [vmem:[%s1 + $0x84c] sm:$0xff]
  %v377 = vld [vmem:[%s1 + $0x854] sm:$0xf]
  %v378 = vld [vmem:[%s1 + $0x858] sm:$0xff]
  %v379 = vld [vmem:[%s1 + $0x860] sm:$0xf]
  %v380 = vld [vmem:[%s1 + $0x864] sm:$0xff]
  %v381 = vld [vmem:[%s1 + $0x86c] sm:$0xf]
  %v382 = vld [vmem:[%s1 + $0x870] sm:$0xff]
  %v383 = vld [vmem:[%s1 + $0x878] sm:$0xf]
  %v384 = vld [vmem:[%s1 + $0x87c] sm:$0xff]
  %v385 = vld [vmem:[%s1 + $0x884] sm:$0xf]
  %v386 = vld [vmem:[%s1 + $0x888] sm:$0xff]
  %v387 = vld [vmem:[%s1 + $0x890] sm:$0xf]
  %v388 = vld [vmem:[%s1 + $0x894] sm:$0xff]
  %v389 = vld [vmem:[%s1 + $0x89c] sm:$0xf]
  %v390 = vld [vmem:[%s1 + $0x8a0] sm:$0xff]
  %v391 = vld [vmem:[%s1 + $0x8a8] sm:$0xf]
  %v392 = vld [vmem:[%s1 + $0x8ac] sm:$0xff]
  %v393 = vld [vmem:[%s1 + $0x8b4] sm:$0xf]
  %v394 = vld [vmem:[%s1 + $0x8b8] sm:$0xff]
  %v395 = vld [vmem:[%s1 + $0x8c0] sm:$0xf]
  %v396 = vld [vmem:[%s1 + $0x8c4] sm:$0xff]
  %v397 = vld [vmem:[%s1 + $0x8cc] sm:$0xf]
  %v398 = vld [vmem:[%s1 + $0x8d0] sm:$0xff]
  %v399 = vld [vmem:[%s1 + $0x8d8] sm:$0xf]
  %v400 = vld [vmem:[%s1 + $0x8dc] sm:$0xff]
  %v401 = vld [vmem:[%s1 + $0x8e4] sm:$0xf]
  %v402 = vld [vmem:[%s1 + $0x8e8] sm:$0xff]
  %v403 = vld [vmem:[%s1 + $0x8f0] sm:$0xf]
  %v404 = vld [vmem:[%s1 + $0x8f4] sm:$0xff]
  %v405 = vld [vmem:[%s1 + $0x8fc] sm:$0xf]
  %v406 = vld [vmem:[%s1 + $0x900] sm:$0xff]
  %v407 = vld [vmem:[%s1 + $0x908] sm:$0xf]
  %v408 = vld [vmem:[%s1 + $0x90c] sm:$0xff]
  %v409 = vld [vmem:[%s1 + $0x914] sm:$0xf]
  %v410 = vld [vmem:[%s1 + $0x918] sm:$0xff]
  %v411 = vld [vmem:[%s1 + $0x920] sm:$0xf]
  %v412 = vld [vmem:[%s1 + $0x924] sm:$0xff]
  %v413 = vld [vmem:[%s1 + $0x92c] sm:$0xf]
  %v414 = vld [vmem:[%s1 + $0x930] sm:$0xff]
  %v415 = vld [vmem:[%s1 + $0x938] sm:$0xf]
  %v416 = vld [vmem:[%s1 + $0x93c] sm:$0xff]
  %v417 = vld [vmem:[%s1 + $0x944] sm:$0xf]
  %v418 = vld [vmem:[%s1 + $0x948] sm:$0xff]
  %v419 = vld [vmem:[%s1 + $0x950] sm:$0xf]
  %v420 = vld [vmem:[%s1 + $0x954] sm:$0xff]
  %v421 = vld [vmem:[%s1 + $0x95c] sm:$0xf]
  %v422 = vld [vmem:[%s1 + $0x960] sm:$0xff]
  %v423 = vld [vmem:[%s1 + $0x968] sm:$0xf]
  %v424 = vld [vmem:[%s1 + $0x96c] sm:$0xff]
  %v425 = vld [vmem:[%s1 + $0x974] sm:$0xf]
  %v426 = vld [vmem:[%s1 + $0x978] sm:$0xff]
  %v427 = vld [vmem:[%s1 + $0x980] sm:$0xf]
  %v428 = vld [vmem:[%s1 + $0x984] sm:$0xff]
  %v429 = vld [vmem:[%s1 + $0x98c] sm:$0xf]
  %v430 = vld [vmem:[%s1 + $0x990] sm:$0xff]
  %v431 = vld [vmem:[%s1 + $0x998] sm:$0xf]
  %v432 = vld [vmem:[%s1 + $0x99c] sm:$0xff]
  %v433 = vld [vmem:[%s1 + $0x9a4] sm:$0xf]
  %v434 = vld [vmem:[%s1 + $0x9a8] sm:$0xff]
  %v435 = vld [vmem:[%s1 + $0x9b0] sm:$0xf]
  %v436 = vld [vmem:[%s1 + $0x9b4] sm:$0xff]
  %v437 = vld [vmem:[%s1 + $0x9bc] sm:$0xf]
  %v438 = vld [vmem:[%s1 + $0x9c0] sm:$0xff]
  %v439 = vld [vmem:[%s1 + $0x9c8] sm:$0xf]
  %v440 = vld [vmem:[%s1 + $0x9cc] sm:$0xff]
  %v441 = vld [vmem:[%s1 + $0x9d4] sm:$0xf]
  %v442 = vld [vmem:[%s1 + $0x9d8] sm:$0xff]
  %v443 = vld [vmem:[%s1 + $0x9e0] sm:$0xf]
  %v444 = vld [vmem:[%s1 + $0x9e4] sm:$0xff]
  %v445 = vld [vmem:[%s1 + $0x9ec] sm:$0xf]
  %v446 = vld [vmem:[%s1 + $0x9f0] sm:$0x77]
  %v447 = vld [vmem:[%s1 + $0x9f8] sm:$0x7]
  %v448 = vld [vmem:[%s2] sm:$0x7]
  %v450 = vlaneseq
  %v451 = vshrl.u32 %v450, 7
  %v452 = vsub.s32 0, %v451
  %v453 = vrot.slane %v448, %v452
  %v454 = vlaneseq
  %v455 = vshrl.u32 %v454, 7
  %v456 = vsub.s32 1, %v455
  %v457 = vrot.slane %v448, %v456
  %v458 = vlaneseq
  %v459 = vshrl.u32 %v458, 7
  %v460 = vsub.s32 2, %v459
  %v461 = vrot.slane %v448, %v460
  %v472 = vunpack.c.l.b16 %v15
  %v473 = vunpack.c.h.b16 %v15
  %v474 = vunpack.c.l.b16 %v16
  %v475 = vunpack.c.h.b16 %v16
  %v476 = vunpack.c.l.b16 %v17
  %v477 = vunpack.c.h.b16 %v17
  %v478 = vunpack.c.l.b16 %v18
  %v479 = vunpack.c.h.b16 %v18
  %v480 = vunpack.c.l.b16 %v19
  %v481 = vunpack.c.h.b16 %v19
  %v482 = vunpack.c.l.b16 %v20
  %v483 = vunpack.c.h.b16 %v20
  %v484 = vunpack.c.l.b16 %v21
  %v485 = vunpack.c.h.b16 %v21
  %v486 = vpack.c.b16 %v472, %v472
  %v487 = vpack.c.b16 %v473, %v473
  %v488 = vpack.c.b16 %v474, %v474
  %v489 = vpack.c.b16 %v475, %v475
  %v490 = vpack.c.b16 %v476, %v476
  %v491 = vpack.c.b16 %v477, %v477
  %v492 = vpack.c.b16 %v478, %v478
  %v493 = vpack.c.b16 %v479, %v479
  %v494 = vpack.c.b16 %v480, %v480
  %v495 = vpack.c.b16 %v481, %v481
  %v496 = vpack.c.b16 %v482, %v482
  %v497 = vpack.c.b16 %v483, %v483
  %v498 = vpack.c.b16 %v484, %v484
  %v499 = vpack.c.b16 %v485, %v485
  %v939 = vunpack.c.l.b16 %v22
  %v940 = vunpack.c.h.b16 %v22
  %v941 = vunpack.c.l.b16 %v23
  %v942 = vunpack.c.l.b16 %v24
  %v943 = vunpack.c.h.b16 %v24
  %v944 = vunpack.c.l.b16 %v25
  %v945 = vunpack.c.l.b16 %v26
  %v946 = vunpack.c.h.b16 %v26
  %v947 = vunpack.c.l.b16 %v27
  %v948 = vunpack.c.l.b16 %v28
  %v949 = vunpack.c.h.b16 %v28
  %v950 = vunpack.c.l.b16 %v29
  %v951 = vunpack.c.l.b16 %v30
  %v952 = vunpack.c.h.b16 %v30
  %v953 = vunpack.c.l.b16 %v31
  %v954 = vunpack.c.l.b16 %v32
  %v955 = vunpack.c.h.b16 %v32
  %v956 = vunpack.c.l.b16 %v33
  %v957 = vunpack.c.l.b16 %v34
  %v958 = vunpack.c.h.b16 %v34
  %v959 = vunpack.c.l.b16 %v35
  %v960 = vunpack.c.l.b16 %v36
  %v961 = vunpack.c.h.b16 %v36
  %v962 = vunpack.c.l.b16 %v37
  %v963 = vunpack.c.l.b16 %v38
  %v964 = vunpack.c.h.b16 %v38
  %v965 = vunpack.c.l.b16 %v39
  %v966 = vunpack.c.l.b16 %v40
  %v967 = vunpack.c.h.b16 %v40
  %v968 = vunpack.c.l.b16 %v41
  %v969 = vunpack.c.l.b16 %v42
  %v970 = vunpack.c.h.b16 %v42
  %v971 = vunpack.c.l.b16 %v43
  %v972 = vunpack.c.l.b16 %v44
  %v973 = vunpack.c.h.b16 %v44
  %v974 = vunpack.c.l.b16 %v45
  %v975 = vunpack.c.l.b16 %v46
  %v976 = vunpack.c.h.b16 %v46
  %v977 = vunpack.c.l.b16 %v47
  %v978 = vunpack.c.l.b16 %v48
  %v979 = vunpack.c.h.b16 %v48
  %v980 = vunpack.c.l.b16 %v49
  %v981 = vunpack.c.l.b16 %v50
  %v982 = vunpack.c.h.b16 %v50
  %v983 = vunpack.c.l.b16 %v51
  %v984 = vunpack.c.l.b16 %v52
  %v985 = vunpack.c.h.b16 %v52
  %v986 = vunpack.c.l.b16 %v53
  %v987 = vunpack.c.l.b16 %v54
  %v988 = vunpack.c.h.b16 %v54
  %v989 = vunpack.c.l.b16 %v55
  %v990 = vunpack.c.l.b16 %v56
  %v991 = vunpack.c.h.b16 %v56
  %v992 = vunpack.c.l.b16 %v57
  %v993 = vunpack.c.l.b16 %v58
  %v994 = vunpack.c.h.b16 %v58
  %v995 = vunpack.c.l.b16 %v59
  %v996 = vunpack.c.l.b16 %v60
  %v997 = vunpack.c.h.b16 %v60
  %v998 = vunpack.c.l.b16 %v61
  %v999 = vunpack.c.l.b16 %v62
  %v1000 = vunpack.c.h.b16 %v62
  %v1001 = vunpack.c.l.b16 %v63
  %v1002 = vunpack.c.l.b16 %v64
  %v1003 = vunpack.c.h.b16 %v64
  %v1004 = vunpack.c.l.b16 %v65
  %v1005 = vunpack.c.l.b16 %v66
  %v1006 = vunpack.c.h.b16 %v66
  %v1007 = vunpack.c.l.b16 %v67
  %v1008 = vunpack.c.l.b16 %v68
  %v1009 = vunpack.c.h.b16 %v68
  %v1010 = vunpack.c.l.b16 %v69
  %v1011 = vunpack.c.l.b16 %v70
  %v1012 = vunpack.c.h.b16 %v70
  %v1013 = vunpack.c.l.b16 %v71
  %v1014 = vunpack.c.l.b16 %v72
  %v1015 = vunpack.c.h.b16 %v72
  %v1016 = vunpack.c.l.b16 %v73
  %v1017 = vunpack.c.l.b16 %v74
  %v1018 = vunpack.c.h.b16 %v74
  %v1019 = vunpack.c.l.b16 %v75
  %v1020 = vunpack.c.l.b16 %v76
  %v1021 = vunpack.c.h.b16 %v76
  %v1022 = vunpack.c.l.b16 %v77
  %v1023 = vunpack.c.l.b16 %v78
  %v1024 = vunpack.c.h.b16 %v78
  %v1025 = vunpack.c.l.b16 %v79
  %v1026 = vunpack.c.l.b16 %v80
  %v1027 = vunpack.c.h.b16 %v80
  %v1028 = vunpack.c.l.b16 %v81
  %v1029 = vunpack.c.l.b16 %v82
  %v1030 = vunpack.c.h.b16 %v82
  %v1031 = vunpack.c.l.b16 %v83
  %v1032 = vunpack.c.l.b16 %v84
  %v1033 = vunpack.c.h.b16 %v84
  %v1034 = vunpack.c.l.b16 %v85
  %v1035 = vunpack.c.l.b16 %v86
  %v1036 = vunpack.c.h.b16 %v86
  %v1037 = vunpack.c.l.b16 %v87
  %v1038 = vunpack.c.l.b16 %v88
  %v1039 = vunpack.c.h.b16 %v88
  %v1040 = vunpack.c.l.b16 %v89
  %v1041 = vunpack.c.l.b16 %v90
  %v1042 = vunpack.c.h.b16 %v90
  %v1043 = vunpack.c.l.b16 %v91
  %v1044 = vunpack.c.l.b16 %v92
  %v1045 = vunpack.c.h.b16 %v92
  %v1046 = vunpack.c.l.b16 %v93
  %v1047 = vunpack.c.l.b16 %v94
  %v1048 = vunpack.c.h.b16 %v94
  %v1049 = vunpack.c.l.b16 %v95
  %v1050 = vunpack.c.l.b16 %v96
  %v1051 = vunpack.c.h.b16 %v96
  %v1052 = vunpack.c.l.b16 %v97
  %v1053 = vunpack.c.l.b16 %v98
  %v1054 = vunpack.c.h.b16 %v98
  %v1055 = vunpack.c.l.b16 %v99
  %v1056 = vunpack.c.l.b16 %v100
  %v1057 = vunpack.c.h.b16 %v100
  %v1058 = vunpack.c.l.b16 %v101
  %v1059 = vunpack.c.l.b16 %v102
  %v1060 = vunpack.c.h.b16 %v102
  %v1061 = vunpack.c.l.b16 %v103
  %v1062 = vunpack.c.l.b16 %v104
  %v1063 = vunpack.c.h.b16 %v104
  %v1064 = vunpack.c.l.b16 %v105
  %v1065 = vunpack.c.l.b16 %v106
  %v1066 = vunpack.c.h.b16 %v106
  %v1067 = vunpack.c.l.b16 %v107
  %v1068 = vunpack.c.l.b16 %v108
  %v1069 = vunpack.c.h.b16 %v108
  %v1070 = vunpack.c.l.b16 %v109
  %v1071 = vunpack.c.l.b16 %v110
  %v1072 = vunpack.c.h.b16 %v110
  %v1073 = vunpack.c.l.b16 %v111
  %v1074 = vunpack.c.l.b16 %v112
  %v1075 = vunpack.c.h.b16 %v112
  %v1076 = vunpack.c.l.b16 %v113
  %v1077 = vunpack.c.l.b16 %v114
  %v1078 = vunpack.c.h.b16 %v114
  %v1079 = vunpack.c.l.b16 %v115
  %v1080 = vunpack.c.l.b16 %v116
  %v1081 = vunpack.c.h.b16 %v116
  %v1082 = vunpack.c.l.b16 %v117
  %v1083 = vunpack.c.l.b16 %v118
  %v1084 = vunpack.c.h.b16 %v118
  %v1085 = vunpack.c.l.b16 %v119
  %v1086 = vunpack.c.l.b16 %v120
  %v1087 = vunpack.c.h.b16 %v120
  %v1088 = vunpack.c.l.b16 %v121
  %v1089 = vunpack.c.l.b16 %v122
  %v1090 = vunpack.c.h.b16 %v122
  %v1091 = vunpack.c.l.b16 %v123
  %v1092 = vunpack.c.l.b16 %v124
  %v1093 = vunpack.c.h.b16 %v124
  %v1094 = vunpack.c.l.b16 %v125
  %v1095 = vunpack.c.l.b16 %v126
  %v1096 = vunpack.c.h.b16 %v126
  %v1097 = vunpack.c.l.b16 %v127
  %v1098 = vunpack.c.l.b16 %v128
  %v1099 = vunpack.c.h.b16 %v128
  %v1100 = vunpack.c.l.b16 %v129
  %v1101 = vunpack.c.l.b16 %v130
  %v1102 = vunpack.c.h.b16 %v130
  %v1103 = vunpack.c.l.b16 %v131
  %v1104 = vunpack.c.l.b16 %v132
  %v1105 = vunpack.c.h.b16 %v132
  %v1106 = vunpack.c.l.b16 %v133
  %v1107 = vunpack.c.l.b16 %v134
  %v1108 = vunpack.c.h.b16 %v134
  %v1109 = vunpack.c.l.b16 %v135
  %v1110 = vunpack.c.l.b16 %v136
  %v1111 = vunpack.c.h.b16 %v136
  %v1112 = vunpack.c.l.b16 %v137
  %v1113 = vunpack.c.l.b16 %v138
  %v1114 = vunpack.c.h.b16 %v138
  %v1115 = vunpack.c.l.b16 %v139
  %v1116 = vunpack.c.l.b16 %v140
  %v1117 = vunpack.c.h.b16 %v140
  %v1118 = vunpack.c.l.b16 %v141
  %v1119 = vunpack.c.l.b16 %v142
  %v1120 = vunpack.c.h.b16 %v142
  %v1121 = vunpack.c.l.b16 %v143
  %v1122 = vunpack.c.l.b16 %v144
  %v1123 = vunpack.c.h.b16 %v144
  %v1124 = vunpack.c.l.b16 %v145
  %v1125 = vunpack.c.l.b16 %v146
  %v1126 = vunpack.c.h.b16 %v146
  %v1127 = vunpack.c.l.b16 %v147
  %v1128 = vunpack.c.l.b16 %v148
  %v1129 = vunpack.c.h.b16 %v148
  %v1130 = vunpack.c.l.b16 %v149
  %v1131 = vunpack.c.l.b16 %v150
  %v1132 = vunpack.c.h.b16 %v150
  %v1133 = vunpack.c.l.b16 %v151
  %v1134 = vunpack.c.l.b16 %v152
  %v1135 = vunpack.c.h.b16 %v152
  %v1136 = vunpack.c.l.b16 %v153
  %v1137 = vunpack.c.l.b16 %v154
  %v1138 = vunpack.c.h.b16 %v154
  %v1139 = vunpack.c.l.b16 %v155
  %v1140 = vunpack.c.l.b16 %v156
  %v1141 = vunpack.c.h.b16 %v156
  %v1142 = vunpack.c.l.b16 %v157
  %v1143 = vunpack.c.l.b16 %v158
  %v1144 = vunpack.c.h.b16 %v158
  %v1145 = vunpack.c.l.b16 %v159
  %v1146 = vunpack.c.l.b16 %v160
  %v1147 = vunpack.c.h.b16 %v160
  %v1148 = vunpack.c.l.b16 %v161
  %v1149 = vunpack.c.l.b16 %v162
  %v1150 = vunpack.c.h.b16 %v162
  %v1151 = vunpack.c.l.b16 %v163
  %v1152 = vunpack.c.l.b16 %v164
  %v1153 = vunpack.c.h.b16 %v164
  %v1154 = vunpack.c.l.b16 %v165
  %v1155 = vunpack.c.l.b16 %v166
  %v1156 = vunpack.c.h.b16 %v166
  %v1157 = vunpack.c.l.b16 %v167
  %v1158 = vunpack.c.l.b16 %v168
  %v1159 = vunpack.c.h.b16 %v168
  %v1160 = vunpack.c.l.b16 %v169
  %v1161 = vunpack.c.l.b16 %v170
  %v1162 = vunpack.c.h.b16 %v170
  %v1163 = vunpack.c.l.b16 %v171
  %v1164 = vunpack.c.l.b16 %v172
  %v1165 = vunpack.c.h.b16 %v172
  %v1166 = vunpack.c.l.b16 %v173
  %v1167 = vunpack.c.l.b16 %v174
  %v1168 = vunpack.c.h.b16 %v174
  %v1169 = vunpack.c.l.b16 %v175
  %v1170 = vunpack.c.l.b16 %v176
  %v1171 = vunpack.c.h.b16 %v176
  %v1172 = vunpack.c.l.b16 %v177
  %v1173 = vunpack.c.l.b16 %v178
  %v1174 = vunpack.c.h.b16 %v178
  %v1175 = vunpack.c.l.b16 %v179
  %v1176 = vunpack.c.l.b16 %v180
  %v1177 = vunpack.c.h.b16 %v180
  %v1178 = vunpack.c.l.b16 %v181
  %v1179 = vunpack.c.l.b16 %v182
  %v1180 = vunpack.c.h.b16 %v182
  %v1181 = vunpack.c.l.b16 %v183
  %v1182 = vunpack.c.l.b16 %v184
  %v1183 = vunpack.c.h.b16 %v184
  %v1184 = vunpack.c.l.b16 %v185
  %v1185 = vunpack.c.l.b16 %v186
  %v1186 = vunpack.c.h.b16 %v186
  %v1187 = vunpack.c.l.b16 %v187
  %v1188 = vunpack.c.l.b16 %v188
  %v1189 = vunpack.c.h.b16 %v188
  %v1190 = vunpack.c.l.b16 %v189
  %v1191 = vunpack.c.l.b16 %v190
  %v1192 = vunpack.c.h.b16 %v190
  %v1193 = vunpack.c.l.b16 %v191
  %v1194 = vunpack.c.l.b16 %v192
  %v1195 = vunpack.c.h.b16 %v192
  %v1196 = vunpack.c.l.b16 %v193
  %v1197 = vunpack.c.l.b16 %v194
  %v1198 = vunpack.c.h.b16 %v194
  %v1199 = vunpack.c.l.b16 %v195
  %v1200 = vunpack.c.l.b16 %v196
  %v1201 = vunpack.c.h.b16 %v196
  %v1202 = vunpack.c.l.b16 %v197
  %v1203 = vunpack.c.l.b16 %v198
  %v1204 = vunpack.c.h.b16 %v198
  %v1205 = vunpack.c.l.b16 %v199
  %v1206 = vunpack.c.l.b16 %v200
  %v1207 = vunpack.c.h.b16 %v200
  %v1208 = vunpack.c.l.b16 %v201
  %v1209 = vunpack.c.l.b16 %v202
  %v1210 = vunpack.c.h.b16 %v202
  %v1211 = vunpack.c.l.b16 %v203
  %v1212 = vunpack.c.l.b16 %v204
  %v1213 = vunpack.c.h.b16 %v204
  %v1214 = vunpack.c.l.b16 %v205
  %v1215 = vunpack.c.l.b16 %v206
  %v1216 = vunpack.c.h.b16 %v206
  %v1217 = vunpack.c.l.b16 %v207
  %v1218 = vunpack.c.l.b16 %v208
  %v1219 = vunpack.c.h.b16 %v208
  %v1220 = vunpack.c.l.b16 %v209
  %v1221 = vunpack.c.l.b16 %v210
  %v1222 = vunpack.c.h.b16 %v210
  %v1223 = vunpack.c.l.b16 %v211
  %v1224 = vunpack.c.l.b16 %v212
  %v1225 = vunpack.c.h.b16 %v212
  %v1226 = vunpack.c.l.b16 %v213
  %v1227 = vunpack.c.l.b16 %v214
  %v1228 = vunpack.c.h.b16 %v214
  %v1229 = vunpack.c.l.b16 %v215
  %v1230 = vunpack.c.l.b16 %v216
  %v1231 = vunpack.c.h.b16 %v216
  %v1232 = vunpack.c.l.b16 %v217
  %v1233 = vunpack.c.l.b16 %v218
  %v1234 = vunpack.c.h.b16 %v218
  %v1235 = vunpack.c.l.b16 %v219
  %v1236 = vunpack.c.l.b16 %v220
  %v1237 = vunpack.c.h.b16 %v220
  %v1238 = vunpack.c.l.b16 %v221
  %v1239 = vunpack.c.l.b16 %v222
  %v1240 = vunpack.c.h.b16 %v222
  %v1241 = vunpack.c.l.b16 %v223
  %v1242 = vunpack.c.l.b16 %v224
  %v1243 = vunpack.c.h.b16 %v224
  %v1244 = vunpack.c.l.b16 %v225
  %v1245 = vunpack.c.l.b16 %v226
  %v1246 = vunpack.c.h.b16 %v226
  %v1247 = vunpack.c.l.b16 %v227
  %v1248 = vunpack.c.l.b16 %v228
  %v1249 = vunpack.c.h.b16 %v228
  %v1250 = vunpack.c.l.b16 %v229
  %v1251 = vunpack.c.l.b16 %v230
  %v1252 = vunpack.c.h.b16 %v230
  %v1253 = vunpack.c.l.b16 %v231
  %v1254 = vunpack.c.l.b16 %v232
  %v1255 = vunpack.c.h.b16 %v232
  %v1256 = vunpack.c.l.b16 %v233
  %v1257 = vunpack.c.l.b16 %v234
  %v1258 = vunpack.c.h.b16 %v234
  %v1259 = vunpack.c.l.b16 %v235
  %v1260 = vunpack.c.l.b16 %v236
  %v1261 = vunpack.c.h.b16 %v236
  %v1262 = vunpack.c.l.b16 %v237
  %v1263 = vunpack.c.l.b16 %v238
  %v1264 = vunpack.c.h.b16 %v238
  %v1265 = vunpack.c.l.b16 %v239
  %v1266 = vunpack.c.l.b16 %v240
  %v1267 = vunpack.c.h.b16 %v240
  %v1268 = vunpack.c.l.b16 %v241
  %v1269 = vunpack.c.l.b16 %v242
  %v1270 = vunpack.c.h.b16 %v242
  %v1271 = vunpack.c.l.b16 %v243
  %v1272 = vunpack.c.l.b16 %v244
  %v1273 = vunpack.c.h.b16 %v244
  %v1274 = vunpack.c.l.b16 %v245
  %v1275 = vunpack.c.l.b16 %v246
  %v1276 = vunpack.c.h.b16 %v246
  %v1277 = vunpack.c.l.b16 %v247
  %v1278 = vunpack.c.l.b16 %v248
  %v1279 = vunpack.c.h.b16 %v248
  %v1280 = vunpack.c.l.b16 %v249
  %v1281 = vunpack.c.l.b16 %v250
  %v1282 = vunpack.c.h.b16 %v250
  %v1283 = vunpack.c.l.b16 %v251
  %v1284 = vunpack.c.l.b16 %v252
  %v1285 = vunpack.c.h.b16 %v252
  %v1286 = vunpack.c.l.b16 %v253
  %v1287 = vunpack.c.l.b16 %v254
  %v1288 = vunpack.c.h.b16 %v254
  %v1289 = vunpack.c.l.b16 %v255
  %v1290 = vunpack.c.l.b16 %v256
  %v1291 = vunpack.c.h.b16 %v256
  %v1292 = vunpack.c.l.b16 %v257
  %v1293 = vunpack.c.l.b16 %v258
  %v1294 = vunpack.c.h.b16 %v258
  %v1295 = vunpack.c.l.b16 %v259
  %v1296 = vunpack.c.l.b16 %v260
  %v1297 = vunpack.c.h.b16 %v260
  %v1298 = vunpack.c.l.b16 %v261
  %v1299 = vunpack.c.l.b16 %v262
  %v1300 = vunpack.c.h.b16 %v262
  %v1301 = vunpack.c.l.b16 %v263
  %v1302 = vunpack.c.l.b16 %v264
  %v1303 = vunpack.c.h.b16 %v264
  %v1304 = vunpack.c.l.b16 %v265
  %v1305 = vunpack.c.l.b16 %v266
  %v1306 = vunpack.c.h.b16 %v266
  %v1307 = vunpack.c.l.b16 %v267
  %v1308 = vunpack.c.l.b16 %v268
  %v1309 = vunpack.c.h.b16 %v268
  %v1310 = vunpack.c.l.b16 %v269
  %v1311 = vunpack.c.l.b16 %v270
  %v1312 = vunpack.c.h.b16 %v270
  %v1313 = vunpack.c.l.b16 %v271
  %v1314 = vunpack.c.l.b16 %v272
  %v1315 = vunpack.c.h.b16 %v272
  %v1316 = vunpack.c.l.b16 %v273
  %v1317 = vunpack.c.l.b16 %v274
  %v1318 = vunpack.c.h.b16 %v274
  %v1319 = vunpack.c.l.b16 %v275
  %v1320 = vunpack.c.l.b16 %v276
  %v1321 = vunpack.c.h.b16 %v276
  %v1322 = vunpack.c.l.b16 %v277
  %v1323 = vunpack.c.l.b16 %v278
  %v1324 = vunpack.c.h.b16 %v278
  %v1325 = vunpack.c.l.b16 %v279
  %v1326 = vunpack.c.l.b16 %v280
  %v1327 = vunpack.c.h.b16 %v280
  %v1328 = vunpack.c.l.b16 %v281
  %v1329 = vunpack.c.l.b16 %v282
  %v1330 = vunpack.c.h.b16 %v282
  %v1331 = vunpack.c.l.b16 %v283
  %v1332 = vunpack.c.l.b16 %v284
  %v1333 = vunpack.c.h.b16 %v284
  %v1334 = vunpack.c.l.b16 %v285
  %v1335 = vunpack.c.l.b16 %v286
  %v1336 = vunpack.c.h.b16 %v286
  %v1337 = vunpack.c.l.b16 %v287
  %v1338 = vunpack.c.l.b16 %v288
  %v1339 = vunpack.c.h.b16 %v288
  %v1340 = vunpack.c.l.b16 %v289
  %v1341 = vunpack.c.l.b16 %v290
  %v1342 = vunpack.c.h.b16 %v290
  %v1343 = vunpack.c.l.b16 %v291
  %v1344 = vunpack.c.l.b16 %v292
  %v1345 = vunpack.c.h.b16 %v292
  %v1346 = vunpack.c.l.b16 %v293
  %v1347 = vunpack.c.l.b16 %v294
  %v1348 = vunpack.c.h.b16 %v294
  %v1349 = vunpack.c.l.b16 %v295
  %v1350 = vunpack.c.l.b16 %v296
  %v1351 = vunpack.c.h.b16 %v296
  %v1352 = vunpack.c.l.b16 %v297
  %v1353 = vunpack.c.l.b16 %v298
  %v1354 = vunpack.c.h.b16 %v298
  %v1355 = vunpack.c.l.b16 %v299
  %v1356 = vunpack.c.l.b16 %v300
  %v1357 = vunpack.c.h.b16 %v300
  %v1358 = vunpack.c.l.b16 %v301
  %v1359 = vunpack.c.l.b16 %v302
  %v1360 = vunpack.c.h.b16 %v302
  %v1361 = vunpack.c.l.b16 %v303
  %v1362 = vunpack.c.l.b16 %v304
  %v1363 = vunpack.c.h.b16 %v304
  %v1364 = vunpack.c.l.b16 %v305
  %v1365 = vunpack.c.l.b16 %v306
  %v1366 = vunpack.c.h.b16 %v306
  %v1367 = vunpack.c.l.b16 %v307
  %v1368 = vunpack.c.l.b16 %v308
  %v1369 = vunpack.c.h.b16 %v308
  %v1370 = vunpack.c.l.b16 %v309
  %v1371 = vunpack.c.l.b16 %v310
  %v1372 = vunpack.c.h.b16 %v310
  %v1373 = vunpack.c.l.b16 %v311
  %v1374 = vunpack.c.l.b16 %v312
  %v1375 = vunpack.c.h.b16 %v312
  %v1376 = vunpack.c.l.b16 %v313
  %v1377 = vunpack.c.l.b16 %v314
  %v1378 = vunpack.c.h.b16 %v314
  %v1379 = vunpack.c.l.b16 %v315
  %v1380 = vunpack.c.l.b16 %v316
  %v1381 = vunpack.c.h.b16 %v316
  %v1382 = vunpack.c.l.b16 %v317
  %v1383 = vunpack.c.l.b16 %v318
  %v1384 = vunpack.c.h.b16 %v318
  %v1385 = vunpack.c.l.b16 %v319
  %v1386 = vunpack.c.l.b16 %v320
  %v1387 = vunpack.c.h.b16 %v320
  %v1388 = vunpack.c.l.b16 %v321
  %v1389 = vunpack.c.l.b16 %v322
  %v1390 = vunpack.c.h.b16 %v322
  %v1391 = vunpack.c.l.b16 %v323
  %v1392 = vunpack.c.l.b16 %v324
  %v1393 = vunpack.c.h.b16 %v324
  %v1394 = vunpack.c.l.b16 %v325
  %v1395 = vunpack.c.l.b16 %v326
  %v1396 = vunpack.c.h.b16 %v326
  %v1397 = vunpack.c.l.b16 %v327
  %v1398 = vunpack.c.l.b16 %v328
  %v1399 = vunpack.c.h.b16 %v328
  %v1400 = vunpack.c.l.b16 %v329
  %v1401 = vunpack.c.l.b16 %v330
  %v1402 = vunpack.c.h.b16 %v330
  %v1403 = vunpack.c.l.b16 %v331
  %v1404 = vunpack.c.l.b16 %v332
  %v1405 = vunpack.c.h.b16 %v332
  %v1406 = vunpack.c.l.b16 %v333
  %v1407 = vunpack.c.l.b16 %v334
  %v1408 = vunpack.c.h.b16 %v334
  %v1409 = vunpack.c.l.b16 %v335
  %v1410 = vunpack.c.l.b16 %v336
  %v1411 = vunpack.c.h.b16 %v336
  %v1412 = vunpack.c.l.b16 %v337
  %v1413 = vunpack.c.l.b16 %v338
  %v1414 = vunpack.c.h.b16 %v338
  %v1415 = vunpack.c.l.b16 %v339
  %v1416 = vunpack.c.l.b16 %v340
  %v1417 = vunpack.c.h.b16 %v340
  %v1418 = vunpack.c.l.b16 %v341
  %v1419 = vunpack.c.l.b16 %v342
  %v1420 = vunpack.c.h.b16 %v342
  %v1421 = vunpack.c.l.b16 %v343
  %v1422 = vunpack.c.l.b16 %v344
  %v1423 = vunpack.c.h.b16 %v344
  %v1424 = vunpack.c.l.b16 %v345
  %v1425 = vunpack.c.l.b16 %v346
  %v1426 = vunpack.c.h.b16 %v346
  %v1427 = vunpack.c.l.b16 %v347
  %v1428 = vunpack.c.l.b16 %v348
  %v1429 = vunpack.c.h.b16 %v348
  %v1430 = vunpack.c.l.b16 %v349
  %v1431 = vunpack.c.l.b16 %v350
  %v1432 = vunpack.c.h.b16 %v350
  %v1433 = vunpack.c.l.b16 %v351
  %v1434 = vunpack.c.l.b16 %v352
  %v1435 = vunpack.c.h.b16 %v352
  %v1436 = vunpack.c.l.b16 %v353
  %v1437 = vunpack.c.l.b16 %v354
  %v1438 = vunpack.c.h.b16 %v354
  %v1439 = vunpack.c.l.b16 %v355
  %v1440 = vunpack.c.l.b16 %v356
  %v1441 = vunpack.c.h.b16 %v356
  %v1442 = vunpack.c.l.b16 %v357
  %v1443 = vunpack.c.l.b16 %v358
  %v1444 = vunpack.c.h.b16 %v358
  %v1445 = vunpack.c.l.b16 %v359
  %v1446 = vunpack.c.l.b16 %v360
  %v1447 = vunpack.c.h.b16 %v360
  %v1448 = vunpack.c.l.b16 %v361
  %v1449 = vunpack.c.l.b16 %v362
  %v1450 = vunpack.c.h.b16 %v362
  %v1451 = vunpack.c.l.b16 %v363
  %v1452 = vunpack.c.l.b16 %v364
  %v1453 = vunpack.c.h.b16 %v364
  %v1454 = vunpack.c.l.b16 %v365
  %v1455 = vunpack.c.l.b16 %v366
  %v1456 = vunpack.c.h.b16 %v366
  %v1457 = vunpack.c.l.b16 %v367
  %v1458 = vunpack.c.l.b16 %v368
  %v1459 = vunpack.c.h.b16 %v368
  %v1460 = vunpack.c.l.b16 %v369
  %v1461 = vunpack.c.l.b16 %v370
  %v1462 = vunpack.c.h.b16 %v370
  %v1463 = vunpack.c.l.b16 %v371
  %v1464 = vunpack.c.l.b16 %v372
  %v1465 = vunpack.c.h.b16 %v372
  %v1466 = vunpack.c.l.b16 %v373
  %v1467 = vunpack.c.l.b16 %v374
  %v1468 = vunpack.c.h.b16 %v374
  %v1469 = vunpack.c.l.b16 %v375
  %v1470 = vunpack.c.l.b16 %v376
  %v1471 = vunpack.c.h.b16 %v376
  %v1472 = vunpack.c.l.b16 %v377
  %v1473 = vunpack.c.l.b16 %v378
  %v1474 = vunpack.c.h.b16 %v378
  %v1475 = vunpack.c.l.b16 %v379
  %v1476 = vunpack.c.l.b16 %v380
  %v1477 = vunpack.c.h.b16 %v380
  %v1478 = vunpack.c.l.b16 %v381
  %v1479 = vunpack.c.l.b16 %v382
  %v1480 = vunpack.c.h.b16 %v382
  %v1481 = vunpack.c.l.b16 %v383
  %v1482 = vunpack.c.l.b16 %v384
  %v1483 = vunpack.c.h.b16 %v384
  %v1484 = vunpack.c.l.b16 %v385
  %v1485 = vunpack.c.l.b16 %v386
  %v1486 = vunpack.c.h.b16 %v386
  %v1487 = vunpack.c.l.b16 %v387
  %v1488 = vunpack.c.l.b16 %v388
  %v1489 = vunpack.c.h.b16 %v388
  %v1490 = vunpack.c.l.b16 %v389
  %v1491 = vunpack.c.l.b16 %v390
  %v1492 = vunpack.c.h.b16 %v390
  %v1493 = vunpack.c.l.b16 %v391
  %v1494 = vunpack.c.l.b16 %v392
  %v1495 = vunpack.c.h.b16 %v392
  %v1496 = vunpack.c.l.b16 %v393
  %v1497 = vunpack.c.l.b16 %v394
  %v1498 = vunpack.c.h.b16 %v394
  %v1499 = vunpack.c.l.b16 %v395
  %v1500 = vunpack.c.l.b16 %v396
  %v1501 = vunpack.c.h.b16 %v396
  %v1502 = vunpack.c.l.b16 %v397
  %v1503 = vunpack.c.l.b16 %v398
  %v1504 = vunpack.c.h.b16 %v398
  %v1505 = vunpack.c.l.b16 %v399
  %v1506 = vunpack.c.l.b16 %v400
  %v1507 = vunpack.c.h.b16 %v400
  %v1508 = vunpack.c.l.b16 %v401
  %v1509 = vunpack.c.l.b16 %v402
  %v1510 = vunpack.c.h.b16 %v402
  %v1511 = vunpack.c.l.b16 %v403
  %v1512 = vunpack.c.l.b16 %v404
  %v1513 = vunpack.c.h.b16 %v404
  %v1514 = vunpack.c.l.b16 %v405
  %v1515 = vunpack.c.l.b16 %v406
  %v1516 = vunpack.c.h.b16 %v406
  %v1517 = vunpack.c.l.b16 %v407
  %v1518 = vunpack.c.l.b16 %v408
  %v1519 = vunpack.c.h.b16 %v408
  %v1520 = vunpack.c.l.b16 %v409
  %v1521 = vunpack.c.l.b16 %v410
  %v1522 = vunpack.c.h.b16 %v410
  %v1523 = vunpack.c.l.b16 %v411
  %v1524 = vunpack.c.l.b16 %v412
  %v1525 = vunpack.c.h.b16 %v412
  %v1526 = vunpack.c.l.b16 %v413
  %v1527 = vunpack.c.l.b16 %v414
  %v1528 = vunpack.c.h.b16 %v414
  %v1529 = vunpack.c.l.b16 %v415
  %v1530 = vunpack.c.l.b16 %v416
  %v1531 = vunpack.c.h.b16 %v416
  %v1532 = vunpack.c.l.b16 %v417
  %v1533 = vunpack.c.l.b16 %v418
  %v1534 = vunpack.c.h.b16 %v418
  %v1535 = vunpack.c.l.b16 %v419
  %v1536 = vunpack.c.l.b16 %v420
  %v1537 = vunpack.c.h.b16 %v420
  %v1538 = vunpack.c.l.b16 %v421
  %v1539 = vunpack.c.l.b16 %v422
  %v1540 = vunpack.c.h.b16 %v422
  %v1541 = vunpack.c.l.b16 %v423
  %v1542 = vunpack.c.l.b16 %v424
  %v1543 = vunpack.c.h.b16 %v424
  %v1544 = vunpack.c.l.b16 %v425
  %v1545 = vunpack.c.l.b16 %v426
  %v1546 = vunpack.c.h.b16 %v426
  %v1547 = vunpack.c.l.b16 %v427
  %v1548 = vunpack.c.l.b16 %v428
  %v1549 = vunpack.c.h.b16 %v428
  %v1550 = vunpack.c.l.b16 %v429
  %v1551 = vunpack.c.l.b16 %v430
  %v1552 = vunpack.c.h.b16 %v430
  %v1553 = vunpack.c.l.b16 %v431
  %v1554 = vunpack.c.l.b16 %v432
  %v1555 = vunpack.c.h.b16 %v432
  %v1556 = vunpack.c.l.b16 %v433
  %v1557 = vunpack.c.l.b16 %v434
  %v1558 = vunpack.c.h.b16 %v434
  %v1559 = vunpack.c.l.b16 %v435
  %v1560 = vunpack.c.l.b16 %v436
  %v1561 = vunpack.c.h.b16 %v436
  %v1562 = vunpack.c.l.b16 %v437
  %v1563 = vunpack.c.l.b16 %v438
  %v1564 = vunpack.c.h.b16 %v438
  %v1565 = vunpack.c.l.b16 %v439
  %v1566 = vunpack.c.l.b16 %v440
  %v1567 = vunpack.c.h.b16 %v440
  %v1568 = vunpack.c.l.b16 %v441
  %v1569 = vunpack.c.l.b16 %v442
  %v1570 = vunpack.c.h.b16 %v442
  %v1571 = vunpack.c.l.b16 %v443
  %v1572 = vunpack.c.l.b16 %v444
  %v1573 = vunpack.c.h.b16 %v444
  %v1574 = vunpack.c.l.b16 %v445
  %v1575 = vunpack.c.l.b16 %v446
  %v1576 = vunpack.c.h.b16 %v446
  %v1577 = vunpack.c.l.b16 %v447
  %v1578 = vpack.c.b16 %v942, %v939
  %v1579 = vpack.c.b16 %v943, %v940
  %v1580 = vpack.c.b16 %v944, %v941
  %v1581 = vpack.c.b16 %v948, %v945
  %v1582 = vpack.c.b16 %v949, %v946
  %v1583 = vpack.c.b16 %v950, %v947
  %v1584 = vpack.c.b16 %v954, %v951
  %v1585 = vpack.c.b16 %v955, %v952
  %v1586 = vpack.c.b16 %v956, %v953
  %v1587 = vpack.c.b16 %v960, %v957
  %v1588 = vpack.c.b16 %v961, %v958
  %v1589 = vpack.c.b16 %v962, %v959
  %v1590 = vpack.c.b16 %v966, %v963
  %v1591 = vpack.c.b16 %v967, %v964
  %v1592 = vpack.c.b16 %v968, %v965
  %v1593 = vpack.c.b16 %v972, %v969
  %v1594 = vpack.c.b16 %v973, %v970
  %v1595 = vpack.c.b16 %v974, %v971
  %v1596 = vpack.c.b16 %v978, %v975
  %v1597 = vpack.c.b16 %v979, %v976
  %v1598 = vpack.c.b16 %v980, %v977
  %v1599 = vpack.c.b16 %v984, %v981
  %v1600 = vpack.c.b16 %v985, %v982
  %v1601 = vpack.c.b16 %v986, %v983
  %v1602 = vpack.c.b16 %v990, %v987
  %v1603 = vpack.c.b16 %v991, %v988
  %v1604 = vpack.c.b16 %v992, %v989
  %v1605 = vpack.c.b16 %v996, %v993
  %v1606 = vpack.c.b16 %v997, %v994
  %v1607 = vpack.c.b16 %v998, %v995
  %v1608 = vpack.c.b16 %v1002, %v999
  %v1609 = vpack.c.b16 %v1003, %v1000
  %v1610 = vpack.c.b16 %v1004, %v1001
  %v1611 = vpack.c.b16 %v1008, %v1005
  %v1612 = vpack.c.b16 %v1009, %v1006
  %v1613 = vpack.c.b16 %v1010, %v1007
  %v1614 = vpack.c.b16 %v1014, %v1011
  %v1615 = vpack.c.b16 %v1015, %v1012
  %v1616 = vpack.c.b16 %v1016, %v1013
  %v1617 = vpack.c.b16 %v1020, %v1017
  %v1618 = vpack.c.b16 %v1021, %v1018
  %v1619 = vpack.c.b16 %v1022, %v1019
  %v1620 = vpack.c.b16 %v1026, %v1023
  %v1621 = vpack.c.b16 %v1027, %v1024
  %v1622 = vpack.c.b16 %v1028, %v1025
  %v1623 = vpack.c.b16 %v1032, %v1029
  %v1624 = vpack.c.b16 %v1033, %v1030
  %v1625 = vpack.c.b16 %v1034, %v1031
  %v1626 = vpack.c.b16 %v1038, %v1035
  %v1627 = vpack.c.b16 %v1039, %v1036
  %v1628 = vpack.c.b16 %v1040, %v1037
  %v1629 = vpack.c.b16 %v1044, %v1041
  %v1630 = vpack.c.b16 %v1045, %v1042
  %v1631 = vpack.c.b16 %v1046, %v1043
  %v1632 = vpack.c.b16 %v1050, %v1047
  %v1633 = vpack.c.b16 %v1051, %v1048
  %v1634 = vpack.c.b16 %v1052, %v1049
  %v1635 = vpack.c.b16 %v1056, %v1053
  %v1636 = vpack.c.b16 %v1057, %v1054
  %v1637 = vpack.c.b16 %v1058, %v1055
  %v1638 = vpack.c.b16 %v1062, %v1059
  %v1639 = vpack.c.b16 %v1063, %v1060
  %v1640 = vpack.c.b16 %v1064, %v1061
  %v1641 = vpack.c.b16 %v1068, %v1065
  %v1642 = vpack.c.b16 %v1069, %v1066
  %v1643 = vpack.c.b16 %v1070, %v1067
  %v1644 = vpack.c.b16 %v1074, %v1071
  %v1645 = vpack.c.b16 %v1075, %v1072
  %v1646 = vpack.c.b16 %v1076, %v1073
  %v1647 = vpack.c.b16 %v1080, %v1077
  %v1648 = vpack.c.b16 %v1081, %v1078
  %v1649 = vpack.c.b16 %v1082, %v1079
  %v1650 = vpack.c.b16 %v1086, %v1083
  %v1651 = vpack.c.b16 %v1087, %v1084
  %v1652 = vpack.c.b16 %v1088, %v1085
  %v1653 = vpack.c.b16 %v1092, %v1089
  %v1654 = vpack.c.b16 %v1093, %v1090
  %v1655 = vpack.c.b16 %v1094, %v1091
  %v1656 = vpack.c.b16 %v1098, %v1095
  %v1657 = vpack.c.b16 %v1099, %v1096
  %v1658 = vpack.c.b16 %v1100, %v1097
  %v1659 = vpack.c.b16 %v1104, %v1101
  %v1660 = vpack.c.b16 %v1105, %v1102
  %v1661 = vpack.c.b16 %v1106, %v1103
  %v1662 = vpack.c.b16 %v1110, %v1107
  %v1663 = vpack.c.b16 %v1111, %v1108
  %v1664 = vpack.c.b16 %v1112, %v1109
  %v1665 = vpack.c.b16 %v1116, %v1113
  %v1666 = vpack.c.b16 %v1117, %v1114
  %v1667 = vpack.c.b16 %v1118, %v1115
  %v1668 = vpack.c.b16 %v1122, %v1119
  %v1669 = vpack.c.b16 %v1123, %v1120
  %v1670 = vpack.c.b16 %v1124, %v1121
  %v1671 = vpack.c.b16 %v1128, %v1125
  %v1672 = vpack.c.b16 %v1129, %v1126
  %v1673 = vpack.c.b16 %v1130, %v1127
  %v1674 = vpack.c.b16 %v1134, %v1131
  %v1675 = vpack.c.b16 %v1135, %v1132
  %v1676 = vpack.c.b16 %v1136, %v1133
  %v1677 = vpack.c.b16 %v1140, %v1137
  %v1678 = vpack.c.b16 %v1141, %v1138
  %v1679 = vpack.c.b16 %v1142, %v1139
  %v1680 = vpack.c.b16 %v1146, %v1143
  %v1681 = vpack.c.b16 %v1147, %v1144
  %v1682 = vpack.c.b16 %v1148, %v1145
  %v1683 = vpack.c.b16 %v1152, %v1149
  %v1684 = vpack.c.b16 %v1153, %v1150
  %v1685 = vpack.c.b16 %v1154, %v1151
  %v1686 = vpack.c.b16 %v1158, %v1155
  %v1687 = vpack.c.b16 %v1159, %v1156
  %v1688 = vpack.c.b16 %v1160, %v1157
  %v1689 = vpack.c.b16 %v1164, %v1161
  %v1690 = vpack.c.b16 %v1165, %v1162
  %v1691 = vpack.c.b16 %v1166, %v1163
  %v1692 = vpack.c.b16 %v1170, %v1167
  %v1693 = vpack.c.b16 %v1171, %v1168
  %v1694 = vpack.c.b16 %v1172, %v1169
  %v1695 = vpack.c.b16 %v1176, %v1173
  %v1696 = vpack.c.b16 %v1177, %v1174
  %v1697 = vpack.c.b16 %v1178, %v1175
  %v1698 = vpack.c.b16 %v1182, %v1179
  %v1699 = vpack.c.b16 %v1183, %v1180
  %v1700 = vpack.c.b16 %v1184, %v1181
  %v1701 = vpack.c.b16 %v1188, %v1185
  %v1702 = vpack.c.b16 %v1189, %v1186
  %v1703 = vpack.c.b16 %v1190, %v1187
  %v1704 = vpack.c.b16 %v1194, %v1191
  %v1705 = vpack.c.b16 %v1195, %v1192
  %v1706 = vpack.c.b16 %v1196, %v1193
  %v1707 = vpack.c.b16 %v1200, %v1197
  %v1708 = vpack.c.b16 %v1201, %v1198
  %v1709 = vpack.c.b16 %v1202, %v1199
  %v1710 = vpack.c.b16 %v1206, %v1203
  %v1711 = vpack.c.b16 %v1207, %v1204
  %v1712 = vpack.c.b16 %v1208, %v1205
  %v1713 = vpack.c.b16 %v1212, %v1209
  %v1714 = vpack.c.b16 %v1213, %v1210
  %v1715 = vpack.c.b16 %v1214, %v1211
  %v1716 = vpack.c.b16 %v1218, %v1215
  %v1717 = vpack.c.b16 %v1219, %v1216
  %v1718 = vpack.c.b16 %v1220, %v1217
  %v1719 = vpack.c.b16 %v1224, %v1221
  %v1720 = vpack.c.b16 %v1225, %v1222
  %v1721 = vpack.c.b16 %v1226, %v1223
  %v1722 = vpack.c.b16 %v1230, %v1227
  %v1723 = vpack.c.b16 %v1231, %v1228
  %v1724 = vpack.c.b16 %v1232, %v1229
  %v1725 = vpack.c.b16 %v1236, %v1233
  %v1726 = vpack.c.b16 %v1237, %v1234
  %v1727 = vpack.c.b16 %v1238, %v1235
  %v1728 = vpack.c.b16 %v1242, %v1239
  %v1729 = vpack.c.b16 %v1243, %v1240
  %v1730 = vpack.c.b16 %v1244, %v1241
  %v1731 = vpack.c.b16 %v1248, %v1245
  %v1732 = vpack.c.b16 %v1249, %v1246
  %v1733 = vpack.c.b16 %v1250, %v1247
  %v1734 = vpack.c.b16 %v1254, %v1251
  %v1735 = vpack.c.b16 %v1255, %v1252
  %v1736 = vpack.c.b16 %v1256, %v1253
  %v1737 = vpack.c.b16 %v1260, %v1257
  %v1738 = vpack.c.b16 %v1261, %v1258
  %v1739 = vpack.c.b16 %v1262, %v1259
  %v1740 = vpack.c.b16 %v1266, %v1263
  %v1741 = vpack.c.b16 %v1267, %v1264
  %v1742 = vpack.c.b16 %v1268, %v1265
  %v1743 = vpack.c.b16 %v1272, %v1269
  %v1744 = vpack.c.b16 %v1273, %v1270
  %v1745 = vpack.c.b16 %v1274, %v1271
  %v1746 = vpack.c.b16 %v1278, %v1275
  %v1747 = vpack.c.b16 %v1279, %v1276
  %v1748 = vpack.c.b16 %v1280, %v1277
  %v1749 = vpack.c.b16 %v1284, %v1281
  %v1750 = vpack.c.b16 %v1285, %v1282
  %v1751 = vpack.c.b16 %v1286, %v1283
  %v1752 = vpack.c.b16 %v1290, %v1287
  %v1753 = vpack.c.b16 %v1291, %v1288
  %v1754 = vpack.c.b16 %v1292, %v1289
  %v1755 = vpack.c.b16 %v1296, %v1293
  %v1756 = vpack.c.b16 %v1297, %v1294
  %v1757 = vpack.c.b16 %v1298, %v1295
  %v1758 = vpack.c.b16 %v1302, %v1299
  %v1759 = vpack.c.b16 %v1303, %v1300
  %v1760 = vpack.c.b16 %v1304, %v1301
  %v1761 = vpack.c.b16 %v1308, %v1305
  %v1762 = vpack.c.b16 %v1309, %v1306
  %v1763 = vpack.c.b16 %v1310, %v1307
  %v1764 = vpack.c.b16 %v1314, %v1311
  %v1765 = vpack.c.b16 %v1315, %v1312
  %v1766 = vpack.c.b16 %v1316, %v1313
  %v1767 = vpack.c.b16 %v1320, %v1317
  %v1768 = vpack.c.b16 %v1321, %v1318
  %v1769 = vpack.c.b16 %v1322, %v1319
  %v1770 = vpack.c.b16 %v1326, %v1323
  %v1771 = vpack.c.b16 %v1327, %v1324
  %v1772 = vpack.c.b16 %v1328, %v1325
  %v1773 = vpack.c.b16 %v1332, %v1329
  %v1774 = vpack.c.b16 %v1333, %v1330
  %v1775 = vpack.c.b16 %v1334, %v1331
  %v1776 = vpack.c.b16 %v1338, %v1335
  %v1777 = vpack.c.b16 %v1339, %v1336
  %v1778 = vpack.c.b16 %v1340, %v1337
  %v1779 = vpack.c.b16 %v1344, %v1341
  %v1780 = vpack.c.b16 %v1345, %v1342
  %v1781 = vpack.c.b16 %v1346, %v1343
  %v1782 = vpack.c.b16 %v1350, %v1347
  %v1783 = vpack.c.b16 %v1351, %v1348
  %v1784 = vpack.c.b16 %v1352, %v1349
  %v1785 = vpack.c.b16 %v1356, %v1353
  %v1786 = vpack.c.b16 %v1357, %v1354
  %v1787 = vpack.c.b16 %v1358, %v1355
  %v1788 = vpack.c.b16 %v1362, %v1359
  %v1789 = vpack.c.b16 %v1363, %v1360
  %v1790 = vpack.c.b16 %v1364, %v1361
  %v1791 = vpack.c.b16 %v1368, %v1365
  %v1792 = vpack.c.b16 %v1369, %v1366
  %v1793 = vpack.c.b16 %v1370, %v1367
  %v1794 = vpack.c.b16 %v1374, %v1371
  %v1795 = vpack.c.b16 %v1375, %v1372
  %v1796 = vpack.c.b16 %v1376, %v1373
  %v1797 = vpack.c.b16 %v1380, %v1377
  %v1798 = vpack.c.b16 %v1381, %v1378
  %v1799 = vpack.c.b16 %v1382, %v1379
  %v1800 = vpack.c.b16 %v1386, %v1383
  %v1801 = vpack.c.b16 %v1387, %v1384
  %v1802 = vpack.c.b16 %v1388, %v1385
  %v1803 = vpack.c.b16 %v1392, %v1389
  %v1804 = vpack.c.b16 %v1393, %v1390
  %v1805 = vpack.c.b16 %v1394, %v1391
  %v1806 = vpack.c.b16 %v1398, %v1395
  %v1807 = vpack.c.b16 %v1399, %v1396
  %v1808 = vpack.c.b16 %v1400, %v1397
  %v1809 = vpack.c.b16 %v1404, %v1401
  %v1810 = vpack.c.b16 %v1405, %v1402
  %v1811 = vpack.c.b16 %v1406, %v1403
  %v1812 = vpack.c.b16 %v1410, %v1407
  %v1813 = vpack.c.b16 %v1411, %v1408
  %v1814 = vpack.c.b16 %v1412, %v1409
  %v1815 = vpack.c.b16 %v1416, %v1413
  %v1816 = vpack.c.b16 %v1417, %v1414
  %v1817 = vpack.c.b16 %v1418, %v1415
  %v1818 = vpack.c.b16 %v1422, %v1419
  %v1819 = vpack.c.b16 %v1423, %v1420
  %v1820 = vpack.c.b16 %v1424, %v1421
  %v1821 = vpack.c.b16 %v1428, %v1425
  %v1822 = vpack.c.b16 %v1429, %v1426
  %v1823 = vpack.c.b16 %v1430, %v1427
  %v1824 = vpack.c.b16 %v1434, %v1431
  %v1825 = vpack.c.b16 %v1435, %v1432
  %v1826 = vpack.c.b16 %v1436, %v1433
  %v1827 = vpack.c.b16 %v1440, %v1437
  %v1828 = vpack.c.b16 %v1441, %v1438
  %v1829 = vpack.c.b16 %v1442, %v1439
  %v1830 = vpack.c.b16 %v1446, %v1443
  %v1831 = vpack.c.b16 %v1447, %v1444
  %v1832 = vpack.c.b16 %v1448, %v1445
  %v1833 = vpack.c.b16 %v1452, %v1449
  %v1834 = vpack.c.b16 %v1453, %v1450
  %v1835 = vpack.c.b16 %v1454, %v1451
  %v1836 = vpack.c.b16 %v1458, %v1455
  %v1837 = vpack.c.b16 %v1459, %v1456
  %v1838 = vpack.c.b16 %v1460, %v1457
  %v1839 = vpack.c.b16 %v1464, %v1461
  %v1840 = vpack.c.b16 %v1465, %v1462
  %v1841 = vpack.c.b16 %v1466, %v1463
  %v1842 = vpack.c.b16 %v1470, %v1467
  %v1843 = vpack.c.b16 %v1471, %v1468
  %v1844 = vpack.c.b16 %v1472, %v1469
  %v1845 = vpack.c.b16 %v1476, %v1473
  %v1846 = vpack.c.b16 %v1477, %v1474
  %v1847 = vpack.c.b16 %v1478, %v1475
  %v1848 = vpack.c.b16 %v1482, %v1479
  %v1849 = vpack.c.b16 %v1483, %v1480
  %v1850 = vpack.c.b16 %v1484, %v1481
  %v1851 = vpack.c.b16 %v1488, %v1485
  %v1852 = vpack.c.b16 %v1489, %v1486
  %v1853 = vpack.c.b16 %v1490, %v1487
  %v1854 = vpack.c.b16 %v1494, %v1491
  %v1855 = vpack.c.b16 %v1495, %v1492
  %v1856 = vpack.c.b16 %v1496, %v1493
  %v1857 = vpack.c.b16 %v1500, %v1497
  %v1858 = vpack.c.b16 %v1501, %v1498
  %v1859 = vpack.c.b16 %v1502, %v1499
  %v1860 = vpack.c.b16 %v1506, %v1503
  %v1861 = vpack.c.b16 %v1507, %v1504
  %v1862 = vpack.c.b16 %v1508, %v1505
  %v1863 = vpack.c.b16 %v1512, %v1509
  %v1864 = vpack.c.b16 %v1513, %v1510
  %v1865 = vpack.c.b16 %v1514, %v1511
  %v1866 = vpack.c.b16 %v1518, %v1515
  %v1867 = vpack.c.b16 %v1519, %v1516
  %v1868 = vpack.c.b16 %v1520, %v1517
  %v1869 = vpack.c.b16 %v1524, %v1521
  %v1870 = vpack.c.b16 %v1525, %v1522
  %v1871 = vpack.c.b16 %v1526, %v1523
  %v1872 = vpack.c.b16 %v1530, %v1527
  %v1873 = vpack.c.b16 %v1531, %v1528
  %v1874 = vpack.c.b16 %v1532, %v1529
  %v1875 = vpack.c.b16 %v1536, %v1533
  %v1876 = vpack.c.b16 %v1537, %v1534
  %v1877 = vpack.c.b16 %v1538, %v1535
  %v1878 = vpack.c.b16 %v1542, %v1539
  %v1879 = vpack.c.b16 %v1543, %v1540
  %v1880 = vpack.c.b16 %v1544, %v1541
  %v1881 = vpack.c.b16 %v1548, %v1545
  %v1882 = vpack.c.b16 %v1549, %v1546
  %v1883 = vpack.c.b16 %v1550, %v1547
  %v1884 = vpack.c.b16 %v1554, %v1551
  %v1885 = vpack.c.b16 %v1555, %v1552
  %v1886 = vpack.c.b16 %v1556, %v1553
  %v1887 = vpack.c.b16 %v1560, %v1557
  %v1888 = vpack.c.b16 %v1561, %v1558
  %v1889 = vpack.c.b16 %v1562, %v1559
  %v1890 = vpack.c.b16 %v1566, %v1563
  %v1891 = vpack.c.b16 %v1567, %v1564
  %v1892 = vpack.c.b16 %v1568, %v1565
  %v1893 = vpack.c.b16 %v1572, %v1569
  %v1894 = vpack.c.b16 %v1573, %v1570
  %v1895 = vpack.c.b16 %v1574, %v1571
  %v1896 = vpack.c.b16 %v1575, %v1575
  %v1897 = vpack.c.b16 %v1576, %v1576
  %v1898 = vpack.c.b16 %v1577, %v1577
  %vm2217 = vcmask 302080
  %v2219 = vsel %vm2217, %v499, 0
  %vm2221 = vcmask 1041408
  %vm2222 = vcmask 1042432
  %v2223 = vsel %vm2221, 4294967295, 65535
  %v2224 = vsel %vm2222, %v2223, 0
  %v2226 = vand.u32 %v1896, %v2224
  %v2229 = vand.u32 %v1897, %v2224
  %v2232 = vand.u32 %v1898, %v2224
  %2234 = vmatprep.subr.bf16.mxu0 %v1579
  %2235 = vmatpush1.bf16.msra.mxu0 %v1578
  %2236 = vmatprep.subr.bf16.mxu0 %v1582
  %2237 = vmatpush1.bf16.msra.mxu0 %v1581
  %2238 = vmatprep.subr.bf16.mxu0 %v1585
  %2239 = vmatpush1.bf16.msra.mxu0 %v1584
  %2240 = vmatprep.subr.bf16.mxu0 %v1588
  %2241 = vmatpush1.bf16.msra.mxu0 %v1587
  %2242 = vmatprep.subr.bf16.mxu0 %v1591
  %2243 = vmatpush1.bf16.msra.mxu0 %v1590
  %2244 = vmatprep.subr.bf16.mxu0 %v1594
  %2245 = vmatpush1.bf16.msra.mxu0 %v1593
  %2246 = vmatprep.subr.bf16.mxu0 %v1597
  %2247 = vmatpush1.bf16.msra.mxu0 %v1596
  %2248 = vmatprep.subr.bf16.mxu0 %v1600
  %2249 = vmatpush1.bf16.msra.mxu0 %v1599
  %2250 = vmatprep.subr.bf16.mxu0 %v1603
  %2251 = vmatpush1.bf16.msra.mxu0 %v1602
  %2252 = vmatprep.subr.bf16.mxu0 %v1606
  %2253 = vmatpush1.bf16.msra.mxu0 %v1605
  %2254 = vmatprep.subr.bf16.mxu0 %v1609
  %2255 = vmatpush1.bf16.msra.mxu0 %v1608
  %2256 = vmatprep.subr.bf16.mxu0 %v1612
  %2257 = vmatpush1.bf16.msra.mxu0 %v1611
  %2258 = vmatprep.subr.bf16.mxu0 %v1615
  %2259 = vmatpush1.bf16.msra.mxu0 %v1614
  %2260 = vmatprep.subr.bf16.mxu0 %v1618
  %2261 = vmatpush1.bf16.msra.mxu0 %v1617
  %2262 = vmatprep.subr.bf16.mxu0 %v1621
  %2263 = vmatpush1.bf16.msra.mxu0 %v1620
  %2264 = vmatprep.subr.bf16.mxu0 %v1624
  %2265 = vmatpush1.bf16.msra.mxu0 %v1623
  %2266 = vmatprep.mubr.bf16.mxu0 %v487
  %2267 = vmatmul.mubr.bf16.gmra.mrb[0].mxu0 %v486
  %v2268 = vpop.f32.mrb[0].mxu0
  %v2269 = vadd.f32 %v453, %v2268
  %v2270 = vpop.f32.mrb[0].mxu0
  %v2271 = vadd.f32 %v457, %v2270
  %v2272 = vpop.f32.mrb[0].mxu0
  %v2273 = vpop.f32.mrb[0].mxu0
  %2274 = vdwg.mxu0
  %2275 = vmatprep.subr.bf16.mxu0 %v1627
  %2276 = vmatpush1.bf16.msra.mxu0 %v1626
  %2277 = vmatprep.subr.bf16.mxu0 %v1630
  %2278 = vmatpush1.bf16.msra.mxu0 %v1629
  %2279 = vmatprep.subr.bf16.mxu0 %v1633
  %2280 = vmatpush1.bf16.msra.mxu0 %v1632
  %2281 = vmatprep.subr.bf16.mxu0 %v1636
  %2282 = vmatpush1.bf16.msra.mxu0 %v1635
  %2283 = vmatprep.subr.bf16.mxu0 %v1639
  %2284 = vmatpush1.bf16.msra.mxu0 %v1638
  %2285 = vmatprep.subr.bf16.mxu0 %v1642
  %2286 = vmatpush1.bf16.msra.mxu0 %v1641
  %2287 = vmatprep.subr.bf16.mxu0 %v1645
  %2288 = vmatpush1.bf16.msra.mxu0 %v1644
  %2289 = vmatprep.subr.bf16.mxu0 %v1648
  %2290 = vmatpush1.bf16.msra.mxu0 %v1647
  %2291 = vmatprep.subr.bf16.mxu0 %v1651
  %2292 = vmatpush1.bf16.msra.mxu0 %v1650
  %2293 = vmatprep.subr.bf16.mxu0 %v1654
  %2294 = vmatpush1.bf16.msra.mxu0 %v1653
  %2295 = vmatprep.subr.bf16.mxu0 %v1657
  %2296 = vmatpush1.bf16.msra.mxu0 %v1656
  %2297 = vmatprep.subr.bf16.mxu0 %v1660
  %2298 = vmatpush1.bf16.msra.mxu0 %v1659
  %2299 = vmatprep.subr.bf16.mxu0 %v1663
  %2300 = vmatpush1.bf16.msra.mxu0 %v1662
  %2301 = vmatprep.subr.bf16.mxu0 %v1666
  %2302 = vmatpush1.bf16.msra.mxu0 %v1665
  %2303 = vmatprep.subr.bf16.mxu0 %v1669
  %2304 = vmatpush1.bf16.msra.mxu0 %v1668
  %2305 = vmatprep.subr.bf16.mxu0 %v1672
  %2306 = vmatpush1.bf16.msra.mxu0 %v1671
  %2307 = vmatprep.mubr.bf16.mxu0 %v489
  %2308 = vmatmul.mubr.bf16.gmra.mrb[0].mxu0 %v488
  %v2309 = vpop.f32.mrb[0].mxu0
  %v2310 = vadd.f32 %v2269, %v2309
  %v2311 = vpop.f32.mrb[0].mxu0
  %v2312 = vadd.f32 %v2271, %v2311
  %v2313 = vpop.f32.mrb[0].mxu0
  %v2314 = vpop.f32.mrb[0].mxu0
  %2315 = vdwg.mxu0
  %2316 = vmatprep.subr.bf16.mxu0 %v1675
  %2317 = vmatpush1.bf16.msra.mxu0 %v1674
  %2318 = vmatprep.subr.bf16.mxu0 %v1678
  %2319 = vmatpush1.bf16.msra.mxu0 %v1677
  %2320 = vmatprep.subr.bf16.mxu0 %v1681
  %2321 = vmatpush1.bf16.msra.mxu0 %v1680
  %2322 = vmatprep.subr.bf16.mxu0 %v1684
  %2323 = vmatpush1.bf16.msra.mxu0 %v1683
  %2324 = vmatprep.subr.bf16.mxu0 %v1687
  %2325 = vmatpush1.bf16.msra.mxu0 %v1686
  %2326 = vmatprep.subr.bf16.mxu0 %v1690
  %2327 = vmatpush1.bf16.msra.mxu0 %v1689
  %2328 = vmatprep.subr.bf16.mxu0 %v1693
  %2329 = vmatpush1.bf16.msra.mxu0 %v1692
  %2330 = vmatprep.subr.bf16.mxu0 %v1696
  %2331 = vmatpush1.bf16.msra.mxu0 %v1695
  %2332 = vmatprep.subr.bf16.mxu0 %v1699
  %2333 = vmatpush1.bf16.msra.mxu0 %v1698
  %2334 = vmatprep.subr.bf16.mxu0 %v1702
  %2335 = vmatpush1.bf16.msra.mxu0 %v1701
  %2336 = vmatprep.subr.bf16.mxu0 %v1705
  %2337 = vmatpush1.bf16.msra.mxu0 %v1704
  %2338 = vmatprep.subr.bf16.mxu0 %v1708
  %2339 = vmatpush1.bf16.msra.mxu0 %v1707
  %2340 = vmatprep.subr.bf16.mxu0 %v1711
  %2341 = vmatpush1.bf16.msra.mxu0 %v1710
  %2342 = vmatprep.subr.bf16.mxu0 %v1714
  %2343 = vmatpush1.bf16.msra.mxu0 %v1713
  %2344 = vmatprep.subr.bf16.mxu0 %v1717
  %2345 = vmatpush1.bf16.msra.mxu0 %v1716
  %2346 = vmatprep.subr.bf16.mxu0 %v1720
  %2347 = vmatpush1.bf16.msra.mxu0 %v1719
  %2348 = vmatprep.mubr.bf16.mxu0 %v491
  %2349 = vmatmul.mubr.bf16.gmra.mrb[0].mxu0 %v490
  %v2350 = vpop.f32.mrb[0].mxu0
  %v2351 = vadd.f32 %v2310, %v2350
  %v2352 = vpop.f32.mrb[0].mxu0
  %v2353 = vadd.f32 %v2312, %v2352
  %v2354 = vpop.f32.mrb[0].mxu0
  %v2355 = vpop.f32.mrb[0].mxu0
  %2356 = vdwg.mxu0
  %2357 = vmatprep.subr.bf16.mxu0 %v1723
  %2358 = vmatpush1.bf16.msra.mxu0 %v1722
  %2359 = vmatprep.subr.bf16.mxu0 %v1726
  %2360 = vmatpush1.bf16.msra.mxu0 %v1725
  %2361 = vmatprep.subr.bf16.mxu0 %v1729
  %2362 = vmatpush1.bf16.msra.mxu0 %v1728
  %2363 = vmatprep.subr.bf16.mxu0 %v1732
  %2364 = vmatpush1.bf16.msra.mxu0 %v1731
  %2365 = vmatprep.subr.bf16.mxu0 %v1735
  %2366 = vmatpush1.bf16.msra.mxu0 %v1734
  %2367 = vmatprep.subr.bf16.mxu0 %v1738
  %2368 = vmatpush1.bf16.msra.mxu0 %v1737
  %2369 = vmatprep.subr.bf16.mxu0 %v1741
  %2370 = vmatpush1.bf16.msra.mxu0 %v1740
  %2371 = vmatprep.subr.bf16.mxu0 %v1744
  %2372 = vmatpush1.bf16.msra.mxu0 %v1743
  %2373 = vmatprep.subr.bf16.mxu0 %v1747
  %2374 = vmatpush1.bf16.msra.mxu0 %v1746
  %2375 = vmatprep.subr.bf16.mxu0 %v1750
  %2376 = vmatpush1.bf16.msra.mxu0 %v1749
  %2377 = vmatprep.subr.bf16.mxu0 %v1753
  %2378 = vmatpush1.bf16.msra.mxu0 %v1752
  %2379 = vmatprep.subr.bf16.mxu0 %v1756
  %2380 = vmatpush1.bf16.msra.mxu0 %v1755
  %2381 = vmatprep.subr.bf16.mxu0 %v1759
  %2382 = vmatpush1.bf16.msra.mxu0 %v1758
  %2383 = vmatprep.subr.bf16.mxu0 %v1762
  %2384 = vmatpush1.bf16.msra.mxu0 %v1761
  %2385 = vmatprep.subr.bf16.mxu0 %v1765
  %2386 = vmatpush1.bf16.msra.mxu0 %v1764
  %2387 = vmatprep.subr.bf16.mxu0 %v1768
  %2388 = vmatpush1.bf16.msra.mxu0 %v1767
  %2389 = vmatprep.mubr.bf16.mxu0 %v493
  %2390 = vmatmul.mubr.bf16.gmra.mrb[0].mxu0 %v492
  %v2391 = vpop.f32.mrb[0].mxu0
  %v2392 = vadd.f32 %v2351, %v2391
  %v2393 = vpop.f32.mrb[0].mxu0
  %v2394 = vadd.f32 %v2353, %v2393
  %v2395 = vpop.f32.mrb[0].mxu0
  %v2396 = vpop.f32.mrb[0].mxu0
  %2397 = vdwg.mxu0
  %2398 = vmatprep.subr.bf16.mxu0 %v1771
  %2399 = vmatpush1.bf16.msra.mxu0 %v1770
  %2400 = vmatprep.subr.bf16.mxu0 %v1774
  %2401 = vmatpush1.bf16.msra.mxu0 %v1773
  %2402 = vmatprep.subr.bf16.mxu0 %v1777
  %2403 = vmatpush1.bf16.msra.mxu0 %v1776
  %2404 = vmatprep.subr.bf16.mxu0 %v1780
  %2405 = vmatpush1.bf16.msra.mxu0 %v1779
  %2406 = vmatprep.subr.bf16.mxu0 %v1783
  %2407 = vmatpush1.bf16.msra.mxu0 %v1782
  %2408 = vmatprep.subr.bf16.mxu0 %v1786
  %2409 = vmatpush1.bf16.msra.mxu0 %v1785
  %2410 = vmatprep.subr.bf16.mxu0 %v1789
  %2411 = vmatpush1.bf16.msra.mxu0 %v1788
  %2412 = vmatprep.subr.bf16.mxu0 %v1792
  %2413 = vmatpush1.bf16.msra.mxu0 %v1791
  %2414 = vmatprep.subr.bf16.mxu0 %v1795
  %2415 = vmatpush1.bf16.msra.mxu0 %v1794
  %2416 = vmatprep.subr.bf16.mxu0 %v1798
  %2417 = vmatpush1.bf16.msra.mxu0 %v1797
  %2418 = vmatprep.subr.bf16.mxu0 %v1801
  %2419 = vmatpush1.bf16.msra.mxu0 %v1800
  %2420 = vmatprep.subr.bf16.mxu0 %v1804
  %2421 = vmatpush1.bf16.msra.mxu0 %v1803
  %2422 = vmatprep.subr.bf16.mxu0 %v1807
  %2423 = vmatpush1.bf16.msra.mxu0 %v1806
  %2424 = vmatprep.subr.bf16.mxu0 %v1810
  %2425 = vmatpush1.bf16.msra.mxu0 %v1809
  %2426 = vmatprep.subr.bf16.mxu0 %v1813
  %2427 = vmatpush1.bf16.msra.mxu0 %v1812
  %2428 = vmatprep.subr.bf16.mxu0 %v1816
  %2429 = vmatpush1.bf16.msra.mxu0 %v1815
  %2430 = vmatprep.mubr.bf16.mxu0 %v495
  %2431 = vmatmul.mubr.bf16.gmra.mrb[0].mxu0 %v494
  %v2432 = vpop.f32.mrb[0].mxu0
  %v2433 = vadd.f32 %v2392, %v2432
  %v2434 = vpop.f32.mrb[0].mxu0
  %v2435 = vadd.f32 %v2394, %v2434
  %v2436 = vpop.f32.mrb[0].mxu0
  %v2437 = vpop.f32.mrb[0].mxu0
  %2438 = vdwg.mxu0
  %2439 = vmatprep.subr.bf16.mxu0 %v1819
  %2440 = vmatpush1.bf16.msra.mxu0 %v1818
  %2441 = vmatprep.subr.bf16.mxu0 %v1822
  %2442 = vmatpush1.bf16.msra.mxu0 %v1821
  %2443 = vmatprep.subr.bf16.mxu0 %v1825
  %2444 = vmatpush1.bf16.msra.mxu0 %v1824
  %2445 = vmatprep.subr.bf16.mxu0 %v1828
  %2446 = vmatpush1.bf16.msra.mxu0 %v1827
  %2447 = vmatprep.subr.bf16.mxu0 %v1831
  %2448 = vmatpush1.bf16.msra.mxu0 %v1830
  %2449 = vmatprep.subr.bf16.mxu0 %v1834
  %2450 = vmatpush1.bf16.msra.mxu0 %v1833
  %2451 = vmatprep.subr.bf16.mxu0 %v1837
  %2452 = vmatpush1.bf16.msra.mxu0 %v1836
  %2453 = vmatprep.subr.bf16.mxu0 %v1840
  %2454 = vmatpush1.bf16.msra.mxu0 %v1839
  %2455 = vmatprep.subr.bf16.mxu0 %v1843
  %2456 = vmatpush1.bf16.msra.mxu0 %v1842
  %2457 = vmatprep.subr.bf16.mxu0 %v1846
  %2458 = vmatpush1.bf16.msra.mxu0 %v1845
  %2459 = vmatprep.subr.bf16.mxu0 %v1849
  %2460 = vmatpush1.bf16.msra.mxu0 %v1848
  %2461 = vmatprep.subr.bf16.mxu0 %v1852
  %2462 = vmatpush1.bf16.msra.mxu0 %v1851
  %2463 = vmatprep.subr.bf16.mxu0 %v1855
  %2464 = vmatpush1.bf16.msra.mxu0 %v1854
  %2465 = vmatprep.subr.bf16.mxu0 %v1858
  %2466 = vmatpush1.bf16.msra.mxu0 %v1857
  %2467 = vmatprep.subr.bf16.mxu0 %v1861
  %2468 = vmatpush1.bf16.msra.mxu0 %v1860
  %2469 = vmatprep.subr.bf16.mxu0 %v1864
  %2470 = vmatpush1.bf16.msra.mxu0 %v1863
  %2471 = vmatprep.mubr.bf16.mxu0 %v497
  %2472 = vmatmul.mubr.bf16.gmra.mrb[0].mxu0 %v496
  %v2473 = vpop.f32.mrb[0].mxu0
  %v2474 = vadd.f32 %v2433, %v2473
  %v2475 = vpop.f32.mrb[0].mxu0
  %v2476 = vadd.f32 %v2435, %v2475
  %v2477 = vpop.f32.mrb[0].mxu0
  %v2478 = vpop.f32.mrb[0].mxu0
  %2479 = vdwg.mxu0
  %2480 = vmatprep.subr.bf16.mxu0 %v1867
  %2481 = vmatpush1.bf16.msra.mxu0 %v1866
  %2482 = vmatprep.subr.bf16.mxu0 %v1870
  %2483 = vmatpush1.bf16.msra.mxu0 %v1869
  %2484 = vmatprep.subr.bf16.mxu0 %v1873
  %2485 = vmatpush1.bf16.msra.mxu0 %v1872
  %2486 = vmatprep.subr.bf16.mxu0 %v1876
  %2487 = vmatpush1.bf16.msra.mxu0 %v1875
  %2488 = vmatprep.subr.bf16.mxu0 %v1879
  %2489 = vmatpush1.bf16.msra.mxu0 %v1878
  %2490 = vmatprep.subr.bf16.mxu0 %v1882
  %2491 = vmatpush1.bf16.msra.mxu0 %v1881
  %2492 = vmatprep.subr.bf16.mxu0 %v1885
  %2493 = vmatpush1.bf16.msra.mxu0 %v1884
  %2494 = vmatprep.subr.bf16.mxu0 %v1888
  %2495 = vmatpush1.bf16.msra.mxu0 %v1887
  %2496 = vmatprep.subr.bf16.mxu0 %v1891
  %2497 = vmatpush1.bf16.msra.mxu0 %v1890
  %2498 = vmatprep.subr.bf16.mxu0 %v1894
  %2499 = vmatpush1.bf16.msra.mxu0 %v1893
  %2500 = vmatprep.subr.bf16.mxu0 %v2229
  %2501 = vmatpush1.bf16.msra.mxu0 %v2226
  %2502 = vmatprep.subr.bf16.mxu0 0
  %2503 = vmatpush1.bf16.msra.mxu0 0
  %2504 = vmatprep.subr.bf16.mxu0 0
  %2505 = vmatpush1.bf16.msra.mxu0 0
  %2506 = vmatprep.subr.bf16.mxu0 0
  %2507 = vmatpush1.bf16.msra.mxu0 0
  %2508 = vmatprep.subr.bf16.mxu0 0
  %2509 = vmatpush1.bf16.msra.mxu0 0
  %2510 = vmatprep.subr.bf16.mxu0 0
  %2511 = vmatpush1.bf16.msra.mxu0 0
  %2512 = vmatprep.mubr.bf16.mxu0 %v2219
  %2513 = vmatmul.mubr.bf16.gmra.mrb[0].mxu0 %v498
  %v2514 = vpop.f32.mrb[0].mxu0
  %v2515 = vadd.f32 %v2474, %v2514
  %v2516 = vpop.f32.mrb[0].mxu0
  %v2517 = vadd.f32 %v2476, %v2516
  %v2518 = vpop.f32.mrb[0].mxu0
  %v2519 = vpop.f32.mrb[0].mxu0
  %2520 = vdwg.mxu0
  %2521 = vmatprep.subr.bf16.mxu0 0
  %2522 = vmatpush1.bf16.msra.mxu0 %v1580
  %2523 = vmatprep.subr.bf16.mxu0 0
  %2524 = vmatpush1.bf16.msra.mxu0 %v1583
  %2525 = vmatprep.subr.bf16.mxu0 0
  %2526 = vmatpush1.bf16.msra.mxu0 %v1586
  %2527 = vmatprep.subr.bf16.mxu0 0
  %2528 = vmatpush1.bf16.msra.mxu0 %v1589
  %2529 = vmatprep.subr.bf16.mxu0 0
  %2530 = vmatpush1.bf16.msra.mxu0 %v1592
  %2531 = vmatprep.subr.bf16.mxu0 0
  %2532 = vmatpush1.bf16.msra.mxu0 %v1595
  %2533 = vmatprep.subr.bf16.mxu0 0
  %2534 = vmatpush1.bf16.msra.mxu0 %v1598
  %2535 = vmatprep.subr.bf16.mxu0 0
  %2536 = vmatpush1.bf16.msra.mxu0 %v1601
  %2537 = vmatprep.subr.bf16.mxu0 0
  %2538 = vmatpush1.bf16.msra.mxu0 %v1604
  %2539 = vmatprep.subr.bf16.mxu0 0
  %2540 = vmatpush1.bf16.msra.mxu0 %v1607
  %2541 = vmatprep.subr.bf16.mxu0 0
  %2542 = vmatpush1.bf16.msra.mxu0 %v1610
  %2543 = vmatprep.subr.bf16.mxu0 0
  %2544 = vmatpush1.bf16.msra.mxu0 %v1613
  %2545 = vmatprep.subr.bf16.mxu0 0
  %2546 = vmatpush1.bf16.msra.mxu0 %v1616
  %2547 = vmatprep.subr.bf16.mxu0 0
  %2548 = vmatpush1.bf16.msra.mxu0 %v1619
  %2549 = vmatprep.subr.bf16.mxu0 0
  %2550 = vmatpush1.bf16.msra.mxu0 %v1622
  %2551 = vmatprep.subr.bf16.mxu0 0
  %2552 = vmatpush1.bf16.msra.mxu0 %v1625
  %2553 = vmatprep.mubr.bf16.mxu0 %v487
  %2554 = vmatmul.mubr.bf16.gmra.mrb[0].mxu0 %v486
  %v2555 = vpop.f32.mrb[0].mxu0
  %v2556 = vadd.f32 %v461, %v2555
  %v2557 = vpop.f32.mrb[0].mxu0
  %v2558 = vpop.f32.mrb[0].mxu0
  %v2559 = vpop.f32.mrb[0].mxu0
  %2560 = vdwg.mxu0
  %2561 = vmatprep.subr.bf16.mxu0 0
  %2562 = vmatpush1.bf16.msra.mxu0 %v1628
  %2563 = vmatprep.subr.bf16.mxu0 0
  %2564 = vmatpush1.bf16.msra.mxu0 %v1631
  %2565 = vmatprep.subr.bf16.mxu0 0
  %2566 = vmatpush1.bf16.msra.mxu0 %v1634
  %2567 = vmatprep.subr.bf16.mxu0 0
  %2568 = vmatpush1.bf16.msra.mxu0 %v1637
  %2569 = vmatprep.subr.bf16.mxu0 0
  %2570 = vmatpush1.bf16.msra.mxu0 %v1640
  %2571 = vmatprep.subr.bf16.mxu0 0
  %2572 = vmatpush1.bf16.msra.mxu0 %v1643
  %2573 = vmatprep.subr.bf16.mxu0 0
  %2574 = vmatpush1.bf16.msra.mxu0 %v1646
  %2575 = vmatprep.subr.bf16.mxu0 0
  %2576 = vmatpush1.bf16.msra.mxu0 %v1649
  %2577 = vmatprep.subr.bf16.mxu0 0
  %2578 = vmatpush1.bf16.msra.mxu0 %v1652
  %2579 = vmatprep.subr.bf16.mxu0 0
  %2580 = vmatpush1.bf16.msra.mxu0 %v1655
  %2581 = vmatprep.subr.bf16.mxu0 0
  %2582 = vmatpush1.bf16.msra.mxu0 %v1658
  %2583 = vmatprep.subr.bf16.mxu0 0
  %2584 = vmatpush1.bf16.msra.mxu0 %v1661
  %2585 = vmatprep.subr.bf16.mxu0 0
  %2586 = vmatpush1.bf16.msra.mxu0 %v1664
  %2587 = vmatprep.subr.bf16.mxu0 0
  %2588 = vmatpush1.bf16.msra.mxu0 %v1667
  %2589 = vmatprep.subr.bf16.mxu0 0
  %2590 = vmatpush1.bf16.msra.mxu0 %v1670
  %2591 = vmatprep.subr.bf16.mxu0 0
  %2592 = vmatpush1.bf16.msra.mxu0 %v1673
  %2593 = vmatprep.mubr.bf16.mxu0 %v489
  %2594 = vmatmul.mubr.bf16.gmra.mrb[0].mxu0 %v488
  %v2595 = vpop.f32.mrb[0].mxu0
  %v2596 = vadd.f32 %v2556, %v2595
  %v2597 = vpop.f32.mrb[0].mxu0
  %v2598 = vpop.f32.mrb[0].mxu0
  %v2599 = vpop.f32.mrb[0].mxu0
  %2600 = vdwg.mxu0
  %2601 = vmatprep.subr.bf16.mxu0 0
  %2602 = vmatpush1.bf16.msra.mxu0 %v1676
  %2603 = vmatprep.subr.bf16.mxu0 0
  %2604 = vmatpush1.bf16.msra.mxu0 %v1679
  %2605 = vmatprep.subr.bf16.mxu0 0
  %2606 = vmatpush1.bf16.msra.mxu0 %v1682
  %2607 = vmatprep.subr.bf16.mxu0 0
  %2608 = vmatpush1.bf16.msra.mxu0 %v1685
  %2609 = vmatprep.subr.bf16.mxu0 0
  %2610 = vmatpush1.bf16.msra.mxu0 %v1688
  %2611 = vmatprep.subr.bf16.mxu0 0
  %2612 = vmatpush1.bf16.msra.mxu0 %v1691
  %2613 = vmatprep.subr.bf16.mxu0 0
  %2614 = vmatpush1.bf16.msra.mxu0 %v1694
  %2615 = vmatprep.subr.bf16.mxu0 0
  %2616 = vmatpush1.bf16.msra.mxu0 %v1697
  %2617 = vmatprep.subr.bf16.mxu0 0
  %2618 = vmatpush1.bf16.msra.mxu0 %v1700
  %2619 = vmatprep.subr.bf16.mxu0 0
  %2620 = vmatpush1.bf16.msra.mxu0 %v1703
  %2621 = vmatprep.subr.bf16.mxu0 0
  %2622 = vmatpush1.bf16.msra.mxu0 %v1706
  %2623 = vmatprep.subr.bf16.mxu0 0
  %2624 = vmatpush1.bf16.msra.mxu0 %v1709
  %2625 = vmatprep.subr.bf16.mxu0 0
  %2626 = vmatpush1.bf16.msra.mxu0 %v1712
  %2627 = vmatprep.subr.bf16.mxu0 0
  %2628 = vmatpush1.bf16.msra.mxu0 %v1715
  %2629 = vmatprep.subr.bf16.mxu0 0
  %2630 = vmatpush1.bf16.msra.mxu0 %v1718
  %2631 = vmatprep.subr.bf16.mxu0 0
  %2632 = vmatpush1.bf16.msra.mxu0 %v1721
  %2633 = vmatprep.mubr.bf16.mxu0 %v491
  %2634 = vmatmul.mubr.bf16.gmra.mrb[0].mxu0 %v490
  %v2635 = vpop.f32.mrb[0].mxu0
  %v2636 = vadd.f32 %v2596, %v2635
  %v2637 = vpop.f32.mrb[0].mxu0
  %v2638 = vpop.f32.mrb[0].mxu0
  %v2639 = vpop.f32.mrb[0].mxu0
  %2640 = vdwg.mxu0
  %2641 = vmatprep.subr.bf16.mxu0 0
  %2642 = vmatpush1.bf16.msra.mxu0 %v1724
  %2643 = vmatprep.subr.bf16.mxu0 0
  %2644 = vmatpush1.bf16.msra.mxu0 %v1727
  %2645 = vmatprep.subr.bf16.mxu0 0
  %2646 = vmatpush1.bf16.msra.mxu0 %v1730
  %2647 = vmatprep.subr.bf16.mxu0 0
  %2648 = vmatpush1.bf16.msra.mxu0 %v1733
  %2649 = vmatprep.subr.bf16.mxu0 0
  %2650 = vmatpush1.bf16.msra.mxu0 %v1736
  %2651 = vmatprep.subr.bf16.mxu0 0
  %2652 = vmatpush1.bf16.msra.mxu0 %v1739
  %2653 = vmatprep.subr.bf16.mxu0 0
  %2654 = vmatpush1.bf16.msra.mxu0 %v1742
  %2655 = vmatprep.subr.bf16.mxu0 0
  %2656 = vmatpush1.bf16.msra.mxu0 %v1745
  %2657 = vmatprep.subr.bf16.mxu0 0
  %2658 = vmatpush1.bf16.msra.mxu0 %v1748
  %2659 = vmatprep.subr.bf16.mxu0 0
  %2660 = vmatpush1.bf16.msra.mxu0 %v1751
  %2661 = vmatprep.subr.bf16.mxu0 0
  %2662 = vmatpush1.bf16.msra.mxu0 %v1754
  %2663 = vmatprep.subr.bf16.mxu0 0
  %2664 = vmatpush1.bf16.msra.mxu0 %v1757
  %2665 = vmatprep.subr.bf16.mxu0 0
  %2666 = vmatpush1.bf16.msra.mxu0 %v1760
  %2667 = vmatprep.subr.bf16.mxu0 0
  %2668 = vmatpush1.bf16.msra.mxu0 %v1763
  %2669 = vmatprep.subr.bf16.mxu0 0
  %2670 = vmatpush1.bf16.msra.mxu0 %v1766
  %2671 = vmatprep.subr.bf16.mxu0 0
  %2672 = vmatpush1.bf16.msra.mxu0 %v1769
  %2673 = vmatprep.mubr.bf16.mxu0 %v493
  %2674 = vmatmul.mubr.bf16.gmra.mrb[0].mxu0 %v492
  %v2675 = vpop.f32.mrb[0].mxu0
  %v2676 = vadd.f32 %v2636, %v2675
  %v2677 = vpop.f32.mrb[0].mxu0
  %v2678 = vpop.f32.mrb[0].mxu0
  %v2679 = vpop.f32.mrb[0].mxu0
  %2680 = vdwg.mxu0
  %2681 = vmatprep.subr.bf16.mxu0 0
  %2682 = vmatpush1.bf16.msra.mxu0 %v1772
  %2683 = vmatprep.subr.bf16.mxu0 0
  %2684 = vmatpush1.bf16.msra.mxu0 %v1775
  %2685 = vmatprep.subr.bf16.mxu0 0
  %2686 = vmatpush1.bf16.msra.mxu0 %v1778
  %2687 = vmatprep.subr.bf16.mxu0 0
  %2688 = vmatpush1.bf16.msra.mxu0 %v1781
  %2689 = vmatprep.subr.bf16.mxu0 0
  %2690 = vmatpush1.bf16.msra.mxu0 %v1784
  %2691 = vmatprep.subr.bf16.mxu0 0
  %2692 = vmatpush1.bf16.msra.mxu0 %v1787
  %2693 = vmatprep.subr.bf16.mxu0 0
  %2694 = vmatpush1.bf16.msra.mxu0 %v1790
  %2695 = vmatprep.subr.bf16.mxu0 0
  %2696 = vmatpush1.bf16.msra.mxu0 %v1793
  %2697 = vmatprep.subr.bf16.mxu0 0
  %2698 = vmatpush1.bf16.msra.mxu0 %v1796
  %2699 = vmatprep.subr.bf16.mxu0 0
  %2700 = vmatpush1.bf16.msra.mxu0 %v1799
  %2701 = vmatprep.subr.bf16.mxu0 0
  %2702 = vmatpush1.bf16.msra.mxu0 %v1802
  %2703 = vmatprep.subr.bf16.mxu0 0
  %2704 = vmatpush1.bf16.msra.mxu0 %v1805
  %2705 = vmatprep.subr.bf16.mxu0 0
  %2706 = vmatpush1.bf16.msra.mxu0 %v1808
  %2707 = vmatprep.subr.bf16.mxu0 0
  %2708 = vmatpush1.bf16.msra.mxu0 %v1811
  %2709 = vmatprep.subr.bf16.mxu0 0
  %2710 = vmatpush1.bf16.msra.mxu0 %v1814
  %2711 = vmatprep.subr.bf16.mxu0 0
  %2712 = vmatpush1.bf16.msra.mxu0 %v1817
  %2713 = vmatprep.mubr.bf16.mxu0 %v495
  %2714 = vmatmul.mubr.bf16.gmra.mrb[0].mxu0 %v494
  %v2715 = vpop.f32.mrb[0].mxu0
  %v2716 = vadd.f32 %v2676, %v2715
  %v2717 = vpop.f32.mrb[0].mxu0
  %v2718 = vpop.f32.mrb[0].mxu0
  %v2719 = vpop.f32.mrb[0].mxu0
  %2720 = vdwg.mxu0
  %2721 = vmatprep.subr.bf16.mxu0 0
  %2722 = vmatpush1.bf16.msra.mxu0 %v1820
  %2723 = vmatprep.subr.bf16.mxu0 0
  %2724 = vmatpush1.bf16.msra.mxu0 %v1823
  %2725 = vmatprep.subr.bf16.mxu0 0
  %2726 = vmatpush1.bf16.msra.mxu0 %v1826
  %2727 = vmatprep.subr.bf16.mxu0 0
  %2728 = vmatpush1.bf16.msra.mxu0 %v1829
  %2729 = vmatprep.subr.bf16.mxu0 0
  %2730 = vmatpush1.bf16.msra.mxu0 %v1832
  %2731 = vmatprep.subr.bf16.mxu0 0
  %2732 = vmatpush1.bf16.msra.mxu0 %v1835
  %2733 = vmatprep.subr.bf16.mxu0 0
  %2734 = vmatpush1.bf16.msra.mxu0 %v1838
  %2735 = vmatprep.subr.bf16.mxu0 0
  %2736 = vmatpush1.bf16.msra.mxu0 %v1841
  %2737 = vmatprep.subr.bf16.mxu0 0
  %2738 = vmatpush1.bf16.msra.mxu0 %v1844
  %2739 = vmatprep.subr.bf16.mxu0 0
  %2740 = vmatpush1.bf16.msra.mxu0 %v1847
  %2741 = vmatprep.subr.bf16.mxu0 0
  %2742 = vmatpush1.bf16.msra.mxu0 %v1850
  %2743 = vmatprep.subr.bf16.mxu0 0
  %2744 = vmatpush1.bf16.msra.mxu0 %v1853
  %2745 = vmatprep.subr.bf16.mxu0 0
  %2746 = vmatpush1.bf16.msra.mxu0 %v1856
  %2747 = vmatprep.subr.bf16.mxu0 0
  %2748 = vmatpush1.bf16.msra.mxu0 %v1859
  %2749 = vmatprep.subr.bf16.mxu0 0
  %2750 = vmatpush1.bf16.msra.mxu0 %v1862
  %2751 = vmatprep.subr.bf16.mxu0 0
  %2752 = vmatpush1.bf16.msra.mxu0 %v1865
  %2753 = vmatprep.mubr.bf16.mxu0 %v497
  %2754 = vmatmul.mubr.bf16.gmra.mrb[0].mxu0 %v496
  %v2755 = vpop.f32.mrb[0].mxu0
  %v2756 = vadd.f32 %v2716, %v2755
  %v2757 = vpop.f32.mrb[0].mxu0
  %v2758 = vpop.f32.mrb[0].mxu0
  %v2759 = vpop.f32.mrb[0].mxu0
  %2760 = vdwg.mxu0
  %2761 = vmatprep.subr.bf16.mxu0 0
  %2762 = vmatpush1.bf16.msra.mxu0 %v1868
  %2763 = vmatprep.subr.bf16.mxu0 0
  %2764 = vmatpush1.bf16.msra.mxu0 %v1871
  %2765 = vmatprep.subr.bf16.mxu0 0
  %2766 = vmatpush1.bf16.msra.mxu0 %v1874
  %2767 = vmatprep.subr.bf16.mxu0 0
  %2768 = vmatpush1.bf16.msra.mxu0 %v1877
  %2769 = vmatprep.subr.bf16.mxu0 0
  %2770 = vmatpush1.bf16.msra.mxu0 %v1880
  %2771 = vmatprep.subr.bf16.mxu0 0
  %2772 = vmatpush1.bf16.msra.mxu0 %v1883
  %2773 = vmatprep.subr.bf16.mxu0 0
  %2774 = vmatpush1.bf16.msra.mxu0 %v1886
  %2775 = vmatprep.subr.bf16.mxu0 0
  %2776 = vmatpush1.bf16.msra.mxu0 %v1889
  %2777 = vmatprep.subr.bf16.mxu0 0
  %2778 = vmatpush1.bf16.msra.mxu0 %v1892
  %2779 = vmatprep.subr.bf16.mxu0 0
  %2780 = vmatpush1.bf16.msra.mxu0 %v1895
  %2781 = vmatprep.subr.bf16.mxu0 0
  %2782 = vmatpush1.bf16.msra.mxu0 %v2232
  %2783 = vmatprep.subr.bf16.mxu0 0
  %2784 = vmatpush1.bf16.msra.mxu0 0
  %2785 = vmatprep.subr.bf16.mxu0 0
  %2786 = vmatpush1.bf16.msra.mxu0 0
  %2787 = vmatprep.subr.bf16.mxu0 0
  %2788 = vmatpush1.bf16.msra.mxu0 0
  %2789 = vmatprep.subr.bf16.mxu0 0
  %2790 = vmatpush1.bf16.msra.mxu0 0
  %2791 = vmatprep.subr.bf16.mxu0 0
  %2792 = vmatpush1.bf16.msra.mxu0 0
  %2793 = vmatprep.mubr.bf16.mxu0 %v2219
  %2794 = vmatmul.mubr.bf16.gmra.mrb[0].mxu0 %v498
  %v2795 = vpop.f32.mrb[0].mxu0
  %v2796 = vadd.f32 %v2756, %v2795
  %v2797 = vpop.f32.mrb[0].mxu0
  %v2798 = vpop.f32.mrb[0].mxu0
  %v2799 = vpop.f32.mrb[0].mxu0
  %2800 = vdwg.mxu0
  %v2801 = vmax.f32 %v2515, 0.0
  %v2802 = vmax.f32 %v2517, 0.0
  %v2803 = vmax.f32 %v2796, 0.0
  %2804 = vst [vmem:[%s3] sm:$0xff] %v2801
  %2805 = vst [vmem:[%s3 + $0x8] sm:$0xff] %v2802
  %2806 = vst [vmem:[%s3 + $0x10] sm:$0xff] %v2803
  // Predicated region
  $region14: #{forward.14} parent=0 // pred_check
    _
  $region15: #{forward.14} parent=0 // pred_check_branch
    %2808 = sbr.rel (0) target = $region17
  $region16: #{forward.14} parent=0 // pred_region
    _
  $region17: #{forward.14} parent=0 // pred_fallthru
    _
  // Predicated region
  $region18: #{forward.14} parent=0 // pred_check
    _
  $region19: #{forward.14} parent=0 // pred_check_branch
    %2810 = sbr.rel (0) target = $region21
  $region20: #{forward.14} parent=0 // pred_region
    _
  $region21: #{forward.14} parent=0 // pred_fallthru
    _

// kernel: forward.15
$region0: #{forward.15}
  #allocation0 [shape = 'u32[]', space=smem, size = 0x4, offset = 0x4, fixed_abs, tag = 'smem constant byte address 0x4 - core index']
  #allocation1 [shape = 'u32[144,128]{1,0:T(1,128)}', space=vmem, size = 0x12000, scoped, tag = 'internal scratch']
  %s0 = inlined_call_operand.vmem [shape: bf16[8,3456], index: 0, kind: input, shape index: {}]
  %s1 = inlined_call_operand.vmem [shape: bf16[3456,256], index: 1, kind: input, shape index: {}]
  %s2 = inlined_call_operand.vmem [shape: f32[1,256], index: 2, kind: input, shape index: {}]
  %s3 = inlined_call_operand.vmem [shape: f32[8,256], index: 3, kind: output, shape index: {}]
  %s4 = sld [smem:[#allocation0]]
  $region22: #{forward.15} parent=0
    _
  %s6 = ssub.s32 1, %s4
  %s7 = scalar_select 0, %s6, %s4
  // Predicated region
  $region2: #{forward.15} parent=0 // pred_check
    _
  $region3: #{forward.15} parent=0 // pred_check_branch
    %9 = sbr.rel (0) target = $region5
  $region4: #{forward.15} parent=0 // pred_region
    _
  $region5: #{forward.15} parent=0 // pred_fallthru
    _
  // Predicated region
  $region6: #{forward.15} parent=0 // pred_check
    _
  $region7: #{forward.15} parent=0 // pred_check_branch
    %11 = sbr.rel (0) target = $region9
  $region8: #{forward.15} parent=0 // pred_region
    _
  $region9: #{forward.15} parent=0 // pred_fallthru
    _
  // Predicated region
  $region10: #{forward.15} parent=0 // pred_check
    _
  $region11: #{forward.15} parent=0 // pred_check_branch
    %13 = sbr.rel (0) target = $region13
  $region12: #{forward.15} parent=0 // pred_region
    _
  $region13: #{forward.15} parent=0 // pred_fallthru
    _
  %v15 = vld [vmem:[%s0] sm:$0xff]
  %v16 = vld [vmem:[%s0 + $0x8] sm:$0xff]
  %v17 = vld [vmem:[%s0 + $0x10] sm:$0xff]
  %v18 = vld [vmem:[%s0 + $0x18] sm:$0xff]
  %v19 = vld [vmem:[%s0 + $0x20] sm:$0xff]
  %v20 = vld [vmem:[%s0 + $0x28] sm:$0xff]
  %v21 = vld [vmem:[%s0 + $0x30] sm:$0xff]
  %v22 = vld [vmem:[%s0 + $0x38] sm:$0xff]
  %v23 = vld [vmem:[%s0 + $0x40] sm:$0xff]
  %v24 = vld [vmem:[%s0 + $0x48] sm:$0xff]
  %v25 = vld [vmem:[%s0 + $0x50] sm:$0xff]
  %v26 = vld [vmem:[%s0 + $0x58] sm:$0xff]
  %v27 = vld [vmem:[%s0 + $0x60] sm:$0xff]
  %v28 = vld [vmem:[%s0 + $0x68] sm:$0xf]
  %v29 = vld [vmem:[%s1] sm:$0xff]
  %v30 = vld [vmem:[%s1 + $0x8] sm:$0xff]
  %v31 = vld [vmem:[%s1 + $0x10] sm:$0xff]
  %v32 = vld [vmem:[%s1 + $0x18] sm:$0xff]
  %v33 = vld [vmem:[%s1 + $0x20] sm:$0xff]
  %v34 = vld [vmem:[%s1 + $0x28] sm:$0xff]
  %v35 = vld [vmem:[%s1 + $0x30] sm:$0xff]
  %v36 = vld [vmem:[%s1 + $0x38] sm:$0xff]
  %v37 = vld [vmem:[%s1 + $0x40] sm:$0xff]
  %v38 = vld [vmem:[%s1 + $0x48] sm:$0xff]
  %v39 = vld [vmem:[%s1 + $0x50] sm:$0xff]
  %v40 = vld [vmem:[%s1 + $0x58] sm:$0xff]
  %v41 = vld [vmem:[%s1 + $0x60] sm:$0xff]
  %v42 = vld [vmem:[%s1 + $0x68] sm:$0xff]
  %v43 = vld [vmem:[%s1 + $0x70] sm:$0xff]
  %v44 = vld [vmem:[%s1 + $0x78] sm:$0xff]
  %v45 = vld [vmem:[%s1 + $0x80] sm:$0xff]
  %v46 = vld [vmem:[%s1 + $0x88] sm:$0xff]
  %v47 = vld [vmem:[%s1 + $0x90] sm:$0xff]
  %v48 = vld [vmem:[%s1 + $0x98] sm:$0xff]
  %v49 = vld [vmem:[%s1 + $0xa0] sm:$0xff]
  %v50 = vld [vmem:[%s1 + $0xa8] sm:$0xff]
  %v51 = vld [vmem:[%s1 + $0xb0] sm:$0xff]
  %v52 = vld [vmem:[%s1 + $0xb8] sm:$0xff]
  %v53 = vld [vmem:[%s1 + $0xc0] sm:$0xff]
  %v54 = vld [vmem:[%s1 + $0xc8] sm:$0xff]
  %v55 = vld [vmem:[%s1 + $0xd0] sm:$0xff]
  %v56 = vld [vmem:[%s1 + $0xd8] sm:$0xff]
  %v57 = vld [vmem:[%s1 + $0xe0] sm:$0xff]
  %v58 = vld [vmem:[%s1 + $0xe8] sm:$0xff]
  %v59 = vld [vmem:[%s1 + $0xf0] sm:$0xff]
  %v60 = vld [vmem:[%s1 + $0xf8] sm:$0xff]
  %v61 = vld [vmem:[%s1 + $0x100] sm:$0xff]
  %v62 = vld [vmem:[%s1 + $0x108] sm:$0xff]
  %v63 = vld [vmem:[%s1 + $0x110] sm:$0xff]
  %v64 = vld [vmem:[%s1 + $0x118] sm:$0xff]
  %v65 = vld [vmem:[%s1 + $0x120] sm:$0xff]
  %v66 = vld [vmem:[%s1 + $0x128] sm:$0xff]
  %v67 = vld [vmem:[%s1 + $0x130] sm:$0xff]
  %v68 = vld [vmem:[%s1 + $0x138] sm:$0xff]
  %v69 = vld [vmem:[%s1 + $0x140] sm:$0xff]
  %v70 = vld [vmem:[%s1 + $0x148] sm:$0xff]
  %v71 = vld [vmem:[%s1 + $0x150] sm:$0xff]
  %v72 = vld [vmem:[%s1 + $0x158] sm:$0xff]
  %v73 = vld [vmem:[%s1 + $0x160] sm:$0xff]
  %v74 = vld [vmem:[%s1 + $0x168] sm:$0xff]
  %v75 = vld [vmem:[%s1 + $0x170] sm:$0xff]
  %v76 = vld [vmem:[%s1 + $0x178] sm:$0xff]
  %v77 = vld [vmem:[%s1 + $0x180] sm:$0xff]
  %v78 = vld [vmem:[%s1 + $0x188] sm:$0xff]
  %v79 = vld [vmem:[%s1 + $0x190] sm:$0xff]
  %v80 = vld [vmem:[%s1 + $0x198] sm:$0xff]
  %v81 = vld [vmem:[%s1 + $0x1a0] sm:$0xff]
  %v82 = vld [vmem:[%s1 + $0x1a8] sm:$0xff]
  %v83 = vld [vmem:[%s1 + $0x1b0] sm:$0xff]
  %v84 = vld [vmem:[%s1 + $0x1b8] sm:$0xff]
  %v85 = vld [vmem:[%s1 + $0x1c0] sm:$0xff]
  %v86 = vld [vmem:[%s1 + $0x1c8] sm:$0xff]
  %v87 = vld [vmem:[%s1 + $0x1d0] sm:$0xff]
  %v88 = vld [vmem:[%s1 + $0x1d8] sm:$0xff]
  %v89 = vld [vmem:[%s1 + $0x1e0] sm:$0xff]
  %v90 = vld [vmem:[%s1 + $0x1e8] sm:$0xff]
  %v91 = vld [vmem:[%s1 + $0x1f0] sm:$0xff]
  %v92 = vld [vmem:[%s1 + $0x1f8] sm:$0xff]
  %v93 = vld [vmem:[%s1 + $0x200] sm:$0xff]
  %v94 = vld [vmem:[%s1 + $0x208] sm:$0xff]
  %v95 = vld [vmem:[%s1 + $0x210] sm:$0xff]
  %v96 = vld [vmem:[%s1 + $0x218] sm:$0xff]
  %v97 = vld [vmem:[%s1 + $0x220] sm:$0xff]
  %v98 = vld [vmem:[%s1 + $0x228] sm:$0xff]
  %v99 = vld [vmem:[%s1 + $0x230] sm:$0xff]
  %v100 = vld [vmem:[%s1 + $0x238] sm:$0xff]
  %v101 = vld [vmem:[%s1 + $0x240] sm:$0xff]
  %v102 = vld [vmem:[%s1 + $0x248] sm:$0xff]
  %v103 = vld [vmem:[%s1 + $0x250] sm:$0xff]
  %v104 = vld [vmem:[%s1 + $0x258] sm:$0xff]
  %v105 = vld [vmem:[%s1 + $0x260] sm:$0xff]
  %v106 = vld [vmem:[%s1 + $0x268] sm:$0xff]
  %v107 = vld [vmem:[%s1 + $0x270] sm:$0xff]
  %v108 = vld [vmem:[%s1 + $0x278] sm:$0xff]
  %v109 = vld [vmem:[%s1 + $0x280] sm:$0xff]
  %v110 = vld [vmem:[%s1 + $0x288] sm:$0xff]
  %v111 = vld [vmem:[%s1 + $0x290] sm:$0xff]
  %v112 = vld [vmem:[%s1 + $0x298] sm:$0xff]
  %v113 = vld [vmem:[%s1 + $0x2a0] sm:$0xff]
  %v114 = vld [vmem:[%s1 + $0x2a8] sm:$0xff]
  %v115 = vld [vmem:[%s1 + $0x2b0] sm:$0xff]
  %v116 = vld [vmem:[%s1 + $0x2b8] sm:$0xff]
  %v117 = vld [vmem:[%s1 + $0x2c0] sm:$0xff]
  %v118 = vld [vmem:[%s1 + $0x2c8] sm:$0xff]
  %v119 = vld [vmem:[%s1 + $0x2d0] sm:$0xff]
  %v120 = vld [vmem:[%s1 + $0x2d8] sm:$0xff]
  %v121 = vld [vmem:[%s1 + $0x2e0] sm:$0xff]
  %v122 = vld [vmem:[%s1 + $0x2e8] sm:$0xff]
  %v123 = vld [vmem:[%s1 + $0x2f0] sm:$0xff]
  %v124 = vld [vmem:[%s1 + $0x2f8] sm:$0xff]
  %v125 = vld [vmem:[%s1 + $0x300] sm:$0xff]
  %v126 = vld [vmem:[%s1 + $0x308] sm:$0xff]
  %v127 = vld [vmem:[%s1 + $0x310] sm:$0xff]
  %v128 = vld [vmem:[%s1 + $0x318] sm:$0xff]
  %v129 = vld [vmem:[%s1 + $0x320] sm:$0xff]
  %v130 = vld [vmem:[%s1 + $0x328] sm:$0xff]
  %v131 = vld [vmem:[%s1 + $0x330] sm:$0xff]
  %v132 = vld [vmem:[%s1 + $0x338] sm:$0xff]
  %v133 = vld [vmem:[%s1 + $0x340] sm:$0xff]
  %v134 = vld [vmem:[%s1 + $0x348] sm:$0xff]
  %v135 = vld [vmem:[%s1 + $0x350] sm:$0xff]
  %v136 = vld [vmem:[%s1 + $0x358] sm:$0xff]
  %v137 = vld [vmem:[%s1 + $0x360] sm:$0xff]
  %v138 = vld [vmem:[%s1 + $0x368] sm:$0xff]
  %v139 = vld [vmem:[%s1 + $0x370] sm:$0xff]
  %v140 = vld [vmem:[%s1 + $0x378] sm:$0xff]
  %v141 = vld [vmem:[%s1 + $0x380] sm:$0xff]
  %v142 = vld [vmem:[%s1 + $0x388] sm:$0xff]
  %v143 = vld [vmem:[%s1 + $0x390] sm:$0xff]
  %v144 = vld [vmem:[%s1 + $0x398] sm:$0xff]
  %v145 = vld [vmem:[%s1 + $0x3a0] sm:$0xff]
  %v146 = vld [vmem:[%s1 + $0x3a8] sm:$0xff]
  %v147 = vld [vmem:[%s1 + $0x3b0] sm:$0xff]
  %v148 = vld [vmem:[%s1 + $0x3b8] sm:$0xff]
  %v149 = vld [vmem:[%s1 + $0x3c0] sm:$0xff]
  %v150 = vld [vmem:[%s1 + $0x3c8] sm:$0xff]
  %v151 = vld [vmem:[%s1 + $0x3d0] sm:$0xff]
  %v152 = vld [vmem:[%s1 + $0x3d8] sm:$0xff]
  %v153 = vld [vmem:[%s1 + $0x3e0] sm:$0xff]
  %v154 = vld [vmem:[%s1 + $0x3e8] sm:$0xff]
  %v155 = vld [vmem:[%s1 + $0x3f0] sm:$0xff]
  %v156 = vld [vmem:[%s1 + $0x3f8] sm:$0xff]
  %v157 = vld [vmem:[%s1 + $0x400] sm:$0xff]
  %v158 = vld [vmem:[%s1 + $0x408] sm:$0xff]
  %v159 = vld [vmem:[%s1 + $0x410] sm:$0xff]
  %v160 = vld [vmem:[%s1 + $0x418] sm:$0xff]
  %v161 = vld [vmem:[%s1 + $0x420] sm:$0xff]
  %v162 = vld [vmem:[%s1 + $0x428] sm:$0xff]
  %v163 = vld [vmem:[%s1 + $0x430] sm:$0xff]
  %v164 = vld [vmem:[%s1 + $0x438] sm:$0xff]
  %v165 = vld [vmem:[%s1 + $0x440] sm:$0xff]
  %v166 = vld [vmem:[%s1 + $0x448] sm:$0xff]
  %v167 = vld [vmem:[%s1 + $0x450] sm:$0xff]
  %v168 = vld [vmem:[%s1 + $0x458] sm:$0xff]
  %v169 = vld [vmem:[%s1 + $0x460] sm:$0xff]
  %v170 = vld [vmem:[%s1 + $0x468] sm:$0xff]
  %v171 = vld [vmem:[%s1 + $0x470] sm:$0xff]
  %v172 = vld [vmem:[%s1 + $0x478] sm:$0xff]
  %v173 = vld [vmem:[%s1 + $0x480] sm:$0xff]
  %v174 = vld [vmem:[%s1 + $0x488] sm:$0xff]
  %v175 = vld [vmem:[%s1 + $0x490] sm:$0xff]
  %v176 = vld [vmem:[%s1 + $0x498] sm:$0xff]
  %v177 = vld [vmem:[%s1 + $0x4a0] sm:$0xff]
  %v178 = vld [vmem:[%s1 + $0x4a8] sm:$0xff]
  %v179 = vld [vmem:[%s1 + $0x4b0] sm:$0xff]
  %v180 = vld [vmem:[%s1 + $0x4b8] sm:$0xff]
  %v181 = vld [vmem:[%s1 + $0x4c0] sm:$0xff]
  %v182 = vld [vmem:[%s1 + $0x4c8] sm:$0xff]
  %v183 = vld [vmem:[%s1 + $0x4d0] sm:$0xff]
  %v184 = vld [vmem:[%s1 + $0x4d8] sm:$0xff]
  %v185 = vld [vmem:[%s1 + $0x4e0] sm:$0xff]
  %v186 = vld [vmem:[%s1 + $0x4e8] sm:$0xff]
  %v187 = vld [vmem:[%s1 + $0x4f0] sm:$0xff]
  %v188 = vld [vmem:[%s1 + $0x4f8] sm:$0xff]
  %v189 = vld [vmem:[%s1 + $0x500] sm:$0xff]
  %v190 = vld [vmem:[%s1 + $0x508] sm:$0xff]
  %v191 = vld [vmem:[%s1 + $0x510] sm:$0xff]
  %v192 = vld [vmem:[%s1 + $0x518] sm:$0xff]
  %v193 = vld [vmem:[%s1 + $0x520] sm:$0xff]
  %v194 = vld [vmem:[%s1 + $0x528] sm:$0xff]
  %v195 = vld [vmem:[%s1 + $0x530] sm:$0xff]
  %v196 = vld [vmem:[%s1 + $0x538] sm:$0xff]
  %v197 = vld [vmem:[%s1 + $0x540] sm:$0xff]
  %v198 = vld [vmem:[%s1 + $0x548] sm:$0xff]
  %v199 = vld [vmem:[%s1 + $0x550] sm:$0xff]
  %v200 = vld [vmem:[%s1 + $0x558] sm:$0xff]
  %v201 = vld [vmem:[%s1 + $0x560] sm:$0xff]
  %v202 = vld [vmem:[%s1 + $0x568] sm:$0xff]
  %v203 = vld [vmem:[%s1 + $0x570] sm:$0xff]
  %v204 = vld [vmem:[%s1 + $0x578] sm:$0xff]
  %v205 = vld [vmem:[%s1 + $0x580] sm:$0xff]
  %v206 = vld [vmem:[%s1 + $0x588] sm:$0xff]
  %v207 = vld [vmem:[%s1 + $0x590] sm:$0xff]
  %v208 = vld [vmem:[%s1 + $0x598] sm:$0xff]
  %v209 = vld [vmem:[%s1 + $0x5a0] sm:$0xff]
  %v210 = vld [vmem:[%s1 + $0x5a8] sm:$0xff]
  %v211 = vld [vmem:[%s1 + $0x5b0] sm:$0xff]
  %v212 = vld [vmem:[%s1 + $0x5b8] sm:$0xff]
  %v213 = vld [vmem:[%s1 + $0x5c0] sm:$0xff]
  %v214 = vld [vmem:[%s1 + $0x5c8] sm:$0xff]
  %v215 = vld [vmem:[%s1 + $0x5d0] sm:$0xff]
  %v216 = vld [vmem:[%s1 + $0x5d8] sm:$0xff]
  %v217 = vld [vmem:[%s1 + $0x5e0] sm:$0xff]
  %v218 = vld [vmem:[%s1 + $0x5e8] sm:$0xff]
  %v219 = vld [vmem:[%s1 + $0x5f0] sm:$0xff]
  %v220 = vld [vmem:[%s1 + $0x5f8] sm:$0xff]
  %v221 = vld [vmem:[%s1 + $0x600] sm:$0xff]
  %v222 = vld [vmem:[%s1 + $0x608] sm:$0xff]
  %v223 = vld [vmem:[%s1 + $0x610] sm:$0xff]
  %v224 = vld [vmem:[%s1 + $0x618] sm:$0xff]
  %v225 = vld [vmem:[%s1 + $0x620] sm:$0xff]
  %v226 = vld [vmem:[%s1 + $0x628] sm:$0xff]
  %v227 = vld [vmem:[%s1 + $0x630] sm:$0xff]
  %v228 = vld [vmem:[%s1 + $0x638] sm:$0xff]
  %v229 = vld [vmem:[%s1 + $0x640] sm:$0xff]
  %v230 = vld [vmem:[%s1 + $0x648] sm:$0xff]
  %v231 = vld [vmem:[%s1 + $0x650] sm:$0xff]
  %v232 = vld [vmem:[%s1 + $0x658] sm:$0xff]
  %v233 = vld [vmem:[%s1 + $0x660] sm:$0xff]
  %v234 = vld [vmem:[%s1 + $0x668] sm:$0xff]
  %v235 = vld [vmem:[%s1 + $0x670] sm:$0xff]
  %v236 = vld [vmem:[%s1 + $0x678] sm:$0xff]
  %v237 = vld [vmem:[%s1 + $0x680] sm:$0xff]
  %v238 = vld [vmem:[%s1 + $0x688] sm:$0xff]
  %v239 = vld [vmem:[%s1 + $0x690] sm:$0xff]
  %v240 = vld [vmem:[%s1 + $0x698] sm:$0xff]
  %v241 = vld [vmem:[%s1 + $0x6a0] sm:$0xff]
  %v242 = vld [vmem:[%s1 + $0x6a8] sm:$0xff]
  %v243 = vld [vmem:[%s1 + $0x6b0] sm:$0xff]
  %v244 = vld [vmem:[%s1 + $0x6b8] sm:$0xff]
  %v245 = vld [vmem:[%s1 + $0x6c0] sm:$0xff]
  %v246 = vld [vmem:[%s1 + $0x6c8] sm:$0xff]
  %v247 = vld [vmem:[%s1 + $0x6d0] sm:$0xff]
  %v248 = vld [vmem:[%s1 + $0x6d8] sm:$0xff]
  %v249 = vld [vmem:[%s1 + $0x6e0] sm:$0xff]
  %v250 = vld [vmem:[%s1 + $0x6e8] sm:$0xff]
  %v251 = vld [vmem:[%s1 + $0x6f0] sm:$0xff]
  %v252 = vld [vmem:[%s1 + $0x6f8] sm:$0xff]
  %v253 = vld [vmem:[%s1 + $0x700] sm:$0xff]
  %v254 = vld [vmem:[%s1 + $0x708] sm:$0xff]
  %v255 = vld [vmem:[%s1 + $0x710] sm:$0xff]
  %v256 = vld [vmem:[%s1 + $0x718] sm:$0xff]
  %v257 = vld [vmem:[%s1 + $0x720] sm:$0xff]
  %v258 = vld [vmem:[%s1 + $0x728] sm:$0xff]
  %v259 = vld [vmem:[%s1 + $0x730] sm:$0xff]
  %v260 = vld [vmem:[%s1 + $0x738] sm:$0xff]
  %v261 = vld [vmem:[%s1 + $0x740] sm:$0xff]
  %v262 = vld [vmem:[%s1 + $0x748] sm:$0xff]
  %v263 = vld [vmem:[%s1 + $0x750] sm:$0xff]
  %v264 = vld [vmem:[%s1 + $0x758] sm:$0xff]
  %v265 = vld [vmem:[%s1 + $0x760] sm:$0xff]
  %v266 = vld [vmem:[%s1 + $0x768] sm:$0xff]
  %v267 = vld [vmem:[%s1 + $0x770] sm:$0xff]
  %v268 = vld [vmem:[%s1 + $0x778] sm:$0xff]
  %v269 = vld [vmem:[%s1 + $0x780] sm:$0xff]
  %v270 = vld [vmem:[%s1 + $0x788] sm:$0xff]
  %v271 = vld [vmem:[%s1 + $0x790] sm:$0xff]
  %v272 = vld [vmem:[%s1 + $0x798] sm:$0xff]
  %v273 = vld [vmem:[%s1 + $0x7a0] sm:$0xff]
  %v274 = vld [vmem:[%s1 + $0x7a8] sm:$0xff]
  %v275 = vld [vmem:[%s1 + $0x7b0] sm:$0xff]
  %v276 = vld [vmem:[%s1 + $0x7b8] sm:$0xff]
  %v277 = vld [vmem:[%s1 + $0x7c0] sm:$0xff]
  %v278 = vld [vmem:[%s1 + $0x7c8] sm:$0xff]
  %v279 = vld [vmem:[%s1 + $0x7d0] sm:$0xff]
  %v280 = vld [vmem:[%s1 + $0x7d8] sm:$0xff]
  %v281 = vld [vmem:[%s1 + $0x7e0] sm:$0xff]
  %v282 = vld [vmem:[%s1 + $0x7e8] sm:$0xff]
  %v283 = vld [vmem:[%s1 + $0x7f0] sm:$0xff]
  %v284 = vld [vmem:[%s1 + $0x7f8] sm:$0xff]
  %v285 = vld [vmem:[%s1 + $0x800] sm:$0xff]
  %v286 = vld [vmem:[%s1 + $0x808] sm:$0xff]
  %v287 = vld [vmem:[%s1 + $0x810] sm:$0xff]
  %v288 = vld [vmem:[%s1 + $0x818] sm:$0xff]
  %v289 = vld [vmem:[%s1 + $0x820] sm:$0xff]
  %v290 = vld [vmem:[%s1 + $0x828] sm:$0xff]
  %v291 = vld [vmem:[%s1 + $0x830] sm:$0xff]
  %v292 = vld [vmem:[%s1 + $0x838] sm:$0xff]
  %v293 = vld [vmem:[%s1 + $0x840] sm:$0xff]
  %v294 = vld [vmem:[%s1 + $0x848] sm:$0xff]
  %v295 = vld [vmem:[%s1 + $0x850] sm:$0xff]
  %v296 = vld [vmem:[%s1 + $0x858] sm:$0xff]
  %v297 = vld [vmem:[%s1 + $0x860] sm:$0xff]
  %v298 = vld [vmem:[%s1 + $0x868] sm:$0xff]
  %v299 = vld [vmem:[%s1 + $0x870] sm:$0xff]
  %v300 = vld [vmem:[%s1 + $0x878] sm:$0xff]
  %v301 = vld [vmem:[%s1 + $0x880] sm:$0xff]
  %v302 = vld [vmem:[%s1 + $0x888] sm:$0xff]
  %v303 = vld [vmem:[%s1 + $0x890] sm:$0xff]
  %v304 = vld [vmem:[%s1 + $0x898] sm:$0xff]
  %v305 = vld [vmem:[%s1 + $0x8a0] sm:$0xff]
  %v306 = vld [vmem:[%s1 + $0x8a8] sm:$0xff]
  %v307 = vld [vmem:[%s1 + $0x8b0] sm:$0xff]
  %v308 = vld [vmem:[%s1 + $0x8b8] sm:$0xff]
  %v309 = vld [vmem:[%s1 + $0x8c0] sm:$0xff]
  %v310 = vld [vmem:[%s1 + $0x8c8] sm:$0xff]
  %v311 = vld [vmem:[%s1 + $0x8d0] sm:$0xff]
  %v312 = vld [vmem:[%s1 + $0x8d8] sm:$0xff]
  %v313 = vld [vmem:[%s1 + $0x8e0] sm:$0xff]
  %v314 = vld [vmem:[%s1 + $0x8e8] sm:$0xff]
  %v315 = vld [vmem:[%s1 + $0x8f0] sm:$0xff]
  %v316 = vld [vmem:[%s1 + $0x8f8] sm:$0xff]
  %v317 = vld [vmem:[%s1 + $0x900] sm:$0xff]
  %v318 = vld [vmem:[%s1 + $0x908] sm:$0xff]
  %v319 = vld [vmem:[%s1 + $0x910] sm:$0xff]
  %v320 = vld [vmem:[%s1 + $0x918] sm:$0xff]
  %v321 = vld [vmem:[%s1 + $0x920] sm:$0xff]
  %v322 = vld [vmem:[%s1 + $0x928] sm:$0xff]
  %v323 = vld [vmem:[%s1 + $0x930] sm:$0xff]
  %v324 = vld [vmem:[%s1 + $0x938] sm:$0xff]
  %v325 = vld [vmem:[%s1 + $0x940] sm:$0xff]
  %v326 = vld [vmem:[%s1 + $0x948] sm:$0xff]
  %v327 = vld [vmem:[%s1 + $0x950] sm:$0xff]
  %v328 = vld [vmem:[%s1 + $0x958] sm:$0xff]
  %v329 = vld [vmem:[%s1 + $0x960] sm:$0xff]
  %v330 = vld [vmem:[%s1 + $0x968] sm:$0xff]
  %v331 = vld [vmem:[%s1 + $0x970] sm:$0xff]
  %v332 = vld [vmem:[%s1 + $0x978] sm:$0xff]
  %v333 = vld [vmem:[%s1 + $0x980] sm:$0xff]
  %v334 = vld [vmem:[%s1 + $0x988] sm:$0xff]
  %v335 = vld [vmem:[%s1 + $0x990] sm:$0xff]
  %v336 = vld [vmem:[%s1 + $0x998] sm:$0xff]
  %v337 = vld [vmem:[%s1 + $0x9a0] sm:$0xff]
  %v338 = vld [vmem:[%s1 + $0x9a8] sm:$0xff]
  %v339 = vld [vmem:[%s1 + $0x9b0] sm:$0xff]
  %v340 = vld [vmem:[%s1 + $0x9b8] sm:$0xff]
  %v341 = vld [vmem:[%s1 + $0x9c0] sm:$0xff]
  %v342 = vld [vmem:[%s1 + $0x9c8] sm:$0xff]
  %v343 = vld [vmem:[%s1 + $0x9d0] sm:$0xff]
  %v344 = vld [vmem:[%s1 + $0x9d8] sm:$0xff]
  %v345 = vld [vmem:[%s1 + $0x9e0] sm:$0xff]
  %v346 = vld [vmem:[%s1 + $0x9e8] sm:$0xff]
  %v347 = vld [vmem:[%s1 + $0x9f0] sm:$0xff]
  %v348 = vld [vmem:[%s1 + $0x9f8] sm:$0xff]
  %v349 = vld [vmem:[%s1 + $0xa00] sm:$0xff]
  %v350 = vld [vmem:[%s1 + $0xa08] sm:$0xff]
  %v351 = vld [vmem:[%s1 + $0xa10] sm:$0xff]
  %v352 = vld [vmem:[%s1 + $0xa18] sm:$0xff]
  %v353 = vld [vmem:[%s1 + $0xa20] sm:$0xff]
  %v354 = vld [vmem:[%s1 + $0xa28] sm:$0xff]
  %v355 = vld [vmem:[%s1 + $0xa30] sm:$0xff]
  %v356 = vld [vmem:[%s1 + $0xa38] sm:$0xff]
  %v357 = vld [vmem:[%s1 + $0xa40] sm:$0xff]
  %v358 = vld [vmem:[%s1 + $0xa48] sm:$0xff]
  %v359 = vld [vmem:[%s1 + $0xa50] sm:$0xff]
  %v360 = vld [vmem:[%s1 + $0xa58] sm:$0xff]
  %v361 = vld [vmem:[%s1 + $0xa60] sm:$0xff]
  %v362 = vld [vmem:[%s1 + $0xa68] sm:$0xff]
  %v363 = vld [vmem:[%s1 + $0xa70] sm:$0xff]
  %v364 = vld [vmem:[%s1 + $0xa78] sm:$0xff]
  %v365 = vld [vmem:[%s1 + $0xa80] sm:$0xff]
  %v366 = vld [vmem:[%s1 + $0xa88] sm:$0xff]
  %v367 = vld [vmem:[%s1 + $0xa90] sm:$0xff]
  %v368 = vld [vmem:[%s1 + $0xa98] sm:$0xff]
  %v369 = vld [vmem:[%s1 + $0xaa0] sm:$0xff]
  %v370 = vld [vmem:[%s1 + $0xaa8] sm:$0xff]
  %v371 = vld [vmem:[%s1 + $0xab0] sm:$0xff]
  %v372 = vld [vmem:[%s1 + $0xab8] sm:$0xff]
  %v373 = vld [vmem:[%s1 + $0xac0] sm:$0xff]
  %v374 = vld [vmem:[%s1 + $0xac8] sm:$0xff]
  %v375 = vld [vmem:[%s1 + $0xad0] sm:$0xff]
  %v376 = vld [vmem:[%s1 + $0xad8] sm:$0xff]
  %v377 = vld [vmem:[%s1 + $0xae0] sm:$0xff]
  %v378 = vld [vmem:[%s1 + $0xae8] sm:$0xff]
  %v379 = vld [vmem:[%s1 + $0xaf0] sm:$0xff]
  %v380 = vld [vmem:[%s1 + $0xaf8] sm:$0xff]
  %v381 = vld [vmem:[%s1 + $0xb00] sm:$0xff]
  %v382 = vld [vmem:[%s1 + $0xb08] sm:$0xff]
  %v383 = vld [vmem:[%s1 + $0xb10] sm:$0xff]
  %v384 = vld [vmem:[%s1 + $0xb18] sm:$0xff]
  %v385 = vld [vmem:[%s1 + $0xb20] sm:$0xff]
  %v386 = vld [vmem:[%s1 + $0xb28] sm:$0xff]
  %v387 = vld [vmem:[%s1 + $0xb30] sm:$0xff]
  %v388 = vld [vmem:[%s1 + $0xb38] sm:$0xff]
  %v389 = vld [vmem:[%s1 + $0xb40] sm:$0xff]
  %v390 = vld [vmem:[%s1 + $0xb48] sm:$0xff]
  %v391 = vld [vmem:[%s1 + $0xb50] sm:$0xff]
  %v392 = vld [vmem:[%s1 + $0xb58] sm:$0xff]
  %v393 = vld [vmem:[%s1 + $0xb60] sm:$0xff]
  %v394 = vld [vmem:[%s1 + $0xb68] sm:$0xff]
  %v395 = vld [vmem:[%s1 + $0xb70] sm:$0xff]
  %v396 = vld [vmem:[%s1 + $0xb78] sm:$0xff]
  %v397 = vld [vmem:[%s1 + $0xb80] sm:$0xff]
  %v398 = vld [vmem:[%s1 + $0xb88] sm:$0xff]
  %v399 = vld [vmem:[%s1 + $0xb90] sm:$0xff]
  %v400 = vld [vmem:[%s1 + $0xb98] sm:$0xff]
  %v401 = vld [vmem:[%s1 + $0xba0] sm:$0xff]
  %v402 = vld [vmem:[%s1 + $0xba8] sm:$0xff]
  %v403 = vld [vmem:[%s1 + $0xbb0] sm:$0xff]
  %v404 = vld [vmem:[%s1 + $0xbb8] sm:$0xff]
  %v405 = vld [vmem:[%s1 + $0xbc0] sm:$0xff]
  %v406 = vld [vmem:[%s1 + $0xbc8] sm:$0xff]
  %v407 = vld [vmem:[%s1 + $0xbd0] sm:$0xff]
  %v408 = vld [vmem:[%s1 + $0xbd8] sm:$0xff]
  %v409 = vld [vmem:[%s1 + $0xbe0] sm:$0xff]
  %v410 = vld [vmem:[%s1 + $0xbe8] sm:$0xff]
  %v411 = vld [vmem:[%s1 + $0xbf0] sm:$0xff]
  %v412 = vld [vmem:[%s1 + $0xbf8] sm:$0xff]
  %v413 = vld [vmem:[%s1 + $0xc00] sm:$0xff]
  %v414 = vld [vmem:[%s1 + $0xc08] sm:$0xff]
  %v415 = vld [vmem:[%s1 + $0xc10] sm:$0xff]
  %v416 = vld [vmem:[%s1 + $0xc18] sm:$0xff]
  %v417 = vld [vmem:[%s1 + $0xc20] sm:$0xff]
  %v418 = vld [vmem:[%s1 + $0xc28] sm:$0xff]
  %v419 = vld [vmem:[%s1 + $0xc30] sm:$0xff]
  %v420 = vld [vmem:[%s1 + $0xc38] sm:$0xff]
  %v421 = vld [vmem:[%s1 + $0xc40] sm:$0xff]
  %v422 = vld [vmem:[%s1 + $0xc48] sm:$0xff]
  %v423 = vld [vmem:[%s1 + $0xc50] sm:$0xff]
  %v424 = vld [vmem:[%s1 + $0xc58] sm:$0xff]
  %v425 = vld [vmem:[%s1 + $0xc60] sm:$0xff]
  %v426 = vld [vmem:[%s1 + $0xc68] sm:$0xff]
  %v427 = vld [vmem:[%s1 + $0xc70] sm:$0xff]
  %v428 = vld [vmem:[%s1 + $0xc78] sm:$0xff]
  %v429 = vld [vmem:[%s1 + $0xc80] sm:$0xff]
  %v430 = vld [vmem:[%s1 + $0xc88] sm:$0xff]
  %v431 = vld [vmem:[%s1 + $0xc90] sm:$0xff]
  %v432 = vld [vmem:[%s1 + $0xc98] sm:$0xff]
  %v433 = vld [vmem:[%s1 + $0xca0] sm:$0xff]
  %v434 = vld [vmem:[%s1 + $0xca8] sm:$0xff]
  %v435 = vld [vmem:[%s1 + $0xcb0] sm:$0xff]
  %v436 = vld [vmem:[%s1 + $0xcb8] sm:$0xff]
  %v437 = vld [vmem:[%s1 + $0xcc0] sm:$0xff]
  %v438 = vld [vmem:[%s1 + $0xcc8] sm:$0xff]
  %v439 = vld [vmem:[%s1 + $0xcd0] sm:$0xff]
  %v440 = vld [vmem:[%s1 + $0xcd8] sm:$0xff]
  %v441 = vld [vmem:[%s1 + $0xce0] sm:$0xff]
  %v442 = vld [vmem:[%s1 + $0xce8] sm:$0xff]
  %v443 = vld [vmem:[%s1 + $0xcf0] sm:$0xff]
  %v444 = vld [vmem:[%s1 + $0xcf8] sm:$0xff]
  %v445 = vld [vmem:[%s1 + $0xd00] sm:$0xff]
  %v446 = vld [vmem:[%s1 + $0xd08] sm:$0xff]
  %v447 = vld [vmem:[%s1 + $0xd10] sm:$0xff]
  %v448 = vld [vmem:[%s1 + $0xd18] sm:$0xff]
  %v449 = vld [vmem:[%s1 + $0xd20] sm:$0xff]
  %v450 = vld [vmem:[%s1 + $0xd28] sm:$0xff]
  %v451 = vld [vmem:[%s1 + $0xd30] sm:$0xff]
  %v452 = vld [vmem:[%s1 + $0xd38] sm:$0xff]
  %v453 = vld [vmem:[%s1 + $0xd40] sm:$0xff]
  %v454 = vld [vmem:[%s1 + $0xd48] sm:$0xff]
  %v455 = vld [vmem:[%s1 + $0xd50] sm:$0xff]
  %v456 = vld [vmem:[%s1 + $0xd58] sm:$0xff]
  %v457 = vld [vmem:[%s1 + $0xd60] sm:$0xff]
  %v458 = vld [vmem:[%s1 + $0xd68] sm:$0xff]
  %v459 = vld [vmem:[%s1 + $0xd70] sm:$0xff]
  %v460 = vld [vmem:[%s1 + $0xd78] sm:$0xff]
  %v461 = vld [vmem:[%s2] sm:$0x3]
  %v463 = vlaneseq
  %v464 = vshrl.u32 %v463, 7
  %v465 = vsub.s32 0, %v464
  %v466 = vrot.slane %v461, %v465
  %v467 = vlaneseq
  %v468 = vshrl.u32 %v467, 7
  %v469 = vsub.s32 1, %v468
  %v470 = vrot.slane %v461, %v469
  %v487 = vunpack.c.l.b16 %v15
  %v488 = vunpack.c.h.b16 %v15
  %v489 = vunpack.c.l.b16 %v16
  %v490 = vunpack.c.h.b16 %v16
  %v491 = vunpack.c.l.b16 %v17
  %v492 = vunpack.c.h.b16 %v17
  %v493 = vunpack.c.l.b16 %v18
  %v494 = vunpack.c.h.b16 %v18
  %v495 = vunpack.c.l.b16 %v19
  %v496 = vunpack.c.h.b16 %v19
  %v497 = vunpack.c.l.b16 %v20
  %v498 = vunpack.c.h.b16 %v20
  %v499 = vunpack.c.l.b16 %v21
  %v500 = vunpack.c.h.b16 %v21
  %v501 = vunpack.c.l.b16 %v22
  %v502 = vunpack.c.h.b16 %v22
  %v503 = vunpack.c.l.b16 %v23
  %v504 = vunpack.c.h.b16 %v23
  %v505 = vunpack.c.l.b16 %v24
  %v506 = vunpack.c.h.b16 %v24
  %v507 = vunpack.c.l.b16 %v25
  %v508 = vunpack.c.h.b16 %v25
  %v509 = vunpack.c.l.b16 %v26
  %v510 = vunpack.c.h.b16 %v26
  %v511 = vunpack.c.l.b16 %v27
  %v512 = vunpack.c.h.b16 %v27
  %v513 = vunpack.c.l.b16 %v28
  %v514 = vpack.c.b16 %v487, %v487
  %v515 = vpack.c.b16 %v488, %v488
  %v516 = vpack.c.b16 %v489, %v489
  %v517 = vpack.c.b16 %v490, %v490
  %v518 = vpack.c.b16 %v491, %v491
  %v519 = vpack.c.b16 %v492, %v492
  %v520 = vpack.c.b16 %v493, %v493
  %v521 = vpack.c.b16 %v494, %v494
  %v522 = vpack.c.b16 %v495, %v495
  %v523 = vpack.c.b16 %v496, %v496
  %v524 = vpack.c.b16 %v497, %v497
  %v525 = vpack.c.b16 %v498, %v498
  %v526 = vpack.c.b16 %v499, %v499
  %v527 = vpack.c.b16 %v500, %v500
  %v528 = vpack.c.b16 %v501, %v501
  %v529 = vpack.c.b16 %v502, %v502
  %v530 = vpack.c.b16 %v503, %v503
  %v531 = vpack.c.b16 %v504, %v504
  %v532 = vpack.c.b16 %v505, %v505
  %v533 = vpack.c.b16 %v506, %v506
  %v534 = vpack.c.b16 %v507, %v507
  %v535 = vpack.c.b16 %v508, %v508
  %v536 = vpack.c.b16 %v509, %v509
  %v537 = vpack.c.b16 %v510, %v510
  %v538 = vpack.c.b16 %v511, %v511
  %v539 = vpack.c.b16 %v512, %v512
  %v540 = vpack.c.b16 %v513, %v513
  %v1000 = vunpack.c.l.b16 %v29
  %v1001 = vunpack.c.h.b16 %v29
  %v1002 = vunpack.c.l.b16 %v30
  %v1003 = vunpack.c.h.b16 %v30
  %v1004 = vunpack.c.l.b16 %v31
  %v1005 = vunpack.c.h.b16 %v31
  %v1006 = vunpack.c.l.b16 %v32
  %v1007 = vunpack.c.h.b16 %v32
  %v1008 = vunpack.c.l.b16 %v33
  %v1009 = vunpack.c.h.b16 %v33
  %v1010 = vunpack.c.l.b16 %v34
  %v1011 = vunpack.c.h.b16 %v34
  %v1012 = vunpack.c.l.b16 %v35
  %v1013 = vunpack.c.h.b16 %v35
  %v1014 = vunpack.c.l.b16 %v36
  %v1015 = vunpack.c.h.b16 %v36
  %v1016 = vunpack.c.l.b16 %v37
  %v1017 = vunpack.c.h.b16 %v37
  %v1018 = vunpack.c.l.b16 %v38
  %v1019 = vunpack.c.h.b16 %v38
  %v1020 = vunpack.c.l.b16 %v39
  %v1021 = vunpack.c.h.b16 %v39
  %v1022 = vunpack.c.l.b16 %v40
  %v1023 = vunpack.c.h.b16 %v40
  %v1024 = vunpack.c.l.b16 %v41
  %v1025 = vunpack.c.h.b16 %v41
  %v1026 = vunpack.c.l.b16 %v42
  %v1027 = vunpack.c.h.b16 %v42
  %v1028 = vunpack.c.l.b16 %v43
  %v1029 = vunpack.c.h.b16 %v43
  %v1030 = vunpack.c.l.b16 %v44
  %v1031 = vunpack.c.h.b16 %v44
  %v1032 = vunpack.c.l.b16 %v45
  %v1033 = vunpack.c.h.b16 %v45
  %v1034 = vunpack.c.l.b16 %v46
  %v1035 = vunpack.c.h.b16 %v46
  %v1036 = vunpack.c.l.b16 %v47
  %v1037 = vunpack.c.h.b16 %v47
  %v1038 = vunpack.c.l.b16 %v48
  %v1039 = vunpack.c.h.b16 %v48
  %v1040 = vunpack.c.l.b16 %v49
  %v1041 = vunpack.c.h.b16 %v49
  %v1042 = vunpack.c.l.b16 %v50
  %v1043 = vunpack.c.h.b16 %v50
  %v1044 = vunpack.c.l.b16 %v51
  %v1045 = vunpack.c.h.b16 %v51
  %v1046 = vunpack.c.l.b16 %v52
  %v1047 = vunpack.c.h.b16 %v52
  %v1048 = vunpack.c.l.b16 %v53
  %v1049 = vunpack.c.h.b16 %v53
  %v1050 = vunpack.c.l.b16 %v54
  %v1051 = vunpack.c.h.b16 %v54
  %v1052 = vunpack.c.l.b16 %v55
  %v1053 = vunpack.c.h.b16 %v55
  %v1054 = vunpack.c.l.b16 %v56
  %v1055 = vunpack.c.h.b16 %v56
  %v1056 = vunpack.c.l.b16 %v57
  %v1057 = vunpack.c.h.b16 %v57
  %v1058 = vunpack.c.l.b16 %v58
  %v1059 = vunpack.c.h.b16 %v58
  %v1060 = vunpack.c.l.b16 %v59
  %v1061 = vunpack.c.h.b16 %v59
  %v1062 = vunpack.c.l.b16 %v60
  %v1063 = vunpack.c.h.b16 %v60
  %v1064 = vunpack.c.l.b16 %v61
  %v1065 = vunpack.c.h.b16 %v61
  %v1066 = vunpack.c.l.b16 %v62
  %v1067 = vunpack.c.h.b16 %v62
  %v1068 = vunpack.c.l.b16 %v63
  %v1069 = vunpack.c.h.b16 %v63
  %v1070 = vunpack.c.l.b16 %v64
  %v1071 = vunpack.c.h.b16 %v64
  %v1072 = vunpack.c.l.b16 %v65
  %v1073 = vunpack.c.h.b16 %v65
  %v1074 = vunpack.c.l.b16 %v66
  %v1075 = vunpack.c.h.b16 %v66
  %v1076 = vunpack.c.l.b16 %v67
  %v1077 = vunpack.c.h.b16 %v67
  %v1078 = vunpack.c.l.b16 %v68
  %v1079 = vunpack.c.h.b16 %v68
  %v1080 = vunpack.c.l.b16 %v69
  %v1081 = vunpack.c.h.b16 %v69
  %v1082 = vunpack.c.l.b16 %v70
  %v1083 = vunpack.c.h.b16 %v70
  %v1084 = vunpack.c.l.b16 %v71
  %v1085 = vunpack.c.h.b16 %v71
  %v1086 = vunpack.c.l.b16 %v72
  %v1087 = vunpack.c.h.b16 %v72
  %v1088 = vunpack.c.l.b16 %v73
  %v1089 = vunpack.c.h.b16 %v73
  %v1090 = vunpack.c.l.b16 %v74
  %v1091 = vunpack.c.h.b16 %v74
  %v1092 = vunpack.c.l.b16 %v75
  %v1093 = vunpack.c.h.b16 %v75
  %v1094 = vunpack.c.l.b16 %v76
  %v1095 = vunpack.c.h.b16 %v76
  %v1096 = vunpack.c.l.b16 %v77
  %v1097 = vunpack.c.h.b16 %v77
  %v1098 = vunpack.c.l.b16 %v78
  %v1099 = vunpack.c.h.b16 %v78
  %v1100 = vunpack.c.l.b16 %v79
  %v1101 = vunpack.c.h.b16 %v79
  %v1102 = vunpack.c.l.b16 %v80
  %v1103 = vunpack.c.h.b16 %v80
  %v1104 = vunpack.c.l.b16 %v81
  %v1105 = vunpack.c.h.b16 %v81
  %v1106 = vunpack.c.l.b16 %v82
  %v1107 = vunpack.c.h.b16 %v82
  %v1108 = vunpack.c.l.b16 %v83
  %v1109 = vunpack.c.h.b16 %v83
  %v1110 = vunpack.c.l.b16 %v84
  %v1111 = vunpack.c.h.b16 %v84
  %v1112 = vunpack.c.l.b16 %v85
  %v1113 = vunpack.c.h.b16 %v85
  %v1114 = vunpack.c.l.b16 %v86
  %v1115 = vunpack.c.h.b16 %v86
  %v1116 = vunpack.c.l.b16 %v87
  %v1117 = vunpack.c.h.b16 %v87
  %v1118 = vunpack.c.l.b16 %v88
  %v1119 = vunpack.c.h.b16 %v88
  %v1120 = vunpack.c.l.b16 %v89
  %v1121 = vunpack.c.h.b16 %v89
  %v1122 = vunpack.c.l.b16 %v90
  %v1123 = vunpack.c.h.b16 %v90
  %v1124 = vunpack.c.l.b16 %v91
  %v1125 = vunpack.c.h.b16 %v91
  %v1126 = vunpack.c.l.b16 %v92
  %v1127 = vunpack.c.h.b16 %v92
  %v1128 = vunpack.c.l.b16 %v93
  %v1129 = vunpack.c.h.b16 %v93
  %v1130 = vunpack.c.l.b16 %v94
  %v1131 = vunpack.c.h.b16 %v94
  %v1132 = vunpack.c.l.b16 %v95
  %v1133 = vunpack.c.h.b16 %v95
  %v1134 = vunpack.c.l.b16 %v96
  %v1135 = vunpack.c.h.b16 %v96
  %v1136 = vunpack.c.l.b16 %v97
  %v1137 = vunpack.c.h.b16 %v97
  %v1138 = vunpack.c.l.b16 %v98
  %v1139 = vunpack.c.h.b16 %v98
  %v1140 = vunpack.c.l.b16 %v99
  %v1141 = vunpack.c.h.b16 %v99
  %v1142 = vunpack.c.l.b16 %v100
  %v1143 = vunpack.c.h.b16 %v100
  %v1144 = vunpack.c.l.b16 %v101
  %v1145 = vunpack.c.h.b16 %v101
  %v1146 = vunpack.c.l.b16 %v102
  %v1147 = vunpack.c.h.b16 %v102
  %v1148 = vunpack.c.l.b16 %v103
  %v1149 = vunpack.c.h.b16 %v103
  %v1150 = vunpack.c.l.b16 %v104
  %v1151 = vunpack.c.h.b16 %v104
  %v1152 = vunpack.c.l.b16 %v105
  %v1153 = vunpack.c.h.b16 %v105
  %v1154 = vunpack.c.l.b16 %v106
  %v1155 = vunpack.c.h.b16 %v106
  %v1156 = vunpack.c.l.b16 %v107
  %v1157 = vunpack.c.h.b16 %v107
  %v1158 = vunpack.c.l.b16 %v108
  %v1159 = vunpack.c.h.b16 %v108
  %v1160 = vunpack.c.l.b16 %v109
  %v1161 = vunpack.c.h.b16 %v109
  %v1162 = vunpack.c.l.b16 %v110
  %v1163 = vunpack.c.h.b16 %v110
  %v1164 = vunpack.c.l.b16 %v111
  %v1165 = vunpack.c.h.b16 %v111
  %v1166 = vunpack.c.l.b16 %v112
  %v1167 = vunpack.c.h.b16 %v112
  %v1168 = vunpack.c.l.b16 %v113
  %v1169 = vunpack.c.h.b16 %v113
  %v1170 = vunpack.c.l.b16 %v114
  %v1171 = vunpack.c.h.b16 %v114
  %v1172 = vunpack.c.l.b16 %v115
  %v1173 = vunpack.c.h.b16 %v115
  %v1174 = vunpack.c.l.b16 %v116
  %v1175 = vunpack.c.h.b16 %v116
  %v1176 = vunpack.c.l.b16 %v117
  %v1177 = vunpack.c.h.b16 %v117
  %v1178 = vunpack.c.l.b16 %v118
  %v1179 = vunpack.c.h.b16 %v118
  %v1180 = vunpack.c.l.b16 %v119
  %v1181 = vunpack.c.h.b16 %v119
  %v1182 = vunpack.c.l.b16 %v120
  %v1183 = vunpack.c.h.b16 %v120
  %v1184 = vunpack.c.l.b16 %v121
  %v1185 = vunpack.c.h.b16 %v121
  %v1186 = vunpack.c.l.b16 %v122
  %v1187 = vunpack.c.h.b16 %v122
  %v1188 = vunpack.c.l.b16 %v123
  %v1189 = vunpack.c.h.b16 %v123
  %v1190 = vunpack.c.l.b16 %v124
  %v1191 = vunpack.c.h.b16 %v124
  %v1192 = vunpack.c.l.b16 %v125
  %v1193 = vunpack.c.h.b16 %v125
  %v1194 = vunpack.c.l.b16 %v126
  %v1195 = vunpack.c.h.b16 %v126
  %v1196 = vunpack.c.l.b16 %v127
  %v1197 = vunpack.c.h.b16 %v127
  %v1198 = vunpack.c.l.b16 %v128
  %v1199 = vunpack.c.h.b16 %v128
  %v1200 = vunpack.c.l.b16 %v129
  %v1201 = vunpack.c.h.b16 %v129
  %v1202 = vunpack.c.l.b16 %v130
  %v1203 = vunpack.c.h.b16 %v130
  %v1204 = vunpack.c.l.b16 %v131
  %v1205 = vunpack.c.h.b16 %v131
  %v1206 = vunpack.c.l.b16 %v132
  %v1207 = vunpack.c.h.b16 %v132
  %v1208 = vunpack.c.l.b16 %v133
  %v1209 = vunpack.c.h.b16 %v133
  %v1210 = vunpack.c.l.b16 %v134
  %v1211 = vunpack.c.h.b16 %v134
  %v1212 = vunpack.c.l.b16 %v135
  %v1213 = vunpack.c.h.b16 %v135
  %v1214 = vunpack.c.l.b16 %v136
  %v1215 = vunpack.c.h.b16 %v136
  %v1216 = vunpack.c.l.b16 %v137
  %v1217 = vunpack.c.h.b16 %v137
  %v1218 = vunpack.c.l.b16 %v138
  %v1219 = vunpack.c.h.b16 %v138
  %v1220 = vunpack.c.l.b16 %v139
  %v1221 = vunpack.c.h.b16 %v139
  %v1222 = vunpack.c.l.b16 %v140
  %v1223 = vunpack.c.h.b16 %v140
  %v1224 = vunpack.c.l.b16 %v141
  %v1225 = vunpack.c.h.b16 %v141
  %v1226 = vunpack.c.l.b16 %v142
  %v1227 = vunpack.c.h.b16 %v142
  %v1228 = vunpack.c.l.b16 %v143
  %v1229 = vunpack.c.h.b16 %v143
  %v1230 = vunpack.c.l.b16 %v144
  %v1231 = vunpack.c.h.b16 %v144
  %v1232 = vunpack.c.l.b16 %v145
  %v1233 = vunpack.c.h.b16 %v145
  %v1234 = vunpack.c.l.b16 %v146
  %v1235 = vunpack.c.h.b16 %v146
  %v1236 = vunpack.c.l.b16 %v147
  %v1237 = vunpack.c.h.b16 %v147
  %v1238 = vunpack.c.l.b16 %v148
  %v1239 = vunpack.c.h.b16 %v148
  %v1240 = vunpack.c.l.b16 %v149
  %v1241 = vunpack.c.h.b16 %v149
  %v1242 = vunpack.c.l.b16 %v150
  %v1243 = vunpack.c.h.b16 %v150
  %v1244 = vunpack.c.l.b16 %v151
  %v1245 = vunpack.c.h.b16 %v151
  %v1246 = vunpack.c.l.b16 %v152
  %v1247 = vunpack.c.h.b16 %v152
  %v1248 = vunpack.c.l.b16 %v153
  %v1249 = vunpack.c.h.b16 %v153
  %v1250 = vunpack.c.l.b16 %v154
  %v1251 = vunpack.c.h.b16 %v154
  %v1252 = vunpack.c.l.b16 %v155
  %v1253 = vunpack.c.h.b16 %v155
  %v1254 = vunpack.c.l.b16 %v156
  %v1255 = vunpack.c.h.b16 %v156
  %v1256 = vunpack.c.l.b16 %v157
  %v1257 = vunpack.c.h.b16 %v157
  %v1258 = vunpack.c.l.b16 %v158
  %v1259 = vunpack.c.h.b16 %v158
  %v1260 = vunpack.c.l.b16 %v159
  %v1261 = vunpack.c.h.b16 %v159
  %v1262 = vunpack.c.l.b16 %v160
  %v1263 = vunpack.c.h.b16 %v160
  %v1264 = vunpack.c.l.b16 %v161
  %v1265 = vunpack.c.h.b16 %v161
  %v1266 = vunpack.c.l.b16 %v162
  %v1267 = vunpack.c.h.b16 %v162
  %v1268 = vunpack.c.l.b16 %v163
  %v1269 = vunpack.c.h.b16 %v163
  %v1270 = vunpack.c.l.b16 %v164
  %v1271 = vunpack.c.h.b16 %v164
  %v1272 = vunpack.c.l.b16 %v165
  %v1273 = vunpack.c.h.b16 %v165
  %v1274 = vunpack.c.l.b16 %v166
  %v1275 = vunpack.c.h.b16 %v166
  %v1276 = vunpack.c.l.b16 %v167
  %v1277 = vunpack.c.h.b16 %v167
  %v1278 = vunpack.c.l.b16 %v168
  %v1279 = vunpack.c.h.b16 %v168
  %v1280 = vunpack.c.l.b16 %v169
  %v1281 = vunpack.c.h.b16 %v169
  %v1282 = vunpack.c.l.b16 %v170
  %v1283 = vunpack.c.h.b16 %v170
  %v1284 = vunpack.c.l.b16 %v171
  %v1285 = vunpack.c.h.b16 %v171
  %v1286 = vunpack.c.l.b16 %v172
  %v1287 = vunpack.c.h.b16 %v172
  %v1288 = vunpack.c.l.b16 %v173
  %v1289 = vunpack.c.h.b16 %v173
  %v1290 = vunpack.c.l.b16 %v174
  %v1291 = vunpack.c.h.b16 %v174
  %v1292 = vunpack.c.l.b16 %v175
  %v1293 = vunpack.c.h.b16 %v175
  %v1294 = vunpack.c.l.b16 %v176
  %v1295 = vunpack.c.h.b16 %v176
  %v1296 = vunpack.c.l.b16 %v177
  %v1297 = vunpack.c.h.b16 %v177
  %v1298 = vunpack.c.l.b16 %v178
  %v1299 = vunpack.c.h.b16 %v178
  %v1300 = vunpack.c.l.b16 %v179
  %v1301 = vunpack.c.h.b16 %v179
  %v1302 = vunpack.c.l.b16 %v180
  %v1303 = vunpack.c.h.b16 %v180
  %v1304 = vunpack.c.l.b16 %v181
  %v1305 = vunpack.c.h.b16 %v181
  %v1306 = vunpack.c.l.b16 %v182
  %v1307 = vunpack.c.h.b16 %v182
  %v1308 = vunpack.c.l.b16 %v183
  %v1309 = vunpack.c.h.b16 %v183
  %v1310 = vunpack.c.l.b16 %v184
  %v1311 = vunpack.c.h.b16 %v184
  %v1312 = vunpack.c.l.b16 %v185
  %v1313 = vunpack.c.h.b16 %v185
  %v1314 = vunpack.c.l.b16 %v186
  %v1315 = vunpack.c.h.b16 %v186
  %v1316 = vunpack.c.l.b16 %v187
  %v1317 = vunpack.c.h.b16 %v187
  %v1318 = vunpack.c.l.b16 %v188
  %v1319 = vunpack.c.h.b16 %v188
  %v1320 = vunpack.c.l.b16 %v189
  %v1321 = vunpack.c.h.b16 %v189
  %v1322 = vunpack.c.l.b16 %v190
  %v1323 = vunpack.c.h.b16 %v190
  %v1324 = vunpack.c.l.b16 %v191
  %v1325 = vunpack.c.h.b16 %v191
  %v1326 = vunpack.c.l.b16 %v192
  %v1327 = vunpack.c.h.b16 %v192
  %v1328 = vunpack.c.l.b16 %v193
  %v1329 = vunpack.c.h.b16 %v193
  %v1330 = vunpack.c.l.b16 %v194
  %v1331 = vunpack.c.h.b16 %v194
  %v1332 = vunpack.c.l.b16 %v195
  %v1333 = vunpack.c.h.b16 %v195
  %v1334 = vunpack.c.l.b16 %v196
  %v1335 = vunpack.c.h.b16 %v196
  %v1336 = vunpack.c.l.b16 %v197
  %v1337 = vunpack.c.h.b16 %v197
  %v1338 = vunpack.c.l.b16 %v198
  %v1339 = vunpack.c.h.b16 %v198
  %v1340 = vunpack.c.l.b16 %v199
  %v1341 = vunpack.c.h.b16 %v199
  %v1342 = vunpack.c.l.b16 %v200
  %v1343 = vunpack.c.h.b16 %v200
  %v1344 = vunpack.c.l.b16 %v201
  %v1345 = vunpack.c.h.b16 %v201
  %v1346 = vunpack.c.l.b16 %v202
  %v1347 = vunpack.c.h.b16 %v202
  %v1348 = vunpack.c.l.b16 %v203
  %v1349 = vunpack.c.h.b16 %v203
  %v1350 = vunpack.c.l.b16 %v204
  %v1351 = vunpack.c.h.b16 %v204
  %v1352 = vunpack.c.l.b16 %v205
  %v1353 = vunpack.c.h.b16 %v205
  %v1354 = vunpack.c.l.b16 %v206
  %v1355 = vunpack.c.h.b16 %v206
  %v1356 = vunpack.c.l.b16 %v207
  %v1357 = vunpack.c.h.b16 %v207
  %v1358 = vunpack.c.l.b16 %v208
  %v1359 = vunpack.c.h.b16 %v208
  %v1360 = vunpack.c.l.b16 %v209
  %v1361 = vunpack.c.h.b16 %v209
  %v1362 = vunpack.c.l.b16 %v210
  %v1363 = vunpack.c.h.b16 %v210
  %v1364 = vunpack.c.l.b16 %v211
  %v1365 = vunpack.c.h.b16 %v211
  %v1366 = vunpack.c.l.b16 %v212
  %v1367 = vunpack.c.h.b16 %v212
  %v1368 = vunpack.c.l.b16 %v213
  %v1369 = vunpack.c.h.b16 %v213
  %v1370 = vunpack.c.l.b16 %v214
  %v1371 = vunpack.c.h.b16 %v214
  %v1372 = vunpack.c.l.b16 %v215
  %v1373 = vunpack.c.h.b16 %v215
  %v1374 = vunpack.c.l.b16 %v216
  %v1375 = vunpack.c.h.b16 %v216
  %v1376 = vunpack.c.l.b16 %v217
  %v1377 = vunpack.c.h.b16 %v217
  %v1378 = vunpack.c.l.b16 %v218
  %v1379 = vunpack.c.h.b16 %v218
  %v1380 = vunpack.c.l.b16 %v219
  %v1381 = vunpack.c.h.b16 %v219
  %v1382 = vunpack.c.l.b16 %v220
  %v1383 = vunpack.c.h.b16 %v220
  %v1384 = vunpack.c.l.b16 %v221
  %v1385 = vunpack.c.h.b16 %v221
  %v1386 = vunpack.c.l.b16 %v222
  %v1387 = vunpack.c.h.b16 %v222
  %v1388 = vunpack.c.l.b16 %v223
  %v1389 = vunpack.c.h.b16 %v223
  %v1390 = vunpack.c.l.b16 %v224
  %v1391 = vunpack.c.h.b16 %v224
  %v1392 = vunpack.c.l.b16 %v225
  %v1393 = vunpack.c.h.b16 %v225
  %v1394 = vunpack.c.l.b16 %v226
  %v1395 = vunpack.c.h.b16 %v226
  %v1396 = vunpack.c.l.b16 %v227
  %v1397 = vunpack.c.h.b16 %v227
  %v1398 = vunpack.c.l.b16 %v228
  %v1399 = vunpack.c.h.b16 %v228
  %v1400 = vunpack.c.l.b16 %v229
  %v1401 = vunpack.c.h.b16 %v229
  %v1402 = vunpack.c.l.b16 %v230
  %v1403 = vunpack.c.h.b16 %v230
  %v1404 = vunpack.c.l.b16 %v231
  %v1405 = vunpack.c.h.b16 %v231
  %v1406 = vunpack.c.l.b16 %v232
  %v1407 = vunpack.c.h.b16 %v232
  %v1408 = vunpack.c.l.b16 %v233
  %v1409 = vunpack.c.h.b16 %v233
  %v1410 = vunpack.c.l.b16 %v234
  %v1411 = vunpack.c.h.b16 %v234
  %v1412 = vunpack.c.l.b16 %v235
  %v1413 = vunpack.c.h.b16 %v235
  %v1414 = vunpack.c.l.b16 %v236
  %v1415 = vunpack.c.h.b16 %v236
  %v1416 = vunpack.c.l.b16 %v237
  %v1417 = vunpack.c.h.b16 %v237
  %v1418 = vunpack.c.l.b16 %v238
  %v1419 = vunpack.c.h.b16 %v238
  %v1420 = vunpack.c.l.b16 %v239
  %v1421 = vunpack.c.h.b16 %v239
  %v1422 = vunpack.c.l.b16 %v240
  %v1423 = vunpack.c.h.b16 %v240
  %v1424 = vunpack.c.l.b16 %v241
  %v1425 = vunpack.c.h.b16 %v241
  %v1426 = vunpack.c.l.b16 %v242
  %v1427 = vunpack.c.h.b16 %v242
  %v1428 = vunpack.c.l.b16 %v243
  %v1429 = vunpack.c.h.b16 %v243
  %v1430 = vunpack.c.l.b16 %v244
  %v1431 = vunpack.c.h.b16 %v244
  %v1432 = vunpack.c.l.b16 %v245
  %v1433 = vunpack.c.h.b16 %v245
  %v1434 = vunpack.c.l.b16 %v246
  %v1435 = vunpack.c.h.b16 %v246
  %v1436 = vunpack.c.l.b16 %v247
  %v1437 = vunpack.c.h.b16 %v247
  %v1438 = vunpack.c.l.b16 %v248
  %v1439 = vunpack.c.h.b16 %v248
  %v1440 = vunpack.c.l.b16 %v249
  %v1441 = vunpack.c.h.b16 %v249
  %v1442 = vunpack.c.l.b16 %v250
  %v1443 = vunpack.c.h.b16 %v250
  %v1444 = vunpack.c.l.b16 %v251
  %v1445 = vunpack.c.h.b16 %v251
  %v1446 = vunpack.c.l.b16 %v252
  %v1447 = vunpack.c.h.b16 %v252
  %v1448 = vunpack.c.l.b16 %v253
  %v1449 = vunpack.c.h.b16 %v253
  %v1450 = vunpack.c.l.b16 %v254
  %v1451 = vunpack.c.h.b16 %v254
  %v1452 = vunpack.c.l.b16 %v255
  %v1453 = vunpack.c.h.b16 %v255
  %v1454 = vunpack.c.l.b16 %v256
  %v1455 = vunpack.c.h.b16 %v256
  %v1456 = vunpack.c.l.b16 %v257
  %v1457 = vunpack.c.h.b16 %v257
  %v1458 = vunpack.c.l.b16 %v258
  %v1459 = vunpack.c.h.b16 %v258
  %v1460 = vunpack.c.l.b16 %v259
  %v1461 = vunpack.c.h.b16 %v259
  %v1462 = vunpack.c.l.b16 %v260
  %v1463 = vunpack.c.h.b16 %v260
  %v1464 = vunpack.c.l.b16 %v261
  %v1465 = vunpack.c.h.b16 %v261
  %v1466 = vunpack.c.l.b16 %v262
  %v1467 = vunpack.c.h.b16 %v262
  %v1468 = vunpack.c.l.b16 %v263
  %v1469 = vunpack.c.h.b16 %v263
  %v1470 = vunpack.c.l.b16 %v264
  %v1471 = vunpack.c.h.b16 %v264
  %v1472 = vunpack.c.l.b16 %v265
  %v1473 = vunpack.c.h.b16 %v265
  %v1474 = vunpack.c.l.b16 %v266
  %v1475 = vunpack.c.h.b16 %v266
  %v1476 = vunpack.c.l.b16 %v267
  %v1477 = vunpack.c.h.b16 %v267
  %v1478 = vunpack.c.l.b16 %v268
  %v1479 = vunpack.c.h.b16 %v268
  %v1480 = vunpack.c.l.b16 %v269
  %v1481 = vunpack.c.h.b16 %v269
  %v1482 = vunpack.c.l.b16 %v270
  %v1483 = vunpack.c.h.b16 %v270
  %v1484 = vunpack.c.l.b16 %v271
  %v1485 = vunpack.c.h.b16 %v271
  %v1486 = vunpack.c.l.b16 %v272
  %v1487 = vunpack.c.h.b16 %v272
  %v1488 = vunpack.c.l.b16 %v273
  %v1489 = vunpack.c.h.b16 %v273
  %v1490 = vunpack.c.l.b16 %v274
  %v1491 = vunpack.c.h.b16 %v274
  %v1492 = vunpack.c.l.b16 %v275
  %v1493 = vunpack.c.h.b16 %v275
  %v1494 = vunpack.c.l.b16 %v276
  %v1495 = vunpack.c.h.b16 %v276
  %v1496 = vunpack.c.l.b16 %v277
  %v1497 = vunpack.c.h.b16 %v277
  %v1498 = vunpack.c.l.b16 %v278
  %v1499 = vunpack.c.h.b16 %v278
  %v1500 = vunpack.c.l.b16 %v279
  %v1501 = vunpack.c.h.b16 %v279
  %v1502 = vunpack.c.l.b16 %v280
  %v1503 = vunpack.c.h.b16 %v280
  %v1504 = vunpack.c.l.b16 %v281
  %v1505 = vunpack.c.h.b16 %v281
  %v1506 = vunpack.c.l.b16 %v282
  %v1507 = vunpack.c.h.b16 %v282
  %v1508 = vunpack.c.l.b16 %v283
  %v1509 = vunpack.c.h.b16 %v283
  %v1510 = vunpack.c.l.b16 %v284
  %v1511 = vunpack.c.h.b16 %v284
  %v1512 = vunpack.c.l.b16 %v285
  %v1513 = vunpack.c.h.b16 %v285
  %v1514 = vunpack.c.l.b16 %v286
  %v1515 = vunpack.c.h.b16 %v286
  %v1516 = vunpack.c.l.b16 %v287
  %v1517 = vunpack.c.h.b16 %v287
  %v1518 = vunpack.c.l.b16 %v288
  %v1519 = vunpack.c.h.b16 %v288
  %v1520 = vunpack.c.l.b16 %v289
  %v1521 = vunpack.c.h.b16 %v289
  %v1522 = vunpack.c.l.b16 %v290
  %v1523 = vunpack.c.h.b16 %v290
  %v1524 = vunpack.c.l.b16 %v291
  %v1525 = vunpack.c.h.b16 %v291
  %v1526 = vunpack.c.l.b16 %v292
  %v1527 = vunpack.c.h.b16 %v292
  %v1528 = vunpack.c.l.b16 %v293
  %v1529 = vunpack.c.h.b16 %v293
  %v1530 = vunpack.c.l.b16 %v294
  %v1531 = vunpack.c.h.b16 %v294
  %v1532 = vunpack.c.l.b16 %v295
  %v1533 = vunpack.c.h.b16 %v295
  %v1534 = vunpack.c.l.b16 %v296
  %v1535 = vunpack.c.h.b16 %v296
  %v1536 = vunpack.c.l.b16 %v297
  %v1537 = vunpack.c.h.b16 %v297
  %v1538 = vunpack.c.l.b16 %v298
  %v1539 = vunpack.c.h.b16 %v298
  %v1540 = vunpack.c.l.b16 %v299
  %v1541 = vunpack.c.h.b16 %v299
  %v1542 = vunpack.c.l.b16 %v300
  %v1543 = vunpack.c.h.b16 %v300
  %v1544 = vunpack.c.l.b16 %v301
  %v1545 = vunpack.c.h.b16 %v301
  %v1546 = vunpack.c.l.b16 %v302
  %v1547 = vunpack.c.h.b16 %v302
  %v1548 = vunpack.c.l.b16 %v303
  %v1549 = vunpack.c.h.b16 %v303
  %v1550 = vunpack.c.l.b16 %v304
  %v1551 = vunpack.c.h.b16 %v304
  %v1552 = vunpack.c.l.b16 %v305
  %v1553 = vunpack.c.h.b16 %v305
  %v1554 = vunpack.c.l.b16 %v306
  %v1555 = vunpack.c.h.b16 %v306
  %v1556 = vunpack.c.l.b16 %v307
  %v1557 = vunpack.c.h.b16 %v307
  %v1558 = vunpack.c.l.b16 %v308
  %v1559 = vunpack.c.h.b16 %v308
  %v1560 = vunpack.c.l.b16 %v309
  %v1561 = vunpack.c.h.b16 %v309
  %v1562 = vunpack.c.l.b16 %v310
  %v1563 = vunpack.c.h.b16 %v310
  %v1564 = vunpack.c.l.b16 %v311
  %v1565 = vunpack.c.h.b16 %v311
  %v1566 = vunpack.c.l.b16 %v312
  %v1567 = vunpack.c.h.b16 %v312
  %v1568 = vunpack.c.l.b16 %v313
  %v1569 = vunpack.c.h.b16 %v313
  %v1570 = vunpack.c.l.b16 %v314
  %v1571 = vunpack.c.h.b16 %v314
  %v1572 = vunpack.c.l.b16 %v315
  %v1573 = vunpack.c.h.b16 %v315
  %v1574 = vunpack.c.l.b16 %v316
  %v1575 = vunpack.c.h.b16 %v316
  %v1576 = vunpack.c.l.b16 %v317
  %v1577 = vunpack.c.h.b16 %v317
  %v1578 = vunpack.c.l.b16 %v318
  %v1579 = vunpack.c.h.b16 %v318
  %v1580 = vunpack.c.l.b16 %v319
  %v1581 = vunpack.c.h.b16 %v319
  %v1582 = vunpack.c.l.b16 %v320
  %v1583 = vunpack.c.h.b16 %v320
  %v1584 = vunpack.c.l.b16 %v321
  %v1585 = vunpack.c.h.b16 %v321
  %v1586 = vunpack.c.l.b16 %v322
  %v1587 = vunpack.c.h.b16 %v322
  %v1588 = vunpack.c.l.b16 %v323
  %v1589 = vunpack.c.h.b16 %v323
  %v1590 = vunpack.c.l.b16 %v324
  %v1591 = vunpack.c.h.b16 %v324
  %v1592 = vunpack.c.l.b16 %v325
  %v1593 = vunpack.c.h.b16 %v325
  %v1594 = vunpack.c.l.b16 %v326
  %v1595 = vunpack.c.h.b16 %v326
  %v1596 = vunpack.c.l.b16 %v327
  %v1597 = vunpack.c.h.b16 %v327
  %v1598 = vunpack.c.l.b16 %v328
  %v1599 = vunpack.c.h.b16 %v328
  %v1600 = vunpack.c.l.b16 %v329
  %v1601 = vunpack.c.h.b16 %v329
  %v1602 = vunpack.c.l.b16 %v330
  %v1603 = vunpack.c.h.b16 %v330
  %v1604 = vunpack.c.l.b16 %v331
  %v1605 = vunpack.c.h.b16 %v331
  %v1606 = vunpack.c.l.b16 %v332
  %v1607 = vunpack.c.h.b16 %v332
  %v1608 = vunpack.c.l.b16 %v333
  %v1609 = vunpack.c.h.b16 %v333
  %v1610 = vunpack.c.l.b16 %v334
  %v1611 = vunpack.c.h.b16 %v334
  %v1612 = vunpack.c.l.b16 %v335
  %v1613 = vunpack.c.h.b16 %v335
  %v1614 = vunpack.c.l.b16 %v336
  %v1615 = vunpack.c.h.b16 %v336
  %v1616 = vunpack.c.l.b16 %v337
  %v1617 = vunpack.c.h.b16 %v337
  %v1618 = vunpack.c.l.b16 %v338
  %v1619 = vunpack.c.h.b16 %v338
  %v1620 = vunpack.c.l.b16 %v339
  %v1621 = vunpack.c.h.b16 %v339
  %v1622 = vunpack.c.l.b16 %v340
  %v1623 = vunpack.c.h.b16 %v340
  %v1624 = vunpack.c.l.b16 %v341
  %v1625 = vunpack.c.h.b16 %v341
  %v1626 = vunpack.c.l.b16 %v342
  %v1627 = vunpack.c.h.b16 %v342
  %v1628 = vunpack.c.l.b16 %v343
  %v1629 = vunpack.c.h.b16 %v343
  %v1630 = vunpack.c.l.b16 %v344
  %v1631 = vunpack.c.h.b16 %v344
  %v1632 = vunpack.c.l.b16 %v345
  %v1633 = vunpack.c.h.b16 %v345
  %v1634 = vunpack.c.l.b16 %v346
  %v1635 = vunpack.c.h.b16 %v346
  %v1636 = vunpack.c.l.b16 %v347
  %v1637 = vunpack.c.h.b16 %v347
  %v1638 = vunpack.c.l.b16 %v348
  %v1639 = vunpack.c.h.b16 %v348
  %v1640 = vunpack.c.l.b16 %v349
  %v1641 = vunpack.c.h.b16 %v349
  %v1642 = vunpack.c.l.b16 %v350
  %v1643 = vunpack.c.h.b16 %v350
  %v1644 = vunpack.c.l.b16 %v351
  %v1645 = vunpack.c.h.b16 %v351
  %v1646 = vunpack.c.l.b16 %v352
  %v1647 = vunpack.c.h.b16 %v352
  %v1648 = vunpack.c.l.b16 %v353
  %v1649 = vunpack.c.h.b16 %v353
  %v1650 = vunpack.c.l.b16 %v354
  %v1651 = vunpack.c.h.b16 %v354
  %v1652 = vunpack.c.l.b16 %v355
  %v1653 = vunpack.c.h.b16 %v355
  %v1654 = vunpack.c.l.b16 %v356
  %v1655 = vunpack.c.h.b16 %v356
  %v1656 = vunpack.c.l.b16 %v357
  %v1657 = vunpack.c.h.b16 %v357
  %v1658 = vunpack.c.l.b16 %v358
  %v1659 = vunpack.c.h.b16 %v358
  %v1660 = vunpack.c.l.b16 %v359
  %v1661 = vunpack.c.h.b16 %v359
  %v1662 = vunpack.c.l.b16 %v360
  %v1663 = vunpack.c.h.b16 %v360
  %v1664 = vunpack.c.l.b16 %v361
  %v1665 = vunpack.c.h.b16 %v361
  %v1666 = vunpack.c.l.b16 %v362
  %v1667 = vunpack.c.h.b16 %v362
  %v1668 = vunpack.c.l.b16 %v363
  %v1669 = vunpack.c.h.b16 %v363
  %v1670 = vunpack.c.l.b16 %v364
  %v1671 = vunpack.c.h.b16 %v364
  %v1672 = vunpack.c.l.b16 %v365
  %v1673 = vunpack.c.h.b16 %v365
  %v1674 = vunpack.c.l.b16 %v366
  %v1675 = vunpack.c.h.b16 %v366
  %v1676 = vunpack.c.l.b16 %v367
  %v1677 = vunpack.c.h.b16 %v367
  %v1678 = vunpack.c.l.b16 %v368
  %v1679 = vunpack.c.h.b16 %v368
  %v1680 = vunpack.c.l.b16 %v369
  %v1681 = vunpack.c.h.b16 %v369
  %v1682 = vunpack.c.l.b16 %v370
  %v1683 = vunpack.c.h.b16 %v370
  %v1684 = vunpack.c.l.b16 %v371
  %v1685 = vunpack.c.h.b16 %v371
  %v1686 = vunpack.c.l.b16 %v372
  %v1687 = vunpack.c.h.b16 %v372
  %v1688 = vunpack.c.l.b16 %v373
  %v1689 = vunpack.c.h.b16 %v373
  %v1690 = vunpack.c.l.b16 %v374
  %v1691 = vunpack.c.h.b16 %v374
  %v1692 = vunpack.c.l.b16 %v375
  %v1693 = vunpack.c.h.b16 %v375
  %v1694 = vunpack.c.l.b16 %v376
  %v1695 = vunpack.c.h.b16 %v376
  %v1696 = vunpack.c.l.b16 %v377
  %v1697 = vunpack.c.h.b16 %v377
  %v1698 = vunpack.c.l.b16 %v378
  %v1699 = vunpack.c.h.b16 %v378
  %v1700 = vunpack.c.l.b16 %v379
  %v1701 = vunpack.c.h.b16 %v379
  %v1702 = vunpack.c.l.b16 %v380
  %v1703 = vunpack.c.h.b16 %v380
  %v1704 = vunpack.c.l.b16 %v381
  %v1705 = vunpack.c.h.b16 %v381
  %v1706 = vunpack.c.l.b16 %v382
  %v1707 = vunpack.c.h.b16 %v382
  %v1708 = vunpack.c.l.b16 %v383
  %v1709 = vunpack.c.h.b16 %v383
  %v1710 = vunpack.c.l.b16 %v384
  %v1711 = vunpack.c.h.b16 %v384
  %v1712 = vunpack.c.l.b16 %v385
  %v1713 = vunpack.c.h.b16 %v385
  %v1714 = vunpack.c.l.b16 %v386
  %v1715 = vunpack.c.h.b16 %v386
  %v1716 = vunpack.c.l.b16 %v387
  %v1717 = vunpack.c.h.b16 %v387
  %v1718 = vunpack.c.l.b16 %v388
  %v1719 = vunpack.c.h.b16 %v388
  %v1720 = vunpack.c.l.b16 %v389
  %v1721 = vunpack.c.h.b16 %v389
  %v1722 = vunpack.c.l.b16 %v390
  %v1723 = vunpack.c.h.b16 %v390
  %v1724 = vunpack.c.l.b16 %v391
  %v1725 = vunpack.c.h.b16 %v391
  %v1726 = vunpack.c.l.b16 %v392
  %v1727 = vunpack.c.h.b16 %v392
  %v1728 = vunpack.c.l.b16 %v393
  %v1729 = vunpack.c.h.b16 %v393
  %v1730 = vunpack.c.l.b16 %v394
  %v1731 = vunpack.c.h.b16 %v394
  %v1732 = vunpack.c.l.b16 %v395
  %v1733 = vunpack.c.h.b16 %v395
  %v1734 = vunpack.c.l.b16 %v396
  %v1735 = vunpack.c.h.b16 %v396
  %v1736 = vunpack.c.l.b16 %v397
  %v1737 = vunpack.c.h.b16 %v397
  %v1738 = vunpack.c.l.b16 %v398
  %v1739 = vunpack.c.h.b16 %v398
  %v1740 = vunpack.c.l.b16 %v399
  %v1741 = vunpack.c.h.b16 %v399
  %v1742 = vunpack.c.l.b16 %v400
  %v1743 = vunpack.c.h.b16 %v400
  %v1744 = vunpack.c.l.b16 %v401
  %v1745 = vunpack.c.h.b16 %v401
  %v1746 = vunpack.c.l.b16 %v402
  %v1747 = vunpack.c.h.b16 %v402
  %v1748 = vunpack.c.l.b16 %v403
  %v1749 = vunpack.c.h.b16 %v403
  %v1750 = vunpack.c.l.b16 %v404
  %v1751 = vunpack.c.h.b16 %v404
  %v1752 = vunpack.c.l.b16 %v405
  %v1753 = vunpack.c.h.b16 %v405
  %v1754 = vunpack.c.l.b16 %v406
  %v1755 = vunpack.c.h.b16 %v406
  %v1756 = vunpack.c.l.b16 %v407
  %v1757 = vunpack.c.h.b16 %v407
  %v1758 = vunpack.c.l.b16 %v408
  %v1759 = vunpack.c.h.b16 %v408
  %v1760 = vunpack.c.l.b16 %v409
  %v1761 = vunpack.c.h.b16 %v409
  %v1762 = vunpack.c.l.b16 %v410
  %v1763 = vunpack.c.h.b16 %v410
  %v1764 = vunpack.c.l.b16 %v411
  %v1765 = vunpack.c.h.b16 %v411
  %v1766 = vunpack.c.l.b16 %v412
  %v1767 = vunpack.c.h.b16 %v412
  %v1768 = vunpack.c.l.b16 %v413
  %v1769 = vunpack.c.h.b16 %v413
  %v1770 = vunpack.c.l.b16 %v414
  %v1771 = vunpack.c.h.b16 %v414
  %v1772 = vunpack.c.l.b16 %v415
  %v1773 = vunpack.c.h.b16 %v415
  %v1774 = vunpack.c.l.b16 %v416
  %v1775 = vunpack.c.h.b16 %v416
  %v1776 = vunpack.c.l.b16 %v417
  %v1777 = vunpack.c.h.b16 %v417
  %v1778 = vunpack.c.l.b16 %v418
  %v1779 = vunpack.c.h.b16 %v418
  %v1780 = vunpack.c.l.b16 %v419
  %v1781 = vunpack.c.h.b16 %v419
  %v1782 = vunpack.c.l.b16 %v420
  %v1783 = vunpack.c.h.b16 %v420
  %v1784 = vunpack.c.l.b16 %v421
  %v1785 = vunpack.c.h.b16 %v421
  %v1786 = vunpack.c.l.b16 %v422
  %v1787 = vunpack.c.h.b16 %v422
  %v1788 = vunpack.c.l.b16 %v423
  %v1789 = vunpack.c.h.b16 %v423
  %v1790 = vunpack.c.l.b16 %v424
  %v1791 = vunpack.c.h.b16 %v424
  %v1792 = vunpack.c.l.b16 %v425
  %v1793 = vunpack.c.h.b16 %v425
  %v1794 = vunpack.c.l.b16 %v426
  %v1795 = vunpack.c.h.b16 %v426
  %v1796 = vunpack.c.l.b16 %v427
  %v1797 = vunpack.c.h.b16 %v427
  %v1798 = vunpack.c.l.b16 %v428
  %v1799 = vunpack.c.h.b16 %v428
  %v1800 = vunpack.c.l.b16 %v429
  %v1801 = vunpack.c.h.b16 %v429
  %v1802 = vunpack.c.l.b16 %v430
  %v1803 = vunpack.c.h.b16 %v430
  %v1804 = vunpack.c.l.b16 %v431
  %v1805 = vunpack.c.h.b16 %v431
  %v1806 = vunpack.c.l.b16 %v432
  %v1807 = vunpack.c.h.b16 %v432
  %v1808 = vunpack.c.l.b16 %v433
  %v1809 = vunpack.c.h.b16 %v433
  %v1810 = vunpack.c.l.b16 %v434
  %v1811 = vunpack.c.h.b16 %v434
  %v1812 = vunpack.c.l.b16 %v435
  %v1813 = vunpack.c.h.b16 %v435
  %v1814 = vunpack.c.l.b16 %v436
  %v1815 = vunpack.c.h.b16 %v436
  %v1816 = vunpack.c.l.b16 %v437
  %v1817 = vunpack.c.h.b16 %v437
  %v1818 = vunpack.c.l.b16 %v438
  %v1819 = vunpack.c.h.b16 %v438
  %v1820 = vunpack.c.l.b16 %v439
  %v1821 = vunpack.c.h.b16 %v439
  %v1822 = vunpack.c.l.b16 %v440
  %v1823 = vunpack.c.h.b16 %v440
  %v1824 = vunpack.c.l.b16 %v441
  %v1825 = vunpack.c.h.b16 %v441
  %v1826 = vunpack.c.l.b16 %v442
  %v1827 = vunpack.c.h.b16 %v442
  %v1828 = vunpack.c.l.b16 %v443
  %v1829 = vunpack.c.h.b16 %v443
  %v1830 = vunpack.c.l.b16 %v444
  %v1831 = vunpack.c.h.b16 %v444
  %v1832 = vunpack.c.l.b16 %v445
  %v1833 = vunpack.c.h.b16 %v445
  %v1834 = vunpack.c.l.b16 %v446
  %v1835 = vunpack.c.h.b16 %v446
  %v1836 = vunpack.c.l.b16 %v447
  %v1837 = vunpack.c.h.b16 %v447
  %v1838 = vunpack.c.l.b16 %v448
  %v1839 = vunpack.c.h.b16 %v448
  %v1840 = vunpack.c.l.b16 %v449
  %v1841 = vunpack.c.h.b16 %v449
  %v1842 = vunpack.c.l.b16 %v450
  %v1843 = vunpack.c.h.b16 %v450
  %v1844 = vunpack.c.l.b16 %v451
  %v1845 = vunpack.c.h.b16 %v451
  %v1846 = vunpack.c.l.b16 %v452
  %v1847 = vunpack.c.h.b16 %v452
  %v1848 = vunpack.c.l.b16 %v453
  %v1849 = vunpack.c.h.b16 %v453
  %v1850 = vunpack.c.l.b16 %v454
  %v1851 = vunpack.c.h.b16 %v454
  %v1852 = vunpack.c.l.b16 %v455
  %v1853 = vunpack.c.h.b16 %v455
  %v1854 = vunpack.c.l.b16 %v456
  %v1855 = vunpack.c.h.b16 %v456
  %v1856 = vunpack.c.l.b16 %v457
  %v1857 = vunpack.c.h.b16 %v457
  %v1858 = vunpack.c.l.b16 %v458
  %v1859 = vunpack.c.h.b16 %v458
  %v1860 = vunpack.c.l.b16 %v459
  %v1861 = vunpack.c.h.b16 %v459
  %v1862 = vunpack.c.l.b16 %v460
  %v1863 = vunpack.c.h.b16 %v460
  %v1864 = vpack.c.b16 %v1002, %v1000
  %v1865 = vpack.c.b16 %v1003, %v1001
  %v1866 = vpack.c.b16 %v1006, %v1004
  %v1867 = vpack.c.b16 %v1007, %v1005
  %v1868 = vpack.c.b16 %v1010, %v1008
  %v1869 = vpack.c.b16 %v1011, %v1009
  %v1870 = vpack.c.b16 %v1014, %v1012
  %v1871 = vpack.c.b16 %v1015, %v1013
  %v1872 = vpack.c.b16 %v1018, %v1016
  %v1873 = vpack.c.b16 %v1019, %v1017
  %v1874 = vpack.c.b16 %v1022, %v1020
  %v1875 = vpack.c.b16 %v1023, %v1021
  %v1876 = vpack.c.b16 %v1026, %v1024
  %v1877 = vpack.c.b16 %v1027, %v1025
  %v1878 = vpack.c.b16 %v1030, %v1028
  %v1879 = vpack.c.b16 %v1031, %v1029
  %v1880 = vpack.c.b16 %v1034, %v1032
  %v1881 = vpack.c.b16 %v1035, %v1033
  %v1882 = vpack.c.b16 %v1038, %v1036
  %v1883 = vpack.c.b16 %v1039, %v1037
  %v1884 = vpack.c.b16 %v1042, %v1040
  %v1885 = vpack.c.b16 %v1043, %v1041
  %v1886 = vpack.c.b16 %v1046, %v1044
  %v1887 = vpack.c.b16 %v1047, %v1045
  %v1888 = vpack.c.b16 %v1050, %v1048
  %v1889 = vpack.c.b16 %v1051, %v1049
  %v1890 = vpack.c.b16 %v1054, %v1052
  %v1891 = vpack.c.b16 %v1055, %v1053
  %v1892 = vpack.c.b16 %v1058, %v1056
  %v1893 = vpack.c.b16 %v1059, %v1057
  %v1894 = vpack.c.b16 %v1062, %v1060
  %v1895 = vpack.c.b16 %v1063, %v1061
  %v1896 = vpack.c.b16 %v1066, %v1064
  %v1897 = vpack.c.b16 %v1067, %v1065
  %v1898 = vpack.c.b16 %v1070, %v1068
  %v1899 = vpack.c.b16 %v1071, %v1069
  %v1900 = vpack.c.b16 %v1074, %v1072
  %v1901 = vpack.c.b16 %v1075, %v1073
  %v1902 = vpack.c.b16 %v1078, %v1076
  %v1903 = vpack.c.b16 %v1079, %v1077
  %v1904 = vpack.c.b16 %v1082, %v1080
  %v1905 = vpack.c.b16 %v1083, %v1081
  %v1906 = vpack.c.b16 %v1086, %v1084
  %v1907 = vpack.c.b16 %v1087, %v1085
  %v1908 = vpack.c.b16 %v1090, %v1088
  %v1909 = vpack.c.b16 %v1091, %v1089
  %v1910 = vpack.c.b16 %v1094, %v1092
  %v1911 = vpack.c.b16 %v1095, %v1093
  %v1912 = vpack.c.b16 %v1098, %v1096
  %v1913 = vpack.c.b16 %v1099, %v1097
  %v1914 = vpack.c.b16 %v1102, %v1100
  %v1915 = vpack.c.b16 %v1103, %v1101
  %v1916 = vpack.c.b16 %v1106, %v1104
  %v1917 = vpack.c.b16 %v1107, %v1105
  %v1918 = vpack.c.b16 %v1110, %v1108
  %v1919 = vpack.c.b16 %v1111, %v1109
  %v1920 = vpack.c.b16 %v1114, %v1112
  %v1921 = vpack.c.b16 %v1115, %v1113
  %v1922 = vpack.c.b16 %v1118, %v1116
  %v1923 = vpack.c.b16 %v1119, %v1117
  %v1924 = vpack.c.b16 %v1122, %v1120
  %v1925 = vpack.c.b16 %v1123, %v1121
  %v1926 = vpack.c.b16 %v1126, %v1124
  %v1927 = vpack.c.b16 %v1127, %v1125
  %v1928 = vpack.c.b16 %v1130, %v1128
  %v1929 = vpack.c.b16 %v1131, %v1129
  %v1930 = vpack.c.b16 %v1134, %v1132
  %v1931 = vpack.c.b16 %v1135, %v1133
  %v1932 = vpack.c.b16 %v1138, %v1136
  %v1933 = vpack.c.b16 %v1139, %v1137
  %v1934 = vpack.c.b16 %v1142, %v1140
  %v1935 = vpack.c.b16 %v1143, %v1141
  %v1936 = vpack.c.b16 %v1146, %v1144
  %v1937 = vpack.c.b16 %v1147, %v1145
  %v1938 = vpack.c.b16 %v1150, %v1148
  %v1939 = vpack.c.b16 %v1151, %v1149
  %v1940 = vpack.c.b16 %v1154, %v1152
  %v1941 = vpack.c.b16 %v1155, %v1153
  %v1942 = vpack.c.b16 %v1158, %v1156
  %v1943 = vpack.c.b16 %v1159, %v1157
  %v1944 = vpack.c.b16 %v1162, %v1160
  %v1945 = vpack.c.b16 %v1163, %v1161
  %v1946 = vpack.c.b16 %v1166, %v1164
  %v1947 = vpack.c.b16 %v1167, %v1165
  %v1948 = vpack.c.b16 %v1170, %v1168
  %v1949 = vpack.c.b16 %v1171, %v1169
  %v1950 = vpack.c.b16 %v1174, %v1172
  %v1951 = vpack.c.b16 %v1175, %v1173
  %v1952 = vpack.c.b16 %v1178, %v1176
  %v1953 = vpack.c.b16 %v1179, %v1177
  %v1954 = vpack.c.b16 %v1182, %v1180
  %v1955 = vpack.c.b16 %v1183, %v1181
  %v1956 = vpack.c.b16 %v1186, %v1184
  %v1957 = vpack.c.b16 %v1187, %v1185
  %v1958 = vpack.c.b16 %v1190, %v1188
  %v1959 = vpack.c.b16 %v1191, %v1189
  %v1960 = vpack.c.b16 %v1194, %v1192
  %v1961 = vpack.c.b16 %v1195, %v1193
  %v1962 = vpack.c.b16 %v1198, %v1196
  %v1963 = vpack.c.b16 %v1199, %v1197
  %v1964 = vpack.c.b16 %v1202, %v1200
  %v1965 = vpack.c.b16 %v1203, %v1201
  %v1966 = vpack.c.b16 %v1206, %v1204
  %v1967 = vpack.c.b16 %v1207, %v1205
  %v1968 = vpack.c.b16 %v1210, %v1208
  %v1969 = vpack.c.b16 %v1211, %v1209
  %v1970 = vpack.c.b16 %v1214, %v1212
  %v1971 = vpack.c.b16 %v1215, %v1213
  %v1972 = vpack.c.b16 %v1218, %v1216
  %v1973 = vpack.c.b16 %v1219, %v1217
  %v1974 = vpack.c.b16 %v1222, %v1220
  %v1975 = vpack.c.b16 %v1223, %v1221
  %v1976 = vpack.c.b16 %v1226, %v1224
  %v1977 = vpack.c.b16 %v1227, %v1225
  %v1978 = vpack.c.b16 %v1230, %v1228
  %v1979 = vpack.c.b16 %v1231, %v1229
  %v1980 = vpack.c.b16 %v1234, %v1232
  %v1981 = vpack.c.b16 %v1235, %v1233
  %v1982 = vpack.c.b16 %v1238, %v1236
  %v1983 = vpack.c.b16 %v1239, %v1237
  %v1984 = vpack.c.b16 %v1242, %v1240
  %v1985 = vpack.c.b16 %v1243, %v1241
  %v1986 = vpack.c.b16 %v1246, %v1244
  %v1987 = vpack.c.b16 %v1247, %v1245
  %v1988 = vpack.c.b16 %v1250, %v1248
  %v1989 = vpack.c.b16 %v1251, %v1249
  %v1990 = vpack.c.b16 %v1254, %v1252
  %v1991 = vpack.c.b16 %v1255, %v1253
  %v1992 = vpack.c.b16 %v1258, %v1256
  %v1993 = vpack.c.b16 %v1259, %v1257
  %v1994 = vpack.c.b16 %v1262, %v1260
  %v1995 = vpack.c.b16 %v1263, %v1261
  %v1996 = vpack.c.b16 %v1266, %v1264
  %v1997 = vpack.c.b16 %v1267, %v1265
  %v1998 = vpack.c.b16 %v1270, %v1268
  %v1999 = vpack.c.b16 %v1271, %v1269
  %v2000 = vpack.c.b16 %v1274, %v1272
  %v2001 = vpack.c.b16 %v1275, %v1273
  %v2002 = vpack.c.b16 %v1278, %v1276
  %v2003 = vpack.c.b16 %v1279, %v1277
  %v2004 = vpack.c.b16 %v1282, %v1280
  %v2005 = vpack.c.b16 %v1283, %v1281
  %v2006 = vpack.c.b16 %v1286, %v1284
  %v2007 = vpack.c.b16 %v1287, %v1285
  %v2008 = vpack.c.b16 %v1290, %v1288
  %v2009 = vpack.c.b16 %v1291, %v1289
  %v2010 = vpack.c.b16 %v1294, %v1292
  %v2011 = vpack.c.b16 %v1295, %v1293
  %v2012 = vpack.c.b16 %v1298, %v1296
  %v2013 = vpack.c.b16 %v1299, %v1297
  %v2014 = vpack.c.b16 %v1302, %v1300
  %v2015 = vpack.c.b16 %v1303, %v1301
  %v2016 = vpack.c.b16 %v1306, %v1304
  %v2017 = vpack.c.b16 %v1307, %v1305
  %v2018 = vpack.c.b16 %v1310, %v1308
  %v2019 = vpack.c.b16 %v1311, %v1309
  %v2020 = vpack.c.b16 %v1314, %v1312
  %v2021 = vpack.c.b16 %v1315, %v1313
  %v2022 = vpack.c.b16 %v1318, %v1316
  %v2023 = vpack.c.b16 %v1319, %v1317
  %v2024 = vpack.c.b16 %v1322, %v1320
  %v2025 = vpack.c.b16 %v1323, %v1321
  %v2026 = vpack.c.b16 %v1326, %v1324
  %v2027 = vpack.c.b16 %v1327, %v1325
  %v2028 = vpack.c.b16 %v1330, %v1328
  %v2029 = vpack.c.b16 %v1331, %v1329
  %v2030 = vpack.c.b16 %v1334, %v1332
  %v2031 = vpack.c.b16 %v1335, %v1333
  %v2032 = vpack.c.b16 %v1338, %v1336
  %v2033 = vpack.c.b16 %v1339, %v1337
  %v2034 = vpack.c.b16 %v1342, %v1340
  %v2035 = vpack.c.b16 %v1343, %v1341
  %v2036 = vpack.c.b16 %v1346, %v1344
  %v2037 = vpack.c.b16 %v1347, %v1345
  %v2038 = vpack.c.b16 %v1350, %v1348
  %v2039 = vpack.c.b16 %v1351, %v1349
  %v2040 = vpack.c.b16 %v1354, %v1352
  %v2041 = vpack.c.b16 %v1355, %v1353
  %v2042 = vpack.c.b16 %v1358, %v1356
  %v2043 = vpack.c.b16 %v1359, %v1357
  %v2044 = vpack.c.b16 %v1362, %v1360
  %v2045 = vpack.c.b16 %v1363, %v1361
  %v2046 = vpack.c.b16 %v1366, %v1364
  %v2047 = vpack.c.b16 %v1367, %v1365
  %v2048 = vpack.c.b16 %v1370, %v1368
  %v2049 = vpack.c.b16 %v1371, %v1369
  %v2050 = vpack.c.b16 %v1374, %v1372
  %v2051 = vpack.c.b16 %v1375, %v1373
  %v2052 = vpack.c.b16 %v1378, %v1376
  %v2053 = vpack.c.b16 %v1379, %v1377
  %v2054 = vpack.c.b16 %v1382, %v1380
  %v2055 = vpack.c.b16 %v1383, %v1381
  %v2056 = vpack.c.b16 %v1386, %v1384
  %v2057 = vpack.c.b16 %v1387, %v1385
  %v2058 = vpack.c.b16 %v1390, %v1388
  %v2059 = vpack.c.b16 %v1391, %v1389
  %v2060 = vpack.c.b16 %v1394, %v1392
  %v2061 = vpack.c.b16 %v1395, %v1393
  %v2062 = vpack.c.b16 %v1398, %v1396
  %v2063 = vpack.c.b16 %v1399, %v1397
  %v2064 = vpack.c.b16 %v1402, %v1400
  %v2065 = vpack.c.b16 %v1403, %v1401
  %v2066 = vpack.c.b16 %v1406, %v1404
  %v2067 = vpack.c.b16 %v1407, %v1405
  %v2068 = vpack.c.b16 %v1410, %v1408
  %v2069 = vpack.c.b16 %v1411, %v1409
  %v2070 = vpack.c.b16 %v1414, %v1412
  %v2071 = vpack.c.b16 %v1415, %v1413
  %v2072 = vpack.c.b16 %v1418, %v1416
  %v2073 = vpack.c.b16 %v1419, %v1417
  %v2074 = vpack.c.b16 %v1422, %v1420
  %v2075 = vpack.c.b16 %v1423, %v1421
  %v2076 = vpack.c.b16 %v1426, %v1424
  %v2077 = vpack.c.b16 %v1427, %v1425
  %v2078 = vpack.c.b16 %v1430, %v1428
  %v2079 = vpack.c.b16 %v1431, %v1429
  %v2080 = vpack.c.b16 %v1434, %v1432
  %v2081 = vpack.c.b16 %v1435, %v1433
  %v2082 = vpack.c.b16 %v1438, %v1436
  %v2083 = vpack.c.b16 %v1439, %v1437
  %v2084 = vpack.c.b16 %v1442, %v1440
  %v2085 = vpack.c.b16 %v1443, %v1441
  %v2086 = vpack.c.b16 %v1446, %v1444
  %v2087 = vpack.c.b16 %v1447, %v1445
  %v2088 = vpack.c.b16 %v1450, %v1448
  %v2089 = vpack.c.b16 %v1451, %v1449
  %v2090 = vpack.c.b16 %v1454, %v1452
  %v2091 = vpack.c.b16 %v1455, %v1453
  %v2092 = vpack.c.b16 %v1458, %v1456
  %v2093 = vpack.c.b16 %v1459, %v1457
  %v2094 = vpack.c.b16 %v1462, %v1460
  %v2095 = vpack.c.b16 %v1463, %v1461
  %v2096 = vpack.c.b16 %v1466, %v1464
  %v2097 = vpack.c.b16 %v1467, %v1465
  %v2098 = vpack.c.b16 %v1470, %v1468
  %v2099 = vpack.c.b16 %v1471, %v1469
  %v2100 = vpack.c.b16 %v1474, %v1472
  %v2101 = vpack.c.b16 %v1475, %v1473
  %v2102 = vpack.c.b16 %v1478, %v1476
  %v2103 = vpack.c.b16 %v1479, %v1477
  %v2104 = vpack.c.b16 %v1482, %v1480
  %v2105 = vpack.c.b16 %v1483, %v1481
  %v2106 = vpack.c.b16 %v1486, %v1484
  %v2107 = vpack.c.b16 %v1487, %v1485
  %v2108 = vpack.c.b16 %v1490, %v1488
  %v2109 = vpack.c.b16 %v1491, %v1489
  %v2110 = vpack.c.b16 %v1494, %v1492
  %v2111 = vpack.c.b16 %v1495, %v1493
  %v2112 = vpack.c.b16 %v1498, %v1496
  %v2113 = vpack.c.b16 %v1499, %v1497
  %v2114 = vpack.c.b16 %v1502, %v1500
  %v2115 = vpack.c.b16 %v1503, %v1501
  %v2116 = vpack.c.b16 %v1506, %v1504
  %v2117 = vpack.c.b16 %v1507, %v1505
  %v2118 = vpack.c.b16 %v1510, %v1508
  %v2119 = vpack.c.b16 %v1511, %v1509
  %v2120 = vpack.c.b16 %v1514, %v1512
  %v2121 = vpack.c.b16 %v1515, %v1513
  %v2122 = vpack.c.b16 %v1518, %v1516
  %v2123 = vpack.c.b16 %v1519, %v1517
  %v2124 = vpack.c.b16 %v1522, %v1520
  %v2125 = vpack.c.b16 %v1523, %v1521
  %v2126 = vpack.c.b16 %v1526, %v1524
  %v2127 = vpack.c.b16 %v1527, %v1525
  %v2128 = vpack.c.b16 %v1530, %v1528
  %v2129 = vpack.c.b16 %v1531, %v1529
  %v2130 = vpack.c.b16 %v1534, %v1532
  %v2131 = vpack.c.b16 %v1535, %v1533
  %v2132 = vpack.c.b16 %v1538, %v1536
  %v2133 = vpack.c.b16 %v1539, %v1537
  %v2134 = vpack.c.b16 %v1542, %v1540
  %v2135 = vpack.c.b16 %v1543, %v1541
  %v2136 = vpack.c.b16 %v1546, %v1544
  %v2137 = vpack.c.b16 %v1547, %v1545
  %v2138 = vpack.c.b16 %v1550, %v1548
  %v2139 = vpack.c.b16 %v1551, %v1549
  %v2140 = vpack.c.b16 %v1554, %v1552
  %v2141 = vpack.c.b16 %v1555, %v1553
  %v2142 = vpack.c.b16 %v1558, %v1556
  %v2143 = vpack.c.b16 %v1559, %v1557
  %v2144 = vpack.c.b16 %v1562, %v1560
  %v2145 = vpack.c.b16 %v1563, %v1561
  %v2146 = vpack.c.b16 %v1566, %v1564
  %v2147 = vpack.c.b16 %v1567, %v1565
  %v2148 = vpack.c.b16 %v1570, %v1568
  %v2149 = vpack.c.b16 %v1571, %v1569
  %v2150 = vpack.c.b16 %v1574, %v1572
  %v2151 = vpack.c.b16 %v1575, %v1573
  %v2152 = vpack.c.b16 %v1578, %v1576
  %v2153 = vpack.c.b16 %v1579, %v1577
  %v2154 = vpack.c.b16 %v1582, %v1580
  %v2155 = vpack.c.b16 %v1583, %v1581
  %v2156 = vpack.c.b16 %v1586, %v1584
  %v2157 = vpack.c.b16 %v1587, %v1585
  %v2158 = vpack.c.b16 %v1590, %v1588
  %v2159 = vpack.c.b16 %v1591, %v1589
  %v2160 = vpack.c.b16 %v1594, %v1592
  %v2161 = vpack.c.b16 %v1595, %v1593
  %v2162 = vpack.c.b16 %v1598, %v1596
  %v2163 = vpack.c.b16 %v1599, %v1597
  %v2164 = vpack.c.b16 %v1602, %v1600
  %v2165 = vpack.c.b16 %v1603, %v1601
  %v2166 = vpack.c.b16 %v1606, %v1604
  %v2167 = vpack.c.b16 %v1607, %v1605
  %v2168 = vpack.c.b16 %v1610, %v1608
  %v2169 = vpack.c.b16 %v1611, %v1609
  %v2170 = vpack.c.b16 %v1614, %v1612
  %v2171 = vpack.c.b16 %v1615, %v1613
  %v2172 = vpack.c.b16 %v1618, %v1616
  %v2173 = vpack.c.b16 %v1619, %v1617
  %v2174 = vpack.c.b16 %v1622, %v1620
  %v2175 = vpack.c.b16 %v1623, %v1621
  %v2176 = vpack.c.b16 %v1626, %v1624
  %v2177 = vpack.c.b16 %v1627, %v1625
  %v2178 = vpack.c.b16 %v1630, %v1628
  %v2179 = vpack.c.b16 %v1631, %v1629
  %v2180 = vpack.c.b16 %v1634, %v1632
  %v2181 = vpack.c.b16 %v1635, %v1633
  %v2182 = vpack.c.b16 %v1638, %v1636
  %v2183 = vpack.c.b16 %v1639, %v1637
  %v2184 = vpack.c.b16 %v1642, %v1640
  %v2185 = vpack.c.b16 %v1643, %v1641
  %v2186 = vpack.c.b16 %v1646, %v1644
  %v2187 = vpack.c.b16 %v1647, %v1645
  %v2188 = vpack.c.b16 %v1650, %v1648
  %v2189 = vpack.c.b16 %v1651, %v1649
  %v2190 = vpack.c.b16 %v1654, %v1652
  %v2191 = vpack.c.b16 %v1655, %v1653
  %v2192 = vpack.c.b16 %v1658, %v1656
  %v2193 = vpack.c.b16 %v1659, %v1657
  %v2194 = vpack.c.b16 %v1662, %v1660
  %v2195 = vpack.c.b16 %v1663, %v1661
  %v2196 = vpack.c.b16 %v1666, %v1664
  %v2197 = vpack.c.b16 %v1667, %v1665
  %v2198 = vpack.c.b16 %v1670, %v1668
  %v2199 = vpack.c.b16 %v1671, %v1669
  %v2200 = vpack.c.b16 %v1674, %v1672
  %v2201 = vpack.c.b16 %v1675, %v1673
  %v2202 = vpack.c.b16 %v1678, %v1676
  %v2203 = vpack.c.b16 %v1679, %v1677
  %v2204 = vpack.c.b16 %v1682, %v1680
  %v2205 = vpack.c.b16 %v1683, %v1681
  %v2206 = vpack.c.b16 %v1686, %v1684
  %v2207 = vpack.c.b16 %v1687, %v1685
  %v2208 = vpack.c.b16 %v1690, %v1688
  %v2209 = vpack.c.b16 %v1691, %v1689
  %v2210 = vpack.c.b16 %v1694, %v1692
  %v2211 = vpack.c.b16 %v1695, %v1693
  %v2212 = vpack.c.b16 %v1698, %v1696
  %v2213 = vpack.c.b16 %v1699, %v1697
  %v2214 = vpack.c.b16 %v1702, %v1700
  %v2215 = vpack.c.b16 %v1703, %v1701
  %v2216 = vpack.c.b16 %v1706, %v1704
  %v2217 = vpack.c.b16 %v1707, %v1705
  %v2218 = vpack.c.b16 %v1710, %v1708
  %v2219 = vpack.c.b16 %v1711, %v1709
  %v2220 = vpack.c.b16 %v1714, %v1712
  %v2221 = vpack.c.b16 %v1715, %v1713
  %v2222 = vpack.c.b16 %v1718, %v1716
  %v2223 = vpack.c.b16 %v1719, %v1717
  %v2224 = vpack.c.b16 %v1722, %v1720
  %v2225 = vpack.c.b16 %v1723, %v1721
  %v2226 = vpack.c.b16 %v1726, %v1724
  %v2227 = vpack.c.b16 %v1727, %v1725
  %v2228 = vpack.c.b16 %v1730, %v1728
  %v2229 = vpack.c.b16 %v1731, %v1729
  %v2230 = vpack.c.b16 %v1734, %v1732
  %v2231 = vpack.c.b16 %v1735, %v1733
  %v2232 = vpack.c.b16 %v1738, %v1736
  %v2233 = vpack.c.b16 %v1739, %v1737
  %v2234 = vpack.c.b16 %v1742, %v1740
  %v2235 = vpack.c.b16 %v1743, %v1741
  %v2236 = vpack.c.b16 %v1746, %v1744
  %v2237 = vpack.c.b16 %v1747, %v1745
  %v2238 = vpack.c.b16 %v1750, %v1748
  %v2239 = vpack.c.b16 %v1751, %v1749
  %v2240 = vpack.c.b16 %v1754, %v1752
  %v2241 = vpack.c.b16 %v1755, %v1753
  %v2242 = vpack.c.b16 %v1758, %v1756
  %v2243 = vpack.c.b16 %v1759, %v1757
  %v2244 = vpack.c.b16 %v1762, %v1760
  %v2245 = vpack.c.b16 %v1763, %v1761
  %v2246 = vpack.c.b16 %v1766, %v1764
  %v2247 = vpack.c.b16 %v1767, %v1765
  %v2248 = vpack.c.b16 %v1770, %v1768
  %v2249 = vpack.c.b16 %v1771, %v1769
  %v2250 = vpack.c.b16 %v1774, %v1772
  %v2251 = vpack.c.b16 %v1775, %v1773
  %v2252 = vpack.c.b16 %v1778, %v1776
  %v2253 = vpack.c.b16 %v1779, %v1777
  %v2254 = vpack.c.b16 %v1782, %v1780
  %v2255 = vpack.c.b16 %v1783, %v1781
  %v2256 = vpack.c.b16 %v1786, %v1784
  %v2257 = vpack.c.b16 %v1787, %v1785
  %v2258 = vpack.c.b16 %v1790, %v1788
  %v2259 = vpack.c.b16 %v1791, %v1789
  %v2260 = vpack.c.b16 %v1794, %v1792
  %v2261 = vpack.c.b16 %v1795, %v1793
  %v2262 = vpack.c.b16 %v1798, %v1796
  %v2263 = vpack.c.b16 %v1799, %v1797
  %v2264 = vpack.c.b16 %v1802, %v1800
  %v2265 = vpack.c.b16 %v1803, %v1801
  %v2266 = vpack.c.b16 %v1806, %v1804
  %v2267 = vpack.c.b16 %v1807, %v1805
  %v2268 = vpack.c.b16 %v1810, %v1808
  %v2269 = vpack.c.b16 %v1811, %v1809
  %v2270 = vpack.c.b16 %v1814, %v1812
  %v2271 = vpack.c.b16 %v1815, %v1813
  %v2272 = vpack.c.b16 %v1818, %v1816
  %v2273 = vpack.c.b16 %v1819, %v1817
  %v2274 = vpack.c.b16 %v1822, %v1820
  %v2275 = vpack.c.b16 %v1823, %v1821
  %v2276 = vpack.c.b16 %v1826, %v1824
  %v2277 = vpack.c.b16 %v1827, %v1825
  %v2278 = vpack.c.b16 %v1830, %v1828
  %v2279 = vpack.c.b16 %v1831, %v1829
  %v2280 = vpack.c.b16 %v1834, %v1832
  %v2281 = vpack.c.b16 %v1835, %v1833
  %v2282 = vpack.c.b16 %v1838, %v1836
  %v2283 = vpack.c.b16 %v1839, %v1837
  %v2284 = vpack.c.b16 %v1842, %v1840
  %v2285 = vpack.c.b16 %v1843, %v1841
  %v2286 = vpack.c.b16 %v1846, %v1844
  %v2287 = vpack.c.b16 %v1847, %v1845
  %v2288 = vpack.c.b16 %v1850, %v1848
  %v2289 = vpack.c.b16 %v1851, %v1849
  %v2290 = vpack.c.b16 %v1854, %v1852
  %v2291 = vpack.c.b16 %v1855, %v1853
  %v2292 = vpack.c.b16 %v1858, %v1856
  %v2293 = vpack.c.b16 %v1859, %v1857
  %v2294 = vpack.c.b16 %v1862, %v1860
  %v2295 = vpack.c.b16 %v1863, %v1861
  %2728 = vmatprep.subr.bf16.mxu0 %v1865
  %2729 = vmatpush1.bf16.msra.mxu0 %v1864
  %2730 = vmatprep.subr.bf16.mxu0 %v1867
  %2731 = vmatpush1.bf16.msra.mxu0 %v1866
  %2732 = vmatprep.subr.bf16.mxu0 %v1869
  %2733 = vmatpush1.bf16.msra.mxu0 %v1868
  %2734 = vmatprep.subr.bf16.mxu0 %v1871
  %2735 = vmatpush1.bf16.msra.mxu0 %v1870
  %2736 = vmatprep.subr.bf16.mxu0 %v1873
  %2737 = vmatpush1.bf16.msra.mxu0 %v1872
  %2738 = vmatprep.subr.bf16.mxu0 %v1875
  %2739 = vmatpush1.bf16.msra.mxu0 %v1874
  %2740 = vmatprep.subr.bf16.mxu0 %v1877
  %2741 = vmatpush1.bf16.msra.mxu0 %v1876
  %2742 = vmatprep.subr.bf16.mxu0 %v1879
  %2743 = vmatpush1.bf16.msra.mxu0 %v1878
  %2744 = vmatprep.subr.bf16.mxu0 %v1881
  %2745 = vmatpush1.bf16.msra.mxu0 %v1880
  %2746 = vmatprep.subr.bf16.mxu0 %v1883
  %2747 = vmatpush1.bf16.msra.mxu0 %v1882
  %2748 = vmatprep.subr.bf16.mxu0 %v1885
  %2749 = vmatpush1.bf16.msra.mxu0 %v1884
  %2750 = vmatprep.subr.bf16.mxu0 %v1887
  %2751 = vmatpush1.bf16.msra.mxu0 %v1886
  %2752 = vmatprep.subr.bf16.mxu0 %v1889
  %2753 = vmatpush1.bf16.msra.mxu0 %v1888
  %2754 = vmatprep.subr.bf16.mxu0 %v1891
  %2755 = vmatpush1.bf16.msra.mxu0 %v1890
  %2756 = vmatprep.subr.bf16.mxu0 %v1893
  %2757 = vmatpush1.bf16.msra.mxu0 %v1892
  %2758 = vmatprep.subr.bf16.mxu0 %v1895
  %2759 = vmatpush1.bf16.msra.mxu0 %v1894
  %2760 = vmatprep.mubr.bf16.mxu0 %v515
  %2761 = vmatmul.mubr.bf16.gmra.mrb[0].mxu0 %v514
  %v2762 = vpop.f32.mrb[0].mxu0
  %v2763 = vadd.f32 %v466, %v2762
  %v2764 = vpop.f32.mrb[0].mxu0
  %v2765 = vadd.f32 %v470, %v2764
  %v2766 = vpop.f32.mrb[0].mxu0
  %v2767 = vpop.f32.mrb[0].mxu0
  %2768 = vdwg.mxu0
  %2769 = vmatprep.subr.bf16.mxu0 %v1897
  %2770 = vmatpush1.bf16.msra.mxu0 %v1896
  %2771 = vmatprep.subr.bf16.mxu0 %v1899
  %2772 = vmatpush1.bf16.msra.mxu0 %v1898
  %2773 = vmatprep.subr.bf16.mxu0 %v1901
  %2774 = vmatpush1.bf16.msra.mxu0 %v1900
  %2775 = vmatprep.subr.bf16.mxu0 %v1903
  %2776 = vmatpush1.bf16.msra.mxu0 %v1902
  %2777 = vmatprep.subr.bf16.mxu0 %v1905
  %2778 = vmatpush1.bf16.msra.mxu0 %v1904
  %2779 = vmatprep.subr.bf16.mxu0 %v1907
  %2780 = vmatpush1.bf16.msra.mxu0 %v1906
  %2781 = vmatprep.subr.bf16.mxu0 %v1909
  %2782 = vmatpush1.bf16.msra.mxu0 %v1908
  %2783 = vmatprep.subr.bf16.mxu0 %v1911
  %2784 = vmatpush1.bf16.msra.mxu0 %v1910
  %2785 = vmatprep.subr.bf16.mxu0 %v1913
  %2786 = vmatpush1.bf16.msra.mxu0 %v1912
  %2787 = vmatprep.subr.bf16.mxu0 %v1915
  %2788 = vmatpush1.bf16.msra.mxu0 %v1914
  %2789 = vmatprep.subr.bf16.mxu0 %v1917
  %2790 = vmatpush1.bf16.msra.mxu0 %v1916
  %2791 = vmatprep.subr.bf16.mxu0 %v1919
  %2792 = vmatpush1.bf16.msra.mxu0 %v1918
  %2793 = vmatprep.subr.bf16.mxu0 %v1921
  %2794 = vmatpush1.bf16.msra.mxu0 %v1920
  %2795 = vmatprep.subr.bf16.mxu0 %v1923
  %2796 = vmatpush1.bf16.msra.mxu0 %v1922
  %2797 = vmatprep.subr.bf16.mxu0 %v1925
  %2798 = vmatpush1.bf16.msra.mxu0 %v1924
  %2799 = vmatprep.subr.bf16.mxu0 %v1927
  %2800 = vmatpush1.bf16.msra.mxu0 %v1926
  %2801 = vmatprep.mubr.bf16.mxu0 %v517
  %2802 = vmatmul.mubr.bf16.gmra.mrb[0].mxu0 %v516
  %v2803 = vpop.f32.mrb[0].mxu0
  %v2804 = vadd.f32 %v2763, %v2803
  %v2805 = vpop.f32.mrb[0].mxu0
  %v2806 = vadd.f32 %v2765, %v2805
  %v2807 = vpop.f32.mrb[0].mxu0
  %v2808 = vpop.f32.mrb[0].mxu0
  %2809 = vdwg.mxu0
  %2810 = vmatprep.subr.bf16.mxu0 %v1929
  %2811 = vmatpush1.bf16.msra.mxu0 %v1928
  %2812 = vmatprep.subr.bf16.mxu0 %v1931
  %2813 = vmatpush1.bf16.msra.mxu0 %v1930
  %2814 = vmatprep.subr.bf16.mxu0 %v1933
  %2815 = vmatpush1.bf16.msra.mxu0 %v1932
  %2816 = vmatprep.subr.bf16.mxu0 %v1935
  %2817 = vmatpush1.bf16.msra.mxu0 %v1934
  %2818 = vmatprep.subr.bf16.mxu0 %v1937
  %2819 = vmatpush1.bf16.msra.mxu0 %v1936
  %2820 = vmatprep.subr.bf16.mxu0 %v1939
  %2821 = vmatpush1.bf16.msra.mxu0 %v1938
  %2822 = vmatprep.subr.bf16.mxu0 %v1941
  %2823 = vmatpush1.bf16.msra.mxu0 %v1940
  %2824 = vmatprep.subr.bf16.mxu0 %v1943
  %2825 = vmatpush1.bf16.msra.mxu0 %v1942
  %2826 = vmatprep.subr.bf16.mxu0 %v1945
  %2827 = vmatpush1.bf16.msra.mxu0 %v1944
  %2828 = vmatprep.subr.bf16.mxu0 %v1947
  %2829 = vmatpush1.bf16.msra.mxu0 %v1946
  %2830 = vmatprep.subr.bf16.mxu0 %v1949
  %2831 = vmatpush1.bf16.msra.mxu0 %v1948
  %2832 = vmatprep.subr.bf16.mxu0 %v1951
  %2833 = vmatpush1.bf16.msra.mxu0 %v1950
  %2834 = vmatprep.subr.bf16.mxu0 %v1953
  %2835 = vmatpush1.bf16.msra.mxu0 %v1952
  %2836 = vmatprep.subr.bf16.mxu0 %v1955
  %2837 = vmatpush1.bf16.msra.mxu0 %v1954
  %2838 = vmatprep.subr.bf16.mxu0 %v1957
  %2839 = vmatpush1.bf16.msra.mxu0 %v1956
  %2840 = vmatprep.subr.bf16.mxu0 %v1959
  %2841 = vmatpush1.bf16.msra.mxu0 %v1958
  %2842 = vmatprep.mubr.bf16.mxu0 %v519
  %2843 = vmatmul.mubr.bf16.gmra.mrb[0].mxu0 %v518
  %v2844 = vpop.f32.mrb[0].mxu0
  %v2845 = vadd.f32 %v2804, %v2844
  %v2846 = vpop.f32.mrb[0].mxu0
  %v2847 = vadd.f32 %v2806, %v2846
  %v2848 = vpop.f32.mrb[0].mxu0
  %v2849 = vpop.f32.mrb[0].mxu0
  %2850 = vdwg.mxu0
  %2851 = vmatprep.subr.bf16.mxu0 %v1961
  %2852 = vmatpush1.bf16.msra.mxu0 %v1960
  %2853 = vmatprep.subr.bf16.mxu0 %v1963
  %2854 = vmatpush1.bf16.msra.mxu0 %v1962
  %2855 = vmatprep.subr.bf16.mxu0 %v1965
  %2856 = vmatpush1.bf16.msra.mxu0 %v1964
  %2857 = vmatprep.subr.bf16.mxu0 %v1967
  %2858 = vmatpush1.bf16.msra.mxu0 %v1966
  %2859 = vmatprep.subr.bf16.mxu0 %v1969
  %2860 = vmatpush1.bf16.msra.mxu0 %v1968
  %2861 = vmatprep.subr.bf16.mxu0 %v1971
  %2862 = vmatpush1.bf16.msra.mxu0 %v1970
  %2863 = vmatprep.subr.bf16.mxu0 %v1973
  %2864 = vmatpush1.bf16.msra.mxu0 %v1972
  %2865 = vmatprep.subr.bf16.mxu0 %v1975
  %2866 = vmatpush1.bf16.msra.mxu0 %v1974
  %2867 = vmatprep.subr.bf16.mxu0 %v1977
  %2868 = vmatpush1.bf16.msra.mxu0 %v1976
  %2869 = vmatprep.subr.bf16.mxu0 %v1979
  %2870 = vmatpush1.bf16.msra.mxu0 %v1978
  %2871 = vmatprep.subr.bf16.mxu0 %v1981
  %2872 = vmatpush1.bf16.msra.mxu0 %v1980
  %2873 = vmatprep.subr.bf16.mxu0 %v1983
  %2874 = vmatpush1.bf16.msra.mxu0 %v1982
  %2875 = vmatprep.subr.bf16.mxu0 %v1985
  %2876 = vmatpush1.bf16.msra.mxu0 %v1984
  %2877 = vmatprep.subr.bf16.mxu0 %v1987
  %2878 = vmatpush1.bf16.msra.mxu0 %v1986
  %2879 = vmatprep.subr.bf16.mxu0 %v1989
  %2880 = vmatpush1.bf16.msra.mxu0 %v1988
  %2881 = vmatprep.subr.bf16.mxu0 %v1991
  %2882 = vmatpush1.bf16.msra.mxu0 %v1990
  %2883 = vmatprep.mubr.bf16.mxu0 %v521
  %2884 = vmatmul.mubr.bf16.gmra.mrb[0].mxu0 %v520
  %v2885 = vpop.f32.mrb[0].mxu0
  %v2886 = vadd.f32 %v2845, %v2885
  %v2887 = vpop.f32.mrb[0].mxu0
  %v2888 = vadd.f32 %v2847, %v2887
  %v2889 = vpop.f32.mrb[0].mxu0
  %v2890 = vpop.f32.mrb[0].mxu0
  %2891 = vdwg.mxu0
  %2892 = vmatprep.subr.bf16.mxu0 %v1993
  %2893 = vmatpush1.bf16.msra.mxu0 %v1992
  %2894 = vmatprep.subr.bf16.mxu0 %v1995
  %2895 = vmatpush1.bf16.msra.mxu0 %v1994
  %2896 = vmatprep.subr.bf16.mxu0 %v1997
  %2897 = vmatpush1.bf16.msra.mxu0 %v1996
  %2898 = vmatprep.subr.bf16.mxu0 %v1999
  %2899 = vmatpush1.bf16.msra.mxu0 %v1998
  %2900 = vmatprep.subr.bf16.mxu0 %v2001
  %2901 = vmatpush1.bf16.msra.mxu0 %v2000
  %2902 = vmatprep.subr.bf16.mxu0 %v2003
  %2903 = vmatpush1.bf16.msra.mxu0 %v2002
  %2904 = vmatprep.subr.bf16.mxu0 %v2005
  %2905 = vmatpush1.bf16.msra.mxu0 %v2004
  %2906 = vmatprep.subr.bf16.mxu0 %v2007
  %2907 = vmatpush1.bf16.msra.mxu0 %v2006
  %2908 = vmatprep.subr.bf16.mxu0 %v2009
  %2909 = vmatpush1.bf16.msra.mxu0 %v2008
  %2910 = vmatprep.subr.bf16.mxu0 %v2011
  %2911 = vmatpush1.bf16.msra.mxu0 %v2010
  %2912 = vmatprep.subr.bf16.mxu0 %v2013
  %2913 = vmatpush1.bf16.msra.mxu0 %v2012
  %2914 = vmatprep.subr.bf16.mxu0 %v2015
  %2915 = vmatpush1.bf16.msra.mxu0 %v2014
  %2916 = vmatprep.subr.bf16.mxu0 %v2017
  %2917 = vmatpush1.bf16.msra.mxu0 %v2016
  %2918 = vmatprep.subr.bf16.mxu0 %v2019
  %2919 = vmatpush1.bf16.msra.mxu0 %v2018
  %2920 = vmatprep.subr.bf16.mxu0 %v2021
  %2921 = vmatpush1.bf16.msra.mxu0 %v2020
  %2922 = vmatprep.subr.bf16.mxu0 %v2023
  %2923 = vmatpush1.bf16.msra.mxu0 %v2022
  %2924 = vmatprep.mubr.bf16.mxu0 %v523
  %2925 = vmatmul.mubr.bf16.gmra.mrb[0].mxu0 %v522
  %v2926 = vpop.f32.mrb[0].mxu0
  %v2927 = vadd.f32 %v2886, %v2926
  %v2928 = vpop.f32.mrb[0].mxu0
  %v2929 = vadd.f32 %v2888, %v2928
  %v2930 = vpop.f32.mrb[0].mxu0
  %v2931 = vpop.f32.mrb[0].mxu0
  %2932 = vdwg.mxu0
  %2933 = vmatprep.subr.bf16.mxu0 %v2025
  %2934 = vmatpush1.bf16.msra.mxu0 %v2024
  %2935 = vmatprep.subr.bf16.mxu0 %v2027
  %2936 = vmatpush1.bf16.msra.mxu0 %v2026
  %2937 = vmatprep.subr.bf16.mxu0 %v2029
  %2938 = vmatpush1.bf16.msra.mxu0 %v2028
  %2939 = vmatprep.subr.bf16.mxu0 %v2031
  %2940 = vmatpush1.bf16.msra.mxu0 %v2030
  %2941 = vmatprep.subr.bf16.mxu0 %v2033
  %2942 = vmatpush1.bf16.msra.mxu0 %v2032
  %2943 = vmatprep.subr.bf16.mxu0 %v2035
  %2944 = vmatpush1.bf16.msra.mxu0 %v2034
  %2945 = vmatprep.subr.bf16.mxu0 %v2037
  %2946 = vmatpush1.bf16.msra.mxu0 %v2036
  %2947 = vmatprep.subr.bf16.mxu0 %v2039
  %2948 = vmatpush1.bf16.msra.mxu0 %v2038
  %2949 = vmatprep.subr.bf16.mxu0 %v2041
  %2950 = vmatpush1.bf16.msra.mxu0 %v2040
  %2951 = vmatprep.subr.bf16.mxu0 %v2043
  %2952 = vmatpush1.bf16.msra.mxu0 %v2042
  %2953 = vmatprep.subr.bf16.mxu0 %v2045
  %2954 = vmatpush1.bf16.msra.mxu0 %v2044
  %2955 = vmatprep.subr.bf16.mxu0 %v2047
  %2956 = vmatpush1.bf16.msra.mxu0 %v2046
  %2957 = vmatprep.subr.bf16.mxu0 %v2049
  %2958 = vmatpush1.bf16.msra.mxu0 %v2048
  %2959 = vmatprep.subr.bf16.mxu0 %v2051
  %2960 = vmatpush1.bf16.msra.mxu0 %v2050
  %2961 = vmatprep.subr.bf16.mxu0 %v2053
  %2962 = vmatpush1.bf16.msra.mxu0 %v2052
  %2963 = vmatprep.subr.bf16.mxu0 %v2055
  %2964 = vmatpush1.bf16.msra.mxu0 %v2054
  %2965 = vmatprep.mubr.bf16.mxu0 %v525
  %2966 = vmatmul.mubr.bf16.gmra.mrb[0].mxu0 %v524
  %v2967 = vpop.f32.mrb[0].mxu0
  %v2968 = vadd.f32 %v2927, %v2967
  %v2969 = vpop.f32.mrb[0].mxu0
  %v2970 = vadd.f32 %v2929, %v2969
  %v2971 = vpop.f32.mrb[0].mxu0
  %v2972 = vpop.f32.mrb[0].mxu0
  %2973 = vdwg.mxu0
  %2974 = vmatprep.subr.bf16.mxu0 %v2057
  %2975 = vmatpush1.bf16.msra.mxu0 %v2056
  %2976 = vmatprep.subr.bf16.mxu0 %v2059
  %2977 = vmatpush1.bf16.msra.mxu0 %v2058
  %2978 = vmatprep.subr.bf16.mxu0 %v2061
  %2979 = vmatpush1.bf16.msra.mxu0 %v2060
  %2980 = vmatprep.subr.bf16.mxu0 %v2063
  %2981 = vmatpush1.bf16.msra.mxu0 %v2062
  %2982 = vmatprep.subr.bf16.mxu0 %v2065
  %2983 = vmatpush1.bf16.msra.mxu0 %v2064
  %2984 = vmatprep.subr.bf16.mxu0 %v2067
  %2985 = vmatpush1.bf16.msra.mxu0 %v2066
  %2986 = vmatprep.subr.bf16.mxu0 %v2069
  %2987 = vmatpush1.bf16.msra.mxu0 %v2068
  %2988 = vmatprep.subr.bf16.mxu0 %v2071
  %2989 = vmatpush1.bf16.msra.mxu0 %v2070
  %2990 = vmatprep.subr.bf16.mxu0 %v2073
  %2991 = vmatpush1.bf16.msra.mxu0 %v2072
  %2992 = vmatprep.subr.bf16.mxu0 %v2075
  %2993 = vmatpush1.bf16.msra.mxu0 %v2074
  %2994 = vmatprep.subr.bf16.mxu0 %v2077
  %2995 = vmatpush1.bf16.msra.mxu0 %v2076
  %2996 = vmatprep.subr.bf16.mxu0 %v2079
  %2997 = vmatpush1.bf16.msra.mxu0 %v2078
  %2998 = vmatprep.subr.bf16.mxu0 %v2081
  %2999 = vmatpush1.bf16.msra.mxu0 %v2080
  %3000 = vmatprep.subr.bf16.mxu0 %v2083
  %3001 = vmatpush1.bf16.msra.mxu0 %v2082
  %3002 = vmatprep.subr.bf16.mxu0 %v2085
  %3003 = vmatpush1.bf16.msra.mxu0 %v2084
  %3004 = vmatprep.subr.bf16.mxu0 %v2087
  %3005 = vmatpush1.bf16.msra.mxu0 %v2086
  %3006 = vmatprep.mubr.bf16.mxu0 %v527
  %3007 = vmatmul.mubr.bf16.gmra.mrb[0].mxu0 %v526
  %v3008 = vpop.f32.mrb[0].mxu0
  %v3009 = vadd.f32 %v2968, %v3008
  %v3010 = vpop.f32.mrb[0].mxu0
  %v3011 = vadd.f32 %v2970, %v3010
  %v3012 = vpop.f32.mrb[0].mxu0
  %v3013 = vpop.f32.mrb[0].mxu0
  %3014 = vdwg.mxu0
  %3015 = vmatprep.subr.bf16.mxu0 %v2089
  %3016 = vmatpush1.bf16.msra.mxu0 %v2088
  %3017 = vmatprep.subr.bf16.mxu0 %v2091
  %3018 = vmatpush1.bf16.msra.mxu0 %v2090
  %3019 = vmatprep.subr.bf16.mxu0 %v2093
  %3020 = vmatpush1.bf16.msra.mxu0 %v2092
  %3021 = vmatprep.subr.bf16.mxu0 %v2095
  %3022 = vmatpush1.bf16.msra.mxu0 %v2094
  %3023 = vmatprep.subr.bf16.mxu0 %v2097
  %3024 = vmatpush1.bf16.msra.mxu0 %v2096
  %3025 = vmatprep.subr.bf16.mxu0 %v2099
  %3026 = vmatpush1.bf16.msra.mxu0 %v2098
  %3027 = vmatprep.subr.bf16.mxu0 %v2101
  %3028 = vmatpush1.bf16.msra.mxu0 %v2100
  %3029 = vmatprep.subr.bf16.mxu0 %v2103
  %3030 = vmatpush1.bf16.msra.mxu0 %v2102
  %3031 = vmatprep.subr.bf16.mxu0 %v2105
  %3032 = vmatpush1.bf16.msra.mxu0 %v2104
  %3033 = vmatprep.subr.bf16.mxu0 %v2107
  %3034 = vmatpush1.bf16.msra.mxu0 %v2106
  %3035 = vmatprep.subr.bf16.mxu0 %v2109
  %3036 = vmatpush1.bf16.msra.mxu0 %v2108
  %3037 = vmatprep.subr.bf16.mxu0 %v2111
  %3038 = vmatpush1.bf16.msra.mxu0 %v2110
  %3039 = vmatprep.subr.bf16.mxu0 %v2113
  %3040 = vmatpush1.bf16.msra.mxu0 %v2112
  %3041 = vmatprep.subr.bf16.mxu0 %v2115
  %3042 = vmatpush1.bf16.msra.mxu0 %v2114
  %3043 = vmatprep.subr.bf16.mxu0 %v2117
  %3044 = vmatpush1.bf16.msra.mxu0 %v2116
  %3045 = vmatprep.subr.bf16.mxu0 %v2119
  %3046 = vmatpush1.bf16.msra.mxu0 %v2118
  %3047 = vmatprep.mubr.bf16.mxu0 %v529
  %3048 = vmatmul.mubr.bf16.gmra.mrb[0].mxu0 %v528
  %v3049 = vpop.f32.mrb[0].mxu0
  %v3050 = vadd.f32 %v3009, %v3049
  %v3051 = vpop.f32.mrb[0].mxu0
  %v3052 = vadd.f32 %v3011, %v3051
  %v3053 = vpop.f32.mrb[0].mxu0
  %v3054 = vpop.f32.mrb[0].mxu0
  %3055 = vdwg.mxu0
  %3056 = vmatprep.subr.bf16.mxu0 %v2121
  %3057 = vmatpush1.bf16.msra.mxu0 %v2120
  %3058 = vmatprep.subr.bf16.mxu0 %v2123
  %3059 = vmatpush1.bf16.msra.mxu0 %v2122
  %3060 = vmatprep.subr.bf16.mxu0 %v2125
  %3061 = vmatpush1.bf16.msra.mxu0 %v2124
  %3062 = vmatprep.subr.bf16.mxu0 %v2127
  %3063 = vmatpush1.bf16.msra.mxu0 %v2126
  %3064 = vmatprep.subr.bf16.mxu0 %v2129
  %3065 = vmatpush1.bf16.msra.mxu0 %v2128
  %3066 = vmatprep.subr.bf16.mxu0 %v2131
  %3067 = vmatpush1.bf16.msra.mxu0 %v2130
  %3068 = vmatprep.subr.bf16.mxu0 %v2133
  %3069 = vmatpush1.bf16.msra.mxu0 %v2132
  %3070 = vmatprep.subr.bf16.mxu0 %v2135
  %3071 = vmatpush1.bf16.msra.mxu0 %v2134
  %3072 = vmatprep.subr.bf16.mxu0 %v2137
  %3073 = vmatpush1.bf16.msra.mxu0 %v2136
  %3074 = vmatprep.subr.bf16.mxu0 %v2139
  %3075 = vmatpush1.bf16.msra.mxu0 %v2138
  %3076 = vmatprep.subr.bf16.mxu0 %v2141
  %3077 = vmatpush1.bf16.msra.mxu0 %v2140
  %3078 = vmatprep.subr.bf16.mxu0 %v2143
  %3079 = vmatpush1.bf16.msra.mxu0 %v2142
  %3080 = vmatprep.subr.bf16.mxu0 %v2145
  %3081 = vmatpush1.bf16.msra.mxu0 %v2144
  %3082 = vmatprep.subr.bf16.mxu0 %v2147
  %3083 = vmatpush1.bf16.msra.mxu0 %v2146
  %3084 = vmatprep.subr.bf16.mxu0 %v2149
  %3085 = vmatpush1.bf16.msra.mxu0 %v2148
  %3086 = vmatprep.subr.bf16.mxu0 %v2151
  %3087 = vmatpush1.bf16.msra.mxu0 %v2150
  %3088 = vmatprep.mubr.bf16.mxu0 %v531
  %3089 = vmatmul.mubr.bf16.gmra.mrb[0].mxu0 %v530
  %v3090 = vpop.f32.mrb[0].mxu0
  %v3091 = vadd.f32 %v3050, %v3090
  %v3092 = vpop.f32.mrb[0].mxu0
  %v3093 = vadd.f32 %v3052, %v3092
  %v3094 = vpop.f32.mrb[0].mxu0
  %v3095 = vpop.f32.mrb[0].mxu0
  %3096 = vdwg.mxu0
  %3097 = vmatprep.subr.bf16.mxu0 %v2153
  %3098 = vmatpush1.bf16.msra.mxu0 %v2152
  %3099 = vmatprep.subr.bf16.mxu0 %v2155
  %3100 = vmatpush1.bf16.msra.mxu0 %v2154
  %3101 = vmatprep.subr.bf16.mxu0 %v2157
  %3102 = vmatpush1.bf16.msra.mxu0 %v2156
  %3103 = vmatprep.subr.bf16.mxu0 %v2159
  %3104 = vmatpush1.bf16.msra.mxu0 %v2158
  %3105 = vmatprep.subr.bf16.mxu0 %v2161
  %3106 = vmatpush1.bf16.msra.mxu0 %v2160
  %3107 = vmatprep.subr.bf16.mxu0 %v2163
  %3108 = vmatpush1.bf16.msra.mxu0 %v2162
  %3109 = vmatprep.subr.bf16.mxu0 %v2165
  %3110 = vmatpush1.bf16.msra.mxu0 %v2164
  %3111 = vmatprep.subr.bf16.mxu0 %v2167
  %3112 = vmatpush1.bf16.msra.mxu0 %v2166
  %3113 = vmatprep.subr.bf16.mxu0 %v2169
  %3114 = vmatpush1.bf16.msra.mxu0 %v2168
  %3115 = vmatprep.subr.bf16.mxu0 %v2171
  %3116 = vmatpush1.bf16.msra.mxu0 %v2170
  %3117 = vmatprep.subr.bf16.mxu0 %v2173
  %3118 = vmatpush1.bf16.msra.mxu0 %v2172
  %3119 = vmatprep.subr.bf16.mxu0 %v2175
  %3120 = vmatpush1.bf16.msra.mxu0 %v2174
  %3121 = vmatprep.subr.bf16.mxu0 %v2177
  %3122 = vmatpush1.bf16.msra.mxu0 %v2176
  %3123 = vmatprep.subr.bf16.mxu0 %v2179
  %3124 = vmatpush1.bf16.msra.mxu0 %v2178
  %3125 = vmatprep.subr.bf16.mxu0 %v2181
  %3126 = vmatpush1.bf16.msra.mxu0 %v2180
  %3127 = vmatprep.subr.bf16.mxu0 %v2183
  %3128 = vmatpush1.bf16.msra.mxu0 %v2182
  %3129 = vmatprep.mubr.bf16.mxu0 %v533
  %3130 = vmatmul.mubr.bf16.gmra.mrb[0].mxu0 %v532
  %v3131 = vpop.f32.mrb[0].mxu0
  %v3132 = vadd.f32 %v3091, %v3131
  %v3133 = vpop.f32.mrb[0].mxu0
  %v3134 = vadd.f32 %v3093, %v3133
  %v3135 = vpop.f32.mrb[0].mxu0
  %v3136 = vpop.f32.mrb[0].mxu0
  %3137 = vdwg.mxu0
  %3138 = vmatprep.subr.bf16.mxu0 %v2185
  %3139 = vmatpush1.bf16.msra.mxu0 %v2184
  %3140 = vmatprep.subr.bf16.mxu0 %v2187
  %3141 = vmatpush1.bf16.msra.mxu0 %v2186
  %3142 = vmatprep.subr.bf16.mxu0 %v2189
  %3143 = vmatpush1.bf16.msra.mxu0 %v2188
  %3144 = vmatprep.subr.bf16.mxu0 %v2191
  %3145 = vmatpush1.bf16.msra.mxu0 %v2190
  %3146 = vmatprep.subr.bf16.mxu0 %v2193
  %3147 = vmatpush1.bf16.msra.mxu0 %v2192
  %3148 = vmatprep.subr.bf16.mxu0 %v2195
  %3149 = vmatpush1.bf16.msra.mxu0 %v2194
  %3150 = vmatprep.subr.bf16.mxu0 %v2197
  %3151 = vmatpush1.bf16.msra.mxu0 %v2196
  %3152 = vmatprep.subr.bf16.mxu0 %v2199
  %3153 = vmatpush1.bf16.msra.mxu0 %v2198
  %3154 = vmatprep.subr.bf16.mxu0 %v2201
  %3155 = vmatpush1.bf16.msra.mxu0 %v2200
  %3156 = vmatprep.subr.bf16.mxu0 %v2203
  %3157 = vmatpush1.bf16.msra.mxu0 %v2202
  %3158 = vmatprep.subr.bf16.mxu0 %v2205
  %3159 = vmatpush1.bf16.msra.mxu0 %v2204
  %3160 = vmatprep.subr.bf16.mxu0 %v2207
  %3161 = vmatpush1.bf16.msra.mxu0 %v2206
  %3162 = vmatprep.subr.bf16.mxu0 %v2209
  %3163 = vmatpush1.bf16.msra.mxu0 %v2208
  %3164 = vmatprep.subr.bf16.mxu0 %v2211
  %3165 = vmatpush1.bf16.msra.mxu0 %v2210
  %3166 = vmatprep.subr.bf16.mxu0 %v2213
  %3167 = vmatpush1.bf16.msra.mxu0 %v2212
  %3168 = vmatprep.subr.bf16.mxu0 %v2215
  %3169 = vmatpush1.bf16.msra.mxu0 %v2214
  %3170 = vmatprep.mubr.bf16.mxu0 %v535
  %3171 = vmatmul.mubr.bf16.gmra.mrb[0].mxu0 %v534
  %v3172 = vpop.f32.mrb[0].mxu0
  %v3173 = vadd.f32 %v3132, %v3172
  %v3174 = vpop.f32.mrb[0].mxu0
  %v3175 = vadd.f32 %v3134, %v3174
  %v3176 = vpop.f32.mrb[0].mxu0
  %v3177 = vpop.f32.mrb[0].mxu0
  %3178 = vdwg.mxu0
  %3179 = vmatprep.subr.bf16.mxu0 %v2217
  %3180 = vmatpush1.bf16.msra.mxu0 %v2216
  %3181 = vmatprep.subr.bf16.mxu0 %v2219
  %3182 = vmatpush1.bf16.msra.mxu0 %v2218
  %3183 = vmatprep.subr.bf16.mxu0 %v2221
  %3184 = vmatpush1.bf16.msra.mxu0 %v2220
  %3185 = vmatprep.subr.bf16.mxu0 %v2223
  %3186 = vmatpush1.bf16.msra.mxu0 %v2222
  %3187 = vmatprep.subr.bf16.mxu0 %v2225
  %3188 = vmatpush1.bf16.msra.mxu0 %v2224
  %3189 = vmatprep.subr.bf16.mxu0 %v2227
  %3190 = vmatpush1.bf16.msra.mxu0 %v2226
  %3191 = vmatprep.subr.bf16.mxu0 %v2229
  %3192 = vmatpush1.bf16.msra.mxu0 %v2228
  %3193 = vmatprep.subr.bf16.mxu0 %v2231
  %3194 = vmatpush1.bf16.msra.mxu0 %v2230
  %3195 = vmatprep.subr.bf16.mxu0 %v2233
  %3196 = vmatpush1.bf16.msra.mxu0 %v2232
  %3197 = vmatprep.subr.bf16.mxu0 %v2235
  %3198 = vmatpush1.bf16.msra.mxu0 %v2234
  %3199 = vmatprep.subr.bf16.mxu0 %v2237
  %3200 = vmatpush1.bf16.msra.mxu0 %v2236
  %3201 = vmatprep.subr.bf16.mxu0 %v2239
  %3202 = vmatpush1.bf16.msra.mxu0 %v2238
  %3203 = vmatprep.subr.bf16.mxu0 %v2241
  %3204 = vmatpush1.bf16.msra.mxu0 %v2240
  %3205 = vmatprep.subr.bf16.mxu0 %v2243
  %3206 = vmatpush1.bf16.msra.mxu0 %v2242
  %3207 = vmatprep.subr.bf16.mxu0 %v2245
  %3208 = vmatpush1.bf16.msra.mxu0 %v2244
  %3209 = vmatprep.subr.bf16.mxu0 %v2247
  %3210 = vmatpush1.bf16.msra.mxu0 %v2246
  %3211 = vmatprep.mubr.bf16.mxu0 %v537
  %3212 = vmatmul.mubr.bf16.gmra.mrb[0].mxu0 %v536
  %v3213 = vpop.f32.mrb[0].mxu0
  %v3214 = vadd.f32 %v3173, %v3213
  %v3215 = vpop.f32.mrb[0].mxu0
  %v3216 = vadd.f32 %v3175, %v3215
  %v3217 = vpop.f32.mrb[0].mxu0
  %v3218 = vpop.f32.mrb[0].mxu0
  %3219 = vdwg.mxu0
  %3220 = vmatprep.subr.bf16.mxu0 %v2249
  %3221 = vmatpush1.bf16.msra.mxu0 %v2248
  %3222 = vmatprep.subr.bf16.mxu0 %v2251
  %3223 = vmatpush1.bf16.msra.mxu0 %v2250
  %3224 = vmatprep.subr.bf16.mxu0 %v2253
  %3225 = vmatpush1.bf16.msra.mxu0 %v2252
  %3226 = vmatprep.subr.bf16.mxu0 %v2255
  %3227 = vmatpush1.bf16.msra.mxu0 %v2254
  %3228 = vmatprep.subr.bf16.mxu0 %v2257
  %3229 = vmatpush1.bf16.msra.mxu0 %v2256
  %3230 = vmatprep.subr.bf16.mxu0 %v2259
  %3231 = vmatpush1.bf16.msra.mxu0 %v2258
  %3232 = vmatprep.subr.bf16.mxu0 %v2261
  %3233 = vmatpush1.bf16.msra.mxu0 %v2260
  %3234 = vmatprep.subr.bf16.mxu0 %v2263
  %3235 = vmatpush1.bf16.msra.mxu0 %v2262
  %3236 = vmatprep.subr.bf16.mxu0 %v2265
  %3237 = vmatpush1.bf16.msra.mxu0 %v2264
  %3238 = vmatprep.subr.bf16.mxu0 %v2267
  %3239 = vmatpush1.bf16.msra.mxu0 %v2266
  %3240 = vmatprep.subr.bf16.mxu0 %v2269
  %3241 = vmatpush1.bf16.msra.mxu0 %v2268
  %3242 = vmatprep.subr.bf16.mxu0 %v2271
  %3243 = vmatpush1.bf16.msra.mxu0 %v2270
  %3244 = vmatprep.subr.bf16.mxu0 %v2273
  %3245 = vmatpush1.bf16.msra.mxu0 %v2272
  %3246 = vmatprep.subr.bf16.mxu0 %v2275
  %3247 = vmatpush1.bf16.msra.mxu0 %v2274
  %3248 = vmatprep.subr.bf16.mxu0 %v2277
  %3249 = vmatpush1.bf16.msra.mxu0 %v2276
  %3250 = vmatprep.subr.bf16.mxu0 %v2279
  %3251 = vmatpush1.bf16.msra.mxu0 %v2278
  %3252 = vmatprep.mubr.bf16.mxu0 %v539
  %3253 = vmatmul.mubr.bf16.gmra.mrb[0].mxu0 %v538
  %v3254 = vpop.f32.mrb[0].mxu0
  %v3255 = vadd.f32 %v3214, %v3254
  %v3256 = vpop.f32.mrb[0].mxu0
  %v3257 = vadd.f32 %v3216, %v3256
  %v3258 = vpop.f32.mrb[0].mxu0
  %v3259 = vpop.f32.mrb[0].mxu0
  %3260 = vdwg.mxu0
  %3261 = vmatprep.subr.bf16.mxu0 %v2281
  %3262 = vmatpush1.bf16.msra.mxu0 %v2280
  %3263 = vmatprep.subr.bf16.mxu0 %v2283
  %3264 = vmatpush1.bf16.msra.mxu0 %v2282
  %3265 = vmatprep.subr.bf16.mxu0 %v2285
  %3266 = vmatpush1.bf16.msra.mxu0 %v2284
  %3267 = vmatprep.subr.bf16.mxu0 %v2287
  %3268 = vmatpush1.bf16.msra.mxu0 %v2286
  %3269 = vmatprep.subr.bf16.mxu0 %v2289
  %3270 = vmatpush1.bf16.msra.mxu0 %v2288
  %3271 = vmatprep.subr.bf16.mxu0 %v2291
  %3272 = vmatpush1.bf16.msra.mxu0 %v2290
  %3273 = vmatprep.subr.bf16.mxu0 %v2293
  %3274 = vmatpush1.bf16.msra.mxu0 %v2292
  %3275 = vmatprep.subr.bf16.mxu0 %v2295
  %3276 = vmatpush1.bf16.msra.mxu0 %v2294
  %3277 = vmatprep.subr.bf16.mxu0 0
  %3278 = vmatpush1.bf16.msra.mxu0 0
  %3279 = vmatprep.subr.bf16.mxu0 0
  %3280 = vmatpush1.bf16.msra.mxu0 0
  %3281 = vmatprep.subr.bf16.mxu0 0
  %3282 = vmatpush1.bf16.msra.mxu0 0
  %3283 = vmatprep.subr.bf16.mxu0 0
  %3284 = vmatpush1.bf16.msra.mxu0 0
  %3285 = vmatprep.subr.bf16.mxu0 0
  %3286 = vmatpush1.bf16.msra.mxu0 0
  %3287 = vmatprep.subr.bf16.mxu0 0
  %3288 = vmatpush1.bf16.msra.mxu0 0
  %3289 = vmatprep.subr.bf16.mxu0 0
  %3290 = vmatpush1.bf16.msra.mxu0 0
  %3291 = vmatprep.subr.bf16.mxu0 0
  %3292 = vmatpush1.bf16.msra.mxu0 0
  %3293 = vmatprep.mubr.bf16.mxu0 0
  %3294 = vmatmul.mubr.bf16.gmra.mrb[0].mxu0 %v540
  %v3295 = vpop.f32.mrb[0].mxu0
  %v3296 = vadd.f32 %v3255, %v3295
  %v3297 = vpop.f32.mrb[0].mxu0
  %v3298 = vadd.f32 %v3257, %v3297
  %v3299 = vpop.f32.mrb[0].mxu0
  %v3300 = vpop.f32.mrb[0].mxu0
  %3301 = vdwg.mxu0
  %v3302 = vmax.f32 %v3296, 0.0
  %v3303 = vmax.f32 %v3298, 0.0
  %3304 = vst [vmem:[%s3] sm:$0xff] %v3302
  %3305 = vst [vmem:[%s3 + $0x8] sm:$0xff] %v3303
  // Predicated region
  $region14: #{forward.15} parent=0 // pred_check
    _
  $region15: #{forward.15} parent=0 // pred_check_branch
    %3307 = sbr.rel (0) target = $region17
  $region16: #{forward.15} parent=0 // pred_region
    _
  $region17: #{forward.15} parent=0 // pred_fallthru
    _
  // Predicated region
  $region18: #{forward.15} parent=0 // pred_check
    _
  $region19: #{forward.15} parent=0 // pred_check_branch
    %3309 = sbr.rel (0) target = $region21
  $region20: #{forward.15} parent=0 // pred_region
    _
  $region21: #{forward.15} parent=0 // pred_fallthru
    _

// kernel: forward.16
$region0: #{forward.16}
  #allocation0 [shape = 'u32[]', space=smem, size = 0x4, offset = 0x4, fixed_abs, tag = 'smem constant byte address 0x4 - core index']
  #allocation1 [shape = 'u32[144,128]{1,0:T(1,128)}', space=vmem, size = 0x12000, scoped, tag = 'internal scratch']
  %s0 = inlined_call_operand.vmem [shape: bf16[8,2304], index: 0, kind: input, shape index: {}]
  %s1 = inlined_call_operand.vmem [shape: bf16[2304,256], index: 1, kind: input, shape index: {}]
  %s2 = inlined_call_operand.vmem [shape: f32[1,256], index: 2, kind: input, shape index: {}]
  %s3 = inlined_call_operand.vmem [shape: f32[8,256], index: 3, kind: output, shape index: {}]
  %s4 = sld [smem:[#allocation0]]
  $region22: #{forward.16} parent=0
    _
  %s6 = ssub.s32 1, %s4
  %s7 = scalar_select 0, %s6, %s4
  // Predicated region
  $region2: #{forward.16} parent=0 // pred_check
    _
  $region3: #{forward.16} parent=0 // pred_check_branch
    %9 = sbr.rel (0) target = $region5
  $region4: #{forward.16} parent=0 // pred_region
    _
  $region5: #{forward.16} parent=0 // pred_fallthru
    _
  // Predicated region
  $region6: #{forward.16} parent=0 // pred_check
    _
  $region7: #{forward.16} parent=0 // pred_check_branch
    %11 = sbr.rel (0) target = $region9
  $region8: #{forward.16} parent=0 // pred_region
    _
  $region9: #{forward.16} parent=0 // pred_fallthru
    _
  // Predicated region
  $region10: #{forward.16} parent=0 // pred_check
    _
  $region11: #{forward.16} parent=0 // pred_check_branch
    %13 = sbr.rel (0) target = $region13
  $region12: #{forward.16} parent=0 // pred_region
    _
  $region13: #{forward.16} parent=0 // pred_fallthru
    _
  %v14 = vld [vmem:[%s0] sm:$0xff]
  %v15 = vld [vmem:[%s0 + $0x8] sm:$0xff]
  %v16 = vld [vmem:[%s0 + $0x10] sm:$0xff]
  %v17 = vld [vmem:[%s0 + $0x18] sm:$0xff]
  %v18 = vld [vmem:[%s0 + $0x20] sm:$0xff]
  %v19 = vld [vmem:[%s0 + $0x28] sm:$0xff]
  %v20 = vld [vmem:[%s0 + $0x30] sm:$0xff]
  %v21 = vld [vmem:[%s0 + $0x38] sm:$0xff]
  %v22 = vld [vmem:[%s0 + $0x40] sm:$0xff]
  %v23 = vld [vmem:[%s1] sm:$0xff]
  %v24 = vld [vmem:[%s1 + $0x8] sm:$0xff]
  %v25 = vld [vmem:[%s1 + $0x10] sm:$0xff]
  %v26 = vld [vmem:[%s1 + $0x18] sm:$0xff]
  %v27 = vld [vmem:[%s1 + $0x20] sm:$0xff]
  %v28 = vld [vmem:[%s1 + $0x28] sm:$0xff]
  %v29 = vld [vmem:[%s1 + $0x30] sm:$0xff]
  %v30 = vld [vmem:[%s1 + $0x38] sm:$0xff]
  %v31 = vld [vmem:[%s1 + $0x40] sm:$0xff]
  %v32 = vld [vmem:[%s1 + $0x48] sm:$0xff]
  %v33 = vld [vmem:[%s1 + $0x50] sm:$0xff]
  %v34 = vld [vmem:[%s1 + $0x58] sm:$0xff]
  %v35 = vld [vmem:[%s1 + $0x60] sm:$0xff]
  %v36 = vld [vmem:[%s1 + $0x68] sm:$0xff]
  %v37 = vld [vmem:[%s1 + $0x70] sm:$0xff]
  %v38 = vld [vmem:[%s1 + $0x78] sm:$0xff]
  %v39 = vld [vmem:[%s1 + $0x80] sm:$0xff]
  %v40 = vld [vmem:[%s1 + $0x88] sm:$0xff]
  %v41 = vld [vmem:[%s1 + $0x90] sm:$0xff]
  %v42 = vld [vmem:[%s1 + $0x98] sm:$0xff]
  %v43 = vld [vmem:[%s1 + $0xa0] sm:$0xff]
  %v44 = vld [vmem:[%s1 + $0xa8] sm:$0xff]
  %v45 = vld [vmem:[%s1 + $0xb0] sm:$0xff]
  %v46 = vld [vmem:[%s1 + $0xb8] sm:$0xff]
  %v47 = vld [vmem:[%s1 + $0xc0] sm:$0xff]
  %v48 = vld [vmem:[%s1 + $0xc8] sm:$0xff]
  %v49 = vld [vmem:[%s1 + $0xd0] sm:$0xff]
  %v50 = vld [vmem:[%s1 + $0xd8] sm:$0xff]
  %v51 = vld [vmem:[%s1 + $0xe0] sm:$0xff]
  %v52 = vld [vmem:[%s1 + $0xe8] sm:$0xff]
  %v53 = vld [vmem:[%s1 + $0xf0] sm:$0xff]
  %v54 = vld [vmem:[%s1 + $0xf8] sm:$0xff]
  %v55 = vld [vmem:[%s1 + $0x100] sm:$0xff]
  %v56 = vld [vmem:[%s1 + $0x108] sm:$0xff]
  %v57 = vld [vmem:[%s1 + $0x110] sm:$0xff]
  %v58 = vld [vmem:[%s1 + $0x118] sm:$0xff]
  %v59 = vld [vmem:[%s1 + $0x120] sm:$0xff]
  %v60 = vld [vmem:[%s1 + $0x128] sm:$0xff]
  %v61 = vld [vmem:[%s1 + $0x130] sm:$0xff]
  %v62 = vld [vmem:[%s1 + $0x138] sm:$0xff]
  %v63 = vld [vmem:[%s1 + $0x140] sm:$0xff]
  %v64 = vld [vmem:[%s1 + $0x148] sm:$0xff]
  %v65 = vld [vmem:[%s1 + $0x150] sm:$0xff]
  %v66 = vld [vmem:[%s1 + $0x158] sm:$0xff]
  %v67 = vld [vmem:[%s1 + $0x160] sm:$0xff]
  %v68 = vld [vmem:[%s1 + $0x168] sm:$0xff]
  %v69 = vld [vmem:[%s1 + $0x170] sm:$0xff]
  %v70 = vld [vmem:[%s1 + $0x178] sm:$0xff]
  %v71 = vld [vmem:[%s1 + $0x180] sm:$0xff]
  %v72 = vld [vmem:[%s1 + $0x188] sm:$0xff]
  %v73 = vld [vmem:[%s1 + $0x190] sm:$0xff]
  %v74 = vld [vmem:[%s1 + $0x198] sm:$0xff]
  %v75 = vld [vmem:[%s1 + $0x1a0] sm:$0xff]
  %v76 = vld [vmem:[%s1 + $0x1a8] sm:$0xff]
  %v77 = vld [vmem:[%s1 + $0x1b0] sm:$0xff]
  %v78 = vld [vmem:[%s1 + $0x1b8] sm:$0xff]
  %v79 = vld [vmem:[%s1 + $0x1c0] sm:$0xff]
  %v80 = vld [vmem:[%s1 + $0x1c8] sm:$0xff]
  %v81 = vld [vmem:[%s1 + $0x1d0] sm:$0xff]
  %v82 = vld [vmem:[%s1 + $0x1d8] sm:$0xff]
  %v83 = vld [vmem:[%s1 + $0x1e0] sm:$0xff]
  %v84 = vld [vmem:[%s1 + $0x1e8] sm:$0xff]
  %v85 = vld [vmem:[%s1 + $0x1f0] sm:$0xff]
  %v86 = vld [vmem:[%s1 + $0x1f8] sm:$0xff]
  %v87 = vld [vmem:[%s1 + $0x200] sm:$0xff]
  %v88 = vld [vmem:[%s1 + $0x208] sm:$0xff]
  %v89 = vld [vmem:[%s1 + $0x210] sm:$0xff]
  %v90 = vld [vmem:[%s1 + $0x218] sm:$0xff]
  %v91 = vld [vmem:[%s1 + $0x220] sm:$0xff]
  %v92 = vld [vmem:[%s1 + $0x228] sm:$0xff]
  %v93 = vld [vmem:[%s1 + $0x230] sm:$0xff]
  %v94 = vld [vmem:[%s1 + $0x238] sm:$0xff]
  %v95 = vld [vmem:[%s1 + $0x240] sm:$0xff]
  %v96 = vld [vmem:[%s1 + $0x248] sm:$0xff]
  %v97 = vld [vmem:[%s1 + $0x250] sm:$0xff]
  %v98 = vld [vmem:[%s1 + $0x258] sm:$0xff]
  %v99 = vld [vmem:[%s1 + $0x260] sm:$0xff]
  %v100 = vld [vmem:[%s1 + $0x268] sm:$0xff]
  %v101 = vld [vmem:[%s1 + $0x270] sm:$0xff]
  %v102 = vld [vmem:[%s1 + $0x278] sm:$0xff]
  %v103 = vld [vmem:[%s1 + $0x280] sm:$0xff]
  %v104 = vld [vmem:[%s1 + $0x288] sm:$0xff]
  %v105 = vld [vmem:[%s1 + $0x290] sm:$0xff]
  %v106 = vld [vmem:[%s1 + $0x298] sm:$0xff]
  %v107 = vld [vmem:[%s1 + $0x2a0] sm:$0xff]
  %v108 = vld [vmem:[%s1 + $0x2a8] sm:$0xff]
  %v109 = vld [vmem:[%s1 + $0x2b0] sm:$0xff]
  %v110 = vld [vmem:[%s1 + $0x2b8] sm:$0xff]
  %v111 = vld [vmem:[%s1 + $0x2c0] sm:$0xff]
  %v112 = vld [vmem:[%s1 + $0x2c8] sm:$0xff]
  %v113 = vld [vmem:[%s1 + $0x2d0] sm:$0xff]
  %v114 = vld [vmem:[%s1 + $0x2d8] sm:$0xff]
  %v115 = vld [vmem:[%s1 + $0x2e0] sm:$0xff]
  %v116 = vld [vmem:[%s1 + $0x2e8] sm:$0xff]
  %v117 = vld [vmem:[%s1 + $0x2f0] sm:$0xff]
  %v118 = vld [vmem:[%s1 + $0x2f8] sm:$0xff]
  %v119 = vld [vmem:[%s1 + $0x300] sm:$0xff]
  %v120 = vld [vmem:[%s1 + $0x308] sm:$0xff]
  %v121 = vld [vmem:[%s1 + $0x310] sm:$0xff]
  %v122 = vld [vmem:[%s1 + $0x318] sm:$0xff]
  %v123 = vld [vmem:[%s1 + $0x320] sm:$0xff]
  %v124 = vld [vmem:[%s1 + $0x328] sm:$0xff]
  %v125 = vld [vmem:[%s1 + $0x330] sm:$0xff]
  %v126 = vld [vmem:[%s1 + $0x338] sm:$0xff]
  %v127 = vld [vmem:[%s1 + $0x340] sm:$0xff]
  %v128 = vld [vmem:[%s1 + $0x348] sm:$0xff]
  %v129 = vld [vmem:[%s1 + $0x350] sm:$0xff]
  %v130 = vld [vmem:[%s1 + $0x358] sm:$0xff]
  %v131 = vld [vmem:[%s1 + $0x360] sm:$0xff]
  %v132 = vld [vmem:[%s1 + $0x368] sm:$0xff]
  %v133 = vld [vmem:[%s1 + $0x370] sm:$0xff]
  %v134 = vld [vmem:[%s1 + $0x378] sm:$0xff]
  %v135 = vld [vmem:[%s1 + $0x380] sm:$0xff]
  %v136 = vld [vmem:[%s1 + $0x388] sm:$0xff]
  %v137 = vld [vmem:[%s1 + $0x390] sm:$0xff]
  %v138 = vld [vmem:[%s1 + $0x398] sm:$0xff]
  %v139 = vld [vmem:[%s1 + $0x3a0] sm:$0xff]
  %v140 = vld [vmem:[%s1 + $0x3a8] sm:$0xff]
  %v141 = vld [vmem:[%s1 + $0x3b0] sm:$0xff]
  %v142 = vld [vmem:[%s1 + $0x3b8] sm:$0xff]
  %v143 = vld [vmem:[%s1 + $0x3c0] sm:$0xff]
  %v144 = vld [vmem:[%s1 + $0x3c8] sm:$0xff]
  %v145 = vld [vmem:[%s1 + $0x3d0] sm:$0xff]
  %v146 = vld [vmem:[%s1 + $0x3d8] sm:$0xff]
  %v147 = vld [vmem:[%s1 + $0x3e0] sm:$0xff]
  %v148 = vld [vmem:[%s1 + $0x3e8] sm:$0xff]
  %v149 = vld [vmem:[%s1 + $0x3f0] sm:$0xff]
  %v150 = vld [vmem:[%s1 + $0x3f8] sm:$0xff]
  %v151 = vld [vmem:[%s1 + $0x400] sm:$0xff]
  %v152 = vld [vmem:[%s1 + $0x408] sm:$0xff]
  %v153 = vld [vmem:[%s1 + $0x410] sm:$0xff]
  %v154 = vld [vmem:[%s1 + $0x418] sm:$0xff]
  %v155 = vld [vmem:[%s1 + $0x420] sm:$0xff]
  %v156 = vld [vmem:[%s1 + $0x428] sm:$0xff]
  %v157 = vld [vmem:[%s1 + $0x430] sm:$0xff]
  %v158 = vld [vmem:[%s1 + $0x438] sm:$0xff]
  %v159 = vld [vmem:[%s1 + $0x440] sm:$0xff]
  %v160 = vld [vmem:[%s1 + $0x448] sm:$0xff]
  %v161 = vld [vmem:[%s1 + $0x450] sm:$0xff]
  %v162 = vld [vmem:[%s1 + $0x458] sm:$0xff]
  %v163 = vld [vmem:[%s1 + $0x460] sm:$0xff]
  %v164 = vld [vmem:[%s1 + $0x468] sm:$0xff]
  %v165 = vld [vmem:[%s1 + $0x470] sm:$0xff]
  %v166 = vld [vmem:[%s1 + $0x478] sm:$0xff]
  %v167 = vld [vmem:[%s1 + $0x480] sm:$0xff]
  %v168 = vld [vmem:[%s1 + $0x488] sm:$0xff]
  %v169 = vld [vmem:[%s1 + $0x490] sm:$0xff]
  %v170 = vld [vmem:[%s1 + $0x498] sm:$0xff]
  %v171 = vld [vmem:[%s1 + $0x4a0] sm:$0xff]
  %v172 = vld [vmem:[%s1 + $0x4a8] sm:$0xff]
  %v173 = vld [vmem:[%s1 + $0x4b0] sm:$0xff]
  %v174 = vld [vmem:[%s1 + $0x4b8] sm:$0xff]
  %v175 = vld [vmem:[%s1 + $0x4c0] sm:$0xff]
  %v176 = vld [vmem:[%s1 + $0x4c8] sm:$0xff]
  %v177 = vld [vmem:[%s1 + $0x4d0] sm:$0xff]
  %v178 = vld [vmem:[%s1 + $0x4d8] sm:$0xff]
  %v179 = vld [vmem:[%s1 + $0x4e0] sm:$0xff]
  %v180 = vld [vmem:[%s1 + $0x4e8] sm:$0xff]
  %v181 = vld [vmem:[%s1 + $0x4f0] sm:$0xff]
  %v182 = vld [vmem:[%s1 + $0x4f8] sm:$0xff]
  %v183 = vld [vmem:[%s1 + $0x500] sm:$0xff]
  %v184 = vld [vmem:[%s1 + $0x508] sm:$0xff]
  %v185 = vld [vmem:[%s1 + $0x510] sm:$0xff]
  %v186 = vld [vmem:[%s1 + $0x518] sm:$0xff]
  %v187 = vld [vmem:[%s1 + $0x520] sm:$0xff]
  %v188 = vld [vmem:[%s1 + $0x528] sm:$0xff]
  %v189 = vld [vmem:[%s1 + $0x530] sm:$0xff]
  %v190 = vld [vmem:[%s1 + $0x538] sm:$0xff]
  %v191 = vld [vmem:[%s1 + $0x540] sm:$0xff]
  %v192 = vld [vmem:[%s1 + $0x548] sm:$0xff]
  %v193 = vld [vmem:[%s1 + $0x550] sm:$0xff]
  %v194 = vld [vmem:[%s1 + $0x558] sm:$0xff]
  %v195 = vld [vmem:[%s1 + $0x560] sm:$0xff]
  %v196 = vld [vmem:[%s1 + $0x568] sm:$0xff]
  %v197 = vld [vmem:[%s1 + $0x570] sm:$0xff]
  %v198 = vld [vmem:[%s1 + $0x578] sm:$0xff]
  %v199 = vld [vmem:[%s1 + $0x580] sm:$0xff]
  %v200 = vld [vmem:[%s1 + $0x588] sm:$0xff]
  %v201 = vld [vmem:[%s1 + $0x590] sm:$0xff]
  %v202 = vld [vmem:[%s1 + $0x598] sm:$0xff]
  %v203 = vld [vmem:[%s1 + $0x5a0] sm:$0xff]
  %v204 = vld [vmem:[%s1 + $0x5a8] sm:$0xff]
  %v205 = vld [vmem:[%s1 + $0x5b0] sm:$0xff]
  %v206 = vld [vmem:[%s1 + $0x5b8] sm:$0xff]
  %v207 = vld [vmem:[%s1 + $0x5c0] sm:$0xff]
  %v208 = vld [vmem:[%s1 + $0x5c8] sm:$0xff]
  %v209 = vld [vmem:[%s1 + $0x5d0] sm:$0xff]
  %v210 = vld [vmem:[%s1 + $0x5d8] sm:$0xff]
  %v211 = vld [vmem:[%s1 + $0x5e0] sm:$0xff]
  %v212 = vld [vmem:[%s1 + $0x5e8] sm:$0xff]
  %v213 = vld [vmem:[%s1 + $0x5f0] sm:$0xff]
  %v214 = vld [vmem:[%s1 + $0x5f8] sm:$0xff]
  %v215 = vld [vmem:[%s1 + $0x600] sm:$0xff]
  %v216 = vld [vmem:[%s1 + $0x608] sm:$0xff]
  %v217 = vld [vmem:[%s1 + $0x610] sm:$0xff]
  %v218 = vld [vmem:[%s1 + $0x618] sm:$0xff]
  %v219 = vld [vmem:[%s1 + $0x620] sm:$0xff]
  %v220 = vld [vmem:[%s1 + $0x628] sm:$0xff]
  %v221 = vld [vmem:[%s1 + $0x630] sm:$0xff]
  %v222 = vld [vmem:[%s1 + $0x638] sm:$0xff]
  %v223 = vld [vmem:[%s1 + $0x640] sm:$0xff]
  %v224 = vld [vmem:[%s1 + $0x648] sm:$0xff]
  %v225 = vld [vmem:[%s1 + $0x650] sm:$0xff]
  %v226 = vld [vmem:[%s1 + $0x658] sm:$0xff]
  %v227 = vld [vmem:[%s1 + $0x660] sm:$0xff]
  %v228 = vld [vmem:[%s1 + $0x668] sm:$0xff]
  %v229 = vld [vmem:[%s1 + $0x670] sm:$0xff]
  %v230 = vld [vmem:[%s1 + $0x678] sm:$0xff]
  %v231 = vld [vmem:[%s1 + $0x680] sm:$0xff]
  %v232 = vld [vmem:[%s1 + $0x688] sm:$0xff]
  %v233 = vld [vmem:[%s1 + $0x690] sm:$0xff]
  %v234 = vld [vmem:[%s1 + $0x698] sm:$0xff]
  %v235 = vld [vmem:[%s1 + $0x6a0] sm:$0xff]
  %v236 = vld [vmem:[%s1 + $0x6a8] sm:$0xff]
  %v237 = vld [vmem:[%s1 + $0x6b0] sm:$0xff]
  %v238 = vld [vmem:[%s1 + $0x6b8] sm:$0xff]
  %v239 = vld [vmem:[%s1 + $0x6c0] sm:$0xff]
  %v240 = vld [vmem:[%s1 + $0x6c8] sm:$0xff]
  %v241 = vld [vmem:[%s1 + $0x6d0] sm:$0xff]
  %v242 = vld [vmem:[%s1 + $0x6d8] sm:$0xff]
  %v243 = vld [vmem:[%s1 + $0x6e0] sm:$0xff]
  %v244 = vld [vmem:[%s1 + $0x6e8] sm:$0xff]
  %v245 = vld [vmem:[%s1 + $0x6f0] sm:$0xff]
  %v246 = vld [vmem:[%s1 + $0x6f8] sm:$0xff]
  %v247 = vld [vmem:[%s1 + $0x700] sm:$0xff]
  %v248 = vld [vmem:[%s1 + $0x708] sm:$0xff]
  %v249 = vld [vmem:[%s1 + $0x710] sm:$0xff]
  %v250 = vld [vmem:[%s1 + $0x718] sm:$0xff]
  %v251 = vld [vmem:[%s1 + $0x720] sm:$0xff]
  %v252 = vld [vmem:[%s1 + $0x728] sm:$0xff]
  %v253 = vld [vmem:[%s1 + $0x730] sm:$0xff]
  %v254 = vld [vmem:[%s1 + $0x738] sm:$0xff]
  %v255 = vld [vmem:[%s1 + $0x740] sm:$0xff]
  %v256 = vld [vmem:[%s1 + $0x748] sm:$0xff]
  %v257 = vld [vmem:[%s1 + $0x750] sm:$0xff]
  %v258 = vld [vmem:[%s1 + $0x758] sm:$0xff]
  %v259 = vld [vmem:[%s1 + $0x760] sm:$0xff]
  %v260 = vld [vmem:[%s1 + $0x768] sm:$0xff]
  %v261 = vld [vmem:[%s1 + $0x770] sm:$0xff]
  %v262 = vld [vmem:[%s1 + $0x778] sm:$0xff]
  %v263 = vld [vmem:[%s1 + $0x780] sm:$0xff]
  %v264 = vld [vmem:[%s1 + $0x788] sm:$0xff]
  %v265 = vld [vmem:[%s1 + $0x790] sm:$0xff]
  %v266 = vld [vmem:[%s1 + $0x798] sm:$0xff]
  %v267 = vld [vmem:[%s1 + $0x7a0] sm:$0xff]
  %v268 = vld [vmem:[%s1 + $0x7a8] sm:$0xff]
  %v269 = vld [vmem:[%s1 + $0x7b0] sm:$0xff]
  %v270 = vld [vmem:[%s1 + $0x7b8] sm:$0xff]
  %v271 = vld [vmem:[%s1 + $0x7c0] sm:$0xff]
  %v272 = vld [vmem:[%s1 + $0x7c8] sm:$0xff]
  %v273 = vld [vmem:[%s1 + $0x7d0] sm:$0xff]
  %v274 = vld [vmem:[%s1 + $0x7d8] sm:$0xff]
  %v275 = vld [vmem:[%s1 + $0x7e0] sm:$0xff]
  %v276 = vld [vmem:[%s1 + $0x7e8] sm:$0xff]
  %v277 = vld [vmem:[%s1 + $0x7f0] sm:$0xff]
  %v278 = vld [vmem:[%s1 + $0x7f8] sm:$0xff]
  %v279 = vld [vmem:[%s1 + $0x800] sm:$0xff]
  %v280 = vld [vmem:[%s1 + $0x808] sm:$0xff]
  %v281 = vld [vmem:[%s1 + $0x810] sm:$0xff]
  %v282 = vld [vmem:[%s1 + $0x818] sm:$0xff]
  %v283 = vld [vmem:[%s1 + $0x820] sm:$0xff]
  %v284 = vld [vmem:[%s1 + $0x828] sm:$0xff]
  %v285 = vld [vmem:[%s1 + $0x830] sm:$0xff]
  %v286 = vld [vmem:[%s1 + $0x838] sm:$0xff]
  %v287 = vld [vmem:[%s1 + $0x840] sm:$0xff]
  %v288 = vld [vmem:[%s1 + $0x848] sm:$0xff]
  %v289 = vld [vmem:[%s1 + $0x850] sm:$0xff]
  %v290 = vld [vmem:[%s1 + $0x858] sm:$0xff]
  %v291 = vld [vmem:[%s1 + $0x860] sm:$0xff]
  %v292 = vld [vmem:[%s1 + $0x868] sm:$0xff]
  %v293 = vld [vmem:[%s1 + $0x870] sm:$0xff]
  %v294 = vld [vmem:[%s1 + $0x878] sm:$0xff]
  %v295 = vld [vmem:[%s1 + $0x880] sm:$0xff]
  %v296 = vld [vmem:[%s1 + $0x888] sm:$0xff]
  %v297 = vld [vmem:[%s1 + $0x890] sm:$0xff]
  %v298 = vld [vmem:[%s1 + $0x898] sm:$0xff]
  %v299 = vld [vmem:[%s1 + $0x8a0] sm:$0xff]
  %v300 = vld [vmem:[%s1 + $0x8a8] sm:$0xff]
  %v301 = vld [vmem:[%s1 + $0x8b0] sm:$0xff]
  %v302 = vld [vmem:[%s1 + $0x8b8] sm:$0xff]
  %v303 = vld [vmem:[%s1 + $0x8c0] sm:$0xff]
  %v304 = vld [vmem:[%s1 + $0x8c8] sm:$0xff]
  %v305 = vld [vmem:[%s1 + $0x8d0] sm:$0xff]
  %v306 = vld [vmem:[%s1 + $0x8d8] sm:$0xff]
  %v307 = vld [vmem:[%s1 + $0x8e0] sm:$0xff]
  %v308 = vld [vmem:[%s1 + $0x8e8] sm:$0xff]
  %v309 = vld [vmem:[%s1 + $0x8f0] sm:$0xff]
  %v310 = vld [vmem:[%s1 + $0x8f8] sm:$0xff]
  %v311 = vld [vmem:[%s2] sm:$0x3]
  %v313 = vlaneseq
  %v314 = vshrl.u32 %v313, 7
  %v315 = vsub.s32 0, %v314
  %v316 = vrot.slane %v311, %v315
  %v317 = vlaneseq
  %v318 = vshrl.u32 %v317, 7
  %v319 = vsub.s32 1, %v318
  %v320 = vrot.slane %v311, %v319
  %v332 = vunpack.c.l.b16 %v14
  %v333 = vunpack.c.h.b16 %v14
  %v334 = vunpack.c.l.b16 %v15
  %v335 = vunpack.c.h.b16 %v15
  %v336 = vunpack.c.l.b16 %v16
  %v337 = vunpack.c.h.b16 %v16
  %v338 = vunpack.c.l.b16 %v17
  %v339 = vunpack.c.h.b16 %v17
  %v340 = vunpack.c.l.b16 %v18
  %v341 = vunpack.c.h.b16 %v18
  %v342 = vunpack.c.l.b16 %v19
  %v343 = vunpack.c.h.b16 %v19
  %v344 = vunpack.c.l.b16 %v20
  %v345 = vunpack.c.h.b16 %v20
  %v346 = vunpack.c.l.b16 %v21
  %v347 = vunpack.c.h.b16 %v21
  %v348 = vunpack.c.l.b16 %v22
  %v349 = vunpack.c.h.b16 %v22
  %v350 = vpack.c.b16 %v332, %v332
  %v351 = vpack.c.b16 %v333, %v333
  %v352 = vpack.c.b16 %v334, %v334
  %v353 = vpack.c.b16 %v335, %v335
  %v354 = vpack.c.b16 %v336, %v336
  %v355 = vpack.c.b16 %v337, %v337
  %v356 = vpack.c.b16 %v338, %v338
  %v357 = vpack.c.b16 %v339, %v339
  %v358 = vpack.c.b16 %v340, %v340
  %v359 = vpack.c.b16 %v341, %v341
  %v360 = vpack.c.b16 %v342, %v342
  %v361 = vpack.c.b16 %v343, %v343
  %v362 = vpack.c.b16 %v344, %v344
  %v363 = vpack.c.b16 %v345, %v345
  %v364 = vpack.c.b16 %v346, %v346
  %v365 = vpack.c.b16 %v347, %v347
  %v366 = vpack.c.b16 %v348, %v348
  %v367 = vpack.c.b16 %v349, %v349
  %v674 = vunpack.c.l.b16 %v23
  %v675 = vunpack.c.h.b16 %v23
  %v676 = vunpack.c.l.b16 %v24
  %v677 = vunpack.c.h.b16 %v24
  %v678 = vunpack.c.l.b16 %v25
  %v679 = vunpack.c.h.b16 %v25
  %v680 = vunpack.c.l.b16 %v26
  %v681 = vunpack.c.h.b16 %v26
  %v682 = vunpack.c.l.b16 %v27
  %v683 = vunpack.c.h.b16 %v27
  %v684 = vunpack.c.l.b16 %v28
  %v685 = vunpack.c.h.b16 %v28
  %v686 = vunpack.c.l.b16 %v29
  %v687 = vunpack.c.h.b16 %v29
  %v688 = vunpack.c.l.b16 %v30
  %v689 = vunpack.c.h.b16 %v30
  %v690 = vunpack.c.l.b16 %v31
  %v691 = vunpack.c.h.b16 %v31
  %v692 = vunpack.c.l.b16 %v32
  %v693 = vunpack.c.h.b16 %v32
  %v694 = vunpack.c.l.b16 %v33
  %v695 = vunpack.c.h.b16 %v33
  %v696 = vunpack.c.l.b16 %v34
  %v697 = vunpack.c.h.b16 %v34
  %v698 = vunpack.c.l.b16 %v35
  %v699 = vunpack.c.h.b16 %v35
  %v700 = vunpack.c.l.b16 %v36
  %v701 = vunpack.c.h.b16 %v36
  %v702 = vunpack.c.l.b16 %v37
  %v703 = vunpack.c.h.b16 %v37
  %v704 = vunpack.c.l.b16 %v38
  %v705 = vunpack.c.h.b16 %v38
  %v706 = vunpack.c.l.b16 %v39
  %v707 = vunpack.c.h.b16 %v39
  %v708 = vunpack.c.l.b16 %v40
  %v709 = vunpack.c.h.b16 %v40
  %v710 = vunpack.c.l.b16 %v41
  %v711 = vunpack.c.h.b16 %v41
  %v712 = vunpack.c.l.b16 %v42
  %v713 = vunpack.c.h.b16 %v42
  %v714 = vunpack.c.l.b16 %v43
  %v715 = vunpack.c.h.b16 %v43
  %v716 = vunpack.c.l.b16 %v44
  %v717 = vunpack.c.h.b16 %v44
  %v718 = vunpack.c.l.b16 %v45
  %v719 = vunpack.c.h.b16 %v45
  %v720 = vunpack.c.l.b16 %v46
  %v721 = vunpack.c.h.b16 %v46
  %v722 = vunpack.c.l.b16 %v47
  %v723 = vunpack.c.h.b16 %v47
  %v724 = vunpack.c.l.b16 %v48
  %v725 = vunpack.c.h.b16 %v48
  %v726 = vunpack.c.l.b16 %v49
  %v727 = vunpack.c.h.b16 %v49
  %v728 = vunpack.c.l.b16 %v50
  %v729 = vunpack.c.h.b16 %v50
  %v730 = vunpack.c.l.b16 %v51
  %v731 = vunpack.c.h.b16 %v51
  %v732 = vunpack.c.l.b16 %v52
  %v733 = vunpack.c.h.b16 %v52
  %v734 = vunpack.c.l.b16 %v53
  %v735 = vunpack.c.h.b16 %v53
  %v736 = vunpack.c.l.b16 %v54
  %v737 = vunpack.c.h.b16 %v54
  %v738 = vunpack.c.l.b16 %v55
  %v739 = vunpack.c.h.b16 %v55
  %v740 = vunpack.c.l.b16 %v56
  %v741 = vunpack.c.h.b16 %v56
  %v742 = vunpack.c.l.b16 %v57
  %v743 = vunpack.c.h.b16 %v57
  %v744 = vunpack.c.l.b16 %v58
  %v745 = vunpack.c.h.b16 %v58
  %v746 = vunpack.c.l.b16 %v59
  %v747 = vunpack.c.h.b16 %v59
  %v748 = vunpack.c.l.b16 %v60
  %v749 = vunpack.c.h.b16 %v60
  %v750 = vunpack.c.l.b16 %v61
  %v751 = vunpack.c.h.b16 %v61
  %v752 = vunpack.c.l.b16 %v62
  %v753 = vunpack.c.h.b16 %v62
  %v754 = vunpack.c.l.b16 %v63
  %v755 = vunpack.c.h.b16 %v63
  %v756 = vunpack.c.l.b16 %v64
  %v757 = vunpack.c.h.b16 %v64
  %v758 = vunpack.c.l.b16 %v65
  %v759 = vunpack.c.h.b16 %v65
  %v760 = vunpack.c.l.b16 %v66
  %v761 = vunpack.c.h.b16 %v66
  %v762 = vunpack.c.l.b16 %v67
  %v763 = vunpack.c.h.b16 %v67
  %v764 = vunpack.c.l.b16 %v68
  %v765 = vunpack.c.h.b16 %v68
  %v766 = vunpack.c.l.b16 %v69
  %v767 = vunpack.c.h.b16 %v69
  %v768 = vunpack.c.l.b16 %v70
  %v769 = vunpack.c.h.b16 %v70
  %v770 = vunpack.c.l.b16 %v71
  %v771 = vunpack.c.h.b16 %v71
  %v772 = vunpack.c.l.b16 %v72
  %v773 = vunpack.c.h.b16 %v72
  %v774 = vunpack.c.l.b16 %v73
  %v775 = vunpack.c.h.b16 %v73
  %v776 = vunpack.c.l.b16 %v74
  %v777 = vunpack.c.h.b16 %v74
  %v778 = vunpack.c.l.b16 %v75
  %v779 = vunpack.c.h.b16 %v75
  %v780 = vunpack.c.l.b16 %v76
  %v781 = vunpack.c.h.b16 %v76
  %v782 = vunpack.c.l.b16 %v77
  %v783 = vunpack.c.h.b16 %v77
  %v784 = vunpack.c.l.b16 %v78
  %v785 = vunpack.c.h.b16 %v78
  %v786 = vunpack.c.l.b16 %v79
  %v787 = vunpack.c.h.b16 %v79
  %v788 = vunpack.c.l.b16 %v80
  %v789 = vunpack.c.h.b16 %v80
  %v790 = vunpack.c.l.b16 %v81
  %v791 = vunpack.c.h.b16 %v81
  %v792 = vunpack.c.l.b16 %v82
  %v793 = vunpack.c.h.b16 %v82
  %v794 = vunpack.c.l.b16 %v83
  %v795 = vunpack.c.h.b16 %v83
  %v796 = vunpack.c.l.b16 %v84
  %v797 = vunpack.c.h.b16 %v84
  %v798 = vunpack.c.l.b16 %v85
  %v799 = vunpack.c.h.b16 %v85
  %v800 = vunpack.c.l.b16 %v86
  %v801 = vunpack.c.h.b16 %v86
  %v802 = vunpack.c.l.b16 %v87
  %v803 = vunpack.c.h.b16 %v87
  %v804 = vunpack.c.l.b16 %v88
  %v805 = vunpack.c.h.b16 %v88
  %v806 = vunpack.c.l.b16 %v89
  %v807 = vunpack.c.h.b16 %v89
  %v808 = vunpack.c.l.b16 %v90
  %v809 = vunpack.c.h.b16 %v90
  %v810 = vunpack.c.l.b16 %v91
  %v811 = vunpack.c.h.b16 %v91
  %v812 = vunpack.c.l.b16 %v92
  %v813 = vunpack.c.h.b16 %v92
  %v814 = vunpack.c.l.b16 %v93
  %v815 = vunpack.c.h.b16 %v93
  %v816 = vunpack.c.l.b16 %v94
  %v817 = vunpack.c.h.b16 %v94
  %v818 = vunpack.c.l.b16 %v95
  %v819 = vunpack.c.h.b16 %v95
  %v820 = vunpack.c.l.b16 %v96
  %v821 = vunpack.c.h.b16 %v96
  %v822 = vunpack.c.l.b16 %v97
  %v823 = vunpack.c.h.b16 %v97
  %v824 = vunpack.c.l.b16 %v98
  %v825 = vunpack.c.h.b16 %v98
  %v826 = vunpack.c.l.b16 %v99
  %v827 = vunpack.c.h.b16 %v99
  %v828 = vunpack.c.l.b16 %v100
  %v829 = vunpack.c.h.b16 %v100
  %v830 = vunpack.c.l.b16 %v101
  %v831 = vunpack.c.h.b16 %v101
  %v832 = vunpack.c.l.b16 %v102
  %v833 = vunpack.c.h.b16 %v102
  %v834 = vunpack.c.l.b16 %v103
  %v835 = vunpack.c.h.b16 %v103
  %v836 = vunpack.c.l.b16 %v104
  %v837 = vunpack.c.h.b16 %v104
  %v838 = vunpack.c.l.b16 %v105
  %v839 = vunpack.c.h.b16 %v105
  %v840 = vunpack.c.l.b16 %v106
  %v841 = vunpack.c.h.b16 %v106
  %v842 = vunpack.c.l.b16 %v107
  %v843 = vunpack.c.h.b16 %v107
  %v844 = vunpack.c.l.b16 %v108
  %v845 = vunpack.c.h.b16 %v108
  %v846 = vunpack.c.l.b16 %v109
  %v847 = vunpack.c.h.b16 %v109
  %v848 = vunpack.c.l.b16 %v110
  %v849 = vunpack.c.h.b16 %v110
  %v850 = vunpack.c.l.b16 %v111
  %v851 = vunpack.c.h.b16 %v111
  %v852 = vunpack.c.l.b16 %v112
  %v853 = vunpack.c.h.b16 %v112
  %v854 = vunpack.c.l.b16 %v113
  %v855 = vunpack.c.h.b16 %v113
  %v856 = vunpack.c.l.b16 %v114
  %v857 = vunpack.c.h.b16 %v114
  %v858 = vunpack.c.l.b16 %v115
  %v859 = vunpack.c.h.b16 %v115
  %v860 = vunpack.c.l.b16 %v116
  %v861 = vunpack.c.h.b16 %v116
  %v862 = vunpack.c.l.b16 %v117
  %v863 = vunpack.c.h.b16 %v117
  %v864 = vunpack.c.l.b16 %v118
  %v865 = vunpack.c.h.b16 %v118
  %v866 = vunpack.c.l.b16 %v119
  %v867 = vunpack.c.h.b16 %v119
  %v868 = vunpack.c.l.b16 %v120
  %v869 = vunpack.c.h.b16 %v120
  %v870 = vunpack.c.l.b16 %v121
  %v871 = vunpack.c.h.b16 %v121
  %v872 = vunpack.c.l.b16 %v122
  %v873 = vunpack.c.h.b16 %v122
  %v874 = vunpack.c.l.b16 %v123
  %v875 = vunpack.c.h.b16 %v123
  %v876 = vunpack.c.l.b16 %v124
  %v877 = vunpack.c.h.b16 %v124
  %v878 = vunpack.c.l.b16 %v125
  %v879 = vunpack.c.h.b16 %v125
  %v880 = vunpack.c.l.b16 %v126
  %v881 = vunpack.c.h.b16 %v126
  %v882 = vunpack.c.l.b16 %v127
  %v883 = vunpack.c.h.b16 %v127
  %v884 = vunpack.c.l.b16 %v128
  %v885 = vunpack.c.h.b16 %v128
  %v886 = vunpack.c.l.b16 %v129
  %v887 = vunpack.c.h.b16 %v129
  %v888 = vunpack.c.l.b16 %v130
  %v889 = vunpack.c.h.b16 %v130
  %v890 = vunpack.c.l.b16 %v131
  %v891 = vunpack.c.h.b16 %v131
  %v892 = vunpack.c.l.b16 %v132
  %v893 = vunpack.c.h.b16 %v132
  %v894 = vunpack.c.l.b16 %v133
  %v895 = vunpack.c.h.b16 %v133
  %v896 = vunpack.c.l.b16 %v134
  %v897 = vunpack.c.h.b16 %v134
  %v898 = vunpack.c.l.b16 %v135
  %v899 = vunpack.c.h.b16 %v135
  %v900 = vunpack.c.l.b16 %v136
  %v901 = vunpack.c.h.b16 %v136
  %v902 = vunpack.c.l.b16 %v137
  %v903 = vunpack.c.h.b16 %v137
  %v904 = vunpack.c.l.b16 %v138
  %v905 = vunpack.c.h.b16 %v138
  %v906 = vunpack.c.l.b16 %v139
  %v907 = vunpack.c.h.b16 %v139
  %v908 = vunpack.c.l.b16 %v140
  %v909 = vunpack.c.h.b16 %v140
  %v910 = vunpack.c.l.b16 %v141
  %v911 = vunpack.c.h.b16 %v141
  %v912 = vunpack.c.l.b16 %v142
  %v913 = vunpack.c.h.b16 %v142
  %v914 = vunpack.c.l.b16 %v143
  %v915 = vunpack.c.h.b16 %v143
  %v916 = vunpack.c.l.b16 %v144
  %v917 = vunpack.c.h.b16 %v144
  %v918 = vunpack.c.l.b16 %v145
  %v919 = vunpack.c.h.b16 %v145
  %v920 = vunpack.c.l.b16 %v146
  %v921 = vunpack.c.h.b16 %v146
  %v922 = vunpack.c.l.b16 %v147
  %v923 = vunpack.c.h.b16 %v147
  %v924 = vunpack.c.l.b16 %v148
  %v925 = vunpack.c.h.b16 %v148
  %v926 = vunpack.c.l.b16 %v149
  %v927 = vunpack.c.h.b16 %v149
  %v928 = vunpack.c.l.b16 %v150
  %v929 = vunpack.c.h.b16 %v150
  %v930 = vunpack.c.l.b16 %v151
  %v931 = vunpack.c.h.b16 %v151
  %v932 = vunpack.c.l.b16 %v152
  %v933 = vunpack.c.h.b16 %v152
  %v934 = vunpack.c.l.b16 %v153
  %v935 = vunpack.c.h.b16 %v153
  %v936 = vunpack.c.l.b16 %v154
  %v937 = vunpack.c.h.b16 %v154
  %v938 = vunpack.c.l.b16 %v155
  %v939 = vunpack.c.h.b16 %v155
  %v940 = vunpack.c.l.b16 %v156
  %v941 = vunpack.c.h.b16 %v156
  %v942 = vunpack.c.l.b16 %v157
  %v943 = vunpack.c.h.b16 %v157
  %v944 = vunpack.c.l.b16 %v158
  %v945 = vunpack.c.h.b16 %v158
  %v946 = vunpack.c.l.b16 %v159
  %v947 = vunpack.c.h.b16 %v159
  %v948 = vunpack.c.l.b16 %v160
  %v949 = vunpack.c.h.b16 %v160
  %v950 = vunpack.c.l.b16 %v161
  %v951 = vunpack.c.h.b16 %v161
  %v952 = vunpack.c.l.b16 %v162
  %v953 = vunpack.c.h.b16 %v162
  %v954 = vunpack.c.l.b16 %v163
  %v955 = vunpack.c.h.b16 %v163
  %v956 = vunpack.c.l.b16 %v164
  %v957 = vunpack.c.h.b16 %v164
  %v958 = vunpack.c.l.b16 %v165
  %v959 = vunpack.c.h.b16 %v165
  %v960 = vunpack.c.l.b16 %v166
  %v961 = vunpack.c.h.b16 %v166
  %v962 = vunpack.c.l.b16 %v167
  %v963 = vunpack.c.h.b16 %v167
  %v964 = vunpack.c.l.b16 %v168
  %v965 = vunpack.c.h.b16 %v168
  %v966 = vunpack.c.l.b16 %v169
  %v967 = vunpack.c.h.b16 %v169
  %v968 = vunpack.c.l.b16 %v170
  %v969 = vunpack.c.h.b16 %v170
  %v970 = vunpack.c.l.b16 %v171
  %v971 = vunpack.c.h.b16 %v171
  %v972 = vunpack.c.l.b16 %v172
  %v973 = vunpack.c.h.b16 %v172
  %v974 = vunpack.c.l.b16 %v173
  %v975 = vunpack.c.h.b16 %v173
  %v976 = vunpack.c.l.b16 %v174
  %v977 = vunpack.c.h.b16 %v174
  %v978 = vunpack.c.l.b16 %v175
  %v979 = vunpack.c.h.b16 %v175
  %v980 = vunpack.c.l.b16 %v176
  %v981 = vunpack.c.h.b16 %v176
  %v982 = vunpack.c.l.b16 %v177
  %v983 = vunpack.c.h.b16 %v177
  %v984 = vunpack.c.l.b16 %v178
  %v985 = vunpack.c.h.b16 %v178
  %v986 = vunpack.c.l.b16 %v179
  %v987 = vunpack.c.h.b16 %v179
  %v988 = vunpack.c.l.b16 %v180
  %v989 = vunpack.c.h.b16 %v180
  %v990 = vunpack.c.l.b16 %v181
  %v991 = vunpack.c.h.b16 %v181
  %v992 = vunpack.c.l.b16 %v182
  %v993 = vunpack.c.h.b16 %v182
  %v994 = vunpack.c.l.b16 %v183
  %v995 = vunpack.c.h.b16 %v183
  %v996 = vunpack.c.l.b16 %v184
  %v997 = vunpack.c.h.b16 %v184
  %v998 = vunpack.c.l.b16 %v185
  %v999 = vunpack.c.h.b16 %v185
  %v1000 = vunpack.c.l.b16 %v186
  %v1001 = vunpack.c.h.b16 %v186
  %v1002 = vunpack.c.l.b16 %v187
  %v1003 = vunpack.c.h.b16 %v187
  %v1004 = vunpack.c.l.b16 %v188
  %v1005 = vunpack.c.h.b16 %v188
  %v1006 = vunpack.c.l.b16 %v189
  %v1007 = vunpack.c.h.b16 %v189
  %v1008 = vunpack.c.l.b16 %v190
  %v1009 = vunpack.c.h.b16 %v190
  %v1010 = vunpack.c.l.b16 %v191
  %v1011 = vunpack.c.h.b16 %v191
  %v1012 = vunpack.c.l.b16 %v192
  %v1013 = vunpack.c.h.b16 %v192
  %v1014 = vunpack.c.l.b16 %v193
  %v1015 = vunpack.c.h.b16 %v193
  %v1016 = vunpack.c.l.b16 %v194
  %v1017 = vunpack.c.h.b16 %v194
  %v1018 = vunpack.c.l.b16 %v195
  %v1019 = vunpack.c.h.b16 %v195
  %v1020 = vunpack.c.l.b16 %v196
  %v1021 = vunpack.c.h.b16 %v196
  %v1022 = vunpack.c.l.b16 %v197
  %v1023 = vunpack.c.h.b16 %v197
  %v1024 = vunpack.c.l.b16 %v198
  %v1025 = vunpack.c.h.b16 %v198
  %v1026 = vunpack.c.l.b16 %v199
  %v1027 = vunpack.c.h.b16 %v199
  %v1028 = vunpack.c.l.b16 %v200
  %v1029 = vunpack.c.h.b16 %v200
  %v1030 = vunpack.c.l.b16 %v201
  %v1031 = vunpack.c.h.b16 %v201
  %v1032 = vunpack.c.l.b16 %v202
  %v1033 = vunpack.c.h.b16 %v202
  %v1034 = vunpack.c.l.b16 %v203
  %v1035 = vunpack.c.h.b16 %v203
  %v1036 = vunpack.c.l.b16 %v204
  %v1037 = vunpack.c.h.b16 %v204
  %v1038 = vunpack.c.l.b16 %v205
  %v1039 = vunpack.c.h.b16 %v205
  %v1040 = vunpack.c.l.b16 %v206
  %v1041 = vunpack.c.h.b16 %v206
  %v1042 = vunpack.c.l.b16 %v207
  %v1043 = vunpack.c.h.b16 %v207
  %v1044 = vunpack.c.l.b16 %v208
  %v1045 = vunpack.c.h.b16 %v208
  %v1046 = vunpack.c.l.b16 %v209
  %v1047 = vunpack.c.h.b16 %v209
  %v1048 = vunpack.c.l.b16 %v210
  %v1049 = vunpack.c.h.b16 %v210
  %v1050 = vunpack.c.l.b16 %v211
  %v1051 = vunpack.c.h.b16 %v211
  %v1052 = vunpack.c.l.b16 %v212
  %v1053 = vunpack.c.h.b16 %v212
  %v1054 = vunpack.c.l.b16 %v213
  %v1055 = vunpack.c.h.b16 %v213
  %v1056 = vunpack.c.l.b16 %v214
  %v1057 = vunpack.c.h.b16 %v214
  %v1058 = vunpack.c.l.b16 %v215
  %v1059 = vunpack.c.h.b16 %v215
  %v1060 = vunpack.c.l.b16 %v216
  %v1061 = vunpack.c.h.b16 %v216
  %v1062 = vunpack.c.l.b16 %v217
  %v1063 = vunpack.c.h.b16 %v217
  %v1064 = vunpack.c.l.b16 %v218
  %v1065 = vunpack.c.h.b16 %v218
  %v1066 = vunpack.c.l.b16 %v219
  %v1067 = vunpack.c.h.b16 %v219
  %v1068 = vunpack.c.l.b16 %v220
  %v1069 = vunpack.c.h.b16 %v220
  %v1070 = vunpack.c.l.b16 %v221
  %v1071 = vunpack.c.h.b16 %v221
  %v1072 = vunpack.c.l.b16 %v222
  %v1073 = vunpack.c.h.b16 %v222
  %v1074 = vunpack.c.l.b16 %v223
  %v1075 = vunpack.c.h.b16 %v223
  %v1076 = vunpack.c.l.b16 %v224
  %v1077 = vunpack.c.h.b16 %v224
  %v1078 = vunpack.c.l.b16 %v225
  %v1079 = vunpack.c.h.b16 %v225
  %v1080 = vunpack.c.l.b16 %v226
  %v1081 = vunpack.c.h.b16 %v226
  %v1082 = vunpack.c.l.b16 %v227
  %v1083 = vunpack.c.h.b16 %v227
  %v1084 = vunpack.c.l.b16 %v228
  %v1085 = vunpack.c.h.b16 %v228
  %v1086 = vunpack.c.l.b16 %v229
  %v1087 = vunpack.c.h.b16 %v229
  %v1088 = vunpack.c.l.b16 %v230
  %v1089 = vunpack.c.h.b16 %v230
  %v1090 = vunpack.c.l.b16 %v231
  %v1091 = vunpack.c.h.b16 %v231
  %v1092 = vunpack.c.l.b16 %v232
  %v1093 = vunpack.c.h.b16 %v232
  %v1094 = vunpack.c.l.b16 %v233
  %v1095 = vunpack.c.h.b16 %v233
  %v1096 = vunpack.c.l.b16 %v234
  %v1097 = vunpack.c.h.b16 %v234
  %v1098 = vunpack.c.l.b16 %v235
  %v1099 = vunpack.c.h.b16 %v235
  %v1100 = vunpack.c.l.b16 %v236
  %v1101 = vunpack.c.h.b16 %v236
  %v1102 = vunpack.c.l.b16 %v237
  %v1103 = vunpack.c.h.b16 %v237
  %v1104 = vunpack.c.l.b16 %v238
  %v1105 = vunpack.c.h.b16 %v238
  %v1106 = vunpack.c.l.b16 %v239
  %v1107 = vunpack.c.h.b16 %v239
  %v1108 = vunpack.c.l.b16 %v240
  %v1109 = vunpack.c.h.b16 %v240
  %v1110 = vunpack.c.l.b16 %v241
  %v1111 = vunpack.c.h.b16 %v241
  %v1112 = vunpack.c.l.b16 %v242
  %v1113 = vunpack.c.h.b16 %v242
  %v1114 = vunpack.c.l.b16 %v243
  %v1115 = vunpack.c.h.b16 %v243
  %v1116 = vunpack.c.l.b16 %v244
  %v1117 = vunpack.c.h.b16 %v244
  %v1118 = vunpack.c.l.b16 %v245
  %v1119 = vunpack.c.h.b16 %v245
  %v1120 = vunpack.c.l.b16 %v246
  %v1121 = vunpack.c.h.b16 %v246
  %v1122 = vunpack.c.l.b16 %v247
  %v1123 = vunpack.c.h.b16 %v247
  %v1124 = vunpack.c.l.b16 %v248
  %v1125 = vunpack.c.h.b16 %v248
  %v1126 = vunpack.c.l.b16 %v249
  %v1127 = vunpack.c.h.b16 %v249
  %v1128 = vunpack.c.l.b16 %v250
  %v1129 = vunpack.c.h.b16 %v250
  %v1130 = vunpack.c.l.b16 %v251
  %v1131 = vunpack.c.h.b16 %v251
  %v1132 = vunpack.c.l.b16 %v252
  %v1133 = vunpack.c.h.b16 %v252
  %v1134 = vunpack.c.l.b16 %v253
  %v1135 = vunpack.c.h.b16 %v253
  %v1136 = vunpack.c.l.b16 %v254
  %v1137 = vunpack.c.h.b16 %v254
  %v1138 = vunpack.c.l.b16 %v255
  %v1139 = vunpack.c.h.b16 %v255
  %v1140 = vunpack.c.l.b16 %v256
  %v1141 = vunpack.c.h.b16 %v256
  %v1142 = vunpack.c.l.b16 %v257
  %v1143 = vunpack.c.h.b16 %v257
  %v1144 = vunpack.c.l.b16 %v258
  %v1145 = vunpack.c.h.b16 %v258
  %v1146 = vunpack.c.l.b16 %v259
  %v1147 = vunpack.c.h.b16 %v259
  %v1148 = vunpack.c.l.b16 %v260
  %v1149 = vunpack.c.h.b16 %v260
  %v1150 = vunpack.c.l.b16 %v261
  %v1151 = vunpack.c.h.b16 %v261
  %v1152 = vunpack.c.l.b16 %v262
  %v1153 = vunpack.c.h.b16 %v262
  %v1154 = vunpack.c.l.b16 %v263
  %v1155 = vunpack.c.h.b16 %v263
  %v1156 = vunpack.c.l.b16 %v264
  %v1157 = vunpack.c.h.b16 %v264
  %v1158 = vunpack.c.l.b16 %v265
  %v1159 = vunpack.c.h.b16 %v265
  %v1160 = vunpack.c.l.b16 %v266
  %v1161 = vunpack.c.h.b16 %v266
  %v1162 = vunpack.c.l.b16 %v267
  %v1163 = vunpack.c.h.b16 %v267
  %v1164 = vunpack.c.l.b16 %v268
  %v1165 = vunpack.c.h.b16 %v268
  %v1166 = vunpack.c.l.b16 %v269
  %v1167 = vunpack.c.h.b16 %v269
  %v1168 = vunpack.c.l.b16 %v270
  %v1169 = vunpack.c.h.b16 %v270
  %v1170 = vunpack.c.l.b16 %v271
  %v1171 = vunpack.c.h.b16 %v271
  %v1172 = vunpack.c.l.b16 %v272
  %v1173 = vunpack.c.h.b16 %v272
  %v1174 = vunpack.c.l.b16 %v273
  %v1175 = vunpack.c.h.b16 %v273
  %v1176 = vunpack.c.l.b16 %v274
  %v1177 = vunpack.c.h.b16 %v274
  %v1178 = vunpack.c.l.b16 %v275
  %v1179 = vunpack.c.h.b16 %v275
  %v1180 = vunpack.c.l.b16 %v276
  %v1181 = vunpack.c.h.b16 %v276
  %v1182 = vunpack.c.l.b16 %v277
  %v1183 = vunpack.c.h.b16 %v277
  %v1184 = vunpack.c.l.b16 %v278
  %v1185 = vunpack.c.h.b16 %v278
  %v1186 = vunpack.c.l.b16 %v279
  %v1187 = vunpack.c.h.b16 %v279
  %v1188 = vunpack.c.l.b16 %v280
  %v1189 = vunpack.c.h.b16 %v280
  %v1190 = vunpack.c.l.b16 %v281
  %v1191 = vunpack.c.h.b16 %v281
  %v1192 = vunpack.c.l.b16 %v282
  %v1193 = vunpack.c.h.b16 %v282
  %v1194 = vunpack.c.l.b16 %v283
  %v1195 = vunpack.c.h.b16 %v283
  %v1196 = vunpack.c.l.b16 %v284
  %v1197 = vunpack.c.h.b16 %v284
  %v1198 = vunpack.c.l.b16 %v285
  %v1199 = vunpack.c.h.b16 %v285
  %v1200 = vunpack.c.l.b16 %v286
  %v1201 = vunpack.c.h.b16 %v286
  %v1202 = vunpack.c.l.b16 %v287
  %v1203 = vunpack.c.h.b16 %v287
  %v1204 = vunpack.c.l.b16 %v288
  %v1205 = vunpack.c.h.b16 %v288
  %v1206 = vunpack.c.l.b16 %v289
  %v1207 = vunpack.c.h.b16 %v289
  %v1208 = vunpack.c.l.b16 %v290
  %v1209 = vunpack.c.h.b16 %v290
  %v1210 = vunpack.c.l.b16 %v291
  %v1211 = vunpack.c.h.b16 %v291
  %v1212 = vunpack.c.l.b16 %v292
  %v1213 = vunpack.c.h.b16 %v292
  %v1214 = vunpack.c.l.b16 %v293
  %v1215 = vunpack.c.h.b16 %v293
  %v1216 = vunpack.c.l.b16 %v294
  %v1217 = vunpack.c.h.b16 %v294
  %v1218 = vunpack.c.l.b16 %v295
  %v1219 = vunpack.c.h.b16 %v295
  %v1220 = vunpack.c.l.b16 %v296
  %v1221 = vunpack.c.h.b16 %v296
  %v1222 = vunpack.c.l.b16 %v297
  %v1223 = vunpack.c.h.b16 %v297
  %v1224 = vunpack.c.l.b16 %v298
  %v1225 = vunpack.c.h.b16 %v298
  %v1226 = vunpack.c.l.b16 %v299
  %v1227 = vunpack.c.h.b16 %v299
  %v1228 = vunpack.c.l.b16 %v300
  %v1229 = vunpack.c.h.b16 %v300
  %v1230 = vunpack.c.l.b16 %v301
  %v1231 = vunpack.c.h.b16 %v301
  %v1232 = vunpack.c.l.b16 %v302
  %v1233 = vunpack.c.h.b16 %v302
  %v1234 = vunpack.c.l.b16 %v303
  %v1235 = vunpack.c.h.b16 %v303
  %v1236 = vunpack.c.l.b16 %v304
  %v1237 = vunpack.c.h.b16 %v304
  %v1238 = vunpack.c.l.b16 %v305
  %v1239 = vunpack.c.h.b16 %v305
  %v1240 = vunpack.c.l.b16 %v306
  %v1241 = vunpack.c.h.b16 %v306
  %v1242 = vunpack.c.l.b16 %v307
  %v1243 = vunpack.c.h.b16 %v307
  %v1244 = vunpack.c.l.b16 %v308
  %v1245 = vunpack.c.h.b16 %v308
  %v1246 = vunpack.c.l.b16 %v309
  %v1247 = vunpack.c.h.b16 %v309
  %v1248 = vunpack.c.l.b16 %v310
  %v1249 = vunpack.c.h.b16 %v310
  %v1250 = vpack.c.b16 %v676, %v674
  %v1251 = vpack.c.b16 %v677, %v675
  %v1252 = vpack.c.b16 %v680, %v678
  %v1253 = vpack.c.b16 %v681, %v679
  %v1254 = vpack.c.b16 %v684, %v682
  %v1255 = vpack.c.b16 %v685, %v683
  %v1256 = vpack.c.b16 %v688, %v686
  %v1257 = vpack.c.b16 %v689, %v687
  %v1258 = vpack.c.b16 %v692, %v690
  %v1259 = vpack.c.b16 %v693, %v691
  %v1260 = vpack.c.b16 %v696, %v694
  %v1261 = vpack.c.b16 %v697, %v695
  %v1262 = vpack.c.b16 %v700, %v698
  %v1263 = vpack.c.b16 %v701, %v699
  %v1264 = vpack.c.b16 %v704, %v702
  %v1265 = vpack.c.b16 %v705, %v703
  %v1266 = vpack.c.b16 %v708, %v706
  %v1267 = vpack.c.b16 %v709, %v707
  %v1268 = vpack.c.b16 %v712, %v710
  %v1269 = vpack.c.b16 %v713, %v711
  %v1270 = vpack.c.b16 %v716, %v714
  %v1271 = vpack.c.b16 %v717, %v715
  %v1272 = vpack.c.b16 %v720, %v718
  %v1273 = vpack.c.b16 %v721, %v719
  %v1274 = vpack.c.b16 %v724, %v722
  %v1275 = vpack.c.b16 %v725, %v723
  %v1276 = vpack.c.b16 %v728, %v726
  %v1277 = vpack.c.b16 %v729, %v727
  %v1278 = vpack.c.b16 %v732, %v730
  %v1279 = vpack.c.b16 %v733, %v731
  %v1280 = vpack.c.b16 %v736, %v734
  %v1281 = vpack.c.b16 %v737, %v735
  %v1282 = vpack.c.b16 %v740, %v738
  %v1283 = vpack.c.b16 %v741, %v739
  %v1284 = vpack.c.b16 %v744, %v742
  %v1285 = vpack.c.b16 %v745, %v743
  %v1286 = vpack.c.b16 %v748, %v746
  %v1287 = vpack.c.b16 %v749, %v747
  %v1288 = vpack.c.b16 %v752, %v750
  %v1289 = vpack.c.b16 %v753, %v751
  %v1290 = vpack.c.b16 %v756, %v754
  %v1291 = vpack.c.b16 %v757, %v755
  %v1292 = vpack.c.b16 %v760, %v758
  %v1293 = vpack.c.b16 %v761, %v759
  %v1294 = vpack.c.b16 %v764, %v762
  %v1295 = vpack.c.b16 %v765, %v763
  %v1296 = vpack.c.b16 %v768, %v766
  %v1297 = vpack.c.b16 %v769, %v767
  %v1298 = vpack.c.b16 %v772, %v770
  %v1299 = vpack.c.b16 %v773, %v771
  %v1300 = vpack.c.b16 %v776, %v774
  %v1301 = vpack.c.b16 %v777, %v775
  %v1302 = vpack.c.b16 %v780, %v778
  %v1303 = vpack.c.b16 %v781, %v779
  %v1304 = vpack.c.b16 %v784, %v782
  %v1305 = vpack.c.b16 %v785, %v783
  %v1306 = vpack.c.b16 %v788, %v786
  %v1307 = vpack.c.b16 %v789, %v787
  %v1308 = vpack.c.b16 %v792, %v790
  %v1309 = vpack.c.b16 %v793, %v791
  %v1310 = vpack.c.b16 %v796, %v794
  %v1311 = vpack.c.b16 %v797, %v795
  %v1312 = vpack.c.b16 %v800, %v798
  %v1313 = vpack.c.b16 %v801, %v799
  %v1314 = vpack.c.b16 %v804, %v802
  %v1315 = vpack.c.b16 %v805, %v803
  %v1316 = vpack.c.b16 %v808, %v806
  %v1317 = vpack.c.b16 %v809, %v807
  %v1318 = vpack.c.b16 %v812, %v810
  %v1319 = vpack.c.b16 %v813, %v811
  %v1320 = vpack.c.b16 %v816, %v814
  %v1321 = vpack.c.b16 %v817, %v815
  %v1322 = vpack.c.b16 %v820, %v818
  %v1323 = vpack.c.b16 %v821, %v819
  %v1324 = vpack.c.b16 %v824, %v822
  %v1325 = vpack.c.b16 %v825, %v823
  %v1326 = vpack.c.b16 %v828, %v826
  %v1327 = vpack.c.b16 %v829, %v827
  %v1328 = vpack.c.b16 %v832, %v830
  %v1329 = vpack.c.b16 %v833, %v831
  %v1330 = vpack.c.b16 %v836, %v834
  %v1331 = vpack.c.b16 %v837, %v835
  %v1332 = vpack.c.b16 %v840, %v838
  %v1333 = vpack.c.b16 %v841, %v839
  %v1334 = vpack.c.b16 %v844, %v842
  %v1335 = vpack.c.b16 %v845, %v843
  %v1336 = vpack.c.b16 %v848, %v846
  %v1337 = vpack.c.b16 %v849, %v847
  %v1338 = vpack.c.b16 %v852, %v850
  %v1339 = vpack.c.b16 %v853, %v851
  %v1340 = vpack.c.b16 %v856, %v854
  %v1341 = vpack.c.b16 %v857, %v855
  %v1342 = vpack.c.b16 %v860, %v858
  %v1343 = vpack.c.b16 %v861, %v859
  %v1344 = vpack.c.b16 %v864, %v862
  %v1345 = vpack.c.b16 %v865, %v863
  %v1346 = vpack.c.b16 %v868, %v866
  %v1347 = vpack.c.b16 %v869, %v867
  %v1348 = vpack.c.b16 %v872, %v870
  %v1349 = vpack.c.b16 %v873, %v871
  %v1350 = vpack.c.b16 %v876, %v874
  %v1351 = vpack.c.b16 %v877, %v875
  %v1352 = vpack.c.b16 %v880, %v878
  %v1353 = vpack.c.b16 %v881, %v879
  %v1354 = vpack.c.b16 %v884, %v882
  %v1355 = vpack.c.b16 %v885, %v883
  %v1356 = vpack.c.b16 %v888, %v886
  %v1357 = vpack.c.b16 %v889, %v887
  %v1358 = vpack.c.b16 %v892, %v890
  %v1359 = vpack.c.b16 %v893, %v891
  %v1360 = vpack.c.b16 %v896, %v894
  %v1361 = vpack.c.b16 %v897, %v895
  %v1362 = vpack.c.b16 %v900, %v898
  %v1363 = vpack.c.b16 %v901, %v899
  %v1364 = vpack.c.b16 %v904, %v902
  %v1365 = vpack.c.b16 %v905, %v903
  %v1366 = vpack.c.b16 %v908, %v906
  %v1367 = vpack.c.b16 %v909, %v907
  %v1368 = vpack.c.b16 %v912, %v910
  %v1369 = vpack.c.b16 %v913, %v911
  %v1370 = vpack.c.b16 %v916, %v914
  %v1371 = vpack.c.b16 %v917, %v915
  %v1372 = vpack.c.b16 %v920, %v918
  %v1373 = vpack.c.b16 %v921, %v919
  %v1374 = vpack.c.b16 %v924, %v922
  %v1375 = vpack.c.b16 %v925, %v923
  %v1376 = vpack.c.b16 %v928, %v926
  %v1377 = vpack.c.b16 %v929, %v927
  %v1378 = vpack.c.b16 %v932, %v930
  %v1379 = vpack.c.b16 %v933, %v931
  %v1380 = vpack.c.b16 %v936, %v934
  %v1381 = vpack.c.b16 %v937, %v935
  %v1382 = vpack.c.b16 %v940, %v938
  %v1383 = vpack.c.b16 %v941, %v939
  %v1384 = vpack.c.b16 %v944, %v942
  %v1385 = vpack.c.b16 %v945, %v943
  %v1386 = vpack.c.b16 %v948, %v946
  %v1387 = vpack.c.b16 %v949, %v947
  %v1388 = vpack.c.b16 %v952, %v950
  %v1389 = vpack.c.b16 %v953, %v951
  %v1390 = vpack.c.b16 %v956, %v954
  %v1391 = vpack.c.b16 %v957, %v955
  %v1392 = vpack.c.b16 %v960, %v958
  %v1393 = vpack.c.b16 %v961, %v959
  %v1394 = vpack.c.b16 %v964, %v962
  %v1395 = vpack.c.b16 %v965, %v963
  %v1396 = vpack.c.b16 %v968, %v966
  %v1397 = vpack.c.b16 %v969, %v967
  %v1398 = vpack.c.b16 %v972, %v970
  %v1399 = vpack.c.b16 %v973, %v971
  %v1400 = vpack.c.b16 %v976, %v974
  %v1401 = vpack.c.b16 %v977, %v975
  %v1402 = vpack.c.b16 %v980, %v978
  %v1403 = vpack.c.b16 %v981, %v979
  %v1404 = vpack.c.b16 %v984, %v982
  %v1405 = vpack.c.b16 %v985, %v983
  %v1406 = vpack.c.b16 %v988, %v986
  %v1407 = vpack.c.b16 %v989, %v987
  %v1408 = vpack.c.b16 %v992, %v990
  %v1409 = vpack.c.b16 %v993, %v991
  %v1410 = vpack.c.b16 %v996, %v994
  %v1411 = vpack.c.b16 %v997, %v995
  %v1412 = vpack.c.b16 %v1000, %v998
  %v1413 = vpack.c.b16 %v1001, %v999
  %v1414 = vpack.c.b16 %v1004, %v1002
  %v1415 = vpack.c.b16 %v1005, %v1003
  %v1416 = vpack.c.b16 %v1008, %v1006
  %v1417 = vpack.c.b16 %v1009, %v1007
  %v1418 = vpack.c.b16 %v1012, %v1010
  %v1419 = vpack.c.b16 %v1013, %v1011
  %v1420 = vpack.c.b16 %v1016, %v1014
  %v1421 = vpack.c.b16 %v1017, %v1015
  %v1422 = vpack.c.b16 %v1020, %v1018
  %v1423 = vpack.c.b16 %v1021, %v1019
  %v1424 = vpack.c.b16 %v1024, %v1022
  %v1425 = vpack.c.b16 %v1025, %v1023
  %v1426 = vpack.c.b16 %v1028, %v1026
  %v1427 = vpack.c.b16 %v1029, %v1027
  %v1428 = vpack.c.b16 %v1032, %v1030
  %v1429 = vpack.c.b16 %v1033, %v1031
  %v1430 = vpack.c.b16 %v1036, %v1034
  %v1431 = vpack.c.b16 %v1037, %v1035
  %v1432 = vpack.c.b16 %v1040, %v1038
  %v1433 = vpack.c.b16 %v1041, %v1039
  %v1434 = vpack.c.b16 %v1044, %v1042
  %v1435 = vpack.c.b16 %v1045, %v1043
  %v1436 = vpack.c.b16 %v1048, %v1046
  %v1437 = vpack.c.b16 %v1049, %v1047
  %v1438 = vpack.c.b16 %v1052, %v1050
  %v1439 = vpack.c.b16 %v1053, %v1051
  %v1440 = vpack.c.b16 %v1056, %v1054
  %v1441 = vpack.c.b16 %v1057, %v1055
  %v1442 = vpack.c.b16 %v1060, %v1058
  %v1443 = vpack.c.b16 %v1061, %v1059
  %v1444 = vpack.c.b16 %v1064, %v1062
  %v1445 = vpack.c.b16 %v1065, %v1063
  %v1446 = vpack.c.b16 %v1068, %v1066
  %v1447 = vpack.c.b16 %v1069, %v1067
  %v1448 = vpack.c.b16 %v1072, %v1070
  %v1449 = vpack.c.b16 %v1073, %v1071
  %v1450 = vpack.c.b16 %v1076, %v1074
  %v1451 = vpack.c.b16 %v1077, %v1075
  %v1452 = vpack.c.b16 %v1080, %v1078
  %v1453 = vpack.c.b16 %v1081, %v1079
  %v1454 = vpack.c.b16 %v1084, %v1082
  %v1455 = vpack.c.b16 %v1085, %v1083
  %v1456 = vpack.c.b16 %v1088, %v1086
  %v1457 = vpack.c.b16 %v1089, %v1087
  %v1458 = vpack.c.b16 %v1092, %v1090
  %v1459 = vpack.c.b16 %v1093, %v1091
  %v1460 = vpack.c.b16 %v1096, %v1094
  %v1461 = vpack.c.b16 %v1097, %v1095
  %v1462 = vpack.c.b16 %v1100, %v1098
  %v1463 = vpack.c.b16 %v1101, %v1099
  %v1464 = vpack.c.b16 %v1104, %v1102
  %v1465 = vpack.c.b16 %v1105, %v1103
  %v1466 = vpack.c.b16 %v1108, %v1106
  %v1467 = vpack.c.b16 %v1109, %v1107
  %v1468 = vpack.c.b16 %v1112, %v1110
  %v1469 = vpack.c.b16 %v1113, %v1111
  %v1470 = vpack.c.b16 %v1116, %v1114
  %v1471 = vpack.c.b16 %v1117, %v1115
  %v1472 = vpack.c.b16 %v1120, %v1118
  %v1473 = vpack.c.b16 %v1121, %v1119
  %v1474 = vpack.c.b16 %v1124, %v1122
  %v1475 = vpack.c.b16 %v1125, %v1123
  %v1476 = vpack.c.b16 %v1128, %v1126
  %v1477 = vpack.c.b16 %v1129, %v1127
  %v1478 = vpack.c.b16 %v1132, %v1130
  %v1479 = vpack.c.b16 %v1133, %v1131
  %v1480 = vpack.c.b16 %v1136, %v1134
  %v1481 = vpack.c.b16 %v1137, %v1135
  %v1482 = vpack.c.b16 %v1140, %v1138
  %v1483 = vpack.c.b16 %v1141, %v1139
  %v1484 = vpack.c.b16 %v1144, %v1142
  %v1485 = vpack.c.b16 %v1145, %v1143
  %v1486 = vpack.c.b16 %v1148, %v1146
  %v1487 = vpack.c.b16 %v1149, %v1147
  %v1488 = vpack.c.b16 %v1152, %v1150
  %v1489 = vpack.c.b16 %v1153, %v1151
  %v1490 = vpack.c.b16 %v1156, %v1154
  %v1491 = vpack.c.b16 %v1157, %v1155
  %v1492 = vpack.c.b16 %v1160, %v1158
  %v1493 = vpack.c.b16 %v1161, %v1159
  %v1494 = vpack.c.b16 %v1164, %v1162
  %v1495 = vpack.c.b16 %v1165, %v1163
  %v1496 = vpack.c.b16 %v1168, %v1166
  %v1497 = vpack.c.b16 %v1169, %v1167
  %v1498 = vpack.c.b16 %v1172, %v1170
  %v1499 = vpack.c.b16 %v1173, %v1171
  %v1500 = vpack.c.b16 %v1176, %v1174
  %v1501 = vpack.c.b16 %v1177, %v1175
  %v1502 = vpack.c.b16 %v1180, %v1178
  %v1503 = vpack.c.b16 %v1181, %v1179
  %v1504 = vpack.c.b16 %v1184, %v1182
  %v1505 = vpack.c.b16 %v1185, %v1183
  %v1506 = vpack.c.b16 %v1188, %v1186
  %v1507 = vpack.c.b16 %v1189, %v1187
  %v1508 = vpack.c.b16 %v1192, %v1190
  %v1509 = vpack.c.b16 %v1193, %v1191
  %v1510 = vpack.c.b16 %v1196, %v1194
  %v1511 = vpack.c.b16 %v1197, %v1195
  %v1512 = vpack.c.b16 %v1200, %v1198
  %v1513 = vpack.c.b16 %v1201, %v1199
  %v1514 = vpack.c.b16 %v1204, %v1202
  %v1515 = vpack.c.b16 %v1205, %v1203
  %v1516 = vpack.c.b16 %v1208, %v1206
  %v1517 = vpack.c.b16 %v1209, %v1207
  %v1518 = vpack.c.b16 %v1212, %v1210
  %v1519 = vpack.c.b16 %v1213, %v1211
  %v1520 = vpack.c.b16 %v1216, %v1214
  %v1521 = vpack.c.b16 %v1217, %v1215
  %v1522 = vpack.c.b16 %v1220, %v1218
  %v1523 = vpack.c.b16 %v1221, %v1219
  %v1524 = vpack.c.b16 %v1224, %v1222
  %v1525 = vpack.c.b16 %v1225, %v1223
  %v1526 = vpack.c.b16 %v1228, %v1226
  %v1527 = vpack.c.b16 %v1229, %v1227
  %v1528 = vpack.c.b16 %v1232, %v1230
  %v1529 = vpack.c.b16 %v1233, %v1231
  %v1530 = vpack.c.b16 %v1236, %v1234
  %v1531 = vpack.c.b16 %v1237, %v1235
  %v1532 = vpack.c.b16 %v1240, %v1238
  %v1533 = vpack.c.b16 %v1241, %v1239
  %v1534 = vpack.c.b16 %v1244, %v1242
  %v1535 = vpack.c.b16 %v1245, %v1243
  %v1536 = vpack.c.b16 %v1248, %v1246
  %v1537 = vpack.c.b16 %v1249, %v1247
  %1826 = vmatprep.subr.bf16.mxu0 %v1251
  %1827 = vmatpush1.bf16.msra.mxu0 %v1250
  %1828 = vmatprep.subr.bf16.mxu0 %v1253
  %1829 = vmatpush1.bf16.msra.mxu0 %v1252
  %1830 = vmatprep.subr.bf16.mxu0 %v1255
  %1831 = vmatpush1.bf16.msra.mxu0 %v1254
  %1832 = vmatprep.subr.bf16.mxu0 %v1257
  %1833 = vmatpush1.bf16.msra.mxu0 %v1256
  %1834 = vmatprep.subr.bf16.mxu0 %v1259
  %1835 = vmatpush1.bf16.msra.mxu0 %v1258
  %1836 = vmatprep.subr.bf16.mxu0 %v1261
  %1837 = vmatpush1.bf16.msra.mxu0 %v1260
  %1838 = vmatprep.subr.bf16.mxu0 %v1263
  %1839 = vmatpush1.bf16.msra.mxu0 %v1262
  %1840 = vmatprep.subr.bf16.mxu0 %v1265
  %1841 = vmatpush1.bf16.msra.mxu0 %v1264
  %1842 = vmatprep.subr.bf16.mxu0 %v1267
  %1843 = vmatpush1.bf16.msra.mxu0 %v1266
  %1844 = vmatprep.subr.bf16.mxu0 %v1269
  %1845 = vmatpush1.bf16.msra.mxu0 %v1268
  %1846 = vmatprep.subr.bf16.mxu0 %v1271
  %1847 = vmatpush1.bf16.msra.mxu0 %v1270
  %1848 = vmatprep.subr.bf16.mxu0 %v1273
  %1849 = vmatpush1.bf16.msra.mxu0 %v1272
  %1850 = vmatprep.subr.bf16.mxu0 %v1275
  %1851 = vmatpush1.bf16.msra.mxu0 %v1274
  %1852 = vmatprep.subr.bf16.mxu0 %v1277
  %1853 = vmatpush1.bf16.msra.mxu0 %v1276
  %1854 = vmatprep.subr.bf16.mxu0 %v1279
  %1855 = vmatpush1.bf16.msra.mxu0 %v1278
  %1856 = vmatprep.subr.bf16.mxu0 %v1281
  %1857 = vmatpush1.bf16.msra.mxu0 %v1280
  %1858 = vmatprep.mubr.bf16.mxu0 %v351
  %1859 = vmatmul.mubr.bf16.gmra.mrb[0].mxu0 %v350
  %v1860 = vpop.f32.mrb[0].mxu0
  %v1861 = vadd.f32 %v316, %v1860
  %v1862 = vpop.f32.mrb[0].mxu0
  %v1863 = vadd.f32 %v320, %v1862
  %v1864 = vpop.f32.mrb[0].mxu0
  %v1865 = vpop.f32.mrb[0].mxu0
  %1866 = vdwg.mxu0
  %1867 = vmatprep.subr.bf16.mxu0 %v1283
  %1868 = vmatpush1.bf16.msra.mxu0 %v1282
  %1869 = vmatprep.subr.bf16.mxu0 %v1285
  %1870 = vmatpush1.bf16.msra.mxu0 %v1284
  %1871 = vmatprep.subr.bf16.mxu0 %v1287
  %1872 = vmatpush1.bf16.msra.mxu0 %v1286
  %1873 = vmatprep.subr.bf16.mxu0 %v1289
  %1874 = vmatpush1.bf16.msra.mxu0 %v1288
  %1875 = vmatprep.subr.bf16.mxu0 %v1291
  %1876 = vmatpush1.bf16.msra.mxu0 %v1290
  %1877 = vmatprep.subr.bf16.mxu0 %v1293
  %1878 = vmatpush1.bf16.msra.mxu0 %v1292
  %1879 = vmatprep.subr.bf16.mxu0 %v1295
  %1880 = vmatpush1.bf16.msra.mxu0 %v1294
  %1881 = vmatprep.subr.bf16.mxu0 %v1297
  %1882 = vmatpush1.bf16.msra.mxu0 %v1296
  %1883 = vmatprep.subr.bf16.mxu0 %v1299
  %1884 = vmatpush1.bf16.msra.mxu0 %v1298
  %1885 = vmatprep.subr.bf16.mxu0 %v1301
  %1886 = vmatpush1.bf16.msra.mxu0 %v1300
  %1887 = vmatprep.subr.bf16.mxu0 %v1303
  %1888 = vmatpush1.bf16.msra.mxu0 %v1302
  %1889 = vmatprep.subr.bf16.mxu0 %v1305
  %1890 = vmatpush1.bf16.msra.mxu0 %v1304
  %1891 = vmatprep.subr.bf16.mxu0 %v1307
  %1892 = vmatpush1.bf16.msra.mxu0 %v1306
  %1893 = vmatprep.subr.bf16.mxu0 %v1309
  %1894 = vmatpush1.bf16.msra.mxu0 %v1308
  %1895 = vmatprep.subr.bf16.mxu0 %v1311
  %1896 = vmatpush1.bf16.msra.mxu0 %v1310
  %1897 = vmatprep.subr.bf16.mxu0 %v1313
  %1898 = vmatpush1.bf16.msra.mxu0 %v1312
  %1899 = vmatprep.mubr.bf16.mxu0 %v353
  %1900 = vmatmul.mubr.bf16.gmra.mrb[0].mxu0 %v352
  %v1901 = vpop.f32.mrb[0].mxu0
  %v1902 = vadd.f32 %v1861, %v1901
  %v1903 = vpop.f32.mrb[0].mxu0
  %v1904 = vadd.f32 %v1863, %v1903
  %v1905 = vpop.f32.mrb[0].mxu0
  %v1906 = vpop.f32.mrb[0].mxu0
  %1907 = vdwg.mxu0
  %1908 = vmatprep.subr.bf16.mxu0 %v1315
  %1909 = vmatpush1.bf16.msra.mxu0 %v1314
  %1910 = vmatprep.subr.bf16.mxu0 %v1317
  %1911 = vmatpush1.bf16.msra.mxu0 %v1316
  %1912 = vmatprep.subr.bf16.mxu0 %v1319
  %1913 = vmatpush1.bf16.msra.mxu0 %v1318
  %1914 = vmatprep.subr.bf16.mxu0 %v1321
  %1915 = vmatpush1.bf16.msra.mxu0 %v1320
  %1916 = vmatprep.subr.bf16.mxu0 %v1323
  %1917 = vmatpush1.bf16.msra.mxu0 %v1322
  %1918 = vmatprep.subr.bf16.mxu0 %v1325
  %1919 = vmatpush1.bf16.msra.mxu0 %v1324
  %1920 = vmatprep.subr.bf16.mxu0 %v1327
  %1921 = vmatpush1.bf16.msra.mxu0 %v1326
  %1922 = vmatprep.subr.bf16.mxu0 %v1329
  %1923 = vmatpush1.bf16.msra.mxu0 %v1328
  %1924 = vmatprep.subr.bf16.mxu0 %v1331
  %1925 = vmatpush1.bf16.msra.mxu0 %v1330
  %1926 = vmatprep.subr.bf16.mxu0 %v1333
  %1927 = vmatpush1.bf16.msra.mxu0 %v1332
  %1928 = vmatprep.subr.bf16.mxu0 %v1335
  %1929 = vmatpush1.bf16.msra.mxu0 %v1334
  %1930 = vmatprep.subr.bf16.mxu0 %v1337
  %1931 = vmatpush1.bf16.msra.mxu0 %v1336
  %1932 = vmatprep.subr.bf16.mxu0 %v1339
  %1933 = vmatpush1.bf16.msra.mxu0 %v1338
  %1934 = vmatprep.subr.bf16.mxu0 %v1341
  %1935 = vmatpush1.bf16.msra.mxu0 %v1340
  %1936 = vmatprep.subr.bf16.mxu0 %v1343
  %1937 = vmatpush1.bf16.msra.mxu0 %v1342
  %1938 = vmatprep.subr.bf16.mxu0 %v1345
  %1939 = vmatpush1.bf16.msra.mxu0 %v1344
  %1940 = vmatprep.mubr.bf16.mxu0 %v355
  %1941 = vmatmul.mubr.bf16.gmra.mrb[0].mxu0 %v354
  %v1942 = vpop.f32.mrb[0].mxu0
  %v1943 = vadd.f32 %v1902, %v1942
  %v1944 = vpop.f32.mrb[0].mxu0
  %v1945 = vadd.f32 %v1904, %v1944
  %v1946 = vpop.f32.mrb[0].mxu0
  %v1947 = vpop.f32.mrb[0].mxu0
  %1948 = vdwg.mxu0
  %1949 = vmatprep.subr.bf16.mxu0 %v1347
  %1950 = vmatpush1.bf16.msra.mxu0 %v1346
  %1951 = vmatprep.subr.bf16.mxu0 %v1349
  %1952 = vmatpush1.bf16.msra.mxu0 %v1348
  %1953 = vmatprep.subr.bf16.mxu0 %v1351
  %1954 = vmatpush1.bf16.msra.mxu0 %v1350
  %1955 = vmatprep.subr.bf16.mxu0 %v1353
  %1956 = vmatpush1.bf16.msra.mxu0 %v1352
  %1957 = vmatprep.subr.bf16.mxu0 %v1355
  %1958 = vmatpush1.bf16.msra.mxu0 %v1354
  %1959 = vmatprep.subr.bf16.mxu0 %v1357
  %1960 = vmatpush1.bf16.msra.mxu0 %v1356
  %1961 = vmatprep.subr.bf16.mxu0 %v1359
  %1962 = vmatpush1.bf16.msra.mxu0 %v1358
  %1963 = vmatprep.subr.bf16.mxu0 %v1361
  %1964 = vmatpush1.bf16.msra.mxu0 %v1360
  %1965 = vmatprep.subr.bf16.mxu0 %v1363
  %1966 = vmatpush1.bf16.msra.mxu0 %v1362
  %1967 = vmatprep.subr.bf16.mxu0 %v1365
  %1968 = vmatpush1.bf16.msra.mxu0 %v1364
  %1969 = vmatprep.subr.bf16.mxu0 %v1367
  %1970 = vmatpush1.bf16.msra.mxu0 %v1366
  %1971 = vmatprep.subr.bf16.mxu0 %v1369
  %1972 = vmatpush1.bf16.msra.mxu0 %v1368
  %1973 = vmatprep.subr.bf16.mxu0 %v1371
  %1974 = vmatpush1.bf16.msra.mxu0 %v1370
  %1975 = vmatprep.subr.bf16.mxu0 %v1373
  %1976 = vmatpush1.bf16.msra.mxu0 %v1372
  %1977 = vmatprep.subr.bf16.mxu0 %v1375
  %1978 = vmatpush1.bf16.msra.mxu0 %v1374
  %1979 = vmatprep.subr.bf16.mxu0 %v1377
  %1980 = vmatpush1.bf16.msra.mxu0 %v1376
  %1981 = vmatprep.mubr.bf16.mxu0 %v357
  %1982 = vmatmul.mubr.bf16.gmra.mrb[0].mxu0 %v356
  %v1983 = vpop.f32.mrb[0].mxu0
  %v1984 = vadd.f32 %v1943, %v1983
  %v1985 = vpop.f32.mrb[0].mxu0
  %v1986 = vadd.f32 %v1945, %v1985
  %v1987 = vpop.f32.mrb[0].mxu0
  %v1988 = vpop.f32.mrb[0].mxu0
  %1989 = vdwg.mxu0
  %1990 = vmatprep.subr.bf16.mxu0 %v1379
  %1991 = vmatpush1.bf16.msra.mxu0 %v1378
  %1992 = vmatprep.subr.bf16.mxu0 %v1381
  %1993 = vmatpush1.bf16.msra.mxu0 %v1380
  %1994 = vmatprep.subr.bf16.mxu0 %v1383
  %1995 = vmatpush1.bf16.msra.mxu0 %v1382
  %1996 = vmatprep.subr.bf16.mxu0 %v1385
  %1997 = vmatpush1.bf16.msra.mxu0 %v1384
  %1998 = vmatprep.subr.bf16.mxu0 %v1387
  %1999 = vmatpush1.bf16.msra.mxu0 %v1386
  %2000 = vmatprep.subr.bf16.mxu0 %v1389
  %2001 = vmatpush1.bf16.msra.mxu0 %v1388
  %2002 = vmatprep.subr.bf16.mxu0 %v1391
  %2003 = vmatpush1.bf16.msra.mxu0 %v1390
  %2004 = vmatprep.subr.bf16.mxu0 %v1393
  %2005 = vmatpush1.bf16.msra.mxu0 %v1392
  %2006 = vmatprep.subr.bf16.mxu0 %v1395
  %2007 = vmatpush1.bf16.msra.mxu0 %v1394
  %2008 = vmatprep.subr.bf16.mxu0 %v1397
  %2009 = vmatpush1.bf16.msra.mxu0 %v1396
  %2010 = vmatprep.subr.bf16.mxu0 %v1399
  %2011 = vmatpush1.bf16.msra.mxu0 %v1398
  %2012 = vmatprep.subr.bf16.mxu0 %v1401
  %2013 = vmatpush1.bf16.msra.mxu0 %v1400
  %2014 = vmatprep.subr.bf16.mxu0 %v1403
  %2015 = vmatpush1.bf16.msra.mxu0 %v1402
  %2016 = vmatprep.subr.bf16.mxu0 %v1405
  %2017 = vmatpush1.bf16.msra.mxu0 %v1404
  %2018 = vmatprep.subr.bf16.mxu0 %v1407
  %2019 = vmatpush1.bf16.msra.mxu0 %v1406
  %2020 = vmatprep.subr.bf16.mxu0 %v1409
  %2021 = vmatpush1.bf16.msra.mxu0 %v1408
  %2022 = vmatprep.mubr.bf16.mxu0 %v359
  %2023 = vmatmul.mubr.bf16.gmra.mrb[0].mxu0 %v358
  %v2024 = vpop.f32.mrb[0].mxu0
  %v2025 = vadd.f32 %v1984, %v2024
  %v2026 = vpop.f32.mrb[0].mxu0
  %v2027 = vadd.f32 %v1986, %v2026
  %v2028 = vpop.f32.mrb[0].mxu0
  %v2029 = vpop.f32.mrb[0].mxu0
  %2030 = vdwg.mxu0
  %2031 = vmatprep.subr.bf16.mxu0 %v1411
  %2032 = vmatpush1.bf16.msra.mxu0 %v1410
  %2033 = vmatprep.subr.bf16.mxu0 %v1413
  %2034 = vmatpush1.bf16.msra.mxu0 %v1412
  %2035 = vmatprep.subr.bf16.mxu0 %v1415
  %2036 = vmatpush1.bf16.msra.mxu0 %v1414
  %2037 = vmatprep.subr.bf16.mxu0 %v1417
  %2038 = vmatpush1.bf16.msra.mxu0 %v1416
  %2039 = vmatprep.subr.bf16.mxu0 %v1419
  %2040 = vmatpush1.bf16.msra.mxu0 %v1418
  %2041 = vmatprep.subr.bf16.mxu0 %v1421
  %2042 = vmatpush1.bf16.msra.mxu0 %v1420
  %2043 = vmatprep.subr.bf16.mxu0 %v1423
  %2044 = vmatpush1.bf16.msra.mxu0 %v1422
  %2045 = vmatprep.subr.bf16.mxu0 %v1425
  %2046 = vmatpush1.bf16.msra.mxu0 %v1424
  %2047 = vmatprep.subr.bf16.mxu0 %v1427
  %2048 = vmatpush1.bf16.msra.mxu0 %v1426
  %2049 = vmatprep.subr.bf16.mxu0 %v1429
  %2050 = vmatpush1.bf16.msra.mxu0 %v1428
  %2051 = vmatprep.subr.bf16.mxu0 %v1431
  %2052 = vmatpush1.bf16.msra.mxu0 %v1430
  %2053 = vmatprep.subr.bf16.mxu0 %v1433
  %2054 = vmatpush1.bf16.msra.mxu0 %v1432
  %2055 = vmatprep.subr.bf16.mxu0 %v1435
  %2056 = vmatpush1.bf16.msra.mxu0 %v1434
  %2057 = vmatprep.subr.bf16.mxu0 %v1437
  %2058 = vmatpush1.bf16.msra.mxu0 %v1436
  %2059 = vmatprep.subr.bf16.mxu0 %v1439
  %2060 = vmatpush1.bf16.msra.mxu0 %v1438
  %2061 = vmatprep.subr.bf16.mxu0 %v1441
  %2062 = vmatpush1.bf16.msra.mxu0 %v1440
  %2063 = vmatprep.mubr.bf16.mxu0 %v361
  %2064 = vmatmul.mubr.bf16.gmra.mrb[0].mxu0 %v360
  %v2065 = vpop.f32.mrb[0].mxu0
  %v2066 = vadd.f32 %v2025, %v2065
  %v2067 = vpop.f32.mrb[0].mxu0
  %v2068 = vadd.f32 %v2027, %v2067
  %v2069 = vpop.f32.mrb[0].mxu0
  %v2070 = vpop.f32.mrb[0].mxu0
  %2071 = vdwg.mxu0
  %2072 = vmatprep.subr.bf16.mxu0 %v1443
  %2073 = vmatpush1.bf16.msra.mxu0 %v1442
  %2074 = vmatprep.subr.bf16.mxu0 %v1445
  %2075 = vmatpush1.bf16.msra.mxu0 %v1444
  %2076 = vmatprep.subr.bf16.mxu0 %v1447
  %2077 = vmatpush1.bf16.msra.mxu0 %v1446
  %2078 = vmatprep.subr.bf16.mxu0 %v1449
  %2079 = vmatpush1.bf16.msra.mxu0 %v1448
  %2080 = vmatprep.subr.bf16.mxu0 %v1451
  %2081 = vmatpush1.bf16.msra.mxu0 %v1450
  %2082 = vmatprep.subr.bf16.mxu0 %v1453
  %2083 = vmatpush1.bf16.msra.mxu0 %v1452
  %2084 = vmatprep.subr.bf16.mxu0 %v1455
  %2085 = vmatpush1.bf16.msra.mxu0 %v1454
  %2086 = vmatprep.subr.bf16.mxu0 %v1457
  %2087 = vmatpush1.bf16.msra.mxu0 %v1456
  %2088 = vmatprep.subr.bf16.mxu0 %v1459
  %2089 = vmatpush1.bf16.msra.mxu0 %v1458
  %2090 = vmatprep.subr.bf16.mxu0 %v1461
  %2091 = vmatpush1.bf16.msra.mxu0 %v1460
  %2092 = vmatprep.subr.bf16.mxu0 %v1463
  %2093 = vmatpush1.bf16.msra.mxu0 %v1462
  %2094 = vmatprep.subr.bf16.mxu0 %v1465
  %2095 = vmatpush1.bf16.msra.mxu0 %v1464
  %2096 = vmatprep.subr.bf16.mxu0 %v1467
  %2097 = vmatpush1.bf16.msra.mxu0 %v1466
  %2098 = vmatprep.subr.bf16.mxu0 %v1469
  %2099 = vmatpush1.bf16.msra.mxu0 %v1468
  %2100 = vmatprep.subr.bf16.mxu0 %v1471
  %2101 = vmatpush1.bf16.msra.mxu0 %v1470
  %2102 = vmatprep.subr.bf16.mxu0 %v1473
  %2103 = vmatpush1.bf16.msra.mxu0 %v1472
  %2104 = vmatprep.mubr.bf16.mxu0 %v363
  %2105 = vmatmul.mubr.bf16.gmra.mrb[0].mxu0 %v362
  %v2106 = vpop.f32.mrb[0].mxu0
  %v2107 = vadd.f32 %v2066, %v2106
  %v2108 = vpop.f32.mrb[0].mxu0
  %v2109 = vadd.f32 %v2068, %v2108
  %v2110 = vpop.f32.mrb[0].mxu0
  %v2111 = vpop.f32.mrb[0].mxu0
  %2112 = vdwg.mxu0
  %2113 = vmatprep.subr.bf16.mxu0 %v1475
  %2114 = vmatpush1.bf16.msra.mxu0 %v1474
  %2115 = vmatprep.subr.bf16.mxu0 %v1477
  %2116 = vmatpush1.bf16.msra.mxu0 %v1476
  %2117 = vmatprep.subr.bf16.mxu0 %v1479
  %2118 = vmatpush1.bf16.msra.mxu0 %v1478
  %2119 = vmatprep.subr.bf16.mxu0 %v1481
  %2120 = vmatpush1.bf16.msra.mxu0 %v1480
  %2121 = vmatprep.subr.bf16.mxu0 %v1483
  %2122 = vmatpush1.bf16.msra.mxu0 %v1482
  %2123 = vmatprep.subr.bf16.mxu0 %v1485
  %2124 = vmatpush1.bf16.msra.mxu0 %v1484
  %2125 = vmatprep.subr.bf16.mxu0 %v1487
  %2126 = vmatpush1.bf16.msra.mxu0 %v1486
  %2127 = vmatprep.subr.bf16.mxu0 %v1489
  %2128 = vmatpush1.bf16.msra.mxu0 %v1488
  %2129 = vmatprep.subr.bf16.mxu0 %v1491
  %2130 = vmatpush1.bf16.msra.mxu0 %v1490
  %2131 = vmatprep.subr.bf16.mxu0 %v1493
  %2132 = vmatpush1.bf16.msra.mxu0 %v1492
  %2133 = vmatprep.subr.bf16.mxu0 %v1495
  %2134 = vmatpush1.bf16.msra.mxu0 %v1494
  %2135 = vmatprep.subr.bf16.mxu0 %v1497
  %2136 = vmatpush1.bf16.msra.mxu0 %v1496
  %2137 = vmatprep.subr.bf16.mxu0 %v1499
  %2138 = vmatpush1.bf16.msra.mxu0 %v1498
  %2139 = vmatprep.subr.bf16.mxu0 %v1501
  %2140 = vmatpush1.bf16.msra.mxu0 %v1500
  %2141 = vmatprep.subr.bf16.mxu0 %v1503
  %2142 = vmatpush1.bf16.msra.mxu0 %v1502
  %2143 = vmatprep.subr.bf16.mxu0 %v1505
  %2144 = vmatpush1.bf16.msra.mxu0 %v1504
  %2145 = vmatprep.mubr.bf16.mxu0 %v365
  %2146 = vmatmul.mubr.bf16.gmra.mrb[0].mxu0 %v364
  %v2147 = vpop.f32.mrb[0].mxu0
  %v2148 = vadd.f32 %v2107, %v2147
  %v2149 = vpop.f32.mrb[0].mxu0
  %v2150 = vadd.f32 %v2109, %v2149
  %v2151 = vpop.f32.mrb[0].mxu0
  %v2152 = vpop.f32.mrb[0].mxu0
  %2153 = vdwg.mxu0
  %2154 = vmatprep.subr.bf16.mxu0 %v1507
  %2155 = vmatpush1.bf16.msra.mxu0 %v1506
  %2156 = vmatprep.subr.bf16.mxu0 %v1509
  %2157 = vmatpush1.bf16.msra.mxu0 %v1508
  %2158 = vmatprep.subr.bf16.mxu0 %v1511
  %2159 = vmatpush1.bf16.msra.mxu0 %v1510
  %2160 = vmatprep.subr.bf16.mxu0 %v1513
  %2161 = vmatpush1.bf16.msra.mxu0 %v1512
  %2162 = vmatprep.subr.bf16.mxu0 %v1515
  %2163 = vmatpush1.bf16.msra.mxu0 %v1514
  %2164 = vmatprep.subr.bf16.mxu0 %v1517
  %2165 = vmatpush1.bf16.msra.mxu0 %v1516
  %2166 = vmatprep.subr.bf16.mxu0 %v1519
  %2167 = vmatpush1.bf16.msra.mxu0 %v1518
  %2168 = vmatprep.subr.bf16.mxu0 %v1521
  %2169 = vmatpush1.bf16.msra.mxu0 %v1520
  %2170 = vmatprep.subr.bf16.mxu0 %v1523
  %2171 = vmatpush1.bf16.msra.mxu0 %v1522
  %2172 = vmatprep.subr.bf16.mxu0 %v1525
  %2173 = vmatpush1.bf16.msra.mxu0 %v1524
  %2174 = vmatprep.subr.bf16.mxu0 %v1527
  %2175 = vmatpush1.bf16.msra.mxu0 %v1526
  %2176 = vmatprep.subr.bf16.mxu0 %v1529
  %2177 = vmatpush1.bf16.msra.mxu0 %v1528
  %2178 = vmatprep.subr.bf16.mxu0 %v1531
  %2179 = vmatpush1.bf16.msra.mxu0 %v1530
  %2180 = vmatprep.subr.bf16.mxu0 %v1533
  %2181 = vmatpush1.bf16.msra.mxu0 %v1532
  %2182 = vmatprep.subr.bf16.mxu0 %v1535
  %2183 = vmatpush1.bf16.msra.mxu0 %v1534
  %2184 = vmatprep.subr.bf16.mxu0 %v1537
  %2185 = vmatpush1.bf16.msra.mxu0 %v1536
  %2186 = vmatprep.mubr.bf16.mxu0 %v367
  %2187 = vmatmul.mubr.bf16.gmra.mrb[0].mxu0 %v366
  %v2188 = vpop.f32.mrb[0].mxu0
  %v2189 = vadd.f32 %v2148, %v2188
  %v2190 = vpop.f32.mrb[0].mxu0
  %v2191 = vadd.f32 %v2150, %v2190
  %v2192 = vpop.f32.mrb[0].mxu0
  %v2193 = vpop.f32.mrb[0].mxu0
  %2194 = vdwg.mxu0
  %v2195 = vmax.f32 %v2189, 0.0
  %v2196 = vmax.f32 %v2191, 0.0
  %2197 = vst [vmem:[%s3] sm:$0xff] %v2195
  %2198 = vst [vmem:[%s3 + $0x8] sm:$0xff] %v2196
  // Predicated region
  $region14: #{forward.16} parent=0 // pred_check
    _
  $region15: #{forward.16} parent=0 // pred_check_branch
    %2200 = sbr.rel (0) target = $region17
  $region16: #{forward.16} parent=0 // pred_region
    _
  $region17: #{forward.16} parent=0 // pred_fallthru
    _
  // Predicated region
  $region18: #{forward.16} parent=0 // pred_check
    _
  $region19: #{forward.16} parent=0 // pred_check_branch
    %2202 = sbr.rel (0) target = $region21
  $region20: #{forward.16} parent=0 // pred_region
    _
  $region21: #{forward.16} parent=0 // pred_fallthru
    _

// kernel: forward.17
$region0: #{forward.17}
  #allocation0 [shape = 'u32[]', space=smem, size = 0x4, offset = 0x4, fixed_abs, tag = 'smem constant byte address 0x4 - core index']
  #allocation1 [shape = 'u32[144,128]{1,0:T(1,128)}', space=vmem, size = 0x12000, scoped, tag = 'internal scratch']
  %s0 = inlined_call_operand.vmem [shape: bf16[2,256], index: 0, kind: input, shape index: {}]
  %s1 = inlined_call_operand.vmem [shape: bf16[256,10], index: 1, kind: input, shape index: {}]
  %s2 = inlined_call_operand.vmem [shape: f32[1,10], index: 2, kind: input, shape index: {}]
  %s3 = inlined_call_operand.hbm [shape: f32[2,10], index: 3, kind: output, shape index: {}]
  %s4 = sld [smem:[#allocation0]]
  $region22: #{forward.17} parent=0
    _
  %s6 = ssub.s32 1, %s4
  %s7 = scalar_select 0, %s6, %s4
  $region1: #{forward.17} parent=0
    #allocation2 [shape = 'u8[1024]{0}', space=vmem, size = 0x400, scoped, tag = 'output window, operand 0, single buffered']
    #allocation3 [shape = 's32[1]{0}', space=sflag, size = 0x4, scoped, tag = 'scoped memory for forward.17']
    %8 = vsyncpa [#allocation3], 0
    // Predicated region
    $region2: #{forward.17} parent=1 // pred_check
      _
    $region3: #{forward.17} parent=1 // pred_check_branch
      %10 = sbr.rel (0) target = $region5
    $region4: #{forward.17} parent=1 // pred_region
      _
    $region5: #{forward.17} parent=1 // pred_fallthru
      _
    // Predicated region
    $region6: #{forward.17} parent=1 // pred_check
      _
    $region7: #{forward.17} parent=1 // pred_check_branch
      %12 = sbr.rel (0) target = $region9
    $region8: #{forward.17} parent=1 // pred_region
      _
    $region9: #{forward.17} parent=1 // pred_fallthru
      _
    // Predicated region
    $region10: #{forward.17} parent=1 // pred_check
      _
    $region11: #{forward.17} parent=1 // pred_check_branch
      %14 = sbr.rel (0) target = $region13
    $region12: #{forward.17} parent=1 // pred_region
      _
    $region13: #{forward.17} parent=1 // pred_fallthru
      _
    %v16 = vld [vmem:[%s0] sm:$0x3]
    %v17 = vld [vmem:[%s1] sm:$0xf]
    %v18 = vld [vmem:[%s1 + $0x4] sm:$0xf]
    %v19 = vld [vmem:[%s1 + $0x8] sm:$0xf]
    %v20 = vld [vmem:[%s1 + $0xc] sm:$0xf]
    %v21 = vld [vmem:[%s1 + $0x10] sm:$0xf]
    %v22 = vld [vmem:[%s1 + $0x14] sm:$0xf]
    %v23 = vld [vmem:[%s1 + $0x18] sm:$0xf]
    %v24 = vld [vmem:[%s1 + $0x1c] sm:$0xf]
    %v25 = vld [vmem:[%s1 + $0x20] sm:$0xf]
    %v26 = vld [vmem:[%s1 + $0x24] sm:$0xf]
    %v27 = vld [vmem:[%s1 + $0x28] sm:$0xf]
    %v28 = vld [vmem:[%s1 + $0x2c] sm:$0xf]
    %v29 = vld [vmem:[%s1 + $0x30] sm:$0xf]
    %v30 = vld [vmem:[%s1 + $0x34] sm:$0xf]
    %v31 = vld [vmem:[%s1 + $0x38] sm:$0xf]
    %v32 = vld [vmem:[%s1 + $0x3c] sm:$0xf]
    %v33 = vld [vmem:[%s1 + $0x40] sm:$0xf]
    %v34 = vld [vmem:[%s1 + $0x44] sm:$0xf]
    %v35 = vld [vmem:[%s1 + $0x48] sm:$0xf]
    %v36 = vld [vmem:[%s1 + $0x4c] sm:$0xf]
    %v37 = vld [vmem:[%s1 + $0x50] sm:$0xf]
    %v38 = vld [vmem:[%s1 + $0x54] sm:$0xf]
    %v39 = vld [vmem:[%s1 + $0x58] sm:$0xf]
    %v40 = vld [vmem:[%s1 + $0x5c] sm:$0xf]
    %v41 = vld [vmem:[%s1 + $0x60] sm:$0xf]
    %v42 = vld [vmem:[%s1 + $0x64] sm:$0xf]
    %v43 = vld [vmem:[%s1 + $0x68] sm:$0xf]
    %v44 = vld [vmem:[%s1 + $0x6c] sm:$0xf]
    %v45 = vld [vmem:[%s1 + $0x70] sm:$0xf]
    %v46 = vld [vmem:[%s1 + $0x74] sm:$0xf]
    %v47 = vld [vmem:[%s1 + $0x78] sm:$0xf]
    %v48 = vld [vmem:[%s1 + $0x7c] sm:$0xf]
    %v49 = vld [vmem:[%s2] sm:$0x1]
    %v51 = vlaneseq
    %v52 = vshrl.u32 %v51, 7
    %v53 = vsub.s32 0, %v52
    %v54 = vrot.slane %v49, %v53
    %v58 = vunpack.c.l.s4 1966171168
    %v59 = vunpack.c.0.s8 %v58
    %v60 = vlaneseq
    %v61 = vshrl.u32 %v60, 7
    %v62 = vsub.s32 %v59, %v61
    %v63 = vrot.slane %v16, %v62
    %v64 = vcombine.high %v63, %v63
    %v66 = vunpack.c.l.s4 1966171168
    %v67 = vunpack.c.0.s8 %v66
    %v68 = vlaneseq
    %v69 = vshrl.u32 %v68, 7
    %v70 = vsub.s32 %v67, %v69
    %v71 = vrot.slane %v63, %v70
    %v73 = vunpack.c.l.s4 1966171168
    %v74 = vunpack.c.0.s8 %v73
    %v75 = vlaneseq
    %v76 = vshrl.u32 %v75, 7
    %v77 = vsub.s32 %v74, %v76
    %v78 = vrot.slane %v64, %v77
    %v113 = vunpack.c.l.b16 %v17
    %v114 = vunpack.c.l.b16 %v18
    %v115 = vunpack.c.l.b16 %v19
    %v116 = vunpack.c.l.b16 %v20
    %v117 = vunpack.c.l.b16 %v21
    %v118 = vunpack.c.l.b16 %v22
    %v119 = vunpack.c.l.b16 %v23
    %v120 = vunpack.c.l.b16 %v24
    %v121 = vunpack.c.l.b16 %v25
    %v122 = vunpack.c.l.b16 %v26
    %v123 = vunpack.c.l.b16 %v27
    %v124 = vunpack.c.l.b16 %v28
    %v125 = vunpack.c.l.b16 %v29
    %v126 = vunpack.c.l.b16 %v30
    %v127 = vunpack.c.l.b16 %v31
    %v128 = vunpack.c.l.b16 %v32
    %v129 = vunpack.c.l.b16 %v33
    %v130 = vunpack.c.l.b16 %v34
    %v131 = vunpack.c.l.b16 %v35
    %v132 = vunpack.c.l.b16 %v36
    %v133 = vunpack.c.l.b16 %v37
    %v134 = vunpack.c.l.b16 %v38
    %v135 = vunpack.c.l.b16 %v39
    %v136 = vunpack.c.l.b16 %v40
    %v137 = vunpack.c.l.b16 %v41
    %v138 = vunpack.c.l.b16 %v42
    %v139 = vunpack.c.l.b16 %v43
    %v140 = vunpack.c.l.b16 %v44
    %v141 = vunpack.c.l.b16 %v45
    %v142 = vunpack.c.l.b16 %v46
    %v143 = vunpack.c.l.b16 %v47
    %v144 = vunpack.c.l.b16 %v48
    %v145 = vpack.c.b16 %v114, %v113
    %v146 = vpack.c.b16 %v116, %v115
    %v147 = vpack.c.b16 %v118, %v117
    %v148 = vpack.c.b16 %v120, %v119
    %v149 = vpack.c.b16 %v122, %v121
    %v150 = vpack.c.b16 %v124, %v123
    %v151 = vpack.c.b16 %v126, %v125
    %v152 = vpack.c.b16 %v128, %v127
    %v153 = vpack.c.b16 %v130, %v129
    %v154 = vpack.c.b16 %v132, %v131
    %v155 = vpack.c.b16 %v134, %v133
    %v156 = vpack.c.b16 %v136, %v135
    %v157 = vpack.c.b16 %v138, %v137
    %v158 = vpack.c.b16 %v140, %v139
    %v159 = vpack.c.b16 %v142, %v141
    %v160 = vpack.c.b16 %v144, %v143
    %177 = vmatprep.subr.bf16.mxu0 0
    %178 = vmatpush1.bf16.msra.mxu0 %v145
    %179 = vmatprep.subr.bf16.mxu0 0
    %180 = vmatpush1.bf16.msra.mxu0 %v146
    %181 = vmatprep.subr.bf16.mxu0 0
    %182 = vmatpush1.bf16.msra.mxu0 %v147
    %183 = vmatprep.subr.bf16.mxu0 0
    %184 = vmatpush1.bf16.msra.mxu0 %v148
    %185 = vmatprep.subr.bf16.mxu0 0
    %186 = vmatpush1.bf16.msra.mxu0 %v149
    %187 = vmatprep.subr.bf16.mxu0 0
    %188 = vmatpush1.bf16.msra.mxu0 %v150
    %189 = vmatprep.subr.bf16.mxu0 0
    %190 = vmatpush1.bf16.msra.mxu0 %v151
    %191 = vmatprep.subr.bf16.mxu0 0
    %192 = vmatpush1.bf16.msra.mxu0 %v152
    %193 = vmatprep.subr.bf16.mxu0 0
    %194 = vmatpush1.bf16.msra.mxu0 %v153
    %195 = vmatprep.subr.bf16.mxu0 0
    %196 = vmatpush1.bf16.msra.mxu0 %v154
    %197 = vmatprep.subr.bf16.mxu0 0
    %198 = vmatpush1.bf16.msra.mxu0 %v155
    %199 = vmatprep.subr.bf16.mxu0 0
    %200 = vmatpush1.bf16.msra.mxu0 %v156
    %201 = vmatprep.subr.bf16.mxu0 0
    %202 = vmatpush1.bf16.msra.mxu0 %v157
    %203 = vmatprep.subr.bf16.mxu0 0
    %204 = vmatpush1.bf16.msra.mxu0 %v158
    %205 = vmatprep.subr.bf16.mxu0 0
    %206 = vmatpush1.bf16.msra.mxu0 %v159
    %207 = vmatprep.subr.bf16.mxu0 0
    %208 = vmatpush1.bf16.msra.mxu0 %v160
    %209 = vmatprep.mubr.bf16.mxu0 %v78
    %210 = vmatmul.mubr.bf16.gmra.mrb[0].mxu0 %v71
    %v211 = vpop.f32.mrb[0].mxu0
    %v212 = vadd.f32 %v54, %v211
    %v213 = vpop.f32.mrb[0].mxu0
    %v214 = vpop.f32.mrb[0].mxu0
    %v215 = vpop.f32.mrb[0].mxu0
    %216 = vdwg.mxu0
    %vm217 = vcmask 74752
    %218 = vst.msk [vmem:[#allocation2] sm:$0x3] %vm217, %v212
    // Predicated region
    $region14: #{forward.17} parent=1 // pred_check
      _
    $region15: #{forward.17} parent=1 // pred_check_branch
      %220 = sbr.rel (0) target = $region17
    $region16: #{forward.17} parent=1 // pred_region
      %s222 = ssub.s32 32, 32
      %223 = vsyncadd [#allocation3], %s222
      %s225 = sshll.u32 [#allocation2], 4
      %s226 = int_to_ptr.vmem [resolvable:$true] %s225
      %228 = dma.vmem_to_hbm [thread:$0]  %s226, 32, %s3, [#allocation3]
    $region17: #{forward.17} parent=1 // pred_fallthru
      _
    // Predicated region
    $region18: #{forward.17} parent=1 // pred_check
      _
    $region19: #{forward.17} parent=1 // pred_check_branch
      %230 = sbr.rel (0) target = $region21
    $region20: #{forward.17} parent=1 // pred_region
      %231 = dma.done [#allocation3], 32
    $region21: #{forward.17} parent=1 // pred_fallthru
      _
    %232 = vsyncpa [#allocation3], 1

</llo_original>
